<compile_context>
chip_gen: v7x
topology: tpu7x:2x2x1
jax: 0.10.0
libtpu: 0.0.40
codegen_flags: <defaults>
</compile_context>

<pallas_src>
import functools

import jax
import jax.numpy as jnp
from jax.experimental import pallas as pl
from jax.experimental.pallas import tpu as pltpu


# ----------------------------------------------------------------------------
# Pallas kernels
# ----------------------------------------------------------------------------
def _matmul_bias_relu_kernel(x_ref, w_ref, b_ref, o_ref):
    y = jnp.dot(x_ref[...], w_ref[...], preferred_element_type=jnp.float32)
    o_ref[...] = jnp.maximum(y + b_ref[...], 0.0).astype(o_ref.dtype)


def matmul_bias_relu(x, w, b, *, max_tm=512):
    """relu(x @ w + b): x (M, K), w (K, N), b (1, N) -> (M, N), float32.

    M (patch rows) is tiled; the grid axis is "parallel" so row blocks pipeline
    (double-buffered DMA) and shard across TensorCores on megacore parts.
    Weight/bias blocks are grid-invariant and stay VMEM-resident.
    """
    M, K = x.shape
    N = w.shape[1]
    tm = M if M <= max_tm else max_tm
    return pl.pallas_call(
        _matmul_bias_relu_kernel,
        out_shape=jax.ShapeDtypeStruct((M, N), jnp.float32),
        grid=(pl.cdiv(M, tm),),
        in_specs=[
            pl.BlockSpec((tm, K), lambda i: (i, 0)),
            pl.BlockSpec((K, N), lambda i: (0, 0)),
            pl.BlockSpec((1, N), lambda i: (0, 0)),
        ],
        out_specs=pl.BlockSpec((tm, N), lambda i: (i, 0)),
        compiler_params=pltpu.CompilerParams(
            dimension_semantics=("parallel",),
            vmem_limit_bytes=32 * 1024 * 1024,
        ),
    )(x, w, b)


def _q1_heads_kernel(flat_ref, w1_ref, b1_ref, wh_ref, bh_ref, alpha_ref, o_ref,
                     *, num_actions):
    # q = relu(flat @ W1 + b1)                                   (tm, 512)
    q = jnp.dot(flat_ref[...], w1_ref[...], preferred_element_type=jnp.float32)
    q = jnp.maximum(q + b1_ref[...], 0.0)
    # All five Q-heads as ONE MXU matmul: (tm, 512) @ (512, 5*A) -> (tm, 5*A)
    h = jnp.dot(q, wh_ref[...], preferred_element_type=jnp.float32) + bh_ref[...]
    # alpha-weighted mixture on the VPU
    alpha = alpha_ref[...]
    acc = jnp.zeros(o_ref.shape, jnp.float32)
    for i in range(5):
        acc = acc + alpha[:, i:i + 1] * h[:, i * num_actions:(i + 1) * num_actions]
    o_ref[...] = acc.astype(o_ref.dtype)


def q1_heads_fused(flat, w1, b1, wh, bh, alpha, *, max_tm=128):
    """Fused q1 (3136->512, ReLU) + 5 Q-heads + alpha mixture.

    flat (Nb, 3136), w1 (3136, 512), b1 (1, 512), wh (512, 5*A), bh (1, 5*A),
    alpha (Nb, 5) -> (Nb, A).
    """
    M, K = flat.shape
    H = w1.shape[1]
    num_actions = wh.shape[1] // 5
    tm = M if M <= max_tm else max_tm
    return pl.pallas_call(
        functools.partial(_q1_heads_kernel, num_actions=num_actions),
        out_shape=jax.ShapeDtypeStruct((M, num_actions), jnp.float32),
        grid=(pl.cdiv(M, tm),),
        in_specs=[
            pl.BlockSpec((tm, K), lambda i: (i, 0)),
            pl.BlockSpec((K, H), lambda i: (0, 0)),
            pl.BlockSpec((1, H), lambda i: (0, 0)),
            pl.BlockSpec((H, 5 * num_actions), lambda i: (0, 0)),
            pl.BlockSpec((1, 5 * num_actions), lambda i: (0, 0)),
            pl.BlockSpec((tm, 5), lambda i: (i, 0)),
        ],
        out_specs=pl.BlockSpec((tm, num_actions), lambda i: (i, 0)),
        compiler_params=pltpu.CompilerParams(
            dimension_semantics=("parallel",),
            vmem_limit_bytes=32 * 1024 * 1024,
        ),
    )(flat, w1, b1, wh, bh, alpha)


# ----------------------------------------------------------------------------
# Plain-JAX glue: NHWC im2col (VALID, stride s).  Channels stay in the minor
# (lane) dim, so there are no channel-moving relayouts between conv layers.
# ----------------------------------------------------------------------------
def im2col_nhwc(x, kh, kw, stride):
    n, h, w, c = x.shape
    ho = (h - kh) // stride + 1
    wo = (w - kw) // stride + 1
    cols = []
    for i in range(kh):
        for j in range(kw):
            cols.append(x[:, i:i + stride * ho:stride, j:j + stride * wo:stride, :])
    # (n, ho, wo, kh*kw, c): patch columns ordered (kh, kw, cin)
    p = jnp.stack(cols, axis=3)
    return p.reshape(n * ho * wo, kh * kw * c), ho, wo


def conv2d_relu(x, w_mat, b_row, *, kh, kw, stride):
    """x: (N, H, W, Cin) NHWC; w_mat: (KH*KW*Cin, Cout) rows ordered (kh, kw, cin);
    b_row: (1, Cout).  Returns NHWC (N, Ho, Wo, Cout)."""
    n = x.shape[0]
    cout = w_mat.shape[1]
    patches, ho, wo = im2col_nhwc(x, kh, kw, stride)
    y = matmul_bias_relu(patches, w_mat, b_row)
    return y.reshape(n, ho, wo, cout)   # contiguous, free


# ----------------------------------------------------------------------------
# Parameters: initialized in PyTorch layout, then converted ONCE into the
# kernel-friendly layout (NHWC patch order, q1 rows permuted to absorb the
# NCHW flatten, the 5 heads concatenated).
# ----------------------------------------------------------------------------
def _uniform(key, shape, fan_in):
    bound = 1.0 / jnp.sqrt(jnp.float32(fan_in))
    return jax.random.uniform(key, shape, jnp.float32, -bound, bound)


def init_torch_params(key, frames, num_actions):
    ks = jax.random.split(key, 18)
    p = {}
    p["c1_w"] = _uniform(ks[0], (32, frames, 8, 8), frames * 8 * 8)
    p["c1_b"] = _uniform(ks[1], (32,), frames * 8 * 8)
    p["c2_w"] = _uniform(ks[2], (64, 32, 4, 4), 32 * 4 * 4)
    p["c2_b"] = _uniform(ks[3], (64,), 32 * 4 * 4)
    p["c3_w"] = _uniform(ks[4], (64, 64, 3, 3), 64 * 3 * 3)
    p["c3_b"] = _uniform(ks[5], (64,), 64 * 3 * 3)
    p["q1_w"] = _uniform(ks[6], (512, 3136), 3136)      # nn.Linear layout (out, in)
    p["q1_b"] = _uniform(ks[7], (512,), 3136)
    for i in range(5):                                  # independent key per head W and b
        p[f"q2_{i + 1}_w"] = _uniform(ks[8 + 2 * i], (num_actions, 512), 512)
        p[f"q2_{i + 1}_b"] = _uniform(ks[9 + 2 * i], (num_actions,), 512)
    return p


def prepare_params(p):
    """PyTorch-layout params -> kernel layout (one-time, outside the forward)."""
    def conv_prep(w, b):
        cout, cin, kh, kw = w.shape
        w_mat = jnp.transpose(w, (2, 3, 1, 0)).reshape(kh * kw * cin, cout)
        return w_mat, b.reshape(1, cout)

    kp = {}
    kp["c1_w"], kp["c1_b"] = conv_prep(p["c1_w"], p["c1_b"])
    kp["c2_w"], kp["c2_b"] = conv_prep(p["c2_w"], p["c2_b"])
    kp["c3_w"], kp["c3_b"] = conv_prep(p["c3_w"], p["c3_b"])
    # PyTorch flattens conv3's NCHW output in (c, h, w) order; our NHWC flatten
    # is (h, w, c).  Permute q1's input-feature rows once -> exact same numerics.
    w1 = p["q1_w"].T                                     # (3136, 512), rows in (c, h, w) order
    perm = jnp.arange(64 * 7 * 7).reshape(64, 7, 7).transpose(1, 2, 0).reshape(-1)
    kp["q1_w"] = w1[perm, :]                             # rows now in (h, w, c) order
    kp["q1_b"] = p["q1_b"].reshape(1, -1)
    kp["qh_w"] = jnp.concatenate([p[f"q2_{i + 1}_w"].T for i in range(5)], axis=1)       # (512, 5A)
    kp["qh_b"] = jnp.concatenate([p[f"q2_{i + 1}_b"].reshape(1, -1) for i in range(5)], axis=1)  # (1, 5A)
    return kp


# ----------------------------------------------------------------------------
# Forward pass (matches Conv_Q.forward with need_ES=False)
# ----------------------------------------------------------------------------
def conv_q_forward(kp, state, alpha_key):
    """state: (N, frames, 84, 84) NCHW, exactly like the PyTorch module."""
    n = state.shape[0]
    x = jnp.transpose(state, (0, 2, 3, 1))                                # NCHW -> NHWC, once
    x = conv2d_relu(x, kp["c1_w"], kp["c1_b"], kh=8, kw=8, stride=4)      # (N, 20, 20, 32)
    x = conv2d_relu(x, kp["c2_w"], kp["c2_b"], kh=4, kw=4, stride=2)      # (N,  9,  9, 64)
    x = conv2d_relu(x, kp["c3_w"], kp["c3_b"], kh=3, kw=3, stride=1)      # (N,  7,  7, 64)
    flat = x.reshape(n, 7 * 7 * 64)                                       # free (h, w, c) flatten

    # alpha ~ U(0,1) per row, normalized  (torch.Tensor(batch,5).uniform_(0,1))
    alpha = jax.random.uniform(alpha_key, (n, 5), jnp.float32, 0.0, 1.0)
    alpha = alpha / jnp.sum(alpha, axis=1, keepdims=True)

    q2 = q1_heads_fused(flat, kp["q1_w"], kp["q1_b"], kp["qh_w"], kp["qh_b"], alpha)
    es = 0  # TODO(synk): compute_ES cosine-similarity branch (need_ES=True) not implemented
    return q2, es


# ----------------------------------------------------------------------------
# Pure-JAX reference (PyTorch layout & semantics) for a correctness check
# ----------------------------------------------------------------------------
def reference_forward(p, state, alpha):
    prec = jax.lax.Precision.HIGHEST
    dn = ("NCHW", "OIHW", "NCHW")
    c = jnp.maximum(jax.lax.conv_general_dilated(state, p["c1_w"], (4, 4), "VALID",
                                                 dimension_numbers=dn, precision=prec)
                    + p["c1_b"].reshape(1, -1, 1, 1), 0.0)
    c = jnp.maximum(jax.lax.conv_general_dilated(c, p["c2_w"], (2, 2), "VALID",
                                                 dimension_numbers=dn, precision=prec)
                    + p["c2_b"].reshape(1, -1, 1, 1), 0.0)
    c = jnp.maximum(jax.lax.conv_general_dilated(c, p["c3_w"], (1, 1), "VALID",
                                                 dimension_numbers=dn, precision=prec)
                    + p["c3_b"].reshape(1, -1, 1, 1), 0.0)
    q = jnp.maximum(jnp.dot(c.reshape(c.shape[0], -1), p["q1_w"].T, precision=prec)
                    + p["q1_b"], 0.0)
    q2 = jnp.zeros((q.shape[0], p["q2_1_w"].shape[0]), jnp.float32)
    for i in range(5):
        head = jnp.dot(q, p[f"q2_{i + 1}_w"].T, precision=prec) + p[f"q2_{i + 1}_b"]
        q2 = q2 + alpha[:, i:i + 1] * head
    return q2


if __name__ == "__main__":
    batch, frames, num_actions = 2, 4, 6
    H = W = 84   # Conv_Q hardcodes Linear(3136, 512) = 64*7*7, which requires 84x84 inputs

    key = jax.random.PRNGKey(0)
    k_param, k_state, k_alpha = jax.random.split(key, 3)

    torch_params = init_torch_params(k_param, frames, num_actions)
    kparams = prepare_params(torch_params)
    state = jax.random.uniform(k_state, (batch, frames, H, W), jnp.float32)

    fwd = jax.jit(conv_q_forward)
    q2, es = fwd(kparams, state, k_alpha)
    q2 = jax.block_until_ready(q2)
    assert q2.shape == (batch, num_actions)

    # Cross-check against a pure-JAX reference of the PyTorch forward pass
    # (same alpha stream: identical key / shape / dtype / bounds).
    alpha = jax.random.uniform(k_alpha, (batch, 5), jnp.float32, 0.0, 1.0)
    alpha = alpha / jnp.sum(alpha, axis=1, keepdims=True)
    q2_ref = reference_forward(torch_params, state, alpha)
    err = float(jnp.max(jnp.abs(q2 - q2_ref)))
    assert err < 2e-3, f"mismatch vs reference: max abs err = {err}"

    print("KERNEL_OK")
</pallas_src>

<mosaic_0001>
module attributes {stable_mosaic.version = 11 : i64} {
  func.func @_matmul_bias_relu_kernel(%arg0: i32, %arg1: memref<512x256xf32, #tpu.memory_space<vmem>>, %arg2: memref<256x32xf32, #tpu.memory_space<vmem>>, %arg3: memref<1x32xf32, #tpu.memory_space<vmem>>, %arg4: memref<512x32xf32, #tpu.memory_space<vmem>>) attributes {dimension_semantics = [#tpu.dimension_semantics<parallel>], iteration_bounds = array<i64: 2>, scalar_prefetch = 0 : i64, scratch_operands = 0 : i64, tpu.core_type = #tpu.core_type<tc>, window_params = [{transform_indices = @transform_0, window_bounds = array<i64: 512, 256>}, {pipeline_mode = #tpu.pipeline_mode<synchronous>, transform_indices = @transform_1, window_bounds = array<i64: 256, 32>}, {pipeline_mode = #tpu.pipeline_mode<synchronous>, transform_indices = @transform_2, window_bounds = array<i64: 1, 32>}, {transform_indices = @transform_3, window_bounds = array<i64: 512, 32>}]} {
    %c0 = arith.constant 0 : index
    %c0_0 = arith.constant 0 : index
    %0 = vector.load %arg1[%c0, %c0_0] : memref<512x256xf32, #tpu.memory_space<vmem>>, vector<512x256xf32>
    %c0_1 = arith.constant 0 : index
    %c0_2 = arith.constant 0 : index
    %1 = vector.load %arg2[%c0_1, %c0_2] : memref<256x32xf32, #tpu.memory_space<vmem>>, vector<256x32xf32>
    %cst = arith.constant dense<0.000000e+00> : vector<512x32xf32>
    %2 = tpu.matmul %0, %1, %cst {dimension_numbers = #tpu.dot_dimension_numbers<[1], [0], [0], [1], [0, 0, 1, 1], [], []>} : vector<512x256xf32>, vector<256x32xf32>, vector<512x32xf32> -> vector<512x32xf32>
    %c0_3 = arith.constant 0 : index
    %c0_4 = arith.constant 0 : index
    %3 = vector.load %arg3[%c0_3, %c0_4] : memref<1x32xf32, #tpu.memory_space<vmem>>, vector<1x32xf32>
    %4 = vector.broadcast %3 : vector<1x32xf32> to vector<512x32xf32>
    %5 = arith.addf %2, %4 : vector<512x32xf32>
    %cst_5 = arith.constant 0.000000e+00 : f32
    %6 = vector.broadcast %cst_5 : f32 to vector<512x32xf32>
    %7 = arith.maximumf %5, %6 : vector<512x32xf32>
    %c0_6 = arith.constant 0 : index
    %c0_7 = arith.constant 0 : index
    %8 = vector.load %arg4[%c0_6, %c0_7] : memref<512x32xf32, #tpu.memory_space<vmem>>, vector<512x32xf32>
    tpu.vector_store %arg4[%c0_6, %c0_7], %7 {strides = array<i32>} : memref<512x32xf32, #tpu.memory_space<vmem>>, vector<512x32xf32>,
    return
  }
  func.func @transform_0(%arg0: i32) -> (i32, i32) {
    %c0_i32 = arith.constant 0 : i32
    %c0_i32_0 = arith.constant 0 : i32
    return %arg0, %c0_i32 : i32, i32
  }
  func.func @transform_1(%arg0: i32) -> (i32, i32) {
    %c0_i32 = arith.constant 0 : i32
    %c0_i32_0 = arith.constant 0 : i32
    %c0_i32_1 = arith.constant 0 : i32
    return %c0_i32, %c0_i32_0 : i32, i32
  }
  func.func @transform_2(%arg0: i32) -> (i32, i32) {
    %c0_i32 = arith.constant 0 : i32
    %c0_i32_0 = arith.constant 0 : i32
    %c0_i32_1 = arith.constant 0 : i32
    return %c0_i32, %c0_i32_0 : i32, i32
  }
  func.func @transform_3(%arg0: i32) -> (i32, i32) {
    %c0_i32 = arith.constant 0 : i32
    %c0_i32_0 = arith.constant 0 : i32
    return %arg0, %c0_i32 : i32, i32
  }
}

module attributes {stable_mosaic.version = 11 : i64} {
  func.func @_matmul_bias_relu_kernel(%arg0: i32, %arg1: memref<162x512xf32, #tpu.memory_space<vmem>>, %arg2: memref<512x64xf32, #tpu.memory_space<vmem>>, %arg3: memref<1x64xf32, #tpu.memory_space<vmem>>, %arg4: memref<162x64xf32, #tpu.memory_space<vmem>>) attributes {dimension_semantics = [#tpu.dimension_semantics<parallel>], iteration_bounds = array<i64: 1>, scalar_prefetch = 0 : i64, scratch_operands = 0 : i64, tpu.core_type = #tpu.core_type<tc>, window_params = [{transform_indices = @transform_0, window_bounds = array<i64: 162, 512>}, {pipeline_mode = #tpu.pipeline_mode<synchronous>, transform_indices = @transform_1, window_bounds = array<i64: 512, 64>}, {pipeline_mode = #tpu.pipeline_mode<synchronous>, transform_indices = @transform_2, window_bounds = array<i64: 1, 64>}, {transform_indices = @transform_3, window_bounds = array<i64: 162, 64>}]} {
    %c0 = arith.constant 0 : index
    %c0_0 = arith.constant 0 : index
    %0 = vector.load %arg1[%c0, %c0_0] : memref<162x512xf32, #tpu.memory_space<vmem>>, vector<162x512xf32>
    %c0_1 = arith.constant 0 : index
    %c0_2 = arith.constant 0 : index
    %1 = vector.load %arg2[%c0_1, %c0_2] : memref<512x64xf32, #tpu.memory_space<vmem>>, vector<512x64xf32>
    %cst = arith.constant dense<0.000000e+00> : vector<162x64xf32>
    %2 = tpu.matmul %0, %1, %cst {dimension_numbers = #tpu.dot_dimension_numbers<[1], [0], [0], [1], [0, 0, 1, 1], [], []>} : vector<162x512xf32>, vector<512x64xf32>, vector<162x64xf32> -> vector<162x64xf32>
    %c0_3 = arith.constant 0 : index
    %c0_4 = arith.constant 0 : index
    %3 = vector.load %arg3[%c0_3, %c0_4] : memref<1x64xf32, #tpu.memory_space<vmem>>, vector<1x64xf32>
    %4 = vector.broadcast %3 : vector<1x64xf32> to vector<162x64xf32>
    %5 = arith.addf %2, %4 : vector<162x64xf32>
    %cst_5 = arith.constant 0.000000e+00 : f32
    %6 = vector.broadcast %cst_5 : f32 to vector<162x64xf32>
    %7 = arith.maximumf %5, %6 : vector<162x64xf32>
    %c0_6 = arith.constant 0 : index
    %c0_7 = arith.constant 0 : index
    %8 = vector.load %arg4[%c0_6, %c0_7] : memref<162x64xf32, #tpu.memory_space<vmem>>, vector<162x64xf32>
    tpu.vector_store %arg4[%c0_6, %c0_7], %7 {strides = array<i32>} : memref<162x64xf32, #tpu.memory_space<vmem>>, vector<162x64xf32>,
    return
  }
  func.func @transform_0(%arg0: i32) -> (i32, i32) {
    %c0_i32 = arith.constant 0 : i32
    %c0_i32_0 = arith.constant 0 : i32
    return %arg0, %c0_i32 : i32, i32
  }
  func.func @transform_1(%arg0: i32) -> (i32, i32) {
    %c0_i32 = arith.constant 0 : i32
    %c0_i32_0 = arith.constant 0 : i32
    %c0_i32_1 = arith.constant 0 : i32
    return %c0_i32, %c0_i32_0 : i32, i32
  }
  func.func @transform_2(%arg0: i32) -> (i32, i32) {
    %c0_i32 = arith.constant 0 : i32
    %c0_i32_0 = arith.constant 0 : i32
    %c0_i32_1 = arith.constant 0 : i32
    return %c0_i32, %c0_i32_0 : i32, i32
  }
  func.func @transform_3(%arg0: i32) -> (i32, i32) {
    %c0_i32 = arith.constant 0 : i32
    %c0_i32_0 = arith.constant 0 : i32
    return %arg0, %c0_i32 : i32, i32
  }
}

module attributes {stable_mosaic.version = 11 : i64} {
  func.func @_matmul_bias_relu_kernel(%arg0: i32, %arg1: memref<98x576xf32, #tpu.memory_space<vmem>>, %arg2: memref<576x64xf32, #tpu.memory_space<vmem>>, %arg3: memref<1x64xf32, #tpu.memory_space<vmem>>, %arg4: memref<98x64xf32, #tpu.memory_space<vmem>>) attributes {dimension_semantics = [#tpu.dimension_semantics<parallel>], iteration_bounds = array<i64: 1>, scalar_prefetch = 0 : i64, scratch_operands = 0 : i64, tpu.core_type = #tpu.core_type<tc>, window_params = [{transform_indices = @transform_0, window_bounds = array<i64: 98, 576>}, {pipeline_mode = #tpu.pipeline_mode<synchronous>, transform_indices = @transform_1, window_bounds = array<i64: 576, 64>}, {pipeline_mode = #tpu.pipeline_mode<synchronous>, transform_indices = @transform_2, window_bounds = array<i64: 1, 64>}, {transform_indices = @transform_3, window_bounds = array<i64: 98, 64>}]} {
    %c0 = arith.constant 0 : index
    %c0_0 = arith.constant 0 : index
    %0 = vector.load %arg1[%c0, %c0_0] : memref<98x576xf32, #tpu.memory_space<vmem>>, vector<98x576xf32>
    %c0_1 = arith.constant 0 : index
    %c0_2 = arith.constant 0 : index
    %1 = vector.load %arg2[%c0_1, %c0_2] : memref<576x64xf32, #tpu.memory_space<vmem>>, vector<576x64xf32>
    %cst = arith.constant dense<0.000000e+00> : vector<98x64xf32>
    %2 = tpu.matmul %0, %1, %cst {dimension_numbers = #tpu.dot_dimension_numbers<[1], [0], [0], [1], [0, 0, 1, 1], [], []>} : vector<98x576xf32>, vector<576x64xf32>, vector<98x64xf32> -> vector<98x64xf32>
    %c0_3 = arith.constant 0 : index
    %c0_4 = arith.constant 0 : index
    %3 = vector.load %arg3[%c0_3, %c0_4] : memref<1x64xf32, #tpu.memory_space<vmem>>, vector<1x64xf32>
    %4 = vector.broadcast %3 : vector<1x64xf32> to vector<98x64xf32>
    %5 = arith.addf %2, %4 : vector<98x64xf32>
    %cst_5 = arith.constant 0.000000e+00 : f32
    %6 = vector.broadcast %cst_5 : f32 to vector<98x64xf32>
    %7 = arith.maximumf %5, %6 : vector<98x64xf32>
    %c0_6 = arith.constant 0 : index
    %c0_7 = arith.constant 0 : index
    %8 = vector.load %arg4[%c0_6, %c0_7] : memref<98x64xf32, #tpu.memory_space<vmem>>, vector<98x64xf32>
    tpu.vector_store %arg4[%c0_6, %c0_7], %7 {strides = array<i32>} : memref<98x64xf32, #tpu.memory_space<vmem>>, vector<98x64xf32>,
    return
  }
  func.func @transform_0(%arg0: i32) -> (i32, i32) {
    %c0_i32 = arith.constant 0 : i32
    %c0_i32_0 = arith.constant 0 : i32
    return %arg0, %c0_i32 : i32, i32
  }
  func.func @transform_1(%arg0: i32) -> (i32, i32) {
    %c0_i32 = arith.constant 0 : i32
    %c0_i32_0 = arith.constant 0 : i32
    %c0_i32_1 = arith.constant 0 : i32
    return %c0_i32, %c0_i32_0 : i32, i32
  }
  func.func @transform_2(%arg0: i32) -> (i32, i32) {
    %c0_i32 = arith.constant 0 : i32
    %c0_i32_0 = arith.constant 0 : i32
    %c0_i32_1 = arith.constant 0 : i32
    return %c0_i32, %c0_i32_0 : i32, i32
  }
  func.func @transform_3(%arg0: i32) -> (i32, i32) {
    %c0_i32 = arith.constant 0 : i32
    %c0_i32_0 = arith.constant 0 : i32
    return %arg0, %c0_i32 : i32, i32
  }
}

module attributes {stable_mosaic.version = 11 : i64} {
  func.func @_q1_heads_kernel(%arg0: i32, %arg1: memref<2x3136xf32, #tpu.memory_space<vmem>>, %arg2: memref<3136x512xf32, #tpu.memory_space<vmem>>, %arg3: memref<1x512xf32, #tpu.memory_space<vmem>>, %arg4: memref<512x30xf32, #tpu.memory_space<vmem>>, %arg5: memref<1x30xf32, #tpu.memory_space<vmem>>, %arg6: memref<2x5xf32, #tpu.memory_space<vmem>>, %arg7: memref<2x6xf32, #tpu.memory_space<vmem>>) attributes {dimension_semantics = [#tpu.dimension_semantics<parallel>], iteration_bounds = array<i64: 1>, scalar_prefetch = 0 : i64, scratch_operands = 0 : i64, tpu.core_type = #tpu.core_type<tc>, window_params = [{transform_indices = @transform_0, window_bounds = array<i64: 2, 3136>}, {pipeline_mode = #tpu.pipeline_mode<synchronous>, transform_indices = @transform_1, window_bounds = array<i64: 3136, 512>}, {pipeline_mode = #tpu.pipeline_mode<synchronous>, transform_indices = @transform_2, window_bounds = array<i64: 1, 512>}, {pipeline_mode = #tpu.pipeline_mode<synchronous>, transform_indices = @transform_3, window_bounds = array<i64: 512, 30>}, {pipeline_mode = #tpu.pipeline_mode<synchronous>, transform_indices = @transform_4, window_bounds = array<i64: 1, 30>}, {transform_indices = @transform_5, window_bounds = array<i64: 2, 5>}, {transform_indices = @transform_6, window_bounds = array<i64: 2, 6>}]} {
    %c0 = arith.constant 0 : index
    %c0_0 = arith.constant 0 : index
    %0 = vector.load %arg1[%c0, %c0_0] : memref<2x3136xf32, #tpu.memory_space<vmem>>, vector<2x3136xf32>
    %c0_1 = arith.constant 0 : index
    %c0_2 = arith.constant 0 : index
    %1 = vector.load %arg2[%c0_1, %c0_2] : memref<3136x512xf32, #tpu.memory_space<vmem>>, vector<3136x512xf32>
    %cst = arith.constant dense<0.000000e+00> : vector<2x512xf32>
    %2 = tpu.matmul %0, %1, %cst {dimension_numbers = #tpu.dot_dimension_numbers<[1], [0], [0], [1], [0, 0, 1, 1], [], []>} : vector<2x3136xf32>, vector<3136x512xf32>, vector<2x512xf32> -> vector<2x512xf32>
    %c0_3 = arith.constant 0 : index
    %c0_4 = arith.constant 0 : index
    %3 = vector.load %arg3[%c0_3, %c0_4] : memref<1x512xf32, #tpu.memory_space<vmem>>, vector<1x512xf32>
    %4 = vector.broadcast %3 : vector<1x512xf32> to vector<2x512xf32>
    %5 = arith.addf %2, %4 : vector<2x512xf32>
    %cst_5 = arith.constant 0.000000e+00 : f32
    %6 = vector.broadcast %cst_5 : f32 to vector<2x512xf32>
    %7 = arith.maximumf %5, %6 : vector<2x512xf32>
    %c0_6 = arith.constant 0 : index
    %c0_7 = arith.constant 0 : index
    %8 = vector.load %arg4[%c0_6, %c0_7] : memref<512x30xf32, #tpu.memory_space<vmem>>, vector<512x30xf32>
    %cst_8 = arith.constant dense<0.000000e+00> : vector<2x30xf32>
    %9 = tpu.matmul %7, %8, %cst_8 {dimension_numbers = #tpu.dot_dimension_numbers<[1], [0], [0], [1], [0, 0, 1, 1], [], []>} : vector<2x512xf32>, vector<512x30xf32>, vector<2x30xf32> -> vector<2x30xf32>
    %c0_9 = arith.constant 0 : index
    %c0_10 = arith.constant 0 : index
    %10 = vector.load %arg5[%c0_9, %c0_10] : memref<1x30xf32, #tpu.memory_space<vmem>>, vector<1x30xf32>
    %11 = vector.broadcast %10 : vector<1x30xf32> to vector<2x30xf32>
    %12 = arith.addf %9, %11 : vector<2x30xf32>
    %c0_11 = arith.constant 0 : index
    %c0_12 = arith.constant 0 : index
    %13 = vector.load %arg6[%c0_11, %c0_12] : memref<2x5xf32, #tpu.memory_space<vmem>>, vector<2x5xf32>
    %cst_13 = arith.constant 0.000000e+00 : f32
    %14 = vector.broadcast %cst_13 : f32 to vector<2x6xf32>
    %15 = vector.extract_strided_slice %13 {offsets = [0, 0], sizes = [2, 1], strides = [1, 1]} : vector<2x5xf32> to vector<2x1xf32>
    %16 = vector.extract_strided_slice %12 {offsets = [0, 0], sizes = [2, 6], strides = [1, 1]} : vector<2x30xf32> to vector<2x6xf32>
    %17 = vector.broadcast %15 : vector<2x1xf32> to vector<2x6xf32>
    %18 = arith.mulf %17, %16 : vector<2x6xf32>
    %19 = arith.addf %14, %18 : vector<2x6xf32>
    %20 = vector.extract_strided_slice %13 {offsets = [0, 1], sizes = [2, 1], strides = [1, 1]} : vector<2x5xf32> to vector<2x1xf32>
    %21 = vector.extract_strided_slice %12 {offsets = [0, 6], sizes = [2, 6], strides = [1, 1]} : vector<2x30xf32> to vector<2x6xf32>
    %22 = vector.broadcast %20 : vector<2x1xf32> to vector<2x6xf32>
    %23 = arith.mulf %22, %21 : vector<2x6xf32>
    %24 = arith.addf %19, %23 : vector<2x6xf32>
    %25 = vector.extract_strided_slice %13 {offsets = [0, 2], sizes = [2, 1], strides = [1, 1]} : vector<2x5xf32> to vector<2x1xf32>
    %26 = vector.extract_strided_slice %12 {offsets = [0, 12], sizes = [2, 6], strides = [1, 1]} : vector<2x30xf32> to vector<2x6xf32>
    %27 = vector.broadcast %25 : vector<2x1xf32> to vector<2x6xf32>
    %28 = arith.mulf %27, %26 : vector<2x6xf32>
    %29 = arith.addf %24, %28 : vector<2x6xf32>
    %30 = vector.extract_strided_slice %13 {offsets = [0, 3], sizes = [2, 1], strides = [1, 1]} : vector<2x5xf32> to vector<2x1xf32>
    %31 = vector.extract_strided_slice %12 {offsets = [0, 18], sizes = [2, 6], strides = [1, 1]} : vector<2x30xf32> to vector<2x6xf32>
    %32 = vector.broadcast %30 : vector<2x1xf32> to vector<2x6xf32>
    %33 = arith.mulf %32, %31 : vector<2x6xf32>
    %34 = arith.addf %29, %33 : vector<2x6xf32>
    %35 = vector.extract_strided_slice %13 {offsets = [0, 4], sizes = [2, 1], strides = [1, 1]} : vector<2x5xf32> to vector<2x1xf32>
    %36 = vector.extract_strided_slice %12 {offsets = [0, 24], sizes = [2, 6], strides = [1, 1]} : vector<2x30xf32> to vector<2x6xf32>
    %37 = vector.broadcast %35 : vector<2x1xf32> to vector<2x6xf32>
    %38 = arith.mulf %37, %36 : vector<2x6xf32>
    %39 = arith.addf %34, %38 : vector<2x6xf32>
    %c0_14 = arith.constant 0 : index
    %c0_15 = arith.constant 0 : index
    %40 = vector.load %arg7[%c0_14, %c0_15] : memref<2x6xf32, #tpu.memory_space<vmem>>, vector<2x6xf32>
    tpu.vector_store %arg7[%c0_14, %c0_15], %39 {strides = array<i32>} : memref<2x6xf32, #tpu.memory_space<vmem>>, vector<2x6xf32>,
    return
  }
  func.func @transform_0(%arg0: i32) -> (i32, i32) {
    %c0_i32 = arith.constant 0 : i32
    %c0_i32_0 = arith.constant 0 : i32
    return %arg0, %c0_i32 : i32, i32
  }
  func.func @transform_1(%arg0: i32) -> (i32, i32) {
    %c0_i32 = arith.constant 0 : i32
    %c0_i32_0 = arith.constant 0 : i32
    %c0_i32_1 = arith.constant 0 : i32
    return %c0_i32, %c0_i32_0 : i32, i32
  }
  func.func @transform_2(%arg0: i32) -> (i32, i32) {
    %c0_i32 = arith.constant 0 : i32
    %c0_i32_0 = arith.constant 0 : i32
    %c0_i32_1 = arith.constant 0 : i32
    return %c0_i32, %c0_i32_0 : i32, i32
  }
  func.func @transform_3(%arg0: i32) -> (i32, i32) {
    %c0_i32 = arith.constant 0 : i32
    %c0_i32_0 = arith.constant 0 : i32
    %c0_i32_1 = arith.constant 0 : i32
    return %c0_i32, %c0_i32_0 : i32, i32
  }
  func.func @transform_4(%arg0: i32) -> (i32, i32) {
    %c0_i32 = arith.constant 0 : i32
    %c0_i32_0 = arith.constant 0 : i32
    %c0_i32_1 = arith.constant 0 : i32
    return %c0_i32, %c0_i32_0 : i32, i32
  }
  func.func @transform_5(%arg0: i32) -> (i32, i32) {
    %c0_i32 = arith.constant 0 : i32
    %c0_i32_0 = arith.constant 0 : i32
    return %arg0, %c0_i32 : i32, i32
  }
  func.func @transform_6(%arg0: i32) -> (i32, i32) {
    %c0_i32 = arith.constant 0 : i32
    %c0_i32_0 = arith.constant 0 : i32
    return %arg0, %c0_i32 : i32, i32
  }
}

</mosaic_0001>

<llo_original>
// kernel: conv_q_forward.4
$region0: #{conv_q_forward.4}
  #allocation0 [shape = 'u32[]', space=smem, size = 0x4, offset = 0x4, fixed_abs, tag = 'smem constant byte address 0x4 - core index']
  #allocation1 [shape = 'u32[144,128]{1,0:T(1,128)}', space=vmem, size = 0x12000, scoped, tag = 'internal scratch']
  %s0 = inlined_call_operand.vmem [shape: f32[800,256], index: 0, kind: input, shape index: {}]
  %s1 = inlined_call_operand.vmem [shape: f32[256,32], index: 1, kind: input, shape index: {}]
  %s2 = inlined_call_operand.vmem [shape: f32[1,32], index: 2, kind: input, shape index: {}]
  %s3 = inlined_call_operand.vmem [shape: f32[800,32], index: 3, kind: output, shape index: {}]
  %s4 = sld [smem:[#allocation0]]
  $region93: #{conv_q_forward.4} parent=0
    _
  %s6 = ssub.s32 1, %s4
  %s7 = scalar_select 0, %s6, %s4
  $region1: #{conv_q_forward.4} parent=0
    #allocation2 [shape = 'u8[524288]{0}', space=vmem, size = 0x80000, scoped, tag = 'output window, operand 0']
    loop: start=0, step=1, limit=4
    $region2: #{conv_q_forward.4} parent=1 // loop_pre_header
      _
    $region3: #{conv_q_forward.4} parent=1 // loop_header
      %s9 = sphi 0, %s13
      %p10 = scmp.ge.s32.totalorder %s9, 4
      %s19 = sphi 0, %s21
      %s22 = sphi 0, %s19
      %s23 = sphi 0, %s22
      %s39 = sphi 0, %s23
      %s43 = sphi 0, %s43
      %s45 = sphi 0, %s43
      %s46 = sphi 0, %s45
      %s60 = sphi 0, %s46
      %s64 = sphi 0, %s64
      %s66 = sphi 0, %s64
      %s67 = sphi 0, %s66
      %s81 = sphi 0, %s67
      %s87 = sphi 0, %s89
      %s90 = sphi 0, %s87
      %s91 = sphi 0, %s90
      %s107 = sphi 0, %s91
    $region4: #{conv_q_forward.4} parent=1 // loop_header_branch
      %12 = sbr.rel (%p10) target = $region8
    $region5: #{conv_q_forward.4} parent=1 // loop_body
      %s14 = ssub.s32 %s9, 1
      %s15 = ssub.s32 %s9, 2
      %s16 = sadd.s32 %s9, 1
      %s17 = ssub.s32 %s9, %s16
      %p18 = scmp.eq.s32.totalorder %s17, 0
      %s20 = sadd.s32 %s19, 1
      %s21 = scalar_select %p18, %s19, %s20
      %p24 = pneg %p18
      %p25 = scmp.eq.s32.totalorder %s9, 1
      %p26 = por %p24, %p25
      %p27 = scmp.ne.s32.totalorder %s19, %s22
      %p28 = scmp.eq.s32.totalorder %s9, 0
      %p29 = por %p27, %p28
      %p30 = scmp.ne.s32.totalorder %s19, %s22
      %p31 = scmp.eq.s32.totalorder %s14, 1
      %p32 = por %p30, %p31
      %p33 = scmp.ne.s32.totalorder %s22, %s23
      %p34 = scmp.eq.s32.totalorder %s14, 0
      %p35 = por %p33, %p34
      %p36 = scmp.ne.s32.totalorder %s22, %s23
      %p37 = scmp.eq.s32.totalorder %s15, 1
      %p38 = por %p36, %p37
      %p40 = scmp.ne.s32.totalorder %s23, %s39
      %p41 = scmp.eq.s32.totalorder %s15, 0
      %p42 = por %p40, %p41
      %s44 = sadd.s32 %s43, 1
      %p47 = scmp.eq.s32.totalorder %s9, 1
      %p48 = scmp.ne.s32.totalorder %s43, %s45
      %p49 = scmp.eq.s32.totalorder %s9, 0
      %p50 = por %p48, %p49
      %p51 = scmp.ne.s32.totalorder %s43, %s45
      %p52 = scmp.eq.s32.totalorder %s14, 1
      %p53 = por %p51, %p52
      %p54 = scmp.ne.s32.totalorder %s45, %s46
      %p55 = scmp.eq.s32.totalorder %s14, 0
      %p56 = por %p54, %p55
      %p57 = scmp.ne.s32.totalorder %s45, %s46
      %p58 = scmp.eq.s32.totalorder %s15, 1
      %p59 = por %p57, %p58
      %p61 = scmp.ne.s32.totalorder %s46, %s60
      %p62 = scmp.eq.s32.totalorder %s15, 0
      %p63 = por %p61, %p62
      %s65 = sadd.s32 %s64, 1
      %p68 = scmp.eq.s32.totalorder %s9, 1
      %p69 = scmp.ne.s32.totalorder %s64, %s66
      %p70 = scmp.eq.s32.totalorder %s9, 0
      %p71 = por %p69, %p70
      %p72 = scmp.ne.s32.totalorder %s64, %s66
      %p73 = scmp.eq.s32.totalorder %s14, 1
      %p74 = por %p72, %p73
      %p75 = scmp.ne.s32.totalorder %s66, %s67
      %p76 = scmp.eq.s32.totalorder %s14, 0
      %p77 = por %p75, %p76
      %p78 = scmp.ne.s32.totalorder %s66, %s67
      %p79 = scmp.eq.s32.totalorder %s15, 1
      %p80 = por %p78, %p79
      %p82 = scmp.ne.s32.totalorder %s67, %s81
      %p83 = scmp.eq.s32.totalorder %s15, 0
      %p84 = por %p82, %p83
      %s85 = ssub.s32 %s9, %s16
      %p86 = scmp.eq.s32.totalorder %s85, 0
      %s88 = sadd.s32 %s87, 1
      %s89 = scalar_select %p86, %s87, %s88
      %p92 = pneg %p86
      %p93 = scmp.eq.s32.totalorder %s9, 1
      %p94 = por %p92, %p93
      %p95 = scmp.ne.s32.totalorder %s87, %s90
      %p96 = scmp.eq.s32.totalorder %s9, 0
      %p97 = por %p95, %p96
      %p98 = scmp.ne.s32.totalorder %s87, %s90
      %p99 = scmp.eq.s32.totalorder %s14, 1
      %p100 = por %p98, %p99
      %p101 = scmp.ne.s32.totalorder %s90, %s91
      %p102 = scmp.eq.s32.totalorder %s14, 0
      %p103 = por %p101, %p102
      %p104 = scmp.ne.s32.totalorder %s90, %s91
      %p105 = scmp.eq.s32.totalorder %s15, 1
      %p106 = por %p104, %p105
      %p108 = scmp.ne.s32.totalorder %s91, %s107
      %p109 = scmp.eq.s32.totalorder %s15, 0
      %p110 = por %p108, %p109
      %p111 = scmp.le.s32.totalorder 1, %s9
      %p112 = scmp.lt.s32.totalorder %s9, 3
      %p113 = pnand %p111, %p112
      %p114 = pneg %p113
      // Predicated region
      $region9: #{conv_q_forward.4} parent=5 // pred_check
        _
      $region10: #{conv_q_forward.4} parent=5 // pred_check_branch
        %116 = sbr.rel (%p113) target = $region12
      $region11: #{conv_q_forward.4} parent=5 // pred_region
        %s117 = ssub.s32 %s9, 1
        // Predicated region
        $region13: #{conv_q_forward.4} parent=11 // pred_check
          %p118 = pneg %p56
        $region14: #{conv_q_forward.4} parent=11 // pred_check_branch
          %120 = sbr.rel (%p118) target = $region16
        $region15: #{conv_q_forward.4} parent=11 // pred_region
          _
        $region16: #{conv_q_forward.4} parent=11 // pred_fallthru
          _
        // Predicated region
        $region17: #{conv_q_forward.4} parent=11 // pred_check
          %p121 = pneg %p77
        $region18: #{conv_q_forward.4} parent=11 // pred_check_branch
          %123 = sbr.rel (%p121) target = $region20
        $region19: #{conv_q_forward.4} parent=11 // pred_region
          _
        $region20: #{conv_q_forward.4} parent=11 // pred_fallthru
          _
      $region12: #{conv_q_forward.4} parent=5 // pred_fallthru
        _
      %p124 = scmp.lt.s32.totalorder %s9, 2
      // Predicated region
      $region21: #{conv_q_forward.4} parent=5 // pred_check
        %p125 = pneg %p124
      $region22: #{conv_q_forward.4} parent=5 // pred_check_branch
        %127 = sbr.rel (%p125) target = $region24
      $region23: #{conv_q_forward.4} parent=5 // pred_region
        // Predicated region
        $region25: #{conv_q_forward.4} parent=23 // pred_check
          %p128 = pneg %p29
        $region26: #{conv_q_forward.4} parent=23 // pred_check_branch
          %130 = sbr.rel (%p128) target = $region28
        $region27: #{conv_q_forward.4} parent=23 // pred_region
          %s131 = smul.u32 64, %s9
          %s132 = ssub.s32 100, %s131
          %p133 = scmp.lt.s32.totalorder %s132, 64
          %s134 = scalar_select %p133, %s132, 64
          %s135 = smul.u32 128, %s134
          %s136 = smul.u32 %s135, 2
          %p137 = scmp.lt.s32.totalorder %s131, 99
          %s138 = scalar_select %p137, %s131, 99
          %s139 = smul.addr %s138, 2
          %s140 = smul.addr %s139, 8
          %s141 = scalar_lea.vmem %s0, %s140
          %s142 = smul.u32 64, %s9
          %s143 = ssub.s32 100, %s142
          %p144 = scmp.lt.s32.totalorder %s143, 64
          %s145 = scalar_select %p144, %s143, 64
          %s146 = smul.u32 128, %s145
          %s147 = smul.u32 %s146, 2
        $region28: #{conv_q_forward.4} parent=23 // pred_fallthru
          _
      $region24: #{conv_q_forward.4} parent=5 // pred_fallthru
        _
      %p148 = scmp.le.s32.totalorder 1, %s9
      %p149 = scmp.lt.s32.totalorder %s9, 3
      %p150 = pnand %p148, %p149
      %p151 = pneg %p150
      // Predicated region
      $region29: #{conv_q_forward.4} parent=5 // pred_check
        _
      $region30: #{conv_q_forward.4} parent=5 // pred_check_branch
        %153 = sbr.rel (%p150) target = $region32
      $region31: #{conv_q_forward.4} parent=5 // pred_region
        %s154 = ssub.s32 %s9, 1
        %s155 = smul.u32 64, %s14
        %s156 = ssub.s32 100, %s155
        %p157 = scmp.lt.s32.totalorder %s156, 64
        %s158 = scalar_select %p157, %s156, 64
        %s159 = smul.u32 128, %s158
        %s160 = smul.u32 %s159, 2
        %p161 = scmp.lt.s32.totalorder %s155, 99
        %s162 = scalar_select %p161, %s155, 99
        %s163 = smul.addr %s162, 2
        %s164 = smul.addr %s163, 8
        %s165 = scalar_lea.vmem %s0, %s164
        %p166 = pneg %p35
        %p167 = pneg %p32
        %p168 = pneg %p56
        %p169 = pneg %p53
        %p170 = pneg %p77
        %p171 = pneg %p74
        %p172 = pneg %p103
        %p173 = pneg %p100
        %s174 = sand.u32 %s90, 1
        %s175 = sand.u32 %s90, 1
        %s176 = smul.addr %s175, 512
        %s177 = scalar_lea.vmem [#allocation2], %s176
        %s178 = smul.u32 64, %s14
        %s179 = ssub.s32 100, %s178
        %p180 = scmp.lt.s32.totalorder %s179, 64
        %s181 = scalar_select %p180, %s179, 64
        %s182 = smul.u32 128, %s181
        %s183 = smul.u32 %s182, 2
        %p184 = scmp.lt.s32.totalorder %s178, 99
        %s185 = scalar_select %p184, %s178, 99
        %s186 = smul.addr %s185, 2
        %s187 = smul.addr %s186, 8
        %s188 = scalar_lea.vmem %s0, %s187
        %s189 = smul.u32 64, %s14
        %s190 = ssub.s32 100, %s189
        %p191 = scmp.lt.s32.totalorder %s190, 64
        %s192 = scalar_select %p191, %s190, 64
        %s193 = smul.u32 128, %s192
        %s194 = smul.u32 %s193, 2
        %s195 = smul.u32 64, %s14
        %s196 = ssub.s32 100, %s195
        %p197 = scmp.lt.s32.totalorder %s196, 64
        %s198 = scalar_select %p197, %s196, 64
        %s199 = smul.u32 128, %s198
        %v200 = vld [vmem:[%s188] sm:$0xff]
        %v201 = vld [vmem:[%s188 + $0x8] sm:$0xff]
        %v202 = vld [vmem:[%s188 + $0x10] sm:$0xff]
        %v203 = vld [vmem:[%s188 + $0x18] sm:$0xff]
        %v204 = vld [vmem:[%s188 + $0x20] sm:$0xff]
        %v205 = vld [vmem:[%s188 + $0x28] sm:$0xff]
        %v206 = vld [vmem:[%s188 + $0x30] sm:$0xff]
        %v207 = vld [vmem:[%s188 + $0x38] sm:$0xff]
        %v208 = vld [vmem:[%s188 + $0x40] sm:$0xff]
        %v209 = vld [vmem:[%s188 + $0x48] sm:$0xff]
        %v210 = vld [vmem:[%s188 + $0x50] sm:$0xff]
        %v211 = vld [vmem:[%s188 + $0x58] sm:$0xff]
        %v212 = vld [vmem:[%s188 + $0x60] sm:$0xff]
        %v213 = vld [vmem:[%s188 + $0x68] sm:$0xff]
        %v214 = vld [vmem:[%s188 + $0x70] sm:$0xff]
        %v215 = vld [vmem:[%s188 + $0x78] sm:$0xff]
        %v216 = vld [vmem:[%s188 + $0x80] sm:$0xff]
        %v217 = vld [vmem:[%s188 + $0x88] sm:$0xff]
        %v218 = vld [vmem:[%s188 + $0x90] sm:$0xff]
        %v219 = vld [vmem:[%s188 + $0x98] sm:$0xff]
        %v220 = vld [vmem:[%s188 + $0xa0] sm:$0xff]
        %v221 = vld [vmem:[%s188 + $0xa8] sm:$0xff]
        %v222 = vld [vmem:[%s188 + $0xb0] sm:$0xff]
        %v223 = vld [vmem:[%s188 + $0xb8] sm:$0xff]
        %v224 = vld [vmem:[%s188 + $0xc0] sm:$0xff]
        %v225 = vld [vmem:[%s188 + $0xc8] sm:$0xff]
        %v226 = vld [vmem:[%s188 + $0xd0] sm:$0xff]
        %v227 = vld [vmem:[%s188 + $0xd8] sm:$0xff]
        %v228 = vld [vmem:[%s188 + $0xe0] sm:$0xff]
        %v229 = vld [vmem:[%s188 + $0xe8] sm:$0xff]
        %v230 = vld [vmem:[%s188 + $0xf0] sm:$0xff]
        %v231 = vld [vmem:[%s188 + $0xf8] sm:$0xff]
        %v232 = vld [vmem:[%s188 + $0x100] sm:$0xff]
        %v233 = vld [vmem:[%s188 + $0x108] sm:$0xff]
        %v234 = vld [vmem:[%s188 + $0x110] sm:$0xff]
        %v235 = vld [vmem:[%s188 + $0x118] sm:$0xff]
        %v236 = vld [vmem:[%s188 + $0x120] sm:$0xff]
        %v237 = vld [vmem:[%s188 + $0x128] sm:$0xff]
        %v238 = vld [vmem:[%s188 + $0x130] sm:$0xff]
        %v239 = vld [vmem:[%s188 + $0x138] sm:$0xff]
        %v240 = vld [vmem:[%s188 + $0x140] sm:$0xff]
        %v241 = vld [vmem:[%s188 + $0x148] sm:$0xff]
        %v242 = vld [vmem:[%s188 + $0x150] sm:$0xff]
        %v243 = vld [vmem:[%s188 + $0x158] sm:$0xff]
        %v244 = vld [vmem:[%s188 + $0x160] sm:$0xff]
        %v245 = vld [vmem:[%s188 + $0x168] sm:$0xff]
        %v246 = vld [vmem:[%s188 + $0x170] sm:$0xff]
        %v247 = vld [vmem:[%s188 + $0x178] sm:$0xff]
        %v248 = vld [vmem:[%s188 + $0x180] sm:$0xff]
        %v249 = vld [vmem:[%s188 + $0x188] sm:$0xff]
        %v250 = vld [vmem:[%s188 + $0x190] sm:$0xff]
        %v251 = vld [vmem:[%s188 + $0x198] sm:$0xff]
        %v252 = vld [vmem:[%s188 + $0x1a0] sm:$0xff]
        %v253 = vld [vmem:[%s188 + $0x1a8] sm:$0xff]
        %v254 = vld [vmem:[%s188 + $0x1b0] sm:$0xff]
        %v255 = vld [vmem:[%s188 + $0x1b8] sm:$0xff]
        %v256 = vld [vmem:[%s188 + $0x1c0] sm:$0xff]
        %v257 = vld [vmem:[%s188 + $0x1c8] sm:$0xff]
        %v258 = vld [vmem:[%s188 + $0x1d0] sm:$0xff]
        %v259 = vld [vmem:[%s188 + $0x1d8] sm:$0xff]
        %v260 = vld [vmem:[%s188 + $0x1e0] sm:$0xff]
        %v261 = vld [vmem:[%s188 + $0x1e8] sm:$0xff]
        %v262 = vld [vmem:[%s188 + $0x1f0] sm:$0xff]
        %v263 = vld [vmem:[%s188 + $0x1f8] sm:$0xff]
        %v264 = vld [vmem:[%s188 + $0x200] sm:$0xff]
        %v265 = vld [vmem:[%s188 + $0x208] sm:$0xff]
        %v266 = vld [vmem:[%s188 + $0x210] sm:$0xff]
        %v267 = vld [vmem:[%s188 + $0x218] sm:$0xff]
        %v268 = vld [vmem:[%s188 + $0x220] sm:$0xff]
        %v269 = vld [vmem:[%s188 + $0x228] sm:$0xff]
        %v270 = vld [vmem:[%s188 + $0x230] sm:$0xff]
        %v271 = vld [vmem:[%s188 + $0x238] sm:$0xff]
        %v272 = vld [vmem:[%s188 + $0x240] sm:$0xff]
        %v273 = vld [vmem:[%s188 + $0x248] sm:$0xff]
        %v274 = vld [vmem:[%s188 + $0x250] sm:$0xff]
        %v275 = vld [vmem:[%s188 + $0x258] sm:$0xff]
        %v276 = vld [vmem:[%s188 + $0x260] sm:$0xff]
        %v277 = vld [vmem:[%s188 + $0x268] sm:$0xff]
        %v278 = vld [vmem:[%s188 + $0x270] sm:$0xff]
        %v279 = vld [vmem:[%s188 + $0x278] sm:$0xff]
        %v280 = vld [vmem:[%s188 + $0x280] sm:$0xff]
        %v281 = vld [vmem:[%s188 + $0x288] sm:$0xff]
        %v282 = vld [vmem:[%s188 + $0x290] sm:$0xff]
        %v283 = vld [vmem:[%s188 + $0x298] sm:$0xff]
        %v284 = vld [vmem:[%s188 + $0x2a0] sm:$0xff]
        %v285 = vld [vmem:[%s188 + $0x2a8] sm:$0xff]
        %v286 = vld [vmem:[%s188 + $0x2b0] sm:$0xff]
        %v287 = vld [vmem:[%s188 + $0x2b8] sm:$0xff]
        %v288 = vld [vmem:[%s188 + $0x2c0] sm:$0xff]
        %v289 = vld [vmem:[%s188 + $0x2c8] sm:$0xff]
        %v290 = vld [vmem:[%s188 + $0x2d0] sm:$0xff]
        %v291 = vld [vmem:[%s188 + $0x2d8] sm:$0xff]
        %v292 = vld [vmem:[%s188 + $0x2e0] sm:$0xff]
        %v293 = vld [vmem:[%s188 + $0x2e8] sm:$0xff]
        %v294 = vld [vmem:[%s188 + $0x2f0] sm:$0xff]
        %v295 = vld [vmem:[%s188 + $0x2f8] sm:$0xff]
        %v296 = vld [vmem:[%s188 + $0x300] sm:$0xff]
        %v297 = vld [vmem:[%s188 + $0x308] sm:$0xff]
        %v298 = vld [vmem:[%s188 + $0x310] sm:$0xff]
        %v299 = vld [vmem:[%s188 + $0x318] sm:$0xff]
        %v300 = vld [vmem:[%s188 + $0x320] sm:$0xff]
        %v301 = vld [vmem:[%s188 + $0x328] sm:$0xff]
        %v302 = vld [vmem:[%s188 + $0x330] sm:$0xff]
        %v303 = vld [vmem:[%s188 + $0x338] sm:$0xff]
        %v304 = vld [vmem:[%s188 + $0x340] sm:$0xff]
        %v305 = vld [vmem:[%s188 + $0x348] sm:$0xff]
        %v306 = vld [vmem:[%s188 + $0x350] sm:$0xff]
        %v307 = vld [vmem:[%s188 + $0x358] sm:$0xff]
        %v308 = vld [vmem:[%s188 + $0x360] sm:$0xff]
        %v309 = vld [vmem:[%s188 + $0x368] sm:$0xff]
        %v310 = vld [vmem:[%s188 + $0x370] sm:$0xff]
        %v311 = vld [vmem:[%s188 + $0x378] sm:$0xff]
        %v312 = vld [vmem:[%s188 + $0x380] sm:$0xff]
        %v313 = vld [vmem:[%s188 + $0x388] sm:$0xff]
        %v314 = vld [vmem:[%s188 + $0x390] sm:$0xff]
        %v315 = vld [vmem:[%s188 + $0x398] sm:$0xff]
        %v316 = vld [vmem:[%s188 + $0x3a0] sm:$0xff]
        %v317 = vld [vmem:[%s188 + $0x3a8] sm:$0xff]
        %v318 = vld [vmem:[%s188 + $0x3b0] sm:$0xff]
        %v319 = vld [vmem:[%s188 + $0x3b8] sm:$0xff]
        %v320 = vld [vmem:[%s188 + $0x3c0] sm:$0xff]
        %v321 = vld [vmem:[%s188 + $0x3c8] sm:$0xff]
        %v322 = vld [vmem:[%s188 + $0x3d0] sm:$0xff]
        %v323 = vld [vmem:[%s188 + $0x3d8] sm:$0xff]
        %v324 = vld [vmem:[%s188 + $0x3e0] sm:$0xff]
        %v325 = vld [vmem:[%s188 + $0x3e8] sm:$0xff]
        %v326 = vld [vmem:[%s188 + $0x3f0] sm:$0xff]
        %v327 = vld [vmem:[%s188 + $0x3f8] sm:$0xff]
        %v328 = vld [vmem:[%s1] sm:$0xff]
        %v329 = vld [vmem:[%s1 + $0x8] sm:$0xff]
        %v330 = vld [vmem:[%s1 + $0x10] sm:$0xff]
        %v331 = vld [vmem:[%s1 + $0x18] sm:$0xff]
        %v332 = vld [vmem:[%s1 + $0x20] sm:$0xff]
        %v333 = vld [vmem:[%s1 + $0x28] sm:$0xff]
        %v334 = vld [vmem:[%s1 + $0x30] sm:$0xff]
        %v335 = vld [vmem:[%s1 + $0x38] sm:$0xff]
        %v336 = vld [vmem:[%s1 + $0x40] sm:$0xff]
        %v337 = vld [vmem:[%s1 + $0x48] sm:$0xff]
        %v338 = vld [vmem:[%s1 + $0x50] sm:$0xff]
        %v339 = vld [vmem:[%s1 + $0x58] sm:$0xff]
        %v340 = vld [vmem:[%s1 + $0x60] sm:$0xff]
        %v341 = vld [vmem:[%s1 + $0x68] sm:$0xff]
        %v342 = vld [vmem:[%s1 + $0x70] sm:$0xff]
        %v343 = vld [vmem:[%s1 + $0x78] sm:$0xff]
        %v344 = vld [vmem:[%s1 + $0x80] sm:$0xff]
        %v345 = vld [vmem:[%s1 + $0x88] sm:$0xff]
        %v346 = vld [vmem:[%s1 + $0x90] sm:$0xff]
        %v347 = vld [vmem:[%s1 + $0x98] sm:$0xff]
        %v348 = vld [vmem:[%s1 + $0xa0] sm:$0xff]
        %v349 = vld [vmem:[%s1 + $0xa8] sm:$0xff]
        %v350 = vld [vmem:[%s1 + $0xb0] sm:$0xff]
        %v351 = vld [vmem:[%s1 + $0xb8] sm:$0xff]
        %v352 = vld [vmem:[%s1 + $0xc0] sm:$0xff]
        %v353 = vld [vmem:[%s1 + $0xc8] sm:$0xff]
        %v354 = vld [vmem:[%s1 + $0xd0] sm:$0xff]
        %v355 = vld [vmem:[%s1 + $0xd8] sm:$0xff]
        %v356 = vld [vmem:[%s1 + $0xe0] sm:$0xff]
        %v357 = vld [vmem:[%s1 + $0xe8] sm:$0xff]
        %v358 = vld [vmem:[%s1 + $0xf0] sm:$0xff]
        %v359 = vld [vmem:[%s1 + $0xf8] sm:$0xff]
        %v360 = vld [vmem:[%s2] sm:$0x1]
        %v362 = vlaneseq
        %v363 = vshrl.u32 %v362, 7
        %v364 = vsub.s32 0, %v363
        %v365 = vrot.slane %v360, %v364
        %367 = vmatprep.subr.mxu0 0.0
        %368 = vmatpush1.msra.mxu0 %v328
        %369 = vmatprep.subr.mxu0 0.0
        %370 = vmatpush1.msra.mxu0 %v329
        %371 = vmatprep.subr.mxu0 0.0
        %372 = vmatpush1.msra.mxu0 %v330
        %373 = vmatprep.subr.mxu0 0.0
        %374 = vmatpush1.msra.mxu0 %v331
        %375 = vmatprep.subr.mxu0 0.0
        %376 = vmatpush1.msra.mxu0 %v332
        %377 = vmatprep.subr.mxu0 0.0
        %378 = vmatpush1.msra.mxu0 %v333
        %379 = vmatprep.subr.mxu0 0.0
        %380 = vmatpush1.msra.mxu0 %v334
        %381 = vmatprep.subr.mxu0 0.0
        %382 = vmatpush1.msra.mxu0 %v335
        %383 = vmatprep.subr.mxu0 0.0
        %384 = vmatpush1.msra.mxu0 %v336
        %385 = vmatprep.subr.mxu0 0.0
        %386 = vmatpush1.msra.mxu0 %v337
        %387 = vmatprep.subr.mxu0 0.0
        %388 = vmatpush1.msra.mxu0 %v338
        %389 = vmatprep.subr.mxu0 0.0
        %390 = vmatpush1.msra.mxu0 %v339
        %391 = vmatprep.subr.mxu0 0.0
        %392 = vmatpush1.msra.mxu0 %v340
        %393 = vmatprep.subr.mxu0 0.0
        %394 = vmatpush1.msra.mxu0 %v341
        %395 = vmatprep.subr.mxu0 0.0
        %396 = vmatpush1.msra.mxu0 %v342
        %397 = vmatprep.subr.mxu0 0.0
        %398 = vmatpush1.msra.mxu0 %v343
        %399 = vmatprep.subr.mxu0 0.0
        %400 = vmatpush1.msra.mxu0 %v344
        %401 = vmatprep.subr.mxu0 0.0
        %402 = vmatpush1.msra.mxu0 %v345
        %403 = vmatprep.subr.mxu0 0.0
        %404 = vmatpush1.msra.mxu0 %v346
        %405 = vmatprep.subr.mxu0 0.0
        %406 = vmatpush1.msra.mxu0 %v347
        %407 = vmatprep.subr.mxu0 0.0
        %408 = vmatpush1.msra.mxu0 %v348
        %409 = vmatprep.subr.mxu0 0.0
        %410 = vmatpush1.msra.mxu0 %v349
        %411 = vmatprep.subr.mxu0 0.0
        %412 = vmatpush1.msra.mxu0 %v350
        %413 = vmatprep.subr.mxu0 0.0
        %414 = vmatpush1.msra.mxu0 %v351
        %415 = vmatprep.subr.mxu0 0.0
        %416 = vmatpush1.msra.mxu0 %v352
        %417 = vmatprep.subr.mxu0 0.0
        %418 = vmatpush1.msra.mxu0 %v353
        %419 = vmatprep.subr.mxu0 0.0
        %420 = vmatpush1.msra.mxu0 %v354
        %421 = vmatprep.subr.mxu0 0.0
        %422 = vmatpush1.msra.mxu0 %v355
        %423 = vmatprep.subr.mxu0 0.0
        %424 = vmatpush1.msra.mxu0 %v356
        %425 = vmatprep.subr.mxu0 0.0
        %426 = vmatpush1.msra.mxu0 %v357
        %427 = vmatprep.subr.mxu0 0.0
        %428 = vmatpush1.msra.mxu0 %v358
        %429 = vmatprep.subr.mxu0 0.0
        %430 = vmatpush1.msra.mxu0 %v359
        %431 = vmatprep.mubr.f32.mxu0 %v201
        %432 = vmatmul.mubr.f32.gmra.mrb[0].mxu0 %v200
        %v433 = vpop.f32.mrb[0].mxu0
        %v434 = vadd.f32 %v365, %v433
        %v435 = vpop.f32.mrb[0].mxu0
        %436 = vmatprep.mubr.f32.mxu0 %v203
        %437 = vmatmul.mubr.f32.gmra.mrb[0].mxu0 %v202
        %v438 = vpop.f32.mrb[0].mxu0
        %v439 = vadd.f32 %v365, %v438
        %v440 = vpop.f32.mrb[0].mxu0
        %441 = vmatprep.mubr.f32.mxu0 %v205
        %442 = vmatmul.mubr.f32.gmra.mrb[0].mxu0 %v204
        %v443 = vpop.f32.mrb[0].mxu0
        %v444 = vadd.f32 %v365, %v443
        %v445 = vpop.f32.mrb[0].mxu0
        %446 = vmatprep.mubr.f32.mxu0 %v207
        %447 = vmatmul.mubr.f32.gmra.mrb[0].mxu0 %v206
        %v448 = vpop.f32.mrb[0].mxu0
        %v449 = vadd.f32 %v365, %v448
        %v450 = vpop.f32.mrb[0].mxu0
        %451 = vmatprep.mubr.f32.mxu0 %v209
        %452 = vmatmul.mubr.f32.gmra.mrb[0].mxu0 %v208
        %v453 = vpop.f32.mrb[0].mxu0
        %v454 = vadd.f32 %v365, %v453
        %v455 = vpop.f32.mrb[0].mxu0
        %456 = vmatprep.mubr.f32.mxu0 %v211
        %457 = vmatmul.mubr.f32.gmra.mrb[0].mxu0 %v210
        %v458 = vpop.f32.mrb[0].mxu0
        %v459 = vadd.f32 %v365, %v458
        %v460 = vpop.f32.mrb[0].mxu0
        %461 = vmatprep.mubr.f32.mxu0 %v213
        %462 = vmatmul.mubr.f32.gmra.mrb[0].mxu0 %v212
        %v463 = vpop.f32.mrb[0].mxu0
        %v464 = vadd.f32 %v365, %v463
        %v465 = vpop.f32.mrb[0].mxu0
        %466 = vmatprep.mubr.f32.mxu0 %v215
        %467 = vmatmul.mubr.f32.gmra.mrb[0].mxu0 %v214
        %v468 = vpop.f32.mrb[0].mxu0
        %v469 = vadd.f32 %v365, %v468
        %v470 = vpop.f32.mrb[0].mxu0
        %471 = vmatprep.mubr.f32.mxu0 %v217
        %472 = vmatmul.mubr.f32.gmra.mrb[0].mxu0 %v216
        %v473 = vpop.f32.mrb[0].mxu0
        %v474 = vadd.f32 %v365, %v473
        %v475 = vpop.f32.mrb[0].mxu0
        %476 = vmatprep.mubr.f32.mxu0 %v219
        %477 = vmatmul.mubr.f32.gmra.mrb[0].mxu0 %v218
        %v478 = vpop.f32.mrb[0].mxu0
        %v479 = vadd.f32 %v365, %v478
        %v480 = vpop.f32.mrb[0].mxu0
        %481 = vmatprep.mubr.f32.mxu0 %v221
        %482 = vmatmul.mubr.f32.gmra.mrb[0].mxu0 %v220
        %v483 = vpop.f32.mrb[0].mxu0
        %v484 = vadd.f32 %v365, %v483
        %v485 = vpop.f32.mrb[0].mxu0
        %486 = vmatprep.mubr.f32.mxu0 %v223
        %487 = vmatmul.mubr.f32.gmra.mrb[0].mxu0 %v222
        %v488 = vpop.f32.mrb[0].mxu0
        %v489 = vadd.f32 %v365, %v488
        %v490 = vpop.f32.mrb[0].mxu0
        %491 = vmatprep.mubr.f32.mxu0 %v225
        %492 = vmatmul.mubr.f32.gmra.mrb[0].mxu0 %v224
        %v493 = vpop.f32.mrb[0].mxu0
        %v494 = vadd.f32 %v365, %v493
        %v495 = vpop.f32.mrb[0].mxu0
        %496 = vmatprep.mubr.f32.mxu0 %v227
        %497 = vmatmul.mubr.f32.gmra.mrb[0].mxu0 %v226
        %v498 = vpop.f32.mrb[0].mxu0
        %v499 = vadd.f32 %v365, %v498
        %v500 = vpop.f32.mrb[0].mxu0
        %501 = vmatprep.mubr.f32.mxu0 %v229
        %502 = vmatmul.mubr.f32.gmra.mrb[0].mxu0 %v228
        %v503 = vpop.f32.mrb[0].mxu0
        %v504 = vadd.f32 %v365, %v503
        %v505 = vpop.f32.mrb[0].mxu0
        %506 = vmatprep.mubr.f32.mxu0 %v231
        %507 = vmatmul.mubr.f32.gmra.mrb[0].mxu0 %v230
        %v508 = vpop.f32.mrb[0].mxu0
        %v509 = vadd.f32 %v365, %v508
        %v510 = vpop.f32.mrb[0].mxu0
        %511 = vmatprep.mubr.f32.mxu0 %v233
        %512 = vmatmul.mubr.f32.gmra.mrb[0].mxu0 %v232
        %v513 = vpop.f32.mrb[0].mxu0
        %v514 = vadd.f32 %v365, %v513
        %v515 = vpop.f32.mrb[0].mxu0
        %516 = vmatprep.mubr.f32.mxu0 %v235
        %517 = vmatmul.mubr.f32.gmra.mrb[0].mxu0 %v234
        %v518 = vpop.f32.mrb[0].mxu0
        %v519 = vadd.f32 %v365, %v518
        %v520 = vpop.f32.mrb[0].mxu0
        %521 = vmatprep.mubr.f32.mxu0 %v237
        %522 = vmatmul.mubr.f32.gmra.mrb[0].mxu0 %v236
        %v523 = vpop.f32.mrb[0].mxu0
        %v524 = vadd.f32 %v365, %v523
        %v525 = vpop.f32.mrb[0].mxu0
        %526 = vmatprep.mubr.f32.mxu0 %v239
        %527 = vmatmul.mubr.f32.gmra.mrb[0].mxu0 %v238
        %v528 = vpop.f32.mrb[0].mxu0
        %v529 = vadd.f32 %v365, %v528
        %v530 = vpop.f32.mrb[0].mxu0
        %531 = vmatprep.mubr.f32.mxu0 %v241
        %532 = vmatmul.mubr.f32.gmra.mrb[0].mxu0 %v240
        %v533 = vpop.f32.mrb[0].mxu0
        %v534 = vadd.f32 %v365, %v533
        %v535 = vpop.f32.mrb[0].mxu0
        %536 = vmatprep.mubr.f32.mxu0 %v243
        %537 = vmatmul.mubr.f32.gmra.mrb[0].mxu0 %v242
        %v538 = vpop.f32.mrb[0].mxu0
        %v539 = vadd.f32 %v365, %v538
        %v540 = vpop.f32.mrb[0].mxu0
        %541 = vmatprep.mubr.f32.mxu0 %v245
        %542 = vmatmul.mubr.f32.gmra.mrb[0].mxu0 %v244
        %v543 = vpop.f32.mrb[0].mxu0
        %v544 = vadd.f32 %v365, %v543
        %v545 = vpop.f32.mrb[0].mxu0
        %546 = vmatprep.mubr.f32.mxu0 %v247
        %547 = vmatmul.mubr.f32.gmra.mrb[0].mxu0 %v246
        %v548 = vpop.f32.mrb[0].mxu0
        %v549 = vadd.f32 %v365, %v548
        %v550 = vpop.f32.mrb[0].mxu0
        %551 = vmatprep.mubr.f32.mxu0 %v249
        %552 = vmatmul.mubr.f32.gmra.mrb[0].mxu0 %v248
        %v553 = vpop.f32.mrb[0].mxu0
        %v554 = vadd.f32 %v365, %v553
        %v555 = vpop.f32.mrb[0].mxu0
        %556 = vmatprep.mubr.f32.mxu0 %v251
        %557 = vmatmul.mubr.f32.gmra.mrb[0].mxu0 %v250
        %v558 = vpop.f32.mrb[0].mxu0
        %v559 = vadd.f32 %v365, %v558
        %v560 = vpop.f32.mrb[0].mxu0
        %561 = vmatprep.mubr.f32.mxu0 %v253
        %562 = vmatmul.mubr.f32.gmra.mrb[0].mxu0 %v252
        %v563 = vpop.f32.mrb[0].mxu0
        %v564 = vadd.f32 %v365, %v563
        %v565 = vpop.f32.mrb[0].mxu0
        %566 = vmatprep.mubr.f32.mxu0 %v255
        %567 = vmatmul.mubr.f32.gmra.mrb[0].mxu0 %v254
        %v568 = vpop.f32.mrb[0].mxu0
        %v569 = vadd.f32 %v365, %v568
        %v570 = vpop.f32.mrb[0].mxu0
        %571 = vmatprep.mubr.f32.mxu0 %v257
        %572 = vmatmul.mubr.f32.gmra.mrb[0].mxu0 %v256
        %v573 = vpop.f32.mrb[0].mxu0
        %v574 = vadd.f32 %v365, %v573
        %v575 = vpop.f32.mrb[0].mxu0
        %576 = vmatprep.mubr.f32.mxu0 %v259
        %577 = vmatmul.mubr.f32.gmra.mrb[0].mxu0 %v258
        %v578 = vpop.f32.mrb[0].mxu0
        %v579 = vadd.f32 %v365, %v578
        %v580 = vpop.f32.mrb[0].mxu0
        %581 = vmatprep.mubr.f32.mxu0 %v261
        %582 = vmatmul.mubr.f32.gmra.mrb[0].mxu0 %v260
        %v583 = vpop.f32.mrb[0].mxu0
        %v584 = vadd.f32 %v365, %v583
        %v585 = vpop.f32.mrb[0].mxu0
        %586 = vmatprep.mubr.f32.mxu0 %v263
        %587 = vmatmul.mubr.f32.gmra.mrb[0].mxu0 %v262
        %v588 = vpop.f32.mrb[0].mxu0
        %v589 = vadd.f32 %v365, %v588
        %v590 = vpop.f32.mrb[0].mxu0
        %591 = vmatprep.mubr.f32.mxu0 %v265
        %592 = vmatmul.mubr.f32.gmra.mrb[0].mxu0 %v264
        %v593 = vpop.f32.mrb[0].mxu0
        %v594 = vadd.f32 %v365, %v593
        %v595 = vpop.f32.mrb[0].mxu0
        %596 = vmatprep.mubr.f32.mxu0 %v267
        %597 = vmatmul.mubr.f32.gmra.mrb[0].mxu0 %v266
        %v598 = vpop.f32.mrb[0].mxu0
        %v599 = vadd.f32 %v365, %v598
        %v600 = vpop.f32.mrb[0].mxu0
        %601 = vmatprep.mubr.f32.mxu0 %v269
        %602 = vmatmul.mubr.f32.gmra.mrb[0].mxu0 %v268
        %v603 = vpop.f32.mrb[0].mxu0
        %v604 = vadd.f32 %v365, %v603
        %v605 = vpop.f32.mrb[0].mxu0
        %606 = vmatprep.mubr.f32.mxu0 %v271
        %607 = vmatmul.mubr.f32.gmra.mrb[0].mxu0 %v270
        %v608 = vpop.f32.mrb[0].mxu0
        %v609 = vadd.f32 %v365, %v608
        %v610 = vpop.f32.mrb[0].mxu0
        %611 = vmatprep.mubr.f32.mxu0 %v273
        %612 = vmatmul.mubr.f32.gmra.mrb[0].mxu0 %v272
        %v613 = vpop.f32.mrb[0].mxu0
        %v614 = vadd.f32 %v365, %v613
        %v615 = vpop.f32.mrb[0].mxu0
        %616 = vmatprep.mubr.f32.mxu0 %v275
        %617 = vmatmul.mubr.f32.gmra.mrb[0].mxu0 %v274
        %v618 = vpop.f32.mrb[0].mxu0
        %v619 = vadd.f32 %v365, %v618
        %v620 = vpop.f32.mrb[0].mxu0
        %621 = vmatprep.mubr.f32.mxu0 %v277
        %622 = vmatmul.mubr.f32.gmra.mrb[0].mxu0 %v276
        %v623 = vpop.f32.mrb[0].mxu0
        %v624 = vadd.f32 %v365, %v623
        %v625 = vpop.f32.mrb[0].mxu0
        %626 = vmatprep.mubr.f32.mxu0 %v279
        %627 = vmatmul.mubr.f32.gmra.mrb[0].mxu0 %v278
        %v628 = vpop.f32.mrb[0].mxu0
        %v629 = vadd.f32 %v365, %v628
        %v630 = vpop.f32.mrb[0].mxu0
        %631 = vmatprep.mubr.f32.mxu0 %v281
        %632 = vmatmul.mubr.f32.gmra.mrb[0].mxu0 %v280
        %v633 = vpop.f32.mrb[0].mxu0
        %v634 = vadd.f32 %v365, %v633
        %v635 = vpop.f32.mrb[0].mxu0
        %636 = vmatprep.mubr.f32.mxu0 %v283
        %637 = vmatmul.mubr.f32.gmra.mrb[0].mxu0 %v282
        %v638 = vpop.f32.mrb[0].mxu0
        %v639 = vadd.f32 %v365, %v638
        %v640 = vpop.f32.mrb[0].mxu0
        %641 = vmatprep.mubr.f32.mxu0 %v285
        %642 = vmatmul.mubr.f32.gmra.mrb[0].mxu0 %v284
        %v643 = vpop.f32.mrb[0].mxu0
        %v644 = vadd.f32 %v365, %v643
        %v645 = vpop.f32.mrb[0].mxu0
        %646 = vmatprep.mubr.f32.mxu0 %v287
        %647 = vmatmul.mubr.f32.gmra.mrb[0].mxu0 %v286
        %v648 = vpop.f32.mrb[0].mxu0
        %v649 = vadd.f32 %v365, %v648
        %v650 = vpop.f32.mrb[0].mxu0
        %651 = vmatprep.mubr.f32.mxu0 %v289
        %652 = vmatmul.mubr.f32.gmra.mrb[0].mxu0 %v288
        %v653 = vpop.f32.mrb[0].mxu0
        %v654 = vadd.f32 %v365, %v653
        %v655 = vpop.f32.mrb[0].mxu0
        %656 = vmatprep.mubr.f32.mxu0 %v291
        %657 = vmatmul.mubr.f32.gmra.mrb[0].mxu0 %v290
        %v658 = vpop.f32.mrb[0].mxu0
        %v659 = vadd.f32 %v365, %v658
        %v660 = vpop.f32.mrb[0].mxu0
        %661 = vmatprep.mubr.f32.mxu0 %v293
        %662 = vmatmul.mubr.f32.gmra.mrb[0].mxu0 %v292
        %v663 = vpop.f32.mrb[0].mxu0
        %v664 = vadd.f32 %v365, %v663
        %v665 = vpop.f32.mrb[0].mxu0
        %666 = vmatprep.mubr.f32.mxu0 %v295
        %667 = vmatmul.mubr.f32.gmra.mrb[0].mxu0 %v294
        %v668 = vpop.f32.mrb[0].mxu0
        %v669 = vadd.f32 %v365, %v668
        %v670 = vpop.f32.mrb[0].mxu0
        %671 = vmatprep.mubr.f32.mxu0 %v297
        %672 = vmatmul.mubr.f32.gmra.mrb[0].mxu0 %v296
        %v673 = vpop.f32.mrb[0].mxu0
        %v674 = vadd.f32 %v365, %v673
        %v675 = vpop.f32.mrb[0].mxu0
        %676 = vmatprep.mubr.f32.mxu0 %v299
        %677 = vmatmul.mubr.f32.gmra.mrb[0].mxu0 %v298
        %v678 = vpop.f32.mrb[0].mxu0
        %v679 = vadd.f32 %v365, %v678
        %v680 = vpop.f32.mrb[0].mxu0
        %681 = vmatprep.mubr.f32.mxu0 %v301
        %682 = vmatmul.mubr.f32.gmra.mrb[0].mxu0 %v300
        %v683 = vpop.f32.mrb[0].mxu0
        %v684 = vadd.f32 %v365, %v683
        %v685 = vpop.f32.mrb[0].mxu0
        %686 = vmatprep.mubr.f32.mxu0 %v303
        %687 = vmatmul.mubr.f32.gmra.mrb[0].mxu0 %v302
        %v688 = vpop.f32.mrb[0].mxu0
        %v689 = vadd.f32 %v365, %v688
        %v690 = vpop.f32.mrb[0].mxu0
        %691 = vmatprep.mubr.f32.mxu0 %v305
        %692 = vmatmul.mubr.f32.gmra.mrb[0].mxu0 %v304
        %v693 = vpop.f32.mrb[0].mxu0
        %v694 = vadd.f32 %v365, %v693
        %v695 = vpop.f32.mrb[0].mxu0
        %696 = vmatprep.mubr.f32.mxu0 %v307
        %697 = vmatmul.mubr.f32.gmra.mrb[0].mxu0 %v306
        %v698 = vpop.f32.mrb[0].mxu0
        %v699 = vadd.f32 %v365, %v698
        %v700 = vpop.f32.mrb[0].mxu0
        %701 = vmatprep.mubr.f32.mxu0 %v309
        %702 = vmatmul.mubr.f32.gmra.mrb[0].mxu0 %v308
        %v703 = vpop.f32.mrb[0].mxu0
        %v704 = vadd.f32 %v365, %v703
        %v705 = vpop.f32.mrb[0].mxu0
        %706 = vmatprep.mubr.f32.mxu0 %v311
        %707 = vmatmul.mubr.f32.gmra.mrb[0].mxu0 %v310
        %v708 = vpop.f32.mrb[0].mxu0
        %v709 = vadd.f32 %v365, %v708
        %v710 = vpop.f32.mrb[0].mxu0
        %711 = vmatprep.mubr.f32.mxu0 %v313
        %712 = vmatmul.mubr.f32.gmra.mrb[0].mxu0 %v312
        %v713 = vpop.f32.mrb[0].mxu0
        %v714 = vadd.f32 %v365, %v713
        %v715 = vpop.f32.mrb[0].mxu0
        %716 = vmatprep.mubr.f32.mxu0 %v315
        %717 = vmatmul.mubr.f32.gmra.mrb[0].mxu0 %v314
        %v718 = vpop.f32.mrb[0].mxu0
        %v719 = vadd.f32 %v365, %v718
        %v720 = vpop.f32.mrb[0].mxu0
        %721 = vmatprep.mubr.f32.mxu0 %v317
        %722 = vmatmul.mubr.f32.gmra.mrb[0].mxu0 %v316
        %v723 = vpop.f32.mrb[0].mxu0
        %v724 = vadd.f32 %v365, %v723
        %v725 = vpop.f32.mrb[0].mxu0
        %726 = vmatprep.mubr.f32.mxu0 %v319
        %727 = vmatmul.mubr.f32.gmra.mrb[0].mxu0 %v318
        %v728 = vpop.f32.mrb[0].mxu0
        %v729 = vadd.f32 %v365, %v728
        %v730 = vpop.f32.mrb[0].mxu0
        %731 = vmatprep.mubr.f32.mxu0 %v321
        %732 = vmatmul.mubr.f32.gmra.mrb[0].mxu0 %v320
        %v733 = vpop.f32.mrb[0].mxu0
        %v734 = vadd.f32 %v365, %v733
        %v735 = vpop.f32.mrb[0].mxu0
        %736 = vmatprep.mubr.f32.mxu0 %v323
        %737 = vmatmul.mubr.f32.gmra.mrb[0].mxu0 %v322
        %v738 = vpop.f32.mrb[0].mxu0
        %v739 = vadd.f32 %v365, %v738
        %v740 = vpop.f32.mrb[0].mxu0
        %741 = vmatprep.mubr.f32.mxu0 %v325
        %742 = vmatmul.mubr.f32.gmra.mrb[0].mxu0 %v324
        %v743 = vpop.f32.mrb[0].mxu0
        %v744 = vadd.f32 %v365, %v743
        %v745 = vpop.f32.mrb[0].mxu0
        %746 = vmatprep.mubr.f32.mxu0 %v327
        %747 = vmatmul.mubr.f32.gmra.mrb[0].mxu0 %v326
        %v748 = vpop.f32.mrb[0].mxu0
        %v749 = vadd.f32 %v365, %v748
        %v750 = vpop.f32.mrb[0].mxu0
        %751 = vdwg.mxu0
        %v752 = vmax.f32 %v434, 0.0
        %v753 = vmax.f32 %v439, 0.0
        %v754 = vmax.f32 %v444, 0.0
        %v755 = vmax.f32 %v449, 0.0
        %v756 = vmax.f32 %v454, 0.0
        %v757 = vmax.f32 %v459, 0.0
        %v758 = vmax.f32 %v464, 0.0
        %v759 = vmax.f32 %v469, 0.0
        %v760 = vmax.f32 %v474, 0.0
        %v761 = vmax.f32 %v479, 0.0
        %v762 = vmax.f32 %v484, 0.0
        %v763 = vmax.f32 %v489, 0.0
        %v764 = vmax.f32 %v494, 0.0
        %v765 = vmax.f32 %v499, 0.0
        %v766 = vmax.f32 %v504, 0.0
        %v767 = vmax.f32 %v509, 0.0
        %v768 = vmax.f32 %v514, 0.0
        %v769 = vmax.f32 %v519, 0.0
        %v770 = vmax.f32 %v524, 0.0
        %v771 = vmax.f32 %v529, 0.0
        %v772 = vmax.f32 %v534, 0.0
        %v773 = vmax.f32 %v539, 0.0
        %v774 = vmax.f32 %v544, 0.0
        %v775 = vmax.f32 %v549, 0.0
        %v776 = vmax.f32 %v554, 0.0
        %v777 = vmax.f32 %v559, 0.0
        %v778 = vmax.f32 %v564, 0.0
        %v779 = vmax.f32 %v569, 0.0
        %v780 = vmax.f32 %v574, 0.0
        %v781 = vmax.f32 %v579, 0.0
        %v782 = vmax.f32 %v584, 0.0
        %v783 = vmax.f32 %v589, 0.0
        %v784 = vmax.f32 %v594, 0.0
        %v785 = vmax.f32 %v599, 0.0
        %v786 = vmax.f32 %v604, 0.0
        %v787 = vmax.f32 %v609, 0.0
        %v788 = vmax.f32 %v614, 0.0
        %v789 = vmax.f32 %v619, 0.0
        %v790 = vmax.f32 %v624, 0.0
        %v791 = vmax.f32 %v629, 0.0
        %v792 = vmax.f32 %v634, 0.0
        %v793 = vmax.f32 %v639, 0.0
        %v794 = vmax.f32 %v644, 0.0
        %v795 = vmax.f32 %v649, 0.0
        %v796 = vmax.f32 %v654, 0.0
        %v797 = vmax.f32 %v659, 0.0
        %v798 = vmax.f32 %v664, 0.0
        %v799 = vmax.f32 %v669, 0.0
        %v800 = vmax.f32 %v674, 0.0
        %v801 = vmax.f32 %v679, 0.0
        %v802 = vmax.f32 %v684, 0.0
        %v803 = vmax.f32 %v689, 0.0
        %v804 = vmax.f32 %v694, 0.0
        %v805 = vmax.f32 %v699, 0.0
        %v806 = vmax.f32 %v704, 0.0
        %v807 = vmax.f32 %v709, 0.0
        %v808 = vmax.f32 %v714, 0.0
        %v809 = vmax.f32 %v719, 0.0
        %v810 = vmax.f32 %v724, 0.0
        %v811 = vmax.f32 %v729, 0.0
        %v812 = vmax.f32 %v734, 0.0
        %v813 = vmax.f32 %v739, 0.0
        %v814 = vmax.f32 %v744, 0.0
        %v815 = vmax.f32 %v749, 0.0
        %vm816 = vcmask 261120
        %817 = vst.msk [vmem:[%s177] sm:$0xff] %vm816, %v752
        %818 = vst.msk [vmem:[%s177 + $0x8] sm:$0xff] %vm816, %v753
        %819 = vst.msk [vmem:[%s177 + $0x10] sm:$0xff] %vm816, %v754
        %820 = vst.msk [vmem:[%s177 + $0x18] sm:$0xff] %vm816, %v755
        %821 = vst.msk [vmem:[%s177 + $0x20] sm:$0xff] %vm816, %v756
        %822 = vst.msk [vmem:[%s177 + $0x28] sm:$0xff] %vm816, %v757
        %823 = vst.msk [vmem:[%s177 + $0x30] sm:$0xff] %vm816, %v758
        %824 = vst.msk [vmem:[%s177 + $0x38] sm:$0xff] %vm816, %v759
        %825 = vst.msk [vmem:[%s177 + $0x40] sm:$0xff] %vm816, %v760
        %826 = vst.msk [vmem:[%s177 + $0x48] sm:$0xff] %vm816, %v761
        %827 = vst.msk [vmem:[%s177 + $0x50] sm:$0xff] %vm816, %v762
        %828 = vst.msk [vmem:[%s177 + $0x58] sm:$0xff] %vm816, %v763
        %829 = vst.msk [vmem:[%s177 + $0x60] sm:$0xff] %vm816, %v764
        %830 = vst.msk [vmem:[%s177 + $0x68] sm:$0xff] %vm816, %v765
        %831 = vst.msk [vmem:[%s177 + $0x70] sm:$0xff] %vm816, %v766
        %832 = vst.msk [vmem:[%s177 + $0x78] sm:$0xff] %vm816, %v767
        %833 = vst.msk [vmem:[%s177 + $0x80] sm:$0xff] %vm816, %v768
        %834 = vst.msk [vmem:[%s177 + $0x88] sm:$0xff] %vm816, %v769
        %835 = vst.msk [vmem:[%s177 + $0x90] sm:$0xff] %vm816, %v770
        %836 = vst.msk [vmem:[%s177 + $0x98] sm:$0xff] %vm816, %v771
        %837 = vst.msk [vmem:[%s177 + $0xa0] sm:$0xff] %vm816, %v772
        %838 = vst.msk [vmem:[%s177 + $0xa8] sm:$0xff] %vm816, %v773
        %839 = vst.msk [vmem:[%s177 + $0xb0] sm:$0xff] %vm816, %v774
        %840 = vst.msk [vmem:[%s177 + $0xb8] sm:$0xff] %vm816, %v775
        %841 = vst.msk [vmem:[%s177 + $0xc0] sm:$0xff] %vm816, %v776
        %842 = vst.msk [vmem:[%s177 + $0xc8] sm:$0xff] %vm816, %v777
        %843 = vst.msk [vmem:[%s177 + $0xd0] sm:$0xff] %vm816, %v778
        %844 = vst.msk [vmem:[%s177 + $0xd8] sm:$0xff] %vm816, %v779
        %845 = vst.msk [vmem:[%s177 + $0xe0] sm:$0xff] %vm816, %v780
        %846 = vst.msk [vmem:[%s177 + $0xe8] sm:$0xff] %vm816, %v781
        %847 = vst.msk [vmem:[%s177 + $0xf0] sm:$0xff] %vm816, %v782
        %848 = vst.msk [vmem:[%s177 + $0xf8] sm:$0xff] %vm816, %v783
        %849 = vst.msk [vmem:[%s177 + $0x100] sm:$0xff] %vm816, %v784
        %850 = vst.msk [vmem:[%s177 + $0x108] sm:$0xff] %vm816, %v785
        %851 = vst.msk [vmem:[%s177 + $0x110] sm:$0xff] %vm816, %v786
        %852 = vst.msk [vmem:[%s177 + $0x118] sm:$0xff] %vm816, %v787
        %853 = vst.msk [vmem:[%s177 + $0x120] sm:$0xff] %vm816, %v788
        %854 = vst.msk [vmem:[%s177 + $0x128] sm:$0xff] %vm816, %v789
        %855 = vst.msk [vmem:[%s177 + $0x130] sm:$0xff] %vm816, %v790
        %856 = vst.msk [vmem:[%s177 + $0x138] sm:$0xff] %vm816, %v791
        %857 = vst.msk [vmem:[%s177 + $0x140] sm:$0xff] %vm816, %v792
        %858 = vst.msk [vmem:[%s177 + $0x148] sm:$0xff] %vm816, %v793
        %859 = vst.msk [vmem:[%s177 + $0x150] sm:$0xff] %vm816, %v794
        %860 = vst.msk [vmem:[%s177 + $0x158] sm:$0xff] %vm816, %v795
        %861 = vst.msk [vmem:[%s177 + $0x160] sm:$0xff] %vm816, %v796
        %862 = vst.msk [vmem:[%s177 + $0x168] sm:$0xff] %vm816, %v797
        %863 = vst.msk [vmem:[%s177 + $0x170] sm:$0xff] %vm816, %v798
        %864 = vst.msk [vmem:[%s177 + $0x178] sm:$0xff] %vm816, %v799
        %865 = vst.msk [vmem:[%s177 + $0x180] sm:$0xff] %vm816, %v800
        %866 = vst.msk [vmem:[%s177 + $0x188] sm:$0xff] %vm816, %v801
        %867 = vst.msk [vmem:[%s177 + $0x190] sm:$0xff] %vm816, %v802
        %868 = vst.msk [vmem:[%s177 + $0x198] sm:$0xff] %vm816, %v803
        %869 = vst.msk [vmem:[%s177 + $0x1a0] sm:$0xff] %vm816, %v804
        %870 = vst.msk [vmem:[%s177 + $0x1a8] sm:$0xff] %vm816, %v805
        %871 = vst.msk [vmem:[%s177 + $0x1b0] sm:$0xff] %vm816, %v806
        %872 = vst.msk [vmem:[%s177 + $0x1b8] sm:$0xff] %vm816, %v807
        %873 = vst.msk [vmem:[%s177 + $0x1c0] sm:$0xff] %vm816, %v808
        %874 = vst.msk [vmem:[%s177 + $0x1c8] sm:$0xff] %vm816, %v809
        %875 = vst.msk [vmem:[%s177 + $0x1d0] sm:$0xff] %vm816, %v810
        %876 = vst.msk [vmem:[%s177 + $0x1d8] sm:$0xff] %vm816, %v811
        %877 = vst.msk [vmem:[%s177 + $0x1e0] sm:$0xff] %vm816, %v812
        %878 = vst.msk [vmem:[%s177 + $0x1e8] sm:$0xff] %vm816, %v813
        %879 = vst.msk [vmem:[%s177 + $0x1f0] sm:$0xff] %vm816, %v814
        %880 = vst.msk [vmem:[%s177 + $0x1f8] sm:$0xff] %vm816, %v815
        %s881 = sand.u32 %s90, 1
        %s882 = sand.u32 %s90, 1
        %s883 = smul.addr %s882, 512
        %s884 = scalar_lea.vmem [#allocation2], %s883
        // Predicated region
        $region33: #{conv_q_forward.4} parent=31 // pred_check
          %p885 = pneg %p100
        $region34: #{conv_q_forward.4} parent=31 // pred_check_branch
          %887 = sbr.rel (%p885) target = $region36
        $region35: #{conv_q_forward.4} parent=31 // pred_region
          %s888 = smul.u32 64, %s14
          %s889 = ssub.s32 100, %s888
          %p890 = scmp.lt.s32.totalorder %s889, 64
          %s891 = scalar_select %p890, %s889, 64
          %s892 = smul.u32 128, %s891
          %p893 = scmp.ne.s32.totalorder 0, %s892
          %s894 = smul.addr %s888, 8
          %s895 = scalar_lea.vmem %s3, %s894
          // Predicated region
          $region37: #{conv_q_forward.4} parent=35 // pred_check
            %p896 = pneg %p893
          $region38: #{conv_q_forward.4} parent=35 // pred_check_branch
            %898 = sbr.rel (%p896) target = $region40
          $region39: #{conv_q_forward.4} parent=35 // pred_region
            // Predicated region
            $region41: #{conv_q_forward.4} parent=39 // pred_check
              _
            $region42: #{conv_q_forward.4} parent=39 // pred_check_branch
              %900 = sbr.rel (0) target = $region44
            $region43: #{conv_q_forward.4} parent=39 // pred_region
              // Predicated region
              $region63: #{conv_q_forward.4} parent=43 // pred_check
                _
              $region64: #{conv_q_forward.4} parent=43 // pred_check_branch
                %1075 = sbr.rel (0) target = $region66
              $region65: #{conv_q_forward.4} parent=43 // pred_region
                %s1076 = sshrl.u32 %s891, 6
                // While loop
                $region67: #{conv_q_forward.4} parent=65 // loop_pre_header
                  _
                $region68: #{conv_q_forward.4} parent=65 // loop_header
                  %s1078 = sphi 0, %s1080
                  %p1079 = scmp.ge.s32.totalorder %s1078, %s1076
                  %s1083 = sphi 0, %s1216
                  %s1084 = sphi %s884, %s1219
                  %s1085 = sphi %s895, %s1220
                $region69: #{conv_q_forward.4} parent=65 // loop_header_branch
                  %1082 = sbr.rel (%p1079) target = $region73
                $region70: #{conv_q_forward.4} parent=65 // loop_body
                  %v1086 = vld [vmem:[%s1084] sm:$0xff]
                  %1087 = vst [vmem:[%s1085] sm:$0xff] %v1086
                  %v1088 = vld [vmem:[%s1084 + $0x8] sm:$0xff]
                  %1089 = vst [vmem:[%s1085 + $0x8] sm:$0xff] %v1088
                  %v1090 = vld [vmem:[%s1084 + $0x10] sm:$0xff]
                  %1091 = vst [vmem:[%s1085 + $0x10] sm:$0xff] %v1090
                  %v1092 = vld [vmem:[%s1084 + $0x18] sm:$0xff]
                  %1093 = vst [vmem:[%s1085 + $0x18] sm:$0xff] %v1092
                  %v1094 = vld [vmem:[%s1084 + $0x20] sm:$0xff]
                  %1095 = vst [vmem:[%s1085 + $0x20] sm:$0xff] %v1094
                  %v1096 = vld [vmem:[%s1084 + $0x28] sm:$0xff]
                  %1097 = vst [vmem:[%s1085 + $0x28] sm:$0xff] %v1096
                  %v1098 = vld [vmem:[%s1084 + $0x30] sm:$0xff]
                  %1099 = vst [vmem:[%s1085 + $0x30] sm:$0xff] %v1098
                  %v1100 = vld [vmem:[%s1084 + $0x38] sm:$0xff]
                  %1101 = vst [vmem:[%s1085 + $0x38] sm:$0xff] %v1100
                  %v1102 = vld [vmem:[%s1084 + $0x40] sm:$0xff]
                  %1103 = vst [vmem:[%s1085 + $0x40] sm:$0xff] %v1102
                  %v1104 = vld [vmem:[%s1084 + $0x48] sm:$0xff]
                  %1105 = vst [vmem:[%s1085 + $0x48] sm:$0xff] %v1104
                  %v1106 = vld [vmem:[%s1084 + $0x50] sm:$0xff]
                  %1107 = vst [vmem:[%s1085 + $0x50] sm:$0xff] %v1106
                  %v1108 = vld [vmem:[%s1084 + $0x58] sm:$0xff]
                  %1109 = vst [vmem:[%s1085 + $0x58] sm:$0xff] %v1108
                  %v1110 = vld [vmem:[%s1084 + $0x60] sm:$0xff]
                  %1111 = vst [vmem:[%s1085 + $0x60] sm:$0xff] %v1110
                  %v1112 = vld [vmem:[%s1084 + $0x68] sm:$0xff]
                  %1113 = vst [vmem:[%s1085 + $0x68] sm:$0xff] %v1112
                  %v1114 = vld [vmem:[%s1084 + $0x70] sm:$0xff]
                  %1115 = vst [vmem:[%s1085 + $0x70] sm:$0xff] %v1114
                  %v1116 = vld [vmem:[%s1084 + $0x78] sm:$0xff]
                  %1117 = vst [vmem:[%s1085 + $0x78] sm:$0xff] %v1116
                  %v1118 = vld [vmem:[%s1084 + $0x80] sm:$0xff]
                  %1119 = vst [vmem:[%s1085 + $0x80] sm:$0xff] %v1118
                  %v1120 = vld [vmem:[%s1084 + $0x88] sm:$0xff]
                  %1121 = vst [vmem:[%s1085 + $0x88] sm:$0xff] %v1120
                  %v1122 = vld [vmem:[%s1084 + $0x90] sm:$0xff]
                  %1123 = vst [vmem:[%s1085 + $0x90] sm:$0xff] %v1122
                  %v1124 = vld [vmem:[%s1084 + $0x98] sm:$0xff]
                  %1125 = vst [vmem:[%s1085 + $0x98] sm:$0xff] %v1124
                  %v1126 = vld [vmem:[%s1084 + $0xa0] sm:$0xff]
                  %1127 = vst [vmem:[%s1085 + $0xa0] sm:$0xff] %v1126
                  %v1128 = vld [vmem:[%s1084 + $0xa8] sm:$0xff]
                  %1129 = vst [vmem:[%s1085 + $0xa8] sm:$0xff] %v1128
                  %v1130 = vld [vmem:[%s1084 + $0xb0] sm:$0xff]
                  %1131 = vst [vmem:[%s1085 + $0xb0] sm:$0xff] %v1130
                  %v1132 = vld [vmem:[%s1084 + $0xb8] sm:$0xff]
                  %1133 = vst [vmem:[%s1085 + $0xb8] sm:$0xff] %v1132
                  %v1134 = vld [vmem:[%s1084 + $0xc0] sm:$0xff]
                  %1135 = vst [vmem:[%s1085 + $0xc0] sm:$0xff] %v1134
                  %v1136 = vld [vmem:[%s1084 + $0xc8] sm:$0xff]
                  %1137 = vst [vmem:[%s1085 + $0xc8] sm:$0xff] %v1136
                  %v1138 = vld [vmem:[%s1084 + $0xd0] sm:$0xff]
                  %1139 = vst [vmem:[%s1085 + $0xd0] sm:$0xff] %v1138
                  %v1140 = vld [vmem:[%s1084 + $0xd8] sm:$0xff]
                  %1141 = vst [vmem:[%s1085 + $0xd8] sm:$0xff] %v1140
                  %v1142 = vld [vmem:[%s1084 + $0xe0] sm:$0xff]
                  %1143 = vst [vmem:[%s1085 + $0xe0] sm:$0xff] %v1142
                  %v1144 = vld [vmem:[%s1084 + $0xe8] sm:$0xff]
                  %1145 = vst [vmem:[%s1085 + $0xe8] sm:$0xff] %v1144
                  %v1146 = vld [vmem:[%s1084 + $0xf0] sm:$0xff]
                  %1147 = vst [vmem:[%s1085 + $0xf0] sm:$0xff] %v1146
                  %v1148 = vld [vmem:[%s1084 + $0xf8] sm:$0xff]
                  %1149 = vst [vmem:[%s1085 + $0xf8] sm:$0xff] %v1148
                  %v1150 = vld [vmem:[%s1084 + $0x100] sm:$0xff]
                  %1151 = vst [vmem:[%s1085 + $0x100] sm:$0xff] %v1150
                  %v1152 = vld [vmem:[%s1084 + $0x108] sm:$0xff]
                  %1153 = vst [vmem:[%s1085 + $0x108] sm:$0xff] %v1152
                  %v1154 = vld [vmem:[%s1084 + $0x110] sm:$0xff]
                  %1155 = vst [vmem:[%s1085 + $0x110] sm:$0xff] %v1154
                  %v1156 = vld [vmem:[%s1084 + $0x118] sm:$0xff]
                  %1157 = vst [vmem:[%s1085 + $0x118] sm:$0xff] %v1156
                  %v1158 = vld [vmem:[%s1084 + $0x120] sm:$0xff]
                  %1159 = vst [vmem:[%s1085 + $0x120] sm:$0xff] %v1158
                  %v1160 = vld [vmem:[%s1084 + $0x128] sm:$0xff]
                  %1161 = vst [vmem:[%s1085 + $0x128] sm:$0xff] %v1160
                  %v1162 = vld [vmem:[%s1084 + $0x130] sm:$0xff]
                  %1163 = vst [vmem:[%s1085 + $0x130] sm:$0xff] %v1162
                  %v1164 = vld [vmem:[%s1084 + $0x138] sm:$0xff]
                  %1165 = vst [vmem:[%s1085 + $0x138] sm:$0xff] %v1164
                  %v1166 = vld [vmem:[%s1084 + $0x140] sm:$0xff]
                  %1167 = vst [vmem:[%s1085 + $0x140] sm:$0xff] %v1166
                  %v1168 = vld [vmem:[%s1084 + $0x148] sm:$0xff]
                  %1169 = vst [vmem:[%s1085 + $0x148] sm:$0xff] %v1168
                  %v1170 = vld [vmem:[%s1084 + $0x150] sm:$0xff]
                  %1171 = vst [vmem:[%s1085 + $0x150] sm:$0xff] %v1170
                  %v1172 = vld [vmem:[%s1084 + $0x158] sm:$0xff]
                  %1173 = vst [vmem:[%s1085 + $0x158] sm:$0xff] %v1172
                  %v1174 = vld [vmem:[%s1084 + $0x160] sm:$0xff]
                  %1175 = vst [vmem:[%s1085 + $0x160] sm:$0xff] %v1174
                  %v1176 = vld [vmem:[%s1084 + $0x168] sm:$0xff]
                  %1177 = vst [vmem:[%s1085 + $0x168] sm:$0xff] %v1176
                  %v1178 = vld [vmem:[%s1084 + $0x170] sm:$0xff]
                  %1179 = vst [vmem:[%s1085 + $0x170] sm:$0xff] %v1178
                  %v1180 = vld [vmem:[%s1084 + $0x178] sm:$0xff]
                  %1181 = vst [vmem:[%s1085 + $0x178] sm:$0xff] %v1180
                  %v1182 = vld [vmem:[%s1084 + $0x180] sm:$0xff]
                  %1183 = vst [vmem:[%s1085 + $0x180] sm:$0xff] %v1182
                  %v1184 = vld [vmem:[%s1084 + $0x188] sm:$0xff]
                  %1185 = vst [vmem:[%s1085 + $0x188] sm:$0xff] %v1184
                  %v1186 = vld [vmem:[%s1084 + $0x190] sm:$0xff]
                  %1187 = vst [vmem:[%s1085 + $0x190] sm:$0xff] %v1186
                  %v1188 = vld [vmem:[%s1084 + $0x198] sm:$0xff]
                  %1189 = vst [vmem:[%s1085 + $0x198] sm:$0xff] %v1188
                  %v1190 = vld [vmem:[%s1084 + $0x1a0] sm:$0xff]
                  %1191 = vst [vmem:[%s1085 + $0x1a0] sm:$0xff] %v1190
                  %v1192 = vld [vmem:[%s1084 + $0x1a8] sm:$0xff]
                  %1193 = vst [vmem:[%s1085 + $0x1a8] sm:$0xff] %v1192
                  %v1194 = vld [vmem:[%s1084 + $0x1b0] sm:$0xff]
                  %1195 = vst [vmem:[%s1085 + $0x1b0] sm:$0xff] %v1194
                  %v1196 = vld [vmem:[%s1084 + $0x1b8] sm:$0xff]
                  %1197 = vst [vmem:[%s1085 + $0x1b8] sm:$0xff] %v1196
                  %v1198 = vld [vmem:[%s1084 + $0x1c0] sm:$0xff]
                  %1199 = vst [vmem:[%s1085 + $0x1c0] sm:$0xff] %v1198
                  %v1200 = vld [vmem:[%s1084 + $0x1c8] sm:$0xff]
                  %1201 = vst [vmem:[%s1085 + $0x1c8] sm:$0xff] %v1200
                  %v1202 = vld [vmem:[%s1084 + $0x1d0] sm:$0xff]
                  %1203 = vst [vmem:[%s1085 + $0x1d0] sm:$0xff] %v1202
                  %v1204 = vld [vmem:[%s1084 + $0x1d8] sm:$0xff]
                  %1205 = vst [vmem:[%s1085 + $0x1d8] sm:$0xff] %v1204
                  %v1206 = vld [vmem:[%s1084 + $0x1e0] sm:$0xff]
                  %1207 = vst [vmem:[%s1085 + $0x1e0] sm:$0xff] %v1206
                  %v1208 = vld [vmem:[%s1084 + $0x1e8] sm:$0xff]
                  %1209 = vst [vmem:[%s1085 + $0x1e8] sm:$0xff] %v1208
                  %v1210 = vld [vmem:[%s1084 + $0x1f0] sm:$0xff]
                  %1211 = vst [vmem:[%s1085 + $0x1f0] sm:$0xff] %v1210
                  %v1212 = vld [vmem:[%s1084 + $0x1f8] sm:$0xff]
                  %1213 = vst [vmem:[%s1085 + $0x1f8] sm:$0xff] %v1212
                  %s1214 = sadd.s32 1, %s1083
                  %p1215 = scmp.ge.s32.totalorder %s1214, %s1076
                  %s1216 = scalar_select %p1215, 0, %s1214
                  %s1217 = smul.u32 %s1216, 512
                  %s1218 = smul.u32 %s1216, 512
                  %s1219 = scalar_lea.vmem %s884, %s1217 [#allocation2]
                  %s1220 = scalar_lea.vmem %s895, %s1218
                $region71: #{conv_q_forward.4} parent=65 // loop_footer
                  %s1080 = sadd.s32 %s1078, 1
                $region72: #{conv_q_forward.4} parent=65 // loop_footer_branch
                  %1077 = sbr.rel target = $region68
                $region73: #{conv_q_forward.4} parent=65 // loop_exit
                  _
                %s1221 = sshrl.u32 %s891, 6
                %s1222 = sand.u32 %s891, 63
                %s1223 = smul.u32 %s1221, 64
                %s1224 = smul.u32 8, %s1223
                %s1225 = scalar_lea.vmem %s884, %s1224 [#allocation2]
                %s1226 = smul.u32 8, %s1223
                %s1227 = scalar_lea.vmem %s895, %s1226
                // While loop
                $region74: #{conv_q_forward.4} parent=65 // loop_pre_header
                  _
                $region75: #{conv_q_forward.4} parent=65 // loop_header
                  %s1229 = sphi 0, %s1231
                  %p1230 = scmp.ge.s32.totalorder %s1229, %s1222
                  %s1234 = sphi 0, %s1241
                  %s1235 = sphi %s1225, %s1244
                  %s1236 = sphi %s1227, %s1245
                $region76: #{conv_q_forward.4} parent=65 // loop_header_branch
                  %1233 = sbr.rel (%p1230) target = $region80
                $region77: #{conv_q_forward.4} parent=65 // loop_body
                  %v1237 = vld [vmem:[%s1235] sm:$0xff]
                  %1238 = vst [vmem:[%s1236] sm:$0xff] %v1237
                  %s1239 = sadd.s32 1, %s1234
                  %p1240 = scmp.ge.s32.totalorder %s1239, %s1222
                  %s1241 = scalar_select %p1240, 0, %s1239
                  %s1242 = smul.u32 %s1241, 8
                  %s1243 = smul.u32 %s1241, 8
                  %s1244 = scalar_lea.vmem %s1225, %s1242 [#allocation2]
                  %s1245 = scalar_lea.vmem %s1227, %s1243
                $region78: #{conv_q_forward.4} parent=65 // loop_footer
                  %s1231 = sadd.s32 %s1229, 1
                $region79: #{conv_q_forward.4} parent=65 // loop_footer_branch
                  %1228 = sbr.rel target = $region75
                $region80: #{conv_q_forward.4} parent=65 // loop_exit
                  _
              $region66: #{conv_q_forward.4} parent=43 // pred_fallthru
                _
              // Predicated region
              $region81: #{conv_q_forward.4} parent=43 // pred_check
                _
              $region82: #{conv_q_forward.4} parent=43 // pred_check_branch
                %1247 = sbr.rel target = $region84
              $region83: #{conv_q_forward.4} parent=43 // pred_region
                _
              $region84: #{conv_q_forward.4} parent=43 // pred_fallthru
                _
            $region44: #{conv_q_forward.4} parent=39 // pred_fallthru
              _
            // Predicated region
            $region45: #{conv_q_forward.4} parent=39 // pred_check
              _
            $region46: #{conv_q_forward.4} parent=39 // pred_check_branch
              %902 = sbr.rel target = $region48
            $region47: #{conv_q_forward.4} parent=39 // pred_region
              %s904 = sshrl.u32 %s891, 6
              // While loop
              $region49: #{conv_q_forward.4} parent=47 // loop_pre_header
                _
              $region50: #{conv_q_forward.4} parent=47 // loop_header
                %s906 = sphi 0, %s908
                %p907 = scmp.ge.s32.totalorder %s906, %s904
                %s911 = sphi 0, %s1044
                %s912 = sphi %s884, %s1047
                %s913 = sphi %s895, %s1048
              $region51: #{conv_q_forward.4} parent=47 // loop_header_branch
                %910 = sbr.rel (%p907) target = $region55
              $region52: #{conv_q_forward.4} parent=47 // loop_body
                %v914 = vld [vmem:[%s912] sm:$0xff]
                %915 = vst [vmem:[%s913] sm:$0xff] %v914
                %v916 = vld [vmem:[%s912 + $0x8] sm:$0xff]
                %917 = vst [vmem:[%s913 + $0x8] sm:$0xff] %v916
                %v918 = vld [vmem:[%s912 + $0x10] sm:$0xff]
                %919 = vst [vmem:[%s913 + $0x10] sm:$0xff] %v918
                %v920 = vld [vmem:[%s912 + $0x18] sm:$0xff]
                %921 = vst [vmem:[%s913 + $0x18] sm:$0xff] %v920
                %v922 = vld [vmem:[%s912 + $0x20] sm:$0xff]
                %923 = vst [vmem:[%s913 + $0x20] sm:$0xff] %v922
                %v924 = vld [vmem:[%s912 + $0x28] sm:$0xff]
                %925 = vst [vmem:[%s913 + $0x28] sm:$0xff] %v924
                %v926 = vld [vmem:[%s912 + $0x30] sm:$0xff]
                %927 = vst [vmem:[%s913 + $0x30] sm:$0xff] %v926
                %v928 = vld [vmem:[%s912 + $0x38] sm:$0xff]
                %929 = vst [vmem:[%s913 + $0x38] sm:$0xff] %v928
                %v930 = vld [vmem:[%s912 + $0x40] sm:$0xff]
                %931 = vst [vmem:[%s913 + $0x40] sm:$0xff] %v930
                %v932 = vld [vmem:[%s912 + $0x48] sm:$0xff]
                %933 = vst [vmem:[%s913 + $0x48] sm:$0xff] %v932
                %v934 = vld [vmem:[%s912 + $0x50] sm:$0xff]
                %935 = vst [vmem:[%s913 + $0x50] sm:$0xff] %v934
                %v936 = vld [vmem:[%s912 + $0x58] sm:$0xff]
                %937 = vst [vmem:[%s913 + $0x58] sm:$0xff] %v936
                %v938 = vld [vmem:[%s912 + $0x60] sm:$0xff]
                %939 = vst [vmem:[%s913 + $0x60] sm:$0xff] %v938
                %v940 = vld [vmem:[%s912 + $0x68] sm:$0xff]
                %941 = vst [vmem:[%s913 + $0x68] sm:$0xff] %v940
                %v942 = vld [vmem:[%s912 + $0x70] sm:$0xff]
                %943 = vst [vmem:[%s913 + $0x70] sm:$0xff] %v942
                %v944 = vld [vmem:[%s912 + $0x78] sm:$0xff]
                %945 = vst [vmem:[%s913 + $0x78] sm:$0xff] %v944
                %v946 = vld [vmem:[%s912 + $0x80] sm:$0xff]
                %947 = vst [vmem:[%s913 + $0x80] sm:$0xff] %v946
                %v948 = vld [vmem:[%s912 + $0x88] sm:$0xff]
                %949 = vst [vmem:[%s913 + $0x88] sm:$0xff] %v948
                %v950 = vld [vmem:[%s912 + $0x90] sm:$0xff]
                %951 = vst [vmem:[%s913 + $0x90] sm:$0xff] %v950
                %v952 = vld [vmem:[%s912 + $0x98] sm:$0xff]
                %953 = vst [vmem:[%s913 + $0x98] sm:$0xff] %v952
                %v954 = vld [vmem:[%s912 + $0xa0] sm:$0xff]
                %955 = vst [vmem:[%s913 + $0xa0] sm:$0xff] %v954
                %v956 = vld [vmem:[%s912 + $0xa8] sm:$0xff]
                %957 = vst [vmem:[%s913 + $0xa8] sm:$0xff] %v956
                %v958 = vld [vmem:[%s912 + $0xb0] sm:$0xff]
                %959 = vst [vmem:[%s913 + $0xb0] sm:$0xff] %v958
                %v960 = vld [vmem:[%s912 + $0xb8] sm:$0xff]
                %961 = vst [vmem:[%s913 + $0xb8] sm:$0xff] %v960
                %v962 = vld [vmem:[%s912 + $0xc0] sm:$0xff]
                %963 = vst [vmem:[%s913 + $0xc0] sm:$0xff] %v962
                %v964 = vld [vmem:[%s912 + $0xc8] sm:$0xff]
                %965 = vst [vmem:[%s913 + $0xc8] sm:$0xff] %v964
                %v966 = vld [vmem:[%s912 + $0xd0] sm:$0xff]
                %967 = vst [vmem:[%s913 + $0xd0] sm:$0xff] %v966
                %v968 = vld [vmem:[%s912 + $0xd8] sm:$0xff]
                %969 = vst [vmem:[%s913 + $0xd8] sm:$0xff] %v968
                %v970 = vld [vmem:[%s912 + $0xe0] sm:$0xff]
                %971 = vst [vmem:[%s913 + $0xe0] sm:$0xff] %v970
                %v972 = vld [vmem:[%s912 + $0xe8] sm:$0xff]
                %973 = vst [vmem:[%s913 + $0xe8] sm:$0xff] %v972
                %v974 = vld [vmem:[%s912 + $0xf0] sm:$0xff]
                %975 = vst [vmem:[%s913 + $0xf0] sm:$0xff] %v974
                %v976 = vld [vmem:[%s912 + $0xf8] sm:$0xff]
                %977 = vst [vmem:[%s913 + $0xf8] sm:$0xff] %v976
                %v978 = vld [vmem:[%s912 + $0x100] sm:$0xff]
                %979 = vst [vmem:[%s913 + $0x100] sm:$0xff] %v978
                %v980 = vld [vmem:[%s912 + $0x108] sm:$0xff]
                %981 = vst [vmem:[%s913 + $0x108] sm:$0xff] %v980
                %v982 = vld [vmem:[%s912 + $0x110] sm:$0xff]
                %983 = vst [vmem:[%s913 + $0x110] sm:$0xff] %v982
                %v984 = vld [vmem:[%s912 + $0x118] sm:$0xff]
                %985 = vst [vmem:[%s913 + $0x118] sm:$0xff] %v984
                %v986 = vld [vmem:[%s912 + $0x120] sm:$0xff]
                %987 = vst [vmem:[%s913 + $0x120] sm:$0xff] %v986
                %v988 = vld [vmem:[%s912 + $0x128] sm:$0xff]
                %989 = vst [vmem:[%s913 + $0x128] sm:$0xff] %v988
                %v990 = vld [vmem:[%s912 + $0x130] sm:$0xff]
                %991 = vst [vmem:[%s913 + $0x130] sm:$0xff] %v990
                %v992 = vld [vmem:[%s912 + $0x138] sm:$0xff]
                %993 = vst [vmem:[%s913 + $0x138] sm:$0xff] %v992
                %v994 = vld [vmem:[%s912 + $0x140] sm:$0xff]
                %995 = vst [vmem:[%s913 + $0x140] sm:$0xff] %v994
                %v996 = vld [vmem:[%s912 + $0x148] sm:$0xff]
                %997 = vst [vmem:[%s913 + $0x148] sm:$0xff] %v996
                %v998 = vld [vmem:[%s912 + $0x150] sm:$0xff]
                %999 = vst [vmem:[%s913 + $0x150] sm:$0xff] %v998
                %v1000 = vld [vmem:[%s912 + $0x158] sm:$0xff]
                %1001 = vst [vmem:[%s913 + $0x158] sm:$0xff] %v1000
                %v1002 = vld [vmem:[%s912 + $0x160] sm:$0xff]
                %1003 = vst [vmem:[%s913 + $0x160] sm:$0xff] %v1002
                %v1004 = vld [vmem:[%s912 + $0x168] sm:$0xff]
                %1005 = vst [vmem:[%s913 + $0x168] sm:$0xff] %v1004
                %v1006 = vld [vmem:[%s912 + $0x170] sm:$0xff]
                %1007 = vst [vmem:[%s913 + $0x170] sm:$0xff] %v1006
                %v1008 = vld [vmem:[%s912 + $0x178] sm:$0xff]
                %1009 = vst [vmem:[%s913 + $0x178] sm:$0xff] %v1008
                %v1010 = vld [vmem:[%s912 + $0x180] sm:$0xff]
                %1011 = vst [vmem:[%s913 + $0x180] sm:$0xff] %v1010
                %v1012 = vld [vmem:[%s912 + $0x188] sm:$0xff]
                %1013 = vst [vmem:[%s913 + $0x188] sm:$0xff] %v1012
                %v1014 = vld [vmem:[%s912 + $0x190] sm:$0xff]
                %1015 = vst [vmem:[%s913 + $0x190] sm:$0xff] %v1014
                %v1016 = vld [vmem:[%s912 + $0x198] sm:$0xff]
                %1017 = vst [vmem:[%s913 + $0x198] sm:$0xff] %v1016
                %v1018 = vld [vmem:[%s912 + $0x1a0] sm:$0xff]
                %1019 = vst [vmem:[%s913 + $0x1a0] sm:$0xff] %v1018
                %v1020 = vld [vmem:[%s912 + $0x1a8] sm:$0xff]
                %1021 = vst [vmem:[%s913 + $0x1a8] sm:$0xff] %v1020
                %v1022 = vld [vmem:[%s912 + $0x1b0] sm:$0xff]
                %1023 = vst [vmem:[%s913 + $0x1b0] sm:$0xff] %v1022
                %v1024 = vld [vmem:[%s912 + $0x1b8] sm:$0xff]
                %1025 = vst [vmem:[%s913 + $0x1b8] sm:$0xff] %v1024
                %v1026 = vld [vmem:[%s912 + $0x1c0] sm:$0xff]
                %1027 = vst [vmem:[%s913 + $0x1c0] sm:$0xff] %v1026
                %v1028 = vld [vmem:[%s912 + $0x1c8] sm:$0xff]
                %1029 = vst [vmem:[%s913 + $0x1c8] sm:$0xff] %v1028
                %v1030 = vld [vmem:[%s912 + $0x1d0] sm:$0xff]
                %1031 = vst [vmem:[%s913 + $0x1d0] sm:$0xff] %v1030
                %v1032 = vld [vmem:[%s912 + $0x1d8] sm:$0xff]
                %1033 = vst [vmem:[%s913 + $0x1d8] sm:$0xff] %v1032
                %v1034 = vld [vmem:[%s912 + $0x1e0] sm:$0xff]
                %1035 = vst [vmem:[%s913 + $0x1e0] sm:$0xff] %v1034
                %v1036 = vld [vmem:[%s912 + $0x1e8] sm:$0xff]
                %1037 = vst [vmem:[%s913 + $0x1e8] sm:$0xff] %v1036
                %v1038 = vld [vmem:[%s912 + $0x1f0] sm:$0xff]
                %1039 = vst [vmem:[%s913 + $0x1f0] sm:$0xff] %v1038
                %v1040 = vld [vmem:[%s912 + $0x1f8] sm:$0xff]
                %1041 = vst [vmem:[%s913 + $0x1f8] sm:$0xff] %v1040
                %s1042 = sadd.s32 1, %s911
                %p1043 = scmp.ge.s32.totalorder %s1042, %s904
                %s1044 = scalar_select %p1043, 0, %s1042
                %s1045 = smul.u32 %s1044, 512
                %s1046 = smul.u32 %s1044, 512
                %s1047 = scalar_lea.vmem %s884, %s1045 [#allocation2]
                %s1048 = scalar_lea.vmem %s895, %s1046
              $region53: #{conv_q_forward.4} parent=47 // loop_footer
                %s908 = sadd.s32 %s906, 1
              $region54: #{conv_q_forward.4} parent=47 // loop_footer_branch
                %905 = sbr.rel target = $region50
              $region55: #{conv_q_forward.4} parent=47 // loop_exit
                _
              %s1049 = sshrl.u32 %s891, 6
              %s1050 = sand.u32 %s891, 63
              %s1051 = smul.u32 %s1049, 64
              %s1052 = smul.u32 8, %s1051
              %s1053 = scalar_lea.vmem %s884, %s1052 [#allocation2]
              %s1054 = smul.u32 8, %s1051
              %s1055 = scalar_lea.vmem %s895, %s1054
              // While loop
              $region56: #{conv_q_forward.4} parent=47 // loop_pre_header
                _
              $region57: #{conv_q_forward.4} parent=47 // loop_header
                %s1057 = sphi 0, %s1059
                %p1058 = scmp.ge.s32.totalorder %s1057, %s1050
                %s1062 = sphi 0, %s1069
                %s1063 = sphi %s1053, %s1072
                %s1064 = sphi %s1055, %s1073
              $region58: #{conv_q_forward.4} parent=47 // loop_header_branch
                %1061 = sbr.rel (%p1058) target = $region62
              $region59: #{conv_q_forward.4} parent=47 // loop_body
                %v1065 = vld [vmem:[%s1063] sm:$0xff]
                %1066 = vst [vmem:[%s1064] sm:$0xff] %v1065
                %s1067 = sadd.s32 1, %s1062
                %p1068 = scmp.ge.s32.totalorder %s1067, %s1050
                %s1069 = scalar_select %p1068, 0, %s1067
                %s1070 = smul.u32 %s1069, 8
                %s1071 = smul.u32 %s1069, 8
                %s1072 = scalar_lea.vmem %s1053, %s1070 [#allocation2]
                %s1073 = scalar_lea.vmem %s1055, %s1071
              $region60: #{conv_q_forward.4} parent=47 // loop_footer
                %s1059 = sadd.s32 %s1057, 1
              $region61: #{conv_q_forward.4} parent=47 // loop_footer_branch
                %1056 = sbr.rel target = $region57
              $region62: #{conv_q_forward.4} parent=47 // loop_exit
                _
            $region48: #{conv_q_forward.4} parent=39 // pred_fallthru
              _
          $region40: #{conv_q_forward.4} parent=35 // pred_fallthru
            _
          %1248 = vnop
        $region36: #{conv_q_forward.4} parent=31 // pred_fallthru
          _
      $region32: #{conv_q_forward.4} parent=5 // pred_fallthru
        _
      %p1249 = scmp.le.s32.totalorder 2, %s9
      // Predicated region
      $region85: #{conv_q_forward.4} parent=5 // pred_check
        %p1250 = pneg %p1249
      $region86: #{conv_q_forward.4} parent=5 // pred_check_branch
        %1252 = sbr.rel (%p1250) target = $region88
      $region87: #{conv_q_forward.4} parent=5 // pred_region
        %s1253 = ssub.s32 %s9, 2
        // Predicated region
        $region89: #{conv_q_forward.4} parent=87 // pred_check
          %p1254 = pneg %p106
        $region90: #{conv_q_forward.4} parent=87 // pred_check_branch
          %1256 = sbr.rel (%p1254) target = $region92
        $region91: #{conv_q_forward.4} parent=87 // pred_region
          %s1257 = sand.u32 %s91, 1
          %s1258 = sand.u32 %s91, 1
          %s1259 = smul.addr %s1258, 512
          %s1260 = scalar_lea.vmem [#allocation2], %s1259
        $region92: #{conv_q_forward.4} parent=87 // pred_fallthru
          _
      $region88: #{conv_q_forward.4} parent=5 // pred_fallthru
        _
    $region6: #{conv_q_forward.4} parent=1 // loop_footer
      %s13 = sadd.s32 1, %s9
    $region7: #{conv_q_forward.4} parent=1 // loop_footer_branch
      %8 = sbr.rel target = $region3
    $region8: #{conv_q_forward.4} parent=1 // loop_exit
      _

// kernel: conv_q_forward.5
$region0: #{conv_q_forward.5}
  #allocation0 [shape = 'u32[]', space=smem, size = 0x4, offset = 0x4, fixed_abs, tag = 'smem constant byte address 0x4 - core index']
  #allocation1 [shape = 'u32[144,128]{1,0:T(1,128)}', space=vmem, size = 0x12000, scoped, tag = 'internal scratch']
  %s0 = inlined_call_operand.vmem [shape: f32[162,512], index: 0, kind: input, shape index: {}]
  %s1 = inlined_call_operand.vmem [shape: f32[512,64], index: 1, kind: input, shape index: {}]
  %s2 = inlined_call_operand.vmem [shape: f32[1,64], index: 2, kind: input, shape index: {}]
  %s3 = inlined_call_operand.vmem [shape: f32[162,64], index: 3, kind: output, shape index: {}]
  %s4 = sld [smem:[#allocation0]]
  $region22: #{conv_q_forward.5} parent=0
    _
  %s6 = ssub.s32 1, %s4
  %s7 = scalar_select 0, %s6, %s4
  // Predicated region
  $region2: #{conv_q_forward.5} parent=0 // pred_check
    _
  $region3: #{conv_q_forward.5} parent=0 // pred_check_branch
    %9 = sbr.rel (0) target = $region5
  $region4: #{conv_q_forward.5} parent=0 // pred_region
    _
  $region5: #{conv_q_forward.5} parent=0 // pred_fallthru
    _
  // Predicated region
  $region6: #{conv_q_forward.5} parent=0 // pred_check
    _
  $region7: #{conv_q_forward.5} parent=0 // pred_check_branch
    %11 = sbr.rel (0) target = $region9
  $region8: #{conv_q_forward.5} parent=0 // pred_region
    _
  $region9: #{conv_q_forward.5} parent=0 // pred_fallthru
    _
  // Predicated region
  $region10: #{conv_q_forward.5} parent=0 // pred_check
    _
  $region11: #{conv_q_forward.5} parent=0 // pred_check_branch
    %13 = sbr.rel (0) target = $region13
  $region12: #{conv_q_forward.5} parent=0 // pred_region
    _
  $region13: #{conv_q_forward.5} parent=0 // pred_fallthru
    _
  %v14 = vld [vmem:[%s0] sm:$0xff]
  %v15 = vld [vmem:[%s0 + $0x8] sm:$0xff]
  %v16 = vld [vmem:[%s0 + $0x10] sm:$0xff]
  %v17 = vld [vmem:[%s0 + $0x18] sm:$0xff]
  %v18 = vld [vmem:[%s0 + $0x20] sm:$0xff]
  %v19 = vld [vmem:[%s0 + $0x28] sm:$0xff]
  %v20 = vld [vmem:[%s0 + $0x30] sm:$0xff]
  %v21 = vld [vmem:[%s0 + $0x38] sm:$0xff]
  %v22 = vld [vmem:[%s0 + $0x40] sm:$0xff]
  %v23 = vld [vmem:[%s0 + $0x48] sm:$0xff]
  %v24 = vld [vmem:[%s0 + $0x50] sm:$0xff]
  %v25 = vld [vmem:[%s0 + $0x58] sm:$0xff]
  %v26 = vld [vmem:[%s0 + $0x60] sm:$0xff]
  %v27 = vld [vmem:[%s0 + $0x68] sm:$0xff]
  %v28 = vld [vmem:[%s0 + $0x70] sm:$0xff]
  %v29 = vld [vmem:[%s0 + $0x78] sm:$0xff]
  %v30 = vld [vmem:[%s0 + $0x80] sm:$0xff]
  %v31 = vld [vmem:[%s0 + $0x88] sm:$0xff]
  %v32 = vld [vmem:[%s0 + $0x90] sm:$0xff]
  %v33 = vld [vmem:[%s0 + $0x98] sm:$0xff]
  %v34 = vld [vmem:[%s0 + $0xa0] sm:$0xff]
  %v35 = vld [vmem:[%s0 + $0xa8] sm:$0xff]
  %v36 = vld [vmem:[%s0 + $0xb0] sm:$0xff]
  %v37 = vld [vmem:[%s0 + $0xb8] sm:$0xff]
  %v38 = vld [vmem:[%s0 + $0xc0] sm:$0xff]
  %v39 = vld [vmem:[%s0 + $0xc8] sm:$0xff]
  %v40 = vld [vmem:[%s0 + $0xd0] sm:$0xff]
  %v41 = vld [vmem:[%s0 + $0xd8] sm:$0xff]
  %v42 = vld [vmem:[%s0 + $0xe0] sm:$0xff]
  %v43 = vld [vmem:[%s0 + $0xe8] sm:$0xff]
  %v44 = vld [vmem:[%s0 + $0xf0] sm:$0xff]
  %v45 = vld [vmem:[%s0 + $0xf8] sm:$0xff]
  %v46 = vld [vmem:[%s0 + $0x100] sm:$0xff]
  %v47 = vld [vmem:[%s0 + $0x108] sm:$0xff]
  %v48 = vld [vmem:[%s0 + $0x110] sm:$0xff]
  %v49 = vld [vmem:[%s0 + $0x118] sm:$0xff]
  %v50 = vld [vmem:[%s0 + $0x120] sm:$0xff]
  %v51 = vld [vmem:[%s0 + $0x128] sm:$0xff]
  %v52 = vld [vmem:[%s0 + $0x130] sm:$0xff]
  %v53 = vld [vmem:[%s0 + $0x138] sm:$0xff]
  %v54 = vld [vmem:[%s0 + $0x140] sm:$0xff]
  %v55 = vld [vmem:[%s0 + $0x148] sm:$0xff]
  %v56 = vld [vmem:[%s0 + $0x150] sm:$0xff]
  %v57 = vld [vmem:[%s0 + $0x158] sm:$0xff]
  %v58 = vld [vmem:[%s0 + $0x160] sm:$0xff]
  %v59 = vld [vmem:[%s0 + $0x168] sm:$0xff]
  %v60 = vld [vmem:[%s0 + $0x170] sm:$0xff]
  %v61 = vld [vmem:[%s0 + $0x178] sm:$0xff]
  %v62 = vld [vmem:[%s0 + $0x180] sm:$0xff]
  %v63 = vld [vmem:[%s0 + $0x188] sm:$0xff]
  %v64 = vld [vmem:[%s0 + $0x190] sm:$0xff]
  %v65 = vld [vmem:[%s0 + $0x198] sm:$0xff]
  %v66 = vld [vmem:[%s0 + $0x1a0] sm:$0xff]
  %v67 = vld [vmem:[%s0 + $0x1a8] sm:$0xff]
  %v68 = vld [vmem:[%s0 + $0x1b0] sm:$0xff]
  %v69 = vld [vmem:[%s0 + $0x1b8] sm:$0xff]
  %v70 = vld [vmem:[%s0 + $0x1c0] sm:$0xff]
  %v71 = vld [vmem:[%s0 + $0x1c8] sm:$0xff]
  %v72 = vld [vmem:[%s0 + $0x1d0] sm:$0xff]
  %v73 = vld [vmem:[%s0 + $0x1d8] sm:$0xff]
  %v74 = vld [vmem:[%s0 + $0x1e0] sm:$0xff]
  %v75 = vld [vmem:[%s0 + $0x1e8] sm:$0xff]
  %v76 = vld [vmem:[%s0 + $0x1f0] sm:$0xff]
  %v77 = vld [vmem:[%s0 + $0x1f8] sm:$0xff]
  %v78 = vld [vmem:[%s0 + $0x200] sm:$0xff]
  %v79 = vld [vmem:[%s0 + $0x208] sm:$0xff]
  %v80 = vld [vmem:[%s0 + $0x210] sm:$0xff]
  %v81 = vld [vmem:[%s0 + $0x218] sm:$0xff]
  %v82 = vld [vmem:[%s0 + $0x220] sm:$0xff]
  %v83 = vld [vmem:[%s0 + $0x228] sm:$0xff]
  %v84 = vld [vmem:[%s0 + $0x230] sm:$0xff]
  %v85 = vld [vmem:[%s0 + $0x238] sm:$0xff]
  %v86 = vld [vmem:[%s0 + $0x240] sm:$0xff]
  %v87 = vld [vmem:[%s0 + $0x248] sm:$0xff]
  %v88 = vld [vmem:[%s0 + $0x250] sm:$0xff]
  %v89 = vld [vmem:[%s0 + $0x258] sm:$0xff]
  %v90 = vld [vmem:[%s0 + $0x260] sm:$0xff]
  %v91 = vld [vmem:[%s0 + $0x268] sm:$0xff]
  %v92 = vld [vmem:[%s0 + $0x270] sm:$0xff]
  %v93 = vld [vmem:[%s0 + $0x278] sm:$0xff]
  %v94 = vld [vmem:[%s0 + $0x280] sm:$0x3]
  %v95 = vld [vmem:[%s0 + $0x288] sm:$0x3]
  %v96 = vld [vmem:[%s0 + $0x290] sm:$0x3]
  %v97 = vld [vmem:[%s0 + $0x298] sm:$0x3]
  %v98 = vld [vmem:[%s1] sm:$0xff]
  %v99 = vld [vmem:[%s1 + $0x8] sm:$0xff]
  %v100 = vld [vmem:[%s1 + $0x10] sm:$0xff]
  %v101 = vld [vmem:[%s1 + $0x18] sm:$0xff]
  %v102 = vld [vmem:[%s1 + $0x20] sm:$0xff]
  %v103 = vld [vmem:[%s1 + $0x28] sm:$0xff]
  %v104 = vld [vmem:[%s1 + $0x30] sm:$0xff]
  %v105 = vld [vmem:[%s1 + $0x38] sm:$0xff]
  %v106 = vld [vmem:[%s1 + $0x40] sm:$0xff]
  %v107 = vld [vmem:[%s1 + $0x48] sm:$0xff]
  %v108 = vld [vmem:[%s1 + $0x50] sm:$0xff]
  %v109 = vld [vmem:[%s1 + $0x58] sm:$0xff]
  %v110 = vld [vmem:[%s1 + $0x60] sm:$0xff]
  %v111 = vld [vmem:[%s1 + $0x68] sm:$0xff]
  %v112 = vld [vmem:[%s1 + $0x70] sm:$0xff]
  %v113 = vld [vmem:[%s1 + $0x78] sm:$0xff]
  %v114 = vld [vmem:[%s1 + $0x80] sm:$0xff]
  %v115 = vld [vmem:[%s1 + $0x88] sm:$0xff]
  %v116 = vld [vmem:[%s1 + $0x90] sm:$0xff]
  %v117 = vld [vmem:[%s1 + $0x98] sm:$0xff]
  %v118 = vld [vmem:[%s1 + $0xa0] sm:$0xff]
  %v119 = vld [vmem:[%s1 + $0xa8] sm:$0xff]
  %v120 = vld [vmem:[%s1 + $0xb0] sm:$0xff]
  %v121 = vld [vmem:[%s1 + $0xb8] sm:$0xff]
  %v122 = vld [vmem:[%s1 + $0xc0] sm:$0xff]
  %v123 = vld [vmem:[%s1 + $0xc8] sm:$0xff]
  %v124 = vld [vmem:[%s1 + $0xd0] sm:$0xff]
  %v125 = vld [vmem:[%s1 + $0xd8] sm:$0xff]
  %v126 = vld [vmem:[%s1 + $0xe0] sm:$0xff]
  %v127 = vld [vmem:[%s1 + $0xe8] sm:$0xff]
  %v128 = vld [vmem:[%s1 + $0xf0] sm:$0xff]
  %v129 = vld [vmem:[%s1 + $0xf8] sm:$0xff]
  %v130 = vld [vmem:[%s1 + $0x100] sm:$0xff]
  %v131 = vld [vmem:[%s1 + $0x108] sm:$0xff]
  %v132 = vld [vmem:[%s1 + $0x110] sm:$0xff]
  %v133 = vld [vmem:[%s1 + $0x118] sm:$0xff]
  %v134 = vld [vmem:[%s1 + $0x120] sm:$0xff]
  %v135 = vld [vmem:[%s1 + $0x128] sm:$0xff]
  %v136 = vld [vmem:[%s1 + $0x130] sm:$0xff]
  %v137 = vld [vmem:[%s1 + $0x138] sm:$0xff]
  %v138 = vld [vmem:[%s1 + $0x140] sm:$0xff]
  %v139 = vld [vmem:[%s1 + $0x148] sm:$0xff]
  %v140 = vld [vmem:[%s1 + $0x150] sm:$0xff]
  %v141 = vld [vmem:[%s1 + $0x158] sm:$0xff]
  %v142 = vld [vmem:[%s1 + $0x160] sm:$0xff]
  %v143 = vld [vmem:[%s1 + $0x168] sm:$0xff]
  %v144 = vld [vmem:[%s1 + $0x170] sm:$0xff]
  %v145 = vld [vmem:[%s1 + $0x178] sm:$0xff]
  %v146 = vld [vmem:[%s1 + $0x180] sm:$0xff]
  %v147 = vld [vmem:[%s1 + $0x188] sm:$0xff]
  %v148 = vld [vmem:[%s1 + $0x190] sm:$0xff]
  %v149 = vld [vmem:[%s1 + $0x198] sm:$0xff]
  %v150 = vld [vmem:[%s1 + $0x1a0] sm:$0xff]
  %v151 = vld [vmem:[%s1 + $0x1a8] sm:$0xff]
  %v152 = vld [vmem:[%s1 + $0x1b0] sm:$0xff]
  %v153 = vld [vmem:[%s1 + $0x1b8] sm:$0xff]
  %v154 = vld [vmem:[%s1 + $0x1c0] sm:$0xff]
  %v155 = vld [vmem:[%s1 + $0x1c8] sm:$0xff]
  %v156 = vld [vmem:[%s1 + $0x1d0] sm:$0xff]
  %v157 = vld [vmem:[%s1 + $0x1d8] sm:$0xff]
  %v158 = vld [vmem:[%s1 + $0x1e0] sm:$0xff]
  %v159 = vld [vmem:[%s1 + $0x1e8] sm:$0xff]
  %v160 = vld [vmem:[%s1 + $0x1f0] sm:$0xff]
  %v161 = vld [vmem:[%s1 + $0x1f8] sm:$0xff]
  %v162 = vld [vmem:[%s2] sm:$0x1]
  %v164 = vlaneseq
  %v165 = vshrl.u32 %v164, 7
  %v166 = vsub.s32 0, %v165
  %v167 = vrot.slane %v162, %v166
  %169 = vmatprep.subr.mxu0 0.0
  %170 = vmatpush1.msra.mxu0 %v98
  %171 = vmatprep.subr.mxu0 0.0
  %172 = vmatpush1.msra.mxu0 %v99
  %173 = vmatprep.subr.mxu0 0.0
  %174 = vmatpush1.msra.mxu0 %v100
  %175 = vmatprep.subr.mxu0 0.0
  %176 = vmatpush1.msra.mxu0 %v101
  %177 = vmatprep.subr.mxu0 0.0
  %178 = vmatpush1.msra.mxu0 %v102
  %179 = vmatprep.subr.mxu0 0.0
  %180 = vmatpush1.msra.mxu0 %v103
  %181 = vmatprep.subr.mxu0 0.0
  %182 = vmatpush1.msra.mxu0 %v104
  %183 = vmatprep.subr.mxu0 0.0
  %184 = vmatpush1.msra.mxu0 %v105
  %185 = vmatprep.subr.mxu0 0.0
  %186 = vmatpush1.msra.mxu0 %v106
  %187 = vmatprep.subr.mxu0 0.0
  %188 = vmatpush1.msra.mxu0 %v107
  %189 = vmatprep.subr.mxu0 0.0
  %190 = vmatpush1.msra.mxu0 %v108
  %191 = vmatprep.subr.mxu0 0.0
  %192 = vmatpush1.msra.mxu0 %v109
  %193 = vmatprep.subr.mxu0 0.0
  %194 = vmatpush1.msra.mxu0 %v110
  %195 = vmatprep.subr.mxu0 0.0
  %196 = vmatpush1.msra.mxu0 %v111
  %197 = vmatprep.subr.mxu0 0.0
  %198 = vmatpush1.msra.mxu0 %v112
  %199 = vmatprep.subr.mxu0 0.0
  %200 = vmatpush1.msra.mxu0 %v113
  %201 = vmatprep.subr.mxu0 0.0
  %202 = vmatpush1.msra.mxu0 %v114
  %203 = vmatprep.subr.mxu0 0.0
  %204 = vmatpush1.msra.mxu0 %v115
  %205 = vmatprep.subr.mxu0 0.0
  %206 = vmatpush1.msra.mxu0 %v116
  %207 = vmatprep.subr.mxu0 0.0
  %208 = vmatpush1.msra.mxu0 %v117
  %209 = vmatprep.subr.mxu0 0.0
  %210 = vmatpush1.msra.mxu0 %v118
  %211 = vmatprep.subr.mxu0 0.0
  %212 = vmatpush1.msra.mxu0 %v119
  %213 = vmatprep.subr.mxu0 0.0
  %214 = vmatpush1.msra.mxu0 %v120
  %215 = vmatprep.subr.mxu0 0.0
  %216 = vmatpush1.msra.mxu0 %v121
  %217 = vmatprep.subr.mxu0 0.0
  %218 = vmatpush1.msra.mxu0 %v122
  %219 = vmatprep.subr.mxu0 0.0
  %220 = vmatpush1.msra.mxu0 %v123
  %221 = vmatprep.subr.mxu0 0.0
  %222 = vmatpush1.msra.mxu0 %v124
  %223 = vmatprep.subr.mxu0 0.0
  %224 = vmatpush1.msra.mxu0 %v125
  %225 = vmatprep.subr.mxu0 0.0
  %226 = vmatpush1.msra.mxu0 %v126
  %227 = vmatprep.subr.mxu0 0.0
  %228 = vmatpush1.msra.mxu0 %v127
  %229 = vmatprep.subr.mxu0 0.0
  %230 = vmatpush1.msra.mxu0 %v128
  %231 = vmatprep.subr.mxu0 0.0
  %232 = vmatpush1.msra.mxu0 %v129
  %233 = vmatprep.mubr.f32.mxu0 %v15
  %234 = vmatmul.mubr.f32.gmra.mrb[0].mxu0 %v14
  %v235 = vpop.f32.mrb[0].mxu0
  %v236 = vadd.f32 %v167, %v235
  %v237 = vpop.f32.mrb[0].mxu0
  %238 = vmatprep.mubr.f32.mxu0 %v19
  %239 = vmatmul.mubr.f32.gmra.mrb[0].mxu0 %v18
  %v240 = vpop.f32.mrb[0].mxu0
  %v241 = vadd.f32 %v167, %v240
  %v242 = vpop.f32.mrb[0].mxu0
  %243 = vmatprep.mubr.f32.mxu0 %v23
  %244 = vmatmul.mubr.f32.gmra.mrb[0].mxu0 %v22
  %v245 = vpop.f32.mrb[0].mxu0
  %v246 = vadd.f32 %v167, %v245
  %v247 = vpop.f32.mrb[0].mxu0
  %248 = vmatprep.mubr.f32.mxu0 %v27
  %249 = vmatmul.mubr.f32.gmra.mrb[0].mxu0 %v26
  %v250 = vpop.f32.mrb[0].mxu0
  %v251 = vadd.f32 %v167, %v250
  %v252 = vpop.f32.mrb[0].mxu0
  %253 = vmatprep.mubr.f32.mxu0 %v31
  %254 = vmatmul.mubr.f32.gmra.mrb[0].mxu0 %v30
  %v255 = vpop.f32.mrb[0].mxu0
  %v256 = vadd.f32 %v167, %v255
  %v257 = vpop.f32.mrb[0].mxu0
  %258 = vmatprep.mubr.f32.mxu0 %v35
  %259 = vmatmul.mubr.f32.gmra.mrb[0].mxu0 %v34
  %v260 = vpop.f32.mrb[0].mxu0
  %v261 = vadd.f32 %v167, %v260
  %v262 = vpop.f32.mrb[0].mxu0
  %263 = vmatprep.mubr.f32.mxu0 %v39
  %264 = vmatmul.mubr.f32.gmra.mrb[0].mxu0 %v38
  %v265 = vpop.f32.mrb[0].mxu0
  %v266 = vadd.f32 %v167, %v265
  %v267 = vpop.f32.mrb[0].mxu0
  %268 = vmatprep.mubr.f32.mxu0 %v43
  %269 = vmatmul.mubr.f32.gmra.mrb[0].mxu0 %v42
  %v270 = vpop.f32.mrb[0].mxu0
  %v271 = vadd.f32 %v167, %v270
  %v272 = vpop.f32.mrb[0].mxu0
  %273 = vmatprep.mubr.f32.mxu0 %v47
  %274 = vmatmul.mubr.f32.gmra.mrb[0].mxu0 %v46
  %v275 = vpop.f32.mrb[0].mxu0
  %v276 = vadd.f32 %v167, %v275
  %v277 = vpop.f32.mrb[0].mxu0
  %278 = vmatprep.mubr.f32.mxu0 %v51
  %279 = vmatmul.mubr.f32.gmra.mrb[0].mxu0 %v50
  %v280 = vpop.f32.mrb[0].mxu0
  %v281 = vadd.f32 %v167, %v280
  %v282 = vpop.f32.mrb[0].mxu0
  %283 = vmatprep.mubr.f32.mxu0 %v55
  %284 = vmatmul.mubr.f32.gmra.mrb[0].mxu0 %v54
  %v285 = vpop.f32.mrb[0].mxu0
  %v286 = vadd.f32 %v167, %v285
  %v287 = vpop.f32.mrb[0].mxu0
  %288 = vmatprep.mubr.f32.mxu0 %v59
  %289 = vmatmul.mubr.f32.gmra.mrb[0].mxu0 %v58
  %v290 = vpop.f32.mrb[0].mxu0
  %v291 = vadd.f32 %v167, %v290
  %v292 = vpop.f32.mrb[0].mxu0
  %293 = vmatprep.mubr.f32.mxu0 %v63
  %294 = vmatmul.mubr.f32.gmra.mrb[0].mxu0 %v62
  %v295 = vpop.f32.mrb[0].mxu0
  %v296 = vadd.f32 %v167, %v295
  %v297 = vpop.f32.mrb[0].mxu0
  %298 = vmatprep.mubr.f32.mxu0 %v67
  %299 = vmatmul.mubr.f32.gmra.mrb[0].mxu0 %v66
  %v300 = vpop.f32.mrb[0].mxu0
  %v301 = vadd.f32 %v167, %v300
  %v302 = vpop.f32.mrb[0].mxu0
  %303 = vmatprep.mubr.f32.mxu0 %v71
  %304 = vmatmul.mubr.f32.gmra.mrb[0].mxu0 %v70
  %v305 = vpop.f32.mrb[0].mxu0
  %v306 = vadd.f32 %v167, %v305
  %v307 = vpop.f32.mrb[0].mxu0
  %308 = vmatprep.mubr.f32.mxu0 %v75
  %309 = vmatmul.mubr.f32.gmra.mrb[0].mxu0 %v74
  %v310 = vpop.f32.mrb[0].mxu0
  %v311 = vadd.f32 %v167, %v310
  %v312 = vpop.f32.mrb[0].mxu0
  %313 = vmatprep.mubr.f32.mxu0 %v79
  %314 = vmatmul.mubr.f32.gmra.mrb[0].mxu0 %v78
  %v315 = vpop.f32.mrb[0].mxu0
  %v316 = vadd.f32 %v167, %v315
  %v317 = vpop.f32.mrb[0].mxu0
  %318 = vmatprep.mubr.f32.mxu0 %v83
  %319 = vmatmul.mubr.f32.gmra.mrb[0].mxu0 %v82
  %v320 = vpop.f32.mrb[0].mxu0
  %v321 = vadd.f32 %v167, %v320
  %v322 = vpop.f32.mrb[0].mxu0
  %323 = vmatprep.mubr.f32.mxu0 %v87
  %324 = vmatmul.mubr.f32.gmra.mrb[0].mxu0 %v86
  %v325 = vpop.f32.mrb[0].mxu0
  %v326 = vadd.f32 %v167, %v325
  %v327 = vpop.f32.mrb[0].mxu0
  %328 = vmatprep.mubr.f32.mxu0 %v91
  %329 = vmatmul.mubr.f32.gmra.mrb[0].mxu0 %v90
  %v330 = vpop.f32.mrb[0].mxu0
  %v331 = vadd.f32 %v167, %v330
  %v332 = vpop.f32.mrb[0].mxu0
  %333 = vmatprep.mubr.f32.mxu0 %v95
  %334 = vmatmul.mubr.f32.gmra.mrb[0].mxu0 %v94
  %v335 = vpop.f32.mrb[0].mxu0
  %v336 = vadd.f32 %v167, %v335
  %v337 = vpop.f32.mrb[0].mxu0
  %338 = vdwg.mxu0
  %339 = vmatprep.subr.mxu0 0.0
  %340 = vmatpush1.msra.mxu0 %v130
  %341 = vmatprep.subr.mxu0 0.0
  %342 = vmatpush1.msra.mxu0 %v131
  %343 = vmatprep.subr.mxu0 0.0
  %344 = vmatpush1.msra.mxu0 %v132
  %345 = vmatprep.subr.mxu0 0.0
  %346 = vmatpush1.msra.mxu0 %v133
  %347 = vmatprep.subr.mxu0 0.0
  %348 = vmatpush1.msra.mxu0 %v134
  %349 = vmatprep.subr.mxu0 0.0
  %350 = vmatpush1.msra.mxu0 %v135
  %351 = vmatprep.subr.mxu0 0.0
  %352 = vmatpush1.msra.mxu0 %v136
  %353 = vmatprep.subr.mxu0 0.0
  %354 = vmatpush1.msra.mxu0 %v137
  %355 = vmatprep.subr.mxu0 0.0
  %356 = vmatpush1.msra.mxu0 %v138
  %357 = vmatprep.subr.mxu0 0.0
  %358 = vmatpush1.msra.mxu0 %v139
  %359 = vmatprep.subr.mxu0 0.0
  %360 = vmatpush1.msra.mxu0 %v140
  %361 = vmatprep.subr.mxu0 0.0
  %362 = vmatpush1.msra.mxu0 %v141
  %363 = vmatprep.subr.mxu0 0.0
  %364 = vmatpush1.msra.mxu0 %v142
  %365 = vmatprep.subr.mxu0 0.0
  %366 = vmatpush1.msra.mxu0 %v143
  %367 = vmatprep.subr.mxu0 0.0
  %368 = vmatpush1.msra.mxu0 %v144
  %369 = vmatprep.subr.mxu0 0.0
  %370 = vmatpush1.msra.mxu0 %v145
  %371 = vmatprep.subr.mxu0 0.0
  %372 = vmatpush1.msra.mxu0 %v146
  %373 = vmatprep.subr.mxu0 0.0
  %374 = vmatpush1.msra.mxu0 %v147
  %375 = vmatprep.subr.mxu0 0.0
  %376 = vmatpush1.msra.mxu0 %v148
  %377 = vmatprep.subr.mxu0 0.0
  %378 = vmatpush1.msra.mxu0 %v149
  %379 = vmatprep.subr.mxu0 0.0
  %380 = vmatpush1.msra.mxu0 %v150
  %381 = vmatprep.subr.mxu0 0.0
  %382 = vmatpush1.msra.mxu0 %v151
  %383 = vmatprep.subr.mxu0 0.0
  %384 = vmatpush1.msra.mxu0 %v152
  %385 = vmatprep.subr.mxu0 0.0
  %386 = vmatpush1.msra.mxu0 %v153
  %387 = vmatprep.subr.mxu0 0.0
  %388 = vmatpush1.msra.mxu0 %v154
  %389 = vmatprep.subr.mxu0 0.0
  %390 = vmatpush1.msra.mxu0 %v155
  %391 = vmatprep.subr.mxu0 0.0
  %392 = vmatpush1.msra.mxu0 %v156
  %393 = vmatprep.subr.mxu0 0.0
  %394 = vmatpush1.msra.mxu0 %v157
  %395 = vmatprep.subr.mxu0 0.0
  %396 = vmatpush1.msra.mxu0 %v158
  %397 = vmatprep.subr.mxu0 0.0
  %398 = vmatpush1.msra.mxu0 %v159
  %399 = vmatprep.subr.mxu0 0.0
  %400 = vmatpush1.msra.mxu0 %v160
  %401 = vmatprep.subr.mxu0 0.0
  %402 = vmatpush1.msra.mxu0 %v161
  %403 = vmatprep.mubr.f32.mxu0 %v17
  %404 = vmatmul.mubr.f32.gmra.mrb[0].mxu0 %v16
  %v405 = vpop.f32.mrb[0].mxu0
  %v406 = vadd.f32 %v236, %v405
  %v407 = vpop.f32.mrb[0].mxu0
  %408 = vmatprep.mubr.f32.mxu0 %v21
  %409 = vmatmul.mubr.f32.gmra.mrb[0].mxu0 %v20
  %v410 = vpop.f32.mrb[0].mxu0
  %v411 = vadd.f32 %v241, %v410
  %v412 = vpop.f32.mrb[0].mxu0
  %413 = vmatprep.mubr.f32.mxu0 %v25
  %414 = vmatmul.mubr.f32.gmra.mrb[0].mxu0 %v24
  %v415 = vpop.f32.mrb[0].mxu0
  %v416 = vadd.f32 %v246, %v415
  %v417 = vpop.f32.mrb[0].mxu0
  %418 = vmatprep.mubr.f32.mxu0 %v29
  %419 = vmatmul.mubr.f32.gmra.mrb[0].mxu0 %v28
  %v420 = vpop.f32.mrb[0].mxu0
  %v421 = vadd.f32 %v251, %v420
  %v422 = vpop.f32.mrb[0].mxu0
  %423 = vmatprep.mubr.f32.mxu0 %v33
  %424 = vmatmul.mubr.f32.gmra.mrb[0].mxu0 %v32
  %v425 = vpop.f32.mrb[0].mxu0
  %v426 = vadd.f32 %v256, %v425
  %v427 = vpop.f32.mrb[0].mxu0
  %428 = vmatprep.mubr.f32.mxu0 %v37
  %429 = vmatmul.mubr.f32.gmra.mrb[0].mxu0 %v36
  %v430 = vpop.f32.mrb[0].mxu0
  %v431 = vadd.f32 %v261, %v430
  %v432 = vpop.f32.mrb[0].mxu0
  %433 = vmatprep.mubr.f32.mxu0 %v41
  %434 = vmatmul.mubr.f32.gmra.mrb[0].mxu0 %v40
  %v435 = vpop.f32.mrb[0].mxu0
  %v436 = vadd.f32 %v266, %v435
  %v437 = vpop.f32.mrb[0].mxu0
  %438 = vmatprep.mubr.f32.mxu0 %v45
  %439 = vmatmul.mubr.f32.gmra.mrb[0].mxu0 %v44
  %v440 = vpop.f32.mrb[0].mxu0
  %v441 = vadd.f32 %v271, %v440
  %v442 = vpop.f32.mrb[0].mxu0
  %443 = vmatprep.mubr.f32.mxu0 %v49
  %444 = vmatmul.mubr.f32.gmra.mrb[0].mxu0 %v48
  %v445 = vpop.f32.mrb[0].mxu0
  %v446 = vadd.f32 %v276, %v445
  %v447 = vpop.f32.mrb[0].mxu0
  %448 = vmatprep.mubr.f32.mxu0 %v53
  %449 = vmatmul.mubr.f32.gmra.mrb[0].mxu0 %v52
  %v450 = vpop.f32.mrb[0].mxu0
  %v451 = vadd.f32 %v281, %v450
  %v452 = vpop.f32.mrb[0].mxu0
  %453 = vmatprep.mubr.f32.mxu0 %v57
  %454 = vmatmul.mubr.f32.gmra.mrb[0].mxu0 %v56
  %v455 = vpop.f32.mrb[0].mxu0
  %v456 = vadd.f32 %v286, %v455
  %v457 = vpop.f32.mrb[0].mxu0
  %458 = vmatprep.mubr.f32.mxu0 %v61
  %459 = vmatmul.mubr.f32.gmra.mrb[0].mxu0 %v60
  %v460 = vpop.f32.mrb[0].mxu0
  %v461 = vadd.f32 %v291, %v460
  %v462 = vpop.f32.mrb[0].mxu0
  %463 = vmatprep.mubr.f32.mxu0 %v65
  %464 = vmatmul.mubr.f32.gmra.mrb[0].mxu0 %v64
  %v465 = vpop.f32.mrb[0].mxu0
  %v466 = vadd.f32 %v296, %v465
  %v467 = vpop.f32.mrb[0].mxu0
  %468 = vmatprep.mubr.f32.mxu0 %v69
  %469 = vmatmul.mubr.f32.gmra.mrb[0].mxu0 %v68
  %v470 = vpop.f32.mrb[0].mxu0
  %v471 = vadd.f32 %v301, %v470
  %v472 = vpop.f32.mrb[0].mxu0
  %473 = vmatprep.mubr.f32.mxu0 %v73
  %474 = vmatmul.mubr.f32.gmra.mrb[0].mxu0 %v72
  %v475 = vpop.f32.mrb[0].mxu0
  %v476 = vadd.f32 %v306, %v475
  %v477 = vpop.f32.mrb[0].mxu0
  %478 = vmatprep.mubr.f32.mxu0 %v77
  %479 = vmatmul.mubr.f32.gmra.mrb[0].mxu0 %v76
  %v480 = vpop.f32.mrb[0].mxu0
  %v481 = vadd.f32 %v311, %v480
  %v482 = vpop.f32.mrb[0].mxu0
  %483 = vmatprep.mubr.f32.mxu0 %v81
  %484 = vmatmul.mubr.f32.gmra.mrb[0].mxu0 %v80
  %v485 = vpop.f32.mrb[0].mxu0
  %v486 = vadd.f32 %v316, %v485
  %v487 = vpop.f32.mrb[0].mxu0
  %488 = vmatprep.mubr.f32.mxu0 %v85
  %489 = vmatmul.mubr.f32.gmra.mrb[0].mxu0 %v84
  %v490 = vpop.f32.mrb[0].mxu0
  %v491 = vadd.f32 %v321, %v490
  %v492 = vpop.f32.mrb[0].mxu0
  %493 = vmatprep.mubr.f32.mxu0 %v89
  %494 = vmatmul.mubr.f32.gmra.mrb[0].mxu0 %v88
  %v495 = vpop.f32.mrb[0].mxu0
  %v496 = vadd.f32 %v326, %v495
  %v497 = vpop.f32.mrb[0].mxu0
  %498 = vmatprep.mubr.f32.mxu0 %v93
  %499 = vmatmul.mubr.f32.gmra.mrb[0].mxu0 %v92
  %v500 = vpop.f32.mrb[0].mxu0
  %v501 = vadd.f32 %v331, %v500
  %v502 = vpop.f32.mrb[0].mxu0
  %503 = vmatprep.mubr.f32.mxu0 %v97
  %504 = vmatmul.mubr.f32.gmra.mrb[0].mxu0 %v96
  %v505 = vpop.f32.mrb[0].mxu0
  %v506 = vadd.f32 %v336, %v505
  %v507 = vpop.f32.mrb[0].mxu0
  %508 = vdwg.mxu0
  %v509 = vmax.f32 %v406, 0.0
  %v510 = vmax.f32 %v411, 0.0
  %v511 = vmax.f32 %v416, 0.0
  %v512 = vmax.f32 %v421, 0.0
  %v513 = vmax.f32 %v426, 0.0
  %v514 = vmax.f32 %v431, 0.0
  %v515 = vmax.f32 %v436, 0.0
  %v516 = vmax.f32 %v441, 0.0
  %v517 = vmax.f32 %v446, 0.0
  %v518 = vmax.f32 %v451, 0.0
  %v519 = vmax.f32 %v456, 0.0
  %v520 = vmax.f32 %v461, 0.0
  %v521 = vmax.f32 %v466, 0.0
  %v522 = vmax.f32 %v471, 0.0
  %v523 = vmax.f32 %v476, 0.0
  %v524 = vmax.f32 %v481, 0.0
  %v525 = vmax.f32 %v486, 0.0
  %v526 = vmax.f32 %v491, 0.0
  %v527 = vmax.f32 %v496, 0.0
  %v528 = vmax.f32 %v501, 0.0
  %v529 = vmax.f32 %v506, 0.0
  %vm530 = vcmask 523264
  %531 = vst.msk [vmem:[%s3] sm:$0xff] %vm530, %v509
  %532 = vst.msk [vmem:[%s3 + $0x8] sm:$0xff] %vm530, %v510
  %533 = vst.msk [vmem:[%s3 + $0x10] sm:$0xff] %vm530, %v511
  %534 = vst.msk [vmem:[%s3 + $0x18] sm:$0xff] %vm530, %v512
  %535 = vst.msk [vmem:[%s3 + $0x20] sm:$0xff] %vm530, %v513
  %536 = vst.msk [vmem:[%s3 + $0x28] sm:$0xff] %vm530, %v514
  %537 = vst.msk [vmem:[%s3 + $0x30] sm:$0xff] %vm530, %v515
  %538 = vst.msk [vmem:[%s3 + $0x38] sm:$0xff] %vm530, %v516
  %539 = vst.msk [vmem:[%s3 + $0x40] sm:$0xff] %vm530, %v517
  %540 = vst.msk [vmem:[%s3 + $0x48] sm:$0xff] %vm530, %v518
  %541 = vst.msk [vmem:[%s3 + $0x50] sm:$0xff] %vm530, %v519
  %542 = vst.msk [vmem:[%s3 + $0x58] sm:$0xff] %vm530, %v520
  %543 = vst.msk [vmem:[%s3 + $0x60] sm:$0xff] %vm530, %v521
  %544 = vst.msk [vmem:[%s3 + $0x68] sm:$0xff] %vm530, %v522
  %545 = vst.msk [vmem:[%s3 + $0x70] sm:$0xff] %vm530, %v523
  %546 = vst.msk [vmem:[%s3 + $0x78] sm:$0xff] %vm530, %v524
  %547 = vst.msk [vmem:[%s3 + $0x80] sm:$0xff] %vm530, %v525
  %548 = vst.msk [vmem:[%s3 + $0x88] sm:$0xff] %vm530, %v526
  %549 = vst.msk [vmem:[%s3 + $0x90] sm:$0xff] %vm530, %v527
  %550 = vst.msk [vmem:[%s3 + $0x98] sm:$0xff] %vm530, %v528
  %vm551 = vcmask 517120
  %552 = vst.msk [vmem:[%s3 + $0xa0] sm:$0x3] %vm551, %v529
  // Predicated region
  $region14: #{conv_q_forward.5} parent=0 // pred_check
    _
  $region15: #{conv_q_forward.5} parent=0 // pred_check_branch
    %554 = sbr.rel (0) target = $region17
  $region16: #{conv_q_forward.5} parent=0 // pred_region
    _
  $region17: #{conv_q_forward.5} parent=0 // pred_fallthru
    _
  // Predicated region
  $region18: #{conv_q_forward.5} parent=0 // pred_check
    _
  $region19: #{conv_q_forward.5} parent=0 // pred_check_branch
    %556 = sbr.rel (0) target = $region21
  $region20: #{conv_q_forward.5} parent=0 // pred_region
    _
  $region21: #{conv_q_forward.5} parent=0 // pred_fallthru
    _

// kernel: conv_q_forward.6
$region0: #{conv_q_forward.6}
  #allocation0 [shape = 'u32[]', space=smem, size = 0x4, offset = 0x4, fixed_abs, tag = 'smem constant byte address 0x4 - core index']
  #allocation1 [shape = 'u32[144,128]{1,0:T(1,128)}', space=vmem, size = 0x12000, scoped, tag = 'internal scratch']
  %s0 = inlined_call_operand.vmem [shape: f32[98,576], index: 0, kind: input, shape index: {}]
  %s1 = inlined_call_operand.vmem [shape: f32[576,64], index: 1, kind: input, shape index: {}]
  %s2 = inlined_call_operand.vmem [shape: f32[1,64], index: 2, kind: input, shape index: {}]
  %s3 = inlined_call_operand.vmem [shape: f32[98,64], index: 3, kind: output, shape index: {}]
  %s4 = sld [smem:[#allocation0]]
  $region22: #{conv_q_forward.6} parent=0
    _
  %s6 = ssub.s32 1, %s4
  %s7 = scalar_select 0, %s6, %s4
  // Predicated region
  $region2: #{conv_q_forward.6} parent=0 // pred_check
    _
  $region3: #{conv_q_forward.6} parent=0 // pred_check_branch
    %9 = sbr.rel (0) target = $region5
  $region4: #{conv_q_forward.6} parent=0 // pred_region
    _
  $region5: #{conv_q_forward.6} parent=0 // pred_fallthru
    _
  // Predicated region
  $region6: #{conv_q_forward.6} parent=0 // pred_check
    _
  $region7: #{conv_q_forward.6} parent=0 // pred_check_branch
    %11 = sbr.rel (0) target = $region9
  $region8: #{conv_q_forward.6} parent=0 // pred_region
    _
  $region9: #{conv_q_forward.6} parent=0 // pred_fallthru
    _
  // Predicated region
  $region10: #{conv_q_forward.6} parent=0 // pred_check
    _
  $region11: #{conv_q_forward.6} parent=0 // pred_check_branch
    %13 = sbr.rel (0) target = $region13
  $region12: #{conv_q_forward.6} parent=0 // pred_region
    _
  $region13: #{conv_q_forward.6} parent=0 // pred_fallthru
    _
  %v14 = vld [vmem:[%s0] sm:$0xff]
  %v15 = vld [vmem:[%s0 + $0x8] sm:$0xff]
  %v16 = vld [vmem:[%s0 + $0x10] sm:$0xff]
  %v17 = vld [vmem:[%s0 + $0x18] sm:$0xff]
  %v18 = vld [vmem:[%s0 + $0x20] sm:$0xff]
  %v19 = vld [vmem:[%s0 + $0x28] sm:$0xff]
  %v20 = vld [vmem:[%s0 + $0x30] sm:$0xff]
  %v21 = vld [vmem:[%s0 + $0x38] sm:$0xff]
  %v22 = vld [vmem:[%s0 + $0x40] sm:$0xff]
  %v23 = vld [vmem:[%s0 + $0x48] sm:$0xff]
  %v24 = vld [vmem:[%s0 + $0x50] sm:$0xff]
  %v25 = vld [vmem:[%s0 + $0x58] sm:$0xff]
  %v26 = vld [vmem:[%s0 + $0x60] sm:$0xff]
  %v27 = vld [vmem:[%s0 + $0x68] sm:$0xff]
  %v28 = vld [vmem:[%s0 + $0x70] sm:$0xff]
  %v29 = vld [vmem:[%s0 + $0x78] sm:$0xff]
  %v30 = vld [vmem:[%s0 + $0x80] sm:$0xff]
  %v31 = vld [vmem:[%s0 + $0x88] sm:$0xff]
  %v32 = vld [vmem:[%s0 + $0x90] sm:$0xff]
  %v33 = vld [vmem:[%s0 + $0x98] sm:$0xff]
  %v34 = vld [vmem:[%s0 + $0xa0] sm:$0xff]
  %v35 = vld [vmem:[%s0 + $0xa8] sm:$0xff]
  %v36 = vld [vmem:[%s0 + $0xb0] sm:$0xff]
  %v37 = vld [vmem:[%s0 + $0xb8] sm:$0xff]
  %v38 = vld [vmem:[%s0 + $0xc0] sm:$0xff]
  %v39 = vld [vmem:[%s0 + $0xc8] sm:$0xff]
  %v40 = vld [vmem:[%s0 + $0xd0] sm:$0xff]
  %v41 = vld [vmem:[%s0 + $0xd8] sm:$0xff]
  %v42 = vld [vmem:[%s0 + $0xe0] sm:$0xff]
  %v43 = vld [vmem:[%s0 + $0xe8] sm:$0xff]
  %v44 = vld [vmem:[%s0 + $0xf0] sm:$0xff]
  %v45 = vld [vmem:[%s0 + $0xf8] sm:$0xff]
  %v46 = vld [vmem:[%s0 + $0x100] sm:$0xff]
  %v47 = vld [vmem:[%s0 + $0x108] sm:$0xff]
  %v48 = vld [vmem:[%s0 + $0x110] sm:$0xff]
  %v49 = vld [vmem:[%s0 + $0x118] sm:$0xff]
  %v50 = vld [vmem:[%s0 + $0x120] sm:$0xff]
  %v51 = vld [vmem:[%s0 + $0x128] sm:$0xff]
  %v52 = vld [vmem:[%s0 + $0x130] sm:$0xff]
  %v53 = vld [vmem:[%s0 + $0x138] sm:$0xff]
  %v54 = vld [vmem:[%s0 + $0x140] sm:$0xff]
  %v55 = vld [vmem:[%s0 + $0x148] sm:$0xff]
  %v56 = vld [vmem:[%s0 + $0x150] sm:$0xff]
  %v57 = vld [vmem:[%s0 + $0x158] sm:$0xff]
  %v58 = vld [vmem:[%s0 + $0x160] sm:$0xff]
  %v59 = vld [vmem:[%s0 + $0x168] sm:$0xff]
  %v60 = vld [vmem:[%s0 + $0x170] sm:$0xff]
  %v61 = vld [vmem:[%s0 + $0x178] sm:$0xff]
  %v62 = vld [vmem:[%s0 + $0x180] sm:$0xff]
  %v63 = vld [vmem:[%s0 + $0x188] sm:$0xff]
  %v64 = vld [vmem:[%s0 + $0x190] sm:$0xff]
  %v65 = vld [vmem:[%s0 + $0x198] sm:$0xff]
  %v66 = vld [vmem:[%s0 + $0x1a0] sm:$0xff]
  %v67 = vld [vmem:[%s0 + $0x1a8] sm:$0xff]
  %v68 = vld [vmem:[%s0 + $0x1b0] sm:$0xff]
  %v69 = vld [vmem:[%s0 + $0x1b8] sm:$0xff]
  %v70 = vld [vmem:[%s0 + $0x1c0] sm:$0xff]
  %v71 = vld [vmem:[%s0 + $0x1c8] sm:$0xff]
  %v72 = vld [vmem:[%s0 + $0x1d0] sm:$0xff]
  %v73 = vld [vmem:[%s0 + $0x1d8] sm:$0xff]
  %v74 = vld [vmem:[%s0 + $0x1e0] sm:$0x3]
  %v75 = vld [vmem:[%s0 + $0x1e8] sm:$0x3]
  %v76 = vld [vmem:[%s0 + $0x1f0] sm:$0x3]
  %v77 = vld [vmem:[%s0 + $0x1f8] sm:$0x3]
  %v78 = vld [vmem:[%s0 + $0x200] sm:$0x3]
  %v79 = vld [vmem:[%s1] sm:$0xff]
  %v80 = vld [vmem:[%s1 + $0x8] sm:$0xff]
  %v81 = vld [vmem:[%s1 + $0x10] sm:$0xff]
  %v82 = vld [vmem:[%s1 + $0x18] sm:$0xff]
  %v83 = vld [vmem:[%s1 + $0x20] sm:$0xff]
  %v84 = vld [vmem:[%s1 + $0x28] sm:$0xff]
  %v85 = vld [vmem:[%s1 + $0x30] sm:$0xff]
  %v86 = vld [vmem:[%s1 + $0x38] sm:$0xff]
  %v87 = vld [vmem:[%s1 + $0x40] sm:$0xff]
  %v88 = vld [vmem:[%s1 + $0x48] sm:$0xff]
  %v89 = vld [vmem:[%s1 + $0x50] sm:$0xff]
  %v90 = vld [vmem:[%s1 + $0x58] sm:$0xff]
  %v91 = vld [vmem:[%s1 + $0x60] sm:$0xff]
  %v92 = vld [vmem:[%s1 + $0x68] sm:$0xff]
  %v93 = vld [vmem:[%s1 + $0x70] sm:$0xff]
  %v94 = vld [vmem:[%s1 + $0x78] sm:$0xff]
  %v95 = vld [vmem:[%s1 + $0x80] sm:$0xff]
  %v96 = vld [vmem:[%s1 + $0x88] sm:$0xff]
  %v97 = vld [vmem:[%s1 + $0x90] sm:$0xff]
  %v98 = vld [vmem:[%s1 + $0x98] sm:$0xff]
  %v99 = vld [vmem:[%s1 + $0xa0] sm:$0xff]
  %v100 = vld [vmem:[%s1 + $0xa8] sm:$0xff]
  %v101 = vld [vmem:[%s1 + $0xb0] sm:$0xff]
  %v102 = vld [vmem:[%s1 + $0xb8] sm:$0xff]
  %v103 = vld [vmem:[%s1 + $0xc0] sm:$0xff]
  %v104 = vld [vmem:[%s1 + $0xc8] sm:$0xff]
  %v105 = vld [vmem:[%s1 + $0xd0] sm:$0xff]
  %v106 = vld [vmem:[%s1 + $0xd8] sm:$0xff]
  %v107 = vld [vmem:[%s1 + $0xe0] sm:$0xff]
  %v108 = vld [vmem:[%s1 + $0xe8] sm:$0xff]
  %v109 = vld [vmem:[%s1 + $0xf0] sm:$0xff]
  %v110 = vld [vmem:[%s1 + $0xf8] sm:$0xff]
  %v111 = vld [vmem:[%s1 + $0x100] sm:$0xff]
  %v112 = vld [vmem:[%s1 + $0x108] sm:$0xff]
  %v113 = vld [vmem:[%s1 + $0x110] sm:$0xff]
  %v114 = vld [vmem:[%s1 + $0x118] sm:$0xff]
  %v115 = vld [vmem:[%s1 + $0x120] sm:$0xff]
  %v116 = vld [vmem:[%s1 + $0x128] sm:$0xff]
  %v117 = vld [vmem:[%s1 + $0x130] sm:$0xff]
  %v118 = vld [vmem:[%s1 + $0x138] sm:$0xff]
  %v119 = vld [vmem:[%s1 + $0x140] sm:$0xff]
  %v120 = vld [vmem:[%s1 + $0x148] sm:$0xff]
  %v121 = vld [vmem:[%s1 + $0x150] sm:$0xff]
  %v122 = vld [vmem:[%s1 + $0x158] sm:$0xff]
  %v123 = vld [vmem:[%s1 + $0x160] sm:$0xff]
  %v124 = vld [vmem:[%s1 + $0x168] sm:$0xff]
  %v125 = vld [vmem:[%s1 + $0x170] sm:$0xff]
  %v126 = vld [vmem:[%s1 + $0x178] sm:$0xff]
  %v127 = vld [vmem:[%s1 + $0x180] sm:$0xff]
  %v128 = vld [vmem:[%s1 + $0x188] sm:$0xff]
  %v129 = vld [vmem:[%s1 + $0x190] sm:$0xff]
  %v130 = vld [vmem:[%s1 + $0x198] sm:$0xff]
  %v131 = vld [vmem:[%s1 + $0x1a0] sm:$0xff]
  %v132 = vld [vmem:[%s1 + $0x1a8] sm:$0xff]
  %v133 = vld [vmem:[%s1 + $0x1b0] sm:$0xff]
  %v134 = vld [vmem:[%s1 + $0x1b8] sm:$0xff]
  %v135 = vld [vmem:[%s1 + $0x1c0] sm:$0xff]
  %v136 = vld [vmem:[%s1 + $0x1c8] sm:$0xff]
  %v137 = vld [vmem:[%s1 + $0x1d0] sm:$0xff]
  %v138 = vld [vmem:[%s1 + $0x1d8] sm:$0xff]
  %v139 = vld [vmem:[%s1 + $0x1e0] sm:$0xff]
  %v140 = vld [vmem:[%s1 + $0x1e8] sm:$0xff]
  %v141 = vld [vmem:[%s1 + $0x1f0] sm:$0xff]
  %v142 = vld [vmem:[%s1 + $0x1f8] sm:$0xff]
  %v143 = vld [vmem:[%s1 + $0x200] sm:$0xff]
  %v144 = vld [vmem:[%s1 + $0x208] sm:$0xff]
  %v145 = vld [vmem:[%s1 + $0x210] sm:$0xff]
  %v146 = vld [vmem:[%s1 + $0x218] sm:$0xff]
  %v147 = vld [vmem:[%s1 + $0x220] sm:$0xff]
  %v148 = vld [vmem:[%s1 + $0x228] sm:$0xff]
  %v149 = vld [vmem:[%s1 + $0x230] sm:$0xff]
  %v150 = vld [vmem:[%s1 + $0x238] sm:$0xff]
  %v151 = vld [vmem:[%s2] sm:$0x1]
  %v153 = vlaneseq
  %v154 = vshrl.u32 %v153, 7
  %v155 = vsub.s32 0, %v154
  %v156 = vrot.slane %v151, %v155
  %vm158 = vcmask 523264
  %v160 = vsel %vm158, %v18, 0
  %v163 = vsel %vm158, %v23, 0
  %v166 = vsel %vm158, %v28, 0
  %v169 = vsel %vm158, %v33, 0
  %v172 = vsel %vm158, %v38, 0
  %v175 = vsel %vm158, %v43, 0
  %v178 = vsel %vm158, %v48, 0
  %v181 = vsel %vm158, %v53, 0
  %v184 = vsel %vm158, %v58, 0
  %v187 = vsel %vm158, %v63, 0
  %v190 = vsel %vm158, %v68, 0
  %v193 = vsel %vm158, %v73, 0
  %v196 = vsel %vm158, %v78, 0
  %198 = vmatprep.subr.mxu0 0.0
  %199 = vmatpush1.msra.mxu0 %v79
  %200 = vmatprep.subr.mxu0 0.0
  %201 = vmatpush1.msra.mxu0 %v80
  %202 = vmatprep.subr.mxu0 0.0
  %203 = vmatpush1.msra.mxu0 %v81
  %204 = vmatprep.subr.mxu0 0.0
  %205 = vmatpush1.msra.mxu0 %v82
  %206 = vmatprep.subr.mxu0 0.0
  %207 = vmatpush1.msra.mxu0 %v83
  %208 = vmatprep.subr.mxu0 0.0
  %209 = vmatpush1.msra.mxu0 %v84
  %210 = vmatprep.subr.mxu0 0.0
  %211 = vmatpush1.msra.mxu0 %v85
  %212 = vmatprep.subr.mxu0 0.0
  %213 = vmatpush1.msra.mxu0 %v86
  %214 = vmatprep.subr.mxu0 0.0
  %215 = vmatpush1.msra.mxu0 %v87
  %216 = vmatprep.subr.mxu0 0.0
  %217 = vmatpush1.msra.mxu0 %v88
  %218 = vmatprep.subr.mxu0 0.0
  %219 = vmatpush1.msra.mxu0 %v89
  %220 = vmatprep.subr.mxu0 0.0
  %221 = vmatpush1.msra.mxu0 %v90
  %222 = vmatprep.subr.mxu0 0.0
  %223 = vmatpush1.msra.mxu0 %v91
  %224 = vmatprep.subr.mxu0 0.0
  %225 = vmatpush1.msra.mxu0 %v92
  %226 = vmatprep.subr.mxu0 0.0
  %227 = vmatpush1.msra.mxu0 %v93
  %228 = vmatprep.subr.mxu0 0.0
  %229 = vmatpush1.msra.mxu0 %v94
  %230 = vmatprep.subr.mxu0 0.0
  %231 = vmatpush1.msra.mxu0 %v95
  %232 = vmatprep.subr.mxu0 0.0
  %233 = vmatpush1.msra.mxu0 %v96
  %234 = vmatprep.subr.mxu0 0.0
  %235 = vmatpush1.msra.mxu0 %v97
  %236 = vmatprep.subr.mxu0 0.0
  %237 = vmatpush1.msra.mxu0 %v98
  %238 = vmatprep.subr.mxu0 0.0
  %239 = vmatpush1.msra.mxu0 %v99
  %240 = vmatprep.subr.mxu0 0.0
  %241 = vmatpush1.msra.mxu0 %v100
  %242 = vmatprep.subr.mxu0 0.0
  %243 = vmatpush1.msra.mxu0 %v101
  %244 = vmatprep.subr.mxu0 0.0
  %245 = vmatpush1.msra.mxu0 %v102
  %246 = vmatprep.subr.mxu0 0.0
  %247 = vmatpush1.msra.mxu0 %v103
  %248 = vmatprep.subr.mxu0 0.0
  %249 = vmatpush1.msra.mxu0 %v104
  %250 = vmatprep.subr.mxu0 0.0
  %251 = vmatpush1.msra.mxu0 %v105
  %252 = vmatprep.subr.mxu0 0.0
  %253 = vmatpush1.msra.mxu0 %v106
  %254 = vmatprep.subr.mxu0 0.0
  %255 = vmatpush1.msra.mxu0 %v107
  %256 = vmatprep.subr.mxu0 0.0
  %257 = vmatpush1.msra.mxu0 %v108
  %258 = vmatprep.subr.mxu0 0.0
  %259 = vmatpush1.msra.mxu0 %v109
  %260 = vmatprep.subr.mxu0 0.0
  %261 = vmatpush1.msra.mxu0 %v110
  %262 = vmatprep.mubr.f32.mxu0 %v15
  %263 = vmatmul.mubr.f32.gmra.mrb[0].mxu0 %v14
  %v264 = vpop.f32.mrb[0].mxu0
  %v265 = vadd.f32 %v156, %v264
  %v266 = vpop.f32.mrb[0].mxu0
  %267 = vmatprep.mubr.f32.mxu0 %v20
  %268 = vmatmul.mubr.f32.gmra.mrb[0].mxu0 %v19
  %v269 = vpop.f32.mrb[0].mxu0
  %v270 = vadd.f32 %v156, %v269
  %v271 = vpop.f32.mrb[0].mxu0
  %272 = vmatprep.mubr.f32.mxu0 %v25
  %273 = vmatmul.mubr.f32.gmra.mrb[0].mxu0 %v24
  %v274 = vpop.f32.mrb[0].mxu0
  %v275 = vadd.f32 %v156, %v274
  %v276 = vpop.f32.mrb[0].mxu0
  %277 = vmatprep.mubr.f32.mxu0 %v30
  %278 = vmatmul.mubr.f32.gmra.mrb[0].mxu0 %v29
  %v279 = vpop.f32.mrb[0].mxu0
  %v280 = vadd.f32 %v156, %v279
  %v281 = vpop.f32.mrb[0].mxu0
  %282 = vmatprep.mubr.f32.mxu0 %v35
  %283 = vmatmul.mubr.f32.gmra.mrb[0].mxu0 %v34
  %v284 = vpop.f32.mrb[0].mxu0
  %v285 = vadd.f32 %v156, %v284
  %v286 = vpop.f32.mrb[0].mxu0
  %287 = vmatprep.mubr.f32.mxu0 %v40
  %288 = vmatmul.mubr.f32.gmra.mrb[0].mxu0 %v39
  %v289 = vpop.f32.mrb[0].mxu0
  %v290 = vadd.f32 %v156, %v289
  %v291 = vpop.f32.mrb[0].mxu0
  %292 = vmatprep.mubr.f32.mxu0 %v45
  %293 = vmatmul.mubr.f32.gmra.mrb[0].mxu0 %v44
  %v294 = vpop.f32.mrb[0].mxu0
  %v295 = vadd.f32 %v156, %v294
  %v296 = vpop.f32.mrb[0].mxu0
  %297 = vmatprep.mubr.f32.mxu0 %v50
  %298 = vmatmul.mubr.f32.gmra.mrb[0].mxu0 %v49
  %v299 = vpop.f32.mrb[0].mxu0
  %v300 = vadd.f32 %v156, %v299
  %v301 = vpop.f32.mrb[0].mxu0
  %302 = vmatprep.mubr.f32.mxu0 %v55
  %303 = vmatmul.mubr.f32.gmra.mrb[0].mxu0 %v54
  %v304 = vpop.f32.mrb[0].mxu0
  %v305 = vadd.f32 %v156, %v304
  %v306 = vpop.f32.mrb[0].mxu0
  %307 = vmatprep.mubr.f32.mxu0 %v60
  %308 = vmatmul.mubr.f32.gmra.mrb[0].mxu0 %v59
  %v309 = vpop.f32.mrb[0].mxu0
  %v310 = vadd.f32 %v156, %v309
  %v311 = vpop.f32.mrb[0].mxu0
  %312 = vmatprep.mubr.f32.mxu0 %v65
  %313 = vmatmul.mubr.f32.gmra.mrb[0].mxu0 %v64
  %v314 = vpop.f32.mrb[0].mxu0
  %v315 = vadd.f32 %v156, %v314
  %v316 = vpop.f32.mrb[0].mxu0
  %317 = vmatprep.mubr.f32.mxu0 %v70
  %318 = vmatmul.mubr.f32.gmra.mrb[0].mxu0 %v69
  %v319 = vpop.f32.mrb[0].mxu0
  %v320 = vadd.f32 %v156, %v319
  %v321 = vpop.f32.mrb[0].mxu0
  %322 = vmatprep.mubr.f32.mxu0 %v75
  %323 = vmatmul.mubr.f32.gmra.mrb[0].mxu0 %v74
  %v324 = vpop.f32.mrb[0].mxu0
  %v325 = vadd.f32 %v156, %v324
  %v326 = vpop.f32.mrb[0].mxu0
  %327 = vdwg.mxu0
  %328 = vmatprep.subr.mxu0 0.0
  %329 = vmatpush1.msra.mxu0 %v111
  %330 = vmatprep.subr.mxu0 0.0
  %331 = vmatpush1.msra.mxu0 %v112
  %332 = vmatprep.subr.mxu0 0.0
  %333 = vmatpush1.msra.mxu0 %v113
  %334 = vmatprep.subr.mxu0 0.0
  %335 = vmatpush1.msra.mxu0 %v114
  %336 = vmatprep.subr.mxu0 0.0
  %337 = vmatpush1.msra.mxu0 %v115
  %338 = vmatprep.subr.mxu0 0.0
  %339 = vmatpush1.msra.mxu0 %v116
  %340 = vmatprep.subr.mxu0 0.0
  %341 = vmatpush1.msra.mxu0 %v117
  %342 = vmatprep.subr.mxu0 0.0
  %343 = vmatpush1.msra.mxu0 %v118
  %344 = vmatprep.subr.mxu0 0.0
  %345 = vmatpush1.msra.mxu0 %v119
  %346 = vmatprep.subr.mxu0 0.0
  %347 = vmatpush1.msra.mxu0 %v120
  %348 = vmatprep.subr.mxu0 0.0
  %349 = vmatpush1.msra.mxu0 %v121
  %350 = vmatprep.subr.mxu0 0.0
  %351 = vmatpush1.msra.mxu0 %v122
  %352 = vmatprep.subr.mxu0 0.0
  %353 = vmatpush1.msra.mxu0 %v123
  %354 = vmatprep.subr.mxu0 0.0
  %355 = vmatpush1.msra.mxu0 %v124
  %356 = vmatprep.subr.mxu0 0.0
  %357 = vmatpush1.msra.mxu0 %v125
  %358 = vmatprep.subr.mxu0 0.0
  %359 = vmatpush1.msra.mxu0 %v126
  %360 = vmatprep.subr.mxu0 0.0
  %361 = vmatpush1.msra.mxu0 %v127
  %362 = vmatprep.subr.mxu0 0.0
  %363 = vmatpush1.msra.mxu0 %v128
  %364 = vmatprep.subr.mxu0 0.0
  %365 = vmatpush1.msra.mxu0 %v129
  %366 = vmatprep.subr.mxu0 0.0
  %367 = vmatpush1.msra.mxu0 %v130
  %368 = vmatprep.subr.mxu0 0.0
  %369 = vmatpush1.msra.mxu0 %v131
  %370 = vmatprep.subr.mxu0 0.0
  %371 = vmatpush1.msra.mxu0 %v132
  %372 = vmatprep.subr.mxu0 0.0
  %373 = vmatpush1.msra.mxu0 %v133
  %374 = vmatprep.subr.mxu0 0.0
  %375 = vmatpush1.msra.mxu0 %v134
  %376 = vmatprep.subr.mxu0 0.0
  %377 = vmatpush1.msra.mxu0 %v135
  %378 = vmatprep.subr.mxu0 0.0
  %379 = vmatpush1.msra.mxu0 %v136
  %380 = vmatprep.subr.mxu0 0.0
  %381 = vmatpush1.msra.mxu0 %v137
  %382 = vmatprep.subr.mxu0 0.0
  %383 = vmatpush1.msra.mxu0 %v138
  %384 = vmatprep.subr.mxu0 0.0
  %385 = vmatpush1.msra.mxu0 %v139
  %386 = vmatprep.subr.mxu0 0.0
  %387 = vmatpush1.msra.mxu0 %v140
  %388 = vmatprep.subr.mxu0 0.0
  %389 = vmatpush1.msra.mxu0 %v141
  %390 = vmatprep.subr.mxu0 0.0
  %391 = vmatpush1.msra.mxu0 %v142
  %392 = vmatprep.mubr.f32.mxu0 %v17
  %393 = vmatmul.mubr.f32.gmra.mrb[0].mxu0 %v16
  %v394 = vpop.f32.mrb[0].mxu0
  %v395 = vadd.f32 %v265, %v394
  %v396 = vpop.f32.mrb[0].mxu0
  %397 = vmatprep.mubr.f32.mxu0 %v22
  %398 = vmatmul.mubr.f32.gmra.mrb[0].mxu0 %v21
  %v399 = vpop.f32.mrb[0].mxu0
  %v400 = vadd.f32 %v270, %v399
  %v401 = vpop.f32.mrb[0].mxu0
  %402 = vmatprep.mubr.f32.mxu0 %v27
  %403 = vmatmul.mubr.f32.gmra.mrb[0].mxu0 %v26
  %v404 = vpop.f32.mrb[0].mxu0
  %v405 = vadd.f32 %v275, %v404
  %v406 = vpop.f32.mrb[0].mxu0
  %407 = vmatprep.mubr.f32.mxu0 %v32
  %408 = vmatmul.mubr.f32.gmra.mrb[0].mxu0 %v31
  %v409 = vpop.f32.mrb[0].mxu0
  %v410 = vadd.f32 %v280, %v409
  %v411 = vpop.f32.mrb[0].mxu0
  %412 = vmatprep.mubr.f32.mxu0 %v37
  %413 = vmatmul.mubr.f32.gmra.mrb[0].mxu0 %v36
  %v414 = vpop.f32.mrb[0].mxu0
  %v415 = vadd.f32 %v285, %v414
  %v416 = vpop.f32.mrb[0].mxu0
  %417 = vmatprep.mubr.f32.mxu0 %v42
  %418 = vmatmul.mubr.f32.gmra.mrb[0].mxu0 %v41
  %v419 = vpop.f32.mrb[0].mxu0
  %v420 = vadd.f32 %v290, %v419
  %v421 = vpop.f32.mrb[0].mxu0
  %422 = vmatprep.mubr.f32.mxu0 %v47
  %423 = vmatmul.mubr.f32.gmra.mrb[0].mxu0 %v46
  %v424 = vpop.f32.mrb[0].mxu0
  %v425 = vadd.f32 %v295, %v424
  %v426 = vpop.f32.mrb[0].mxu0
  %427 = vmatprep.mubr.f32.mxu0 %v52
  %428 = vmatmul.mubr.f32.gmra.mrb[0].mxu0 %v51
  %v429 = vpop.f32.mrb[0].mxu0
  %v430 = vadd.f32 %v300, %v429
  %v431 = vpop.f32.mrb[0].mxu0
  %432 = vmatprep.mubr.f32.mxu0 %v57
  %433 = vmatmul.mubr.f32.gmra.mrb[0].mxu0 %v56
  %v434 = vpop.f32.mrb[0].mxu0
  %v435 = vadd.f32 %v305, %v434
  %v436 = vpop.f32.mrb[0].mxu0
  %437 = vmatprep.mubr.f32.mxu0 %v62
  %438 = vmatmul.mubr.f32.gmra.mrb[0].mxu0 %v61
  %v439 = vpop.f32.mrb[0].mxu0
  %v440 = vadd.f32 %v310, %v439
  %v441 = vpop.f32.mrb[0].mxu0
  %442 = vmatprep.mubr.f32.mxu0 %v67
  %443 = vmatmul.mubr.f32.gmra.mrb[0].mxu0 %v66
  %v444 = vpop.f32.mrb[0].mxu0
  %v445 = vadd.f32 %v315, %v444
  %v446 = vpop.f32.mrb[0].mxu0
  %447 = vmatprep.mubr.f32.mxu0 %v72
  %448 = vmatmul.mubr.f32.gmra.mrb[0].mxu0 %v71
  %v449 = vpop.f32.mrb[0].mxu0
  %v450 = vadd.f32 %v320, %v449
  %v451 = vpop.f32.mrb[0].mxu0
  %452 = vmatprep.mubr.f32.mxu0 %v77
  %453 = vmatmul.mubr.f32.gmra.mrb[0].mxu0 %v76
  %v454 = vpop.f32.mrb[0].mxu0
  %v455 = vadd.f32 %v325, %v454
  %v456 = vpop.f32.mrb[0].mxu0
  %457 = vdwg.mxu0
  %458 = vmatprep.subr.mxu0 0.0
  %459 = vmatpush1.msra.mxu0 %v143
  %460 = vmatprep.subr.mxu0 0.0
  %461 = vmatpush1.msra.mxu0 %v144
  %462 = vmatprep.subr.mxu0 0.0
  %463 = vmatpush1.msra.mxu0 %v145
  %464 = vmatprep.subr.mxu0 0.0
  %465 = vmatpush1.msra.mxu0 %v146
  %466 = vmatprep.subr.mxu0 0.0
  %467 = vmatpush1.msra.mxu0 %v147
  %468 = vmatprep.subr.mxu0 0.0
  %469 = vmatpush1.msra.mxu0 %v148
  %470 = vmatprep.subr.mxu0 0.0
  %471 = vmatpush1.msra.mxu0 %v149
  %472 = vmatprep.subr.mxu0 0.0
  %473 = vmatpush1.msra.mxu0 %v150
  %474 = vmatprep.subr.mxu0 0.0
  %475 = vmatpush1.msra.mxu0 0.0
  %476 = vmatprep.subr.mxu0 0.0
  %477 = vmatpush1.msra.mxu0 0.0
  %478 = vmatprep.subr.mxu0 0.0
  %479 = vmatpush1.msra.mxu0 0.0
  %480 = vmatprep.subr.mxu0 0.0
  %481 = vmatpush1.msra.mxu0 0.0
  %482 = vmatprep.subr.mxu0 0.0
  %483 = vmatpush1.msra.mxu0 0.0
  %484 = vmatprep.subr.mxu0 0.0
  %485 = vmatpush1.msra.mxu0 0.0
  %486 = vmatprep.subr.mxu0 0.0
  %487 = vmatpush1.msra.mxu0 0.0
  %488 = vmatprep.subr.mxu0 0.0
  %489 = vmatpush1.msra.mxu0 0.0
  %490 = vmatprep.subr.mxu0 0.0
  %491 = vmatpush1.msra.mxu0 0.0
  %492 = vmatprep.subr.mxu0 0.0
  %493 = vmatpush1.msra.mxu0 0.0
  %494 = vmatprep.subr.mxu0 0.0
  %495 = vmatpush1.msra.mxu0 0.0
  %496 = vmatprep.subr.mxu0 0.0
  %497 = vmatpush1.msra.mxu0 0.0
  %498 = vmatprep.subr.mxu0 0.0
  %499 = vmatpush1.msra.mxu0 0.0
  %500 = vmatprep.subr.mxu0 0.0
  %501 = vmatpush1.msra.mxu0 0.0
  %502 = vmatprep.subr.mxu0 0.0
  %503 = vmatpush1.msra.mxu0 0.0
  %504 = vmatprep.subr.mxu0 0.0
  %505 = vmatpush1.msra.mxu0 0.0
  %506 = vmatprep.subr.mxu0 0.0
  %507 = vmatpush1.msra.mxu0 0.0
  %508 = vmatprep.subr.mxu0 0.0
  %509 = vmatpush1.msra.mxu0 0.0
  %510 = vmatprep.subr.mxu0 0.0
  %511 = vmatpush1.msra.mxu0 0.0
  %512 = vmatprep.subr.mxu0 0.0
  %513 = vmatpush1.msra.mxu0 0.0
  %514 = vmatprep.subr.mxu0 0.0
  %515 = vmatpush1.msra.mxu0 0.0
  %516 = vmatprep.subr.mxu0 0.0
  %517 = vmatpush1.msra.mxu0 0.0
  %518 = vmatprep.subr.mxu0 0.0
  %519 = vmatpush1.msra.mxu0 0.0
  %520 = vmatprep.subr.mxu0 0.0
  %521 = vmatpush1.msra.mxu0 0.0
  %522 = vmatprep.mubr.f32.mxu0 0.0
  %523 = vmatmul.mubr.f32.gmra.mrb[0].mxu0 %v160
  %v524 = vpop.f32.mrb[0].mxu0
  %v525 = vadd.f32 %v395, %v524
  %v526 = vpop.f32.mrb[0].mxu0
  %527 = vmatprep.mubr.f32.mxu0 0.0
  %528 = vmatmul.mubr.f32.gmra.mrb[0].mxu0 %v163
  %v529 = vpop.f32.mrb[0].mxu0
  %v530 = vadd.f32 %v400, %v529
  %v531 = vpop.f32.mrb[0].mxu0
  %532 = vmatprep.mubr.f32.mxu0 0.0
  %533 = vmatmul.mubr.f32.gmra.mrb[0].mxu0 %v166
  %v534 = vpop.f32.mrb[0].mxu0
  %v535 = vadd.f32 %v405, %v534
  %v536 = vpop.f32.mrb[0].mxu0
  %537 = vmatprep.mubr.f32.mxu0 0.0
  %538 = vmatmul.mubr.f32.gmra.mrb[0].mxu0 %v169
  %v539 = vpop.f32.mrb[0].mxu0
  %v540 = vadd.f32 %v410, %v539
  %v541 = vpop.f32.mrb[0].mxu0
  %542 = vmatprep.mubr.f32.mxu0 0.0
  %543 = vmatmul.mubr.f32.gmra.mrb[0].mxu0 %v172
  %v544 = vpop.f32.mrb[0].mxu0
  %v545 = vadd.f32 %v415, %v544
  %v546 = vpop.f32.mrb[0].mxu0
  %547 = vmatprep.mubr.f32.mxu0 0.0
  %548 = vmatmul.mubr.f32.gmra.mrb[0].mxu0 %v175
  %v549 = vpop.f32.mrb[0].mxu0
  %v550 = vadd.f32 %v420, %v549
  %v551 = vpop.f32.mrb[0].mxu0
  %552 = vmatprep.mubr.f32.mxu0 0.0
  %553 = vmatmul.mubr.f32.gmra.mrb[0].mxu0 %v178
  %v554 = vpop.f32.mrb[0].mxu0
  %v555 = vadd.f32 %v425, %v554
  %v556 = vpop.f32.mrb[0].mxu0
  %557 = vmatprep.mubr.f32.mxu0 0.0
  %558 = vmatmul.mubr.f32.gmra.mrb[0].mxu0 %v181
  %v559 = vpop.f32.mrb[0].mxu0
  %v560 = vadd.f32 %v430, %v559
  %v561 = vpop.f32.mrb[0].mxu0
  %562 = vmatprep.mubr.f32.mxu0 0.0
  %563 = vmatmul.mubr.f32.gmra.mrb[0].mxu0 %v184
  %v564 = vpop.f32.mrb[0].mxu0
  %v565 = vadd.f32 %v435, %v564
  %v566 = vpop.f32.mrb[0].mxu0
  %567 = vmatprep.mubr.f32.mxu0 0.0
  %568 = vmatmul.mubr.f32.gmra.mrb[0].mxu0 %v187
  %v569 = vpop.f32.mrb[0].mxu0
  %v570 = vadd.f32 %v440, %v569
  %v571 = vpop.f32.mrb[0].mxu0
  %572 = vmatprep.mubr.f32.mxu0 0.0
  %573 = vmatmul.mubr.f32.gmra.mrb[0].mxu0 %v190
  %v574 = vpop.f32.mrb[0].mxu0
  %v575 = vadd.f32 %v445, %v574
  %v576 = vpop.f32.mrb[0].mxu0
  %577 = vmatprep.mubr.f32.mxu0 0.0
  %578 = vmatmul.mubr.f32.gmra.mrb[0].mxu0 %v193
  %v579 = vpop.f32.mrb[0].mxu0
  %v580 = vadd.f32 %v450, %v579
  %v581 = vpop.f32.mrb[0].mxu0
  %582 = vmatprep.mubr.f32.mxu0 0.0
  %583 = vmatmul.mubr.f32.gmra.mrb[0].mxu0 %v196
  %v584 = vpop.f32.mrb[0].mxu0
  %v585 = vadd.f32 %v455, %v584
  %v586 = vpop.f32.mrb[0].mxu0
  %587 = vdwg.mxu0
  %v588 = vmax.f32 %v525, 0.0
  %v589 = vmax.f32 %v530, 0.0
  %v590 = vmax.f32 %v535, 0.0
  %v591 = vmax.f32 %v540, 0.0
  %v592 = vmax.f32 %v545, 0.0
  %v593 = vmax.f32 %v550, 0.0
  %v594 = vmax.f32 %v555, 0.0
  %v595 = vmax.f32 %v560, 0.0
  %v596 = vmax.f32 %v565, 0.0
  %v597 = vmax.f32 %v570, 0.0
  %v598 = vmax.f32 %v575, 0.0
  %v599 = vmax.f32 %v580, 0.0
  %v600 = vmax.f32 %v585, 0.0
  %601 = vst.msk [vmem:[%s3] sm:$0xff] %vm158, %v588
  %602 = vst.msk [vmem:[%s3 + $0x8] sm:$0xff] %vm158, %v589
  %603 = vst.msk [vmem:[%s3 + $0x10] sm:$0xff] %vm158, %v590
  %604 = vst.msk [vmem:[%s3 + $0x18] sm:$0xff] %vm158, %v591
  %605 = vst.msk [vmem:[%s3 + $0x20] sm:$0xff] %vm158, %v592
  %606 = vst.msk [vmem:[%s3 + $0x28] sm:$0xff] %vm158, %v593
  %607 = vst.msk [vmem:[%s3 + $0x30] sm:$0xff] %vm158, %v594
  %608 = vst.msk [vmem:[%s3 + $0x38] sm:$0xff] %vm158, %v595
  %609 = vst.msk [vmem:[%s3 + $0x40] sm:$0xff] %vm158, %v596
  %610 = vst.msk [vmem:[%s3 + $0x48] sm:$0xff] %vm158, %v597
  %611 = vst.msk [vmem:[%s3 + $0x50] sm:$0xff] %vm158, %v598
  %612 = vst.msk [vmem:[%s3 + $0x58] sm:$0xff] %vm158, %v599
  %vm613 = vcmask 517120
  %614 = vst.msk [vmem:[%s3 + $0x60] sm:$0x3] %vm613, %v600
  // Predicated region
  $region14: #{conv_q_forward.6} parent=0 // pred_check
    _
  $region15: #{conv_q_forward.6} parent=0 // pred_check_branch
    %616 = sbr.rel (0) target = $region17
  $region16: #{conv_q_forward.6} parent=0 // pred_region
    _
  $region17: #{conv_q_forward.6} parent=0 // pred_fallthru
    _
  // Predicated region
  $region18: #{conv_q_forward.6} parent=0 // pred_check
    _
  $region19: #{conv_q_forward.6} parent=0 // pred_check_branch
    %618 = sbr.rel (0) target = $region21
  $region20: #{conv_q_forward.6} parent=0 // pred_region
    _
  $region21: #{conv_q_forward.6} parent=0 // pred_fallthru
    _

// kernel: conv_q_forward.7
$region0: #{conv_q_forward.7}
  #allocation0 [shape = 'u32[]', space=smem, size = 0x4, offset = 0x4, fixed_abs, tag = 'smem constant byte address 0x4 - core index']
  #allocation1 [shape = 'u32[144,128]{1,0:T(1,128)}', space=vmem, size = 0x12000, scoped, tag = 'internal scratch']
  %s0 = inlined_call_operand.vmem [shape: f32[2,3136], index: 0, kind: input, shape index: {}]
  %s1 = inlined_call_operand.vmem [shape: f32[3136,512], index: 1, kind: input, shape index: {}]
  %s2 = inlined_call_operand.vmem [shape: f32[1,512], index: 2, kind: input, shape index: {}]
  %s3 = inlined_call_operand.vmem [shape: f32[512,30], index: 3, kind: input, shape index: {}]
  %s4 = inlined_call_operand.vmem [shape: f32[1,30], index: 4, kind: input, shape index: {}]
  %s5 = inlined_call_operand.vmem [shape: f32[2,5], index: 5, kind: input, shape index: {}]
  %s6 = inlined_call_operand.hbm [shape: f32[2,6], index: 6, kind: output, shape index: {}]
  %s7 = sld [smem:[#allocation0]]
  $region34: #{conv_q_forward.7} parent=0
    _
  %s9 = ssub.s32 1, %s7
  %s10 = scalar_select 0, %s9, %s7
  $region1: #{conv_q_forward.7} parent=0
    #allocation2 [shape = 'u8[1024]{0}', space=vmem, size = 0x400, scoped, tag = 'output window, operand 0, single buffered']
    #allocation3 [shape = 's32[1]{0}', space=sflag, size = 0x4, scoped, tag = 'scoped memory for conv_q_forward.7']
    %11 = vsyncpa [#allocation3], 0
    // Predicated region
    $region2: #{conv_q_forward.7} parent=1 // pred_check
      _
    $region3: #{conv_q_forward.7} parent=1 // pred_check_branch
      %13 = sbr.rel (0) target = $region5
    $region4: #{conv_q_forward.7} parent=1 // pred_region
      _
    $region5: #{conv_q_forward.7} parent=1 // pred_fallthru
      _
    // Predicated region
    $region6: #{conv_q_forward.7} parent=1 // pred_check
      _
    $region7: #{conv_q_forward.7} parent=1 // pred_check_branch
      %15 = sbr.rel (0) target = $region9
    $region8: #{conv_q_forward.7} parent=1 // pred_region
      _
    $region9: #{conv_q_forward.7} parent=1 // pred_fallthru
      _
    // Predicated region
    $region10: #{conv_q_forward.7} parent=1 // pred_check
      _
    $region11: #{conv_q_forward.7} parent=1 // pred_check_branch
      %17 = sbr.rel (0) target = $region13
    $region12: #{conv_q_forward.7} parent=1 // pred_region
      _
    $region13: #{conv_q_forward.7} parent=1 // pred_fallthru
      _
    // Predicated region
    $region14: #{conv_q_forward.7} parent=1 // pred_check
      _
    $region15: #{conv_q_forward.7} parent=1 // pred_check_branch
      %19 = sbr.rel (0) target = $region17
    $region16: #{conv_q_forward.7} parent=1 // pred_region
      _
    $region17: #{conv_q_forward.7} parent=1 // pred_fallthru
      _
    // Predicated region
    $region18: #{conv_q_forward.7} parent=1 // pred_check
      _
    $region19: #{conv_q_forward.7} parent=1 // pred_check_branch
      %21 = sbr.rel (0) target = $region21
    $region20: #{conv_q_forward.7} parent=1 // pred_region
      _
    $region21: #{conv_q_forward.7} parent=1 // pred_fallthru
      _
    // Predicated region
    $region22: #{conv_q_forward.7} parent=1 // pred_check
      _
    $region23: #{conv_q_forward.7} parent=1 // pred_check_branch
      %23 = sbr.rel (0) target = $region25
    $region24: #{conv_q_forward.7} parent=1 // pred_region
      _
    $region25: #{conv_q_forward.7} parent=1 // pred_fallthru
      _
    %v24 = vld [vmem:[%s0] sm:$0xff]
    %v25 = vld [vmem:[%s0 + $0x8] sm:$0xff]
    %v26 = vld [vmem:[%s0 + $0x10] sm:$0xff]
    %v27 = vld [vmem:[%s0 + $0x18] sm:$0xff]
    %v28 = vld [vmem:[%s0 + $0x20] sm:$0xff]
    %v29 = vld [vmem:[%s0 + $0x28] sm:$0xff]
    %v30 = vld [vmem:[%s0 + $0x30] sm:$0x3]
    %v31 = vld [vmem:[%s1] sm:$0xff]
    %v32 = vld [vmem:[%s1 + $0x8] sm:$0xff]
    %v33 = vld [vmem:[%s1 + $0x10] sm:$0xff]
    %v34 = vld [vmem:[%s1 + $0x18] sm:$0xff]
    %v35 = vld [vmem:[%s1 + $0x20] sm:$0xff]
    %v36 = vld [vmem:[%s1 + $0x28] sm:$0xff]
    %v37 = vld [vmem:[%s1 + $0x30] sm:$0xff]
    %v38 = vld [vmem:[%s1 + $0x38] sm:$0xff]
    %v39 = vld [vmem:[%s1 + $0x40] sm:$0xff]
    %v40 = vld [vmem:[%s1 + $0x48] sm:$0xff]
    %v41 = vld [vmem:[%s1 + $0x50] sm:$0xff]
    %v42 = vld [vmem:[%s1 + $0x58] sm:$0xff]
    %v43 = vld [vmem:[%s1 + $0x60] sm:$0xff]
    %v44 = vld [vmem:[%s1 + $0x68] sm:$0xff]
    %v45 = vld [vmem:[%s1 + $0x70] sm:$0xff]
    %v46 = vld [vmem:[%s1 + $0x78] sm:$0xff]
    %v47 = vld [vmem:[%s1 + $0x80] sm:$0xff]
    %v48 = vld [vmem:[%s1 + $0x88] sm:$0xff]
    %v49 = vld [vmem:[%s1 + $0x90] sm:$0xff]
    %v50 = vld [vmem:[%s1 + $0x98] sm:$0xff]
    %v51 = vld [vmem:[%s1 + $0xa0] sm:$0xff]
    %v52 = vld [vmem:[%s1 + $0xa8] sm:$0xff]
    %v53 = vld [vmem:[%s1 + $0xb0] sm:$0xff]
    %v54 = vld [vmem:[%s1 + $0xb8] sm:$0xff]
    %v55 = vld [vmem:[%s1 + $0xc0] sm:$0xff]
    %v56 = vld [vmem:[%s1 + $0xc8] sm:$0xff]
    %v57 = vld [vmem:[%s1 + $0xd0] sm:$0xff]
    %v58 = vld [vmem:[%s1 + $0xd8] sm:$0xff]
    %v59 = vld [vmem:[%s1 + $0xe0] sm:$0xff]
    %v60 = vld [vmem:[%s1 + $0xe8] sm:$0xff]
    %v61 = vld [vmem:[%s1 + $0xf0] sm:$0xff]
    %v62 = vld [vmem:[%s1 + $0xf8] sm:$0xff]
    %v63 = vld [vmem:[%s1 + $0x100] sm:$0xff]
    %v64 = vld [vmem:[%s1 + $0x108] sm:$0xff]
    %v65 = vld [vmem:[%s1 + $0x110] sm:$0xff]
    %v66 = vld [vmem:[%s1 + $0x118] sm:$0xff]
    %v67 = vld [vmem:[%s1 + $0x120] sm:$0xff]
    %v68 = vld [vmem:[%s1 + $0x128] sm:$0xff]
    %v69 = vld [vmem:[%s1 + $0x130] sm:$0xff]
    %v70 = vld [vmem:[%s1 + $0x138] sm:$0xff]
    %v71 = vld [vmem:[%s1 + $0x140] sm:$0xff]
    %v72 = vld [vmem:[%s1 + $0x148] sm:$0xff]
    %v73 = vld [vmem:[%s1 + $0x150] sm:$0xff]
    %v74 = vld [vmem:[%s1 + $0x158] sm:$0xff]
    %v75 = vld [vmem:[%s1 + $0x160] sm:$0xff]
    %v76 = vld [vmem:[%s1 + $0x168] sm:$0xff]
    %v77 = vld [vmem:[%s1 + $0x170] sm:$0xff]
    %v78 = vld [vmem:[%s1 + $0x178] sm:$0xff]
    %v79 = vld [vmem:[%s1 + $0x180] sm:$0xff]
    %v80 = vld [vmem:[%s1 + $0x188] sm:$0xff]
    %v81 = vld [vmem:[%s1 + $0x190] sm:$0xff]
    %v82 = vld [vmem:[%s1 + $0x198] sm:$0xff]
    %v83 = vld [vmem:[%s1 + $0x1a0] sm:$0xff]
    %v84 = vld [vmem:[%s1 + $0x1a8] sm:$0xff]
    %v85 = vld [vmem:[%s1 + $0x1b0] sm:$0xff]
    %v86 = vld [vmem:[%s1 + $0x1b8] sm:$0xff]
    %v87 = vld [vmem:[%s1 + $0x1c0] sm:$0xff]
    %v88 = vld [vmem:[%s1 + $0x1c8] sm:$0xff]
    %v89 = vld [vmem:[%s1 + $0x1d0] sm:$0xff]
    %v90 = vld [vmem:[%s1 + $0x1d8] sm:$0xff]
    %v91 = vld [vmem:[%s1 + $0x1e0] sm:$0xff]
    %v92 = vld [vmem:[%s1 + $0x1e8] sm:$0xff]
    %v93 = vld [vmem:[%s1 + $0x1f0] sm:$0xff]
    %v94 = vld [vmem:[%s1 + $0x1f8] sm:$0xff]
    %v95 = vld [vmem:[%s1 + $0x200] sm:$0xff]
    %v96 = vld [vmem:[%s1 + $0x208] sm:$0xff]
    %v97 = vld [vmem:[%s1 + $0x210] sm:$0xff]
    %v98 = vld [vmem:[%s1 + $0x218] sm:$0xff]
    %v99 = vld [vmem:[%s1 + $0x220] sm:$0xff]
    %v100 = vld [vmem:[%s1 + $0x228] sm:$0xff]
    %v101 = vld [vmem:[%s1 + $0x230] sm:$0xff]
    %v102 = vld [vmem:[%s1 + $0x238] sm:$0xff]
    %v103 = vld [vmem:[%s1 + $0x240] sm:$0xff]
    %v104 = vld [vmem:[%s1 + $0x248] sm:$0xff]
    %v105 = vld [vmem:[%s1 + $0x250] sm:$0xff]
    %v106 = vld [vmem:[%s1 + $0x258] sm:$0xff]
    %v107 = vld [vmem:[%s1 + $0x260] sm:$0xff]
    %v108 = vld [vmem:[%s1 + $0x268] sm:$0xff]
    %v109 = vld [vmem:[%s1 + $0x270] sm:$0xff]
    %v110 = vld [vmem:[%s1 + $0x278] sm:$0xff]
    %v111 = vld [vmem:[%s1 + $0x280] sm:$0xff]
    %v112 = vld [vmem:[%s1 + $0x288] sm:$0xff]
    %v113 = vld [vmem:[%s1 + $0x290] sm:$0xff]
    %v114 = vld [vmem:[%s1 + $0x298] sm:$0xff]
    %v115 = vld [vmem:[%s1 + $0x2a0] sm:$0xff]
    %v116 = vld [vmem:[%s1 + $0x2a8] sm:$0xff]
    %v117 = vld [vmem:[%s1 + $0x2b0] sm:$0xff]
    %v118 = vld [vmem:[%s1 + $0x2b8] sm:$0xff]
    %v119 = vld [vmem:[%s1 + $0x2c0] sm:$0xff]
    %v120 = vld [vmem:[%s1 + $0x2c8] sm:$0xff]
    %v121 = vld [vmem:[%s1 + $0x2d0] sm:$0xff]
    %v122 = vld [vmem:[%s1 + $0x2d8] sm:$0xff]
    %v123 = vld [vmem:[%s1 + $0x2e0] sm:$0xff]
    %v124 = vld [vmem:[%s1 + $0x2e8] sm:$0xff]
    %v125 = vld [vmem:[%s1 + $0x2f0] sm:$0xff]
    %v126 = vld [vmem:[%s1 + $0x2f8] sm:$0xff]
    %v127 = vld [vmem:[%s1 + $0x300] sm:$0xff]
    %v128 = vld [vmem:[%s1 + $0x308] sm:$0xff]
    %v129 = vld [vmem:[%s1 + $0x310] sm:$0xff]
    %v130 = vld [vmem:[%s1 + $0x318] sm:$0xff]
    %v131 = vld [vmem:[%s1 + $0x320] sm:$0xff]
    %v132 = vld [vmem:[%s1 + $0x328] sm:$0xff]
    %v133 = vld [vmem:[%s1 + $0x330] sm:$0xff]
    %v134 = vld [vmem:[%s1 + $0x338] sm:$0xff]
    %v135 = vld [vmem:[%s1 + $0x340] sm:$0xff]
    %v136 = vld [vmem:[%s1 + $0x348] sm:$0xff]
    %v137 = vld [vmem:[%s1 + $0x350] sm:$0xff]
    %v138 = vld [vmem:[%s1 + $0x358] sm:$0xff]
    %v139 = vld [vmem:[%s1 + $0x360] sm:$0xff]
    %v140 = vld [vmem:[%s1 + $0x368] sm:$0xff]
    %v141 = vld [vmem:[%s1 + $0x370] sm:$0xff]
    %v142 = vld [vmem:[%s1 + $0x378] sm:$0xff]
    %v143 = vld [vmem:[%s1 + $0x380] sm:$0xff]
    %v144 = vld [vmem:[%s1 + $0x388] sm:$0xff]
    %v145 = vld [vmem:[%s1 + $0x390] sm:$0xff]
    %v146 = vld [vmem:[%s1 + $0x398] sm:$0xff]
    %v147 = vld [vmem:[%s1 + $0x3a0] sm:$0xff]
    %v148 = vld [vmem:[%s1 + $0x3a8] sm:$0xff]
    %v149 = vld [vmem:[%s1 + $0x3b0] sm:$0xff]
    %v150 = vld [vmem:[%s1 + $0x3b8] sm:$0xff]
    %v151 = vld [vmem:[%s1 + $0x3c0] sm:$0xff]
    %v152 = vld [vmem:[%s1 + $0x3c8] sm:$0xff]
    %v153 = vld [vmem:[%s1 + $0x3d0] sm:$0xff]
    %v154 = vld [vmem:[%s1 + $0x3d8] sm:$0xff]
    %v155 = vld [vmem:[%s1 + $0x3e0] sm:$0xff]
    %v156 = vld [vmem:[%s1 + $0x3e8] sm:$0xff]
    %v157 = vld [vmem:[%s1 + $0x3f0] sm:$0xff]
    %v158 = vld [vmem:[%s1 + $0x3f8] sm:$0xff]
    %v159 = vld [vmem:[%s1 + $0x400] sm:$0xff]
    %v160 = vld [vmem:[%s1 + $0x408] sm:$0xff]
    %v161 = vld [vmem:[%s1 + $0x410] sm:$0xff]
    %v162 = vld [vmem:[%s1 + $0x418] sm:$0xff]
    %v163 = vld [vmem:[%s1 + $0x420] sm:$0xff]
    %v164 = vld [vmem:[%s1 + $0x428] sm:$0xff]
    %v165 = vld [vmem:[%s1 + $0x430] sm:$0xff]
    %v166 = vld [vmem:[%s1 + $0x438] sm:$0xff]
    %v167 = vld [vmem:[%s1 + $0x440] sm:$0xff]
    %v168 = vld [vmem:[%s1 + $0x448] sm:$0xff]
    %v169 = vld [vmem:[%s1 + $0x450] sm:$0xff]
    %v170 = vld [vmem:[%s1 + $0x458] sm:$0xff]
    %v171 = vld [vmem:[%s1 + $0x460] sm:$0xff]
    %v172 = vld [vmem:[%s1 + $0x468] sm:$0xff]
    %v173 = vld [vmem:[%s1 + $0x470] sm:$0xff]
    %v174 = vld [vmem:[%s1 + $0x478] sm:$0xff]
    %v175 = vld [vmem:[%s1 + $0x480] sm:$0xff]
    %v176 = vld [vmem:[%s1 + $0x488] sm:$0xff]
    %v177 = vld [vmem:[%s1 + $0x490] sm:$0xff]
    %v178 = vld [vmem:[%s1 + $0x498] sm:$0xff]
    %v179 = vld [vmem:[%s1 + $0x4a0] sm:$0xff]
    %v180 = vld [vmem:[%s1 + $0x4a8] sm:$0xff]
    %v181 = vld [vmem:[%s1 + $0x4b0] sm:$0xff]
    %v182 = vld [vmem:[%s1 + $0x4b8] sm:$0xff]
    %v183 = vld [vmem:[%s1 + $0x4c0] sm:$0xff]
    %v184 = vld [vmem:[%s1 + $0x4c8] sm:$0xff]
    %v185 = vld [vmem:[%s1 + $0x4d0] sm:$0xff]
    %v186 = vld [vmem:[%s1 + $0x4d8] sm:$0xff]
    %v187 = vld [vmem:[%s1 + $0x4e0] sm:$0xff]
    %v188 = vld [vmem:[%s1 + $0x4e8] sm:$0xff]
    %v189 = vld [vmem:[%s1 + $0x4f0] sm:$0xff]
    %v190 = vld [vmem:[%s1 + $0x4f8] sm:$0xff]
    %v191 = vld [vmem:[%s1 + $0x500] sm:$0xff]
    %v192 = vld [vmem:[%s1 + $0x508] sm:$0xff]
    %v193 = vld [vmem:[%s1 + $0x510] sm:$0xff]
    %v194 = vld [vmem:[%s1 + $0x518] sm:$0xff]
    %v195 = vld [vmem:[%s1 + $0x520] sm:$0xff]
    %v196 = vld [vmem:[%s1 + $0x528] sm:$0xff]
    %v197 = vld [vmem:[%s1 + $0x530] sm:$0xff]
    %v198 = vld [vmem:[%s1 + $0x538] sm:$0xff]
    %v199 = vld [vmem:[%s1 + $0x540] sm:$0xff]
    %v200 = vld [vmem:[%s1 + $0x548] sm:$0xff]
    %v201 = vld [vmem:[%s1 + $0x550] sm:$0xff]
    %v202 = vld [vmem:[%s1 + $0x558] sm:$0xff]
    %v203 = vld [vmem:[%s1 + $0x560] sm:$0xff]
    %v204 = vld [vmem:[%s1 + $0x568] sm:$0xff]
    %v205 = vld [vmem:[%s1 + $0x570] sm:$0xff]
    %v206 = vld [vmem:[%s1 + $0x578] sm:$0xff]
    %v207 = vld [vmem:[%s1 + $0x580] sm:$0xff]
    %v208 = vld [vmem:[%s1 + $0x588] sm:$0xff]
    %v209 = vld [vmem:[%s1 + $0x590] sm:$0xff]
    %v210 = vld [vmem:[%s1 + $0x598] sm:$0xff]
    %v211 = vld [vmem:[%s1 + $0x5a0] sm:$0xff]
    %v212 = vld [vmem:[%s1 + $0x5a8] sm:$0xff]
    %v213 = vld [vmem:[%s1 + $0x5b0] sm:$0xff]
    %v214 = vld [vmem:[%s1 + $0x5b8] sm:$0xff]
    %v215 = vld [vmem:[%s1 + $0x5c0] sm:$0xff]
    %v216 = vld [vmem:[%s1 + $0x5c8] sm:$0xff]
    %v217 = vld [vmem:[%s1 + $0x5d0] sm:$0xff]
    %v218 = vld [vmem:[%s1 + $0x5d8] sm:$0xff]
    %v219 = vld [vmem:[%s1 + $0x5e0] sm:$0xff]
    %v220 = vld [vmem:[%s1 + $0x5e8] sm:$0xff]
    %v221 = vld [vmem:[%s1 + $0x5f0] sm:$0xff]
    %v222 = vld [vmem:[%s1 + $0x5f8] sm:$0xff]
    %v223 = vld [vmem:[%s1 + $0x600] sm:$0xff]
    %v224 = vld [vmem:[%s1 + $0x608] sm:$0xff]
    %v225 = vld [vmem:[%s1 + $0x610] sm:$0xff]
    %v226 = vld [vmem:[%s1 + $0x618] sm:$0xff]
    %v227 = vld [vmem:[%s1 + $0x620] sm:$0xff]
    %v228 = vld [vmem:[%s1 + $0x628] sm:$0xff]
    %v229 = vld [vmem:[%s1 + $0x630] sm:$0xff]
    %v230 = vld [vmem:[%s1 + $0x638] sm:$0xff]
    %v231 = vld [vmem:[%s1 + $0x640] sm:$0xff]
    %v232 = vld [vmem:[%s1 + $0x648] sm:$0xff]
    %v233 = vld [vmem:[%s1 + $0x650] sm:$0xff]
    %v234 = vld [vmem:[%s1 + $0x658] sm:$0xff]
    %v235 = vld [vmem:[%s1 + $0x660] sm:$0xff]
    %v236 = vld [vmem:[%s1 + $0x668] sm:$0xff]
    %v237 = vld [vmem:[%s1 + $0x670] sm:$0xff]
    %v238 = vld [vmem:[%s1 + $0x678] sm:$0xff]
    %v239 = vld [vmem:[%s1 + $0x680] sm:$0xff]
    %v240 = vld [vmem:[%s1 + $0x688] sm:$0xff]
    %v241 = vld [vmem:[%s1 + $0x690] sm:$0xff]
    %v242 = vld [vmem:[%s1 + $0x698] sm:$0xff]
    %v243 = vld [vmem:[%s1 + $0x6a0] sm:$0xff]
    %v244 = vld [vmem:[%s1 + $0x6a8] sm:$0xff]
    %v245 = vld [vmem:[%s1 + $0x6b0] sm:$0xff]
    %v246 = vld [vmem:[%s1 + $0x6b8] sm:$0xff]
    %v247 = vld [vmem:[%s1 + $0x6c0] sm:$0xff]
    %v248 = vld [vmem:[%s1 + $0x6c8] sm:$0xff]
    %v249 = vld [vmem:[%s1 + $0x6d0] sm:$0xff]
    %v250 = vld [vmem:[%s1 + $0x6d8] sm:$0xff]
    %v251 = vld [vmem:[%s1 + $0x6e0] sm:$0xff]
    %v252 = vld [vmem:[%s1 + $0x6e8] sm:$0xff]
    %v253 = vld [vmem:[%s1 + $0x6f0] sm:$0xff]
    %v254 = vld [vmem:[%s1 + $0x6f8] sm:$0xff]
    %v255 = vld [vmem:[%s1 + $0x700] sm:$0xff]
    %v256 = vld [vmem:[%s1 + $0x708] sm:$0xff]
    %v257 = vld [vmem:[%s1 + $0x710] sm:$0xff]
    %v258 = vld [vmem:[%s1 + $0x718] sm:$0xff]
    %v259 = vld [vmem:[%s1 + $0x720] sm:$0xff]
    %v260 = vld [vmem:[%s1 + $0x728] sm:$0xff]
    %v261 = vld [vmem:[%s1 + $0x730] sm:$0xff]
    %v262 = vld [vmem:[%s1 + $0x738] sm:$0xff]
    %v263 = vld [vmem:[%s1 + $0x740] sm:$0xff]
    %v264 = vld [vmem:[%s1 + $0x748] sm:$0xff]
    %v265 = vld [vmem:[%s1 + $0x750] sm:$0xff]
    %v266 = vld [vmem:[%s1 + $0x758] sm:$0xff]
    %v267 = vld [vmem:[%s1 + $0x760] sm:$0xff]
    %v268 = vld [vmem:[%s1 + $0x768] sm:$0xff]
    %v269 = vld [vmem:[%s1 + $0x770] sm:$0xff]
    %v270 = vld [vmem:[%s1 + $0x778] sm:$0xff]
    %v271 = vld [vmem:[%s1 + $0x780] sm:$0xff]
    %v272 = vld [vmem:[%s1 + $0x788] sm:$0xff]
    %v273 = vld [vmem:[%s1 + $0x790] sm:$0xff]
    %v274 = vld [vmem:[%s1 + $0x798] sm:$0xff]
    %v275 = vld [vmem:[%s1 + $0x7a0] sm:$0xff]
    %v276 = vld [vmem:[%s1 + $0x7a8] sm:$0xff]
    %v277 = vld [vmem:[%s1 + $0x7b0] sm:$0xff]
    %v278 = vld [vmem:[%s1 + $0x7b8] sm:$0xff]
    %v279 = vld [vmem:[%s1 + $0x7c0] sm:$0xff]
    %v280 = vld [vmem:[%s1 + $0x7c8] sm:$0xff]
    %v281 = vld [vmem:[%s1 + $0x7d0] sm:$0xff]
    %v282 = vld [vmem:[%s1 + $0x7d8] sm:$0xff]
    %v283 = vld [vmem:[%s1 + $0x7e0] sm:$0xff]
    %v284 = vld [vmem:[%s1 + $0x7e8] sm:$0xff]
    %v285 = vld [vmem:[%s1 + $0x7f0] sm:$0xff]
    %v286 = vld [vmem:[%s1 + $0x7f8] sm:$0xff]
    %v287 = vld [vmem:[%s1 + $0x800] sm:$0xff]
    %v288 = vld [vmem:[%s1 + $0x808] sm:$0xff]
    %v289 = vld [vmem:[%s1 + $0x810] sm:$0xff]
    %v290 = vld [vmem:[%s1 + $0x818] sm:$0xff]
    %v291 = vld [vmem:[%s1 + $0x820] sm:$0xff]
    %v292 = vld [vmem:[%s1 + $0x828] sm:$0xff]
    %v293 = vld [vmem:[%s1 + $0x830] sm:$0xff]
    %v294 = vld [vmem:[%s1 + $0x838] sm:$0xff]
    %v295 = vld [vmem:[%s1 + $0x840] sm:$0xff]
    %v296 = vld [vmem:[%s1 + $0x848] sm:$0xff]
    %v297 = vld [vmem:[%s1 + $0x850] sm:$0xff]
    %v298 = vld [vmem:[%s1 + $0x858] sm:$0xff]
    %v299 = vld [vmem:[%s1 + $0x860] sm:$0xff]
    %v300 = vld [vmem:[%s1 + $0x868] sm:$0xff]
    %v301 = vld [vmem:[%s1 + $0x870] sm:$0xff]
    %v302 = vld [vmem:[%s1 + $0x878] sm:$0xff]
    %v303 = vld [vmem:[%s1 + $0x880] sm:$0xff]
    %v304 = vld [vmem:[%s1 + $0x888] sm:$0xff]
    %v305 = vld [vmem:[%s1 + $0x890] sm:$0xff]
    %v306 = vld [vmem:[%s1 + $0x898] sm:$0xff]
    %v307 = vld [vmem:[%s1 + $0x8a0] sm:$0xff]
    %v308 = vld [vmem:[%s1 + $0x8a8] sm:$0xff]
    %v309 = vld [vmem:[%s1 + $0x8b0] sm:$0xff]
    %v310 = vld [vmem:[%s1 + $0x8b8] sm:$0xff]
    %v311 = vld [vmem:[%s1 + $0x8c0] sm:$0xff]
    %v312 = vld [vmem:[%s1 + $0x8c8] sm:$0xff]
    %v313 = vld [vmem:[%s1 + $0x8d0] sm:$0xff]
    %v314 = vld [vmem:[%s1 + $0x8d8] sm:$0xff]
    %v315 = vld [vmem:[%s1 + $0x8e0] sm:$0xff]
    %v316 = vld [vmem:[%s1 + $0x8e8] sm:$0xff]
    %v317 = vld [vmem:[%s1 + $0x8f0] sm:$0xff]
    %v318 = vld [vmem:[%s1 + $0x8f8] sm:$0xff]
    %v319 = vld [vmem:[%s1 + $0x900] sm:$0xff]
    %v320 = vld [vmem:[%s1 + $0x908] sm:$0xff]
    %v321 = vld [vmem:[%s1 + $0x910] sm:$0xff]
    %v322 = vld [vmem:[%s1 + $0x918] sm:$0xff]
    %v323 = vld [vmem:[%s1 + $0x920] sm:$0xff]
    %v324 = vld [vmem:[%s1 + $0x928] sm:$0xff]
    %v325 = vld [vmem:[%s1 + $0x930] sm:$0xff]
    %v326 = vld [vmem:[%s1 + $0x938] sm:$0xff]
    %v327 = vld [vmem:[%s1 + $0x940] sm:$0xff]
    %v328 = vld [vmem:[%s1 + $0x948] sm:$0xff]
    %v329 = vld [vmem:[%s1 + $0x950] sm:$0xff]
    %v330 = vld [vmem:[%s1 + $0x958] sm:$0xff]
    %v331 = vld [vmem:[%s1 + $0x960] sm:$0xff]
    %v332 = vld [vmem:[%s1 + $0x968] sm:$0xff]
    %v333 = vld [vmem:[%s1 + $0x970] sm:$0xff]
    %v334 = vld [vmem:[%s1 + $0x978] sm:$0xff]
    %v335 = vld [vmem:[%s1 + $0x980] sm:$0xff]
    %v336 = vld [vmem:[%s1 + $0x988] sm:$0xff]
    %v337 = vld [vmem:[%s1 + $0x990] sm:$0xff]
    %v338 = vld [vmem:[%s1 + $0x998] sm:$0xff]
    %v339 = vld [vmem:[%s1 + $0x9a0] sm:$0xff]
    %v340 = vld [vmem:[%s1 + $0x9a8] sm:$0xff]
    %v341 = vld [vmem:[%s1 + $0x9b0] sm:$0xff]
    %v342 = vld [vmem:[%s1 + $0x9b8] sm:$0xff]
    %v343 = vld [vmem:[%s1 + $0x9c0] sm:$0xff]
    %v344 = vld [vmem:[%s1 + $0x9c8] sm:$0xff]
    %v345 = vld [vmem:[%s1 + $0x9d0] sm:$0xff]
    %v346 = vld [vmem:[%s1 + $0x9d8] sm:$0xff]
    %v347 = vld [vmem:[%s1 + $0x9e0] sm:$0xff]
    %v348 = vld [vmem:[%s1 + $0x9e8] sm:$0xff]
    %v349 = vld [vmem:[%s1 + $0x9f0] sm:$0xff]
    %v350 = vld [vmem:[%s1 + $0x9f8] sm:$0xff]
    %v351 = vld [vmem:[%s1 + $0xa00] sm:$0xff]
    %v352 = vld [vmem:[%s1 + $0xa08] sm:$0xff]
    %v353 = vld [vmem:[%s1 + $0xa10] sm:$0xff]
    %v354 = vld [vmem:[%s1 + $0xa18] sm:$0xff]
    %v355 = vld [vmem:[%s1 + $0xa20] sm:$0xff]
    %v356 = vld [vmem:[%s1 + $0xa28] sm:$0xff]
    %v357 = vld [vmem:[%s1 + $0xa30] sm:$0xff]
    %v358 = vld [vmem:[%s1 + $0xa38] sm:$0xff]
    %v359 = vld [vmem:[%s1 + $0xa40] sm:$0xff]
    %v360 = vld [vmem:[%s1 + $0xa48] sm:$0xff]
    %v361 = vld [vmem:[%s1 + $0xa50] sm:$0xff]
    %v362 = vld [vmem:[%s1 + $0xa58] sm:$0xff]
    %v363 = vld [vmem:[%s1 + $0xa60] sm:$0xff]
    %v364 = vld [vmem:[%s1 + $0xa68] sm:$0xff]
    %v365 = vld [vmem:[%s1 + $0xa70] sm:$0xff]
    %v366 = vld [vmem:[%s1 + $0xa78] sm:$0xff]
    %v367 = vld [vmem:[%s1 + $0xa80] sm:$0xff]
    %v368 = vld [vmem:[%s1 + $0xa88] sm:$0xff]
    %v369 = vld [vmem:[%s1 + $0xa90] sm:$0xff]
    %v370 = vld [vmem:[%s1 + $0xa98] sm:$0xff]
    %v371 = vld [vmem:[%s1 + $0xaa0] sm:$0xff]
    %v372 = vld [vmem:[%s1 + $0xaa8] sm:$0xff]
    %v373 = vld [vmem:[%s1 + $0xab0] sm:$0xff]
    %v374 = vld [vmem:[%s1 + $0xab8] sm:$0xff]
    %v375 = vld [vmem:[%s1 + $0xac0] sm:$0xff]
    %v376 = vld [vmem:[%s1 + $0xac8] sm:$0xff]
    %v377 = vld [vmem:[%s1 + $0xad0] sm:$0xff]
    %v378 = vld [vmem:[%s1 + $0xad8] sm:$0xff]
    %v379 = vld [vmem:[%s1 + $0xae0] sm:$0xff]
    %v380 = vld [vmem:[%s1 + $0xae8] sm:$0xff]
    %v381 = vld [vmem:[%s1 + $0xaf0] sm:$0xff]
    %v382 = vld [vmem:[%s1 + $0xaf8] sm:$0xff]
    %v383 = vld [vmem:[%s1 + $0xb00] sm:$0xff]
    %v384 = vld [vmem:[%s1 + $0xb08] sm:$0xff]
    %v385 = vld [vmem:[%s1 + $0xb10] sm:$0xff]
    %v386 = vld [vmem:[%s1 + $0xb18] sm:$0xff]
    %v387 = vld [vmem:[%s1 + $0xb20] sm:$0xff]
    %v388 = vld [vmem:[%s1 + $0xb28] sm:$0xff]
    %v389 = vld [vmem:[%s1 + $0xb30] sm:$0xff]
    %v390 = vld [vmem:[%s1 + $0xb38] sm:$0xff]
    %v391 = vld [vmem:[%s1 + $0xb40] sm:$0xff]
    %v392 = vld [vmem:[%s1 + $0xb48] sm:$0xff]
    %v393 = vld [vmem:[%s1 + $0xb50] sm:$0xff]
    %v394 = vld [vmem:[%s1 + $0xb58] sm:$0xff]
    %v395 = vld [vmem:[%s1 + $0xb60] sm:$0xff]
    %v396 = vld [vmem:[%s1 + $0xb68] sm:$0xff]
    %v397 = vld [vmem:[%s1 + $0xb70] sm:$0xff]
    %v398 = vld [vmem:[%s1 + $0xb78] sm:$0xff]
    %v399 = vld [vmem:[%s1 + $0xb80] sm:$0xff]
    %v400 = vld [vmem:[%s1 + $0xb88] sm:$0xff]
    %v401 = vld [vmem:[%s1 + $0xb90] sm:$0xff]
    %v402 = vld [vmem:[%s1 + $0xb98] sm:$0xff]
    %v403 = vld [vmem:[%s1 + $0xba0] sm:$0xff]
    %v404 = vld [vmem:[%s1 + $0xba8] sm:$0xff]
    %v405 = vld [vmem:[%s1 + $0xbb0] sm:$0xff]
    %v406 = vld [vmem:[%s1 + $0xbb8] sm:$0xff]
    %v407 = vld [vmem:[%s1 + $0xbc0] sm:$0xff]
    %v408 = vld [vmem:[%s1 + $0xbc8] sm:$0xff]
    %v409 = vld [vmem:[%s1 + $0xbd0] sm:$0xff]
    %v410 = vld [vmem:[%s1 + $0xbd8] sm:$0xff]
    %v411 = vld [vmem:[%s1 + $0xbe0] sm:$0xff]
    %v412 = vld [vmem:[%s1 + $0xbe8] sm:$0xff]
    %v413 = vld [vmem:[%s1 + $0xbf0] sm:$0xff]
    %v414 = vld [vmem:[%s1 + $0xbf8] sm:$0xff]
    %v415 = vld [vmem:[%s1 + $0xc00] sm:$0xff]
    %v416 = vld [vmem:[%s1 + $0xc08] sm:$0xff]
    %v417 = vld [vmem:[%s1 + $0xc10] sm:$0xff]
    %v418 = vld [vmem:[%s1 + $0xc18] sm:$0xff]
    %v419 = vld [vmem:[%s1 + $0xc20] sm:$0xff]
    %v420 = vld [vmem:[%s1 + $0xc28] sm:$0xff]
    %v421 = vld [vmem:[%s1 + $0xc30] sm:$0xff]
    %v422 = vld [vmem:[%s1 + $0xc38] sm:$0xff]
    %v423 = vld [vmem:[%s1 + $0xc40] sm:$0xff]
    %v424 = vld [vmem:[%s1 + $0xc48] sm:$0xff]
    %v425 = vld [vmem:[%s1 + $0xc50] sm:$0xff]
    %v426 = vld [vmem:[%s1 + $0xc58] sm:$0xff]
    %v427 = vld [vmem:[%s1 + $0xc60] sm:$0xff]
    %v428 = vld [vmem:[%s1 + $0xc68] sm:$0xff]
    %v429 = vld [vmem:[%s1 + $0xc70] sm:$0xff]
    %v430 = vld [vmem:[%s1 + $0xc78] sm:$0xff]
    %v431 = vld [vmem:[%s1 + $0xc80] sm:$0xff]
    %v432 = vld [vmem:[%s1 + $0xc88] sm:$0xff]
    %v433 = vld [vmem:[%s1 + $0xc90] sm:$0xff]
    %v434 = vld [vmem:[%s1 + $0xc98] sm:$0xff]
    %v435 = vld [vmem:[%s1 + $0xca0] sm:$0xff]
    %v436 = vld [vmem:[%s1 + $0xca8] sm:$0xff]
    %v437 = vld [vmem:[%s1 + $0xcb0] sm:$0xff]
    %v438 = vld [vmem:[%s1 + $0xcb8] sm:$0xff]
    %v439 = vld [vmem:[%s1 + $0xcc0] sm:$0xff]
    %v440 = vld [vmem:[%s1 + $0xcc8] sm:$0xff]
    %v441 = vld [vmem:[%s1 + $0xcd0] sm:$0xff]
    %v442 = vld [vmem:[%s1 + $0xcd8] sm:$0xff]
    %v443 = vld [vmem:[%s1 + $0xce0] sm:$0xff]
    %v444 = vld [vmem:[%s1 + $0xce8] sm:$0xff]
    %v445 = vld [vmem:[%s1 + $0xcf0] sm:$0xff]
    %v446 = vld [vmem:[%s1 + $0xcf8] sm:$0xff]
    %v447 = vld [vmem:[%s1 + $0xd00] sm:$0xff]
    %v448 = vld [vmem:[%s1 + $0xd08] sm:$0xff]
    %v449 = vld [vmem:[%s1 + $0xd10] sm:$0xff]
    %v450 = vld [vmem:[%s1 + $0xd18] sm:$0xff]
    %v451 = vld [vmem:[%s1 + $0xd20] sm:$0xff]
    %v452 = vld [vmem:[%s1 + $0xd28] sm:$0xff]
    %v453 = vld [vmem:[%s1 + $0xd30] sm:$0xff]
    %v454 = vld [vmem:[%s1 + $0xd38] sm:$0xff]
    %v455 = vld [vmem:[%s1 + $0xd40] sm:$0xff]
    %v456 = vld [vmem:[%s1 + $0xd48] sm:$0xff]
    %v457 = vld [vmem:[%s1 + $0xd50] sm:$0xff]
    %v458 = vld [vmem:[%s1 + $0xd58] sm:$0xff]
    %v459 = vld [vmem:[%s1 + $0xd60] sm:$0xff]
    %v460 = vld [vmem:[%s1 + $0xd68] sm:$0xff]
    %v461 = vld [vmem:[%s1 + $0xd70] sm:$0xff]
    %v462 = vld [vmem:[%s1 + $0xd78] sm:$0xff]
    %v463 = vld [vmem:[%s1 + $0xd80] sm:$0xff]
    %v464 = vld [vmem:[%s1 + $0xd88] sm:$0xff]
    %v465 = vld [vmem:[%s1 + $0xd90] sm:$0xff]
    %v466 = vld [vmem:[%s1 + $0xd98] sm:$0xff]
    %v467 = vld [vmem:[%s1 + $0xda0] sm:$0xff]
    %v468 = vld [vmem:[%s1 + $0xda8] sm:$0xff]
    %v469 = vld [vmem:[%s1 + $0xdb0] sm:$0xff]
    %v470 = vld [vmem:[%s1 + $0xdb8] sm:$0xff]
    %v471 = vld [vmem:[%s1 + $0xdc0] sm:$0xff]
    %v472 = vld [vmem:[%s1 + $0xdc8] sm:$0xff]
    %v473 = vld [vmem:[%s1 + $0xdd0] sm:$0xff]
    %v474 = vld [vmem:[%s1 + $0xdd8] sm:$0xff]
    %v475 = vld [vmem:[%s1 + $0xde0] sm:$0xff]
    %v476 = vld [vmem:[%s1 + $0xde8] sm:$0xff]
    %v477 = vld [vmem:[%s1 + $0xdf0] sm:$0xff]
    %v478 = vld [vmem:[%s1 + $0xdf8] sm:$0xff]
    %v479 = vld [vmem:[%s1 + $0xe00] sm:$0xff]
    %v480 = vld [vmem:[%s1 + $0xe08] sm:$0xff]
    %v481 = vld [vmem:[%s1 + $0xe10] sm:$0xff]
    %v482 = vld [vmem:[%s1 + $0xe18] sm:$0xff]
    %v483 = vld [vmem:[%s1 + $0xe20] sm:$0xff]
    %v484 = vld [vmem:[%s1 + $0xe28] sm:$0xff]
    %v485 = vld [vmem:[%s1 + $0xe30] sm:$0xff]
    %v486 = vld [vmem:[%s1 + $0xe38] sm:$0xff]
    %v487 = vld [vmem:[%s1 + $0xe40] sm:$0xff]
    %v488 = vld [vmem:[%s1 + $0xe48] sm:$0xff]
    %v489 = vld [vmem:[%s1 + $0xe50] sm:$0xff]
    %v490 = vld [vmem:[%s1 + $0xe58] sm:$0xff]
    %v491 = vld [vmem:[%s1 + $0xe60] sm:$0xff]
    %v492 = vld [vmem:[%s1 + $0xe68] sm:$0xff]
    %v493 = vld [vmem:[%s1 + $0xe70] sm:$0xff]
    %v494 = vld [vmem:[%s1 + $0xe78] sm:$0xff]
    %v495 = vld [vmem:[%s1 + $0xe80] sm:$0xff]
    %v496 = vld [vmem:[%s1 + $0xe88] sm:$0xff]
    %v497 = vld [vmem:[%s1 + $0xe90] sm:$0xff]
    %v498 = vld [vmem:[%s1 + $0xe98] sm:$0xff]
    %v499 = vld [vmem:[%s1 + $0xea0] sm:$0xff]
    %v500 = vld [vmem:[%s1 + $0xea8] sm:$0xff]
    %v501 = vld [vmem:[%s1 + $0xeb0] sm:$0xff]
    %v502 = vld [vmem:[%s1 + $0xeb8] sm:$0xff]
    %v503 = vld [vmem:[%s1 + $0xec0] sm:$0xff]
    %v504 = vld [vmem:[%s1 + $0xec8] sm:$0xff]
    %v505 = vld [vmem:[%s1 + $0xed0] sm:$0xff]
    %v506 = vld [vmem:[%s1 + $0xed8] sm:$0xff]
    %v507 = vld [vmem:[%s1 + $0xee0] sm:$0xff]
    %v508 = vld [vmem:[%s1 + $0xee8] sm:$0xff]
    %v509 = vld [vmem:[%s1 + $0xef0] sm:$0xff]
    %v510 = vld [vmem:[%s1 + $0xef8] sm:$0xff]
    %v511 = vld [vmem:[%s1 + $0xf00] sm:$0xff]
    %v512 = vld [vmem:[%s1 + $0xf08] sm:$0xff]
    %v513 = vld [vmem:[%s1 + $0xf10] sm:$0xff]
    %v514 = vld [vmem:[%s1 + $0xf18] sm:$0xff]
    %v515 = vld [vmem:[%s1 + $0xf20] sm:$0xff]
    %v516 = vld [vmem:[%s1 + $0xf28] sm:$0xff]
    %v517 = vld [vmem:[%s1 + $0xf30] sm:$0xff]
    %v518 = vld [vmem:[%s1 + $0xf38] sm:$0xff]
    %v519 = vld [vmem:[%s1 + $0xf40] sm:$0xff]
    %v520 = vld [vmem:[%s1 + $0xf48] sm:$0xff]
    %v521 = vld [vmem:[%s1 + $0xf50] sm:$0xff]
    %v522 = vld [vmem:[%s1 + $0xf58] sm:$0xff]
    %v523 = vld [vmem:[%s1 + $0xf60] sm:$0xff]
    %v524 = vld [vmem:[%s1 + $0xf68] sm:$0xff]
    %v525 = vld [vmem:[%s1 + $0xf70] sm:$0xff]
    %v526 = vld [vmem:[%s1 + $0xf78] sm:$0xff]
    %v527 = vld [vmem:[%s1 + $0xf80] sm:$0xff]
    %v528 = vld [vmem:[%s1 + $0xf88] sm:$0xff]
    %v529 = vld [vmem:[%s1 + $0xf90] sm:$0xff]
    %v530 = vld [vmem:[%s1 + $0xf98] sm:$0xff]
    %v531 = vld [vmem:[%s1 + $0xfa0] sm:$0xff]
    %v532 = vld [vmem:[%s1 + $0xfa8] sm:$0xff]
    %v533 = vld [vmem:[%s1 + $0xfb0] sm:$0xff]
    %v534 = vld [vmem:[%s1 + $0xfb8] sm:$0xff]
    %v535 = vld [vmem:[%s1 + $0xfc0] sm:$0xff]
    %v536 = vld [vmem:[%s1 + $0xfc8] sm:$0xff]
    %v537 = vld [vmem:[%s1 + $0xfd0] sm:$0xff]
    %v538 = vld [vmem:[%s1 + $0xfd8] sm:$0xff]
    %v539 = vld [vmem:[%s1 + $0xfe0] sm:$0xff]
    %v540 = vld [vmem:[%s1 + $0xfe8] sm:$0xff]
    %v541 = vld [vmem:[%s1 + $0xff0] sm:$0xff]
    %v542 = vld [vmem:[%s1 + $0xff8] sm:$0xff]
    %v543 = vld [vmem:[%s1 + $0x1000] sm:$0xff]
    %v544 = vld [vmem:[%s1 + $0x1008] sm:$0xff]
    %v545 = vld [vmem:[%s1 + $0x1010] sm:$0xff]
    %v546 = vld [vmem:[%s1 + $0x1018] sm:$0xff]
    %v547 = vld [vmem:[%s1 + $0x1020] sm:$0xff]
    %v548 = vld [vmem:[%s1 + $0x1028] sm:$0xff]
    %v549 = vld [vmem:[%s1 + $0x1030] sm:$0xff]
    %v550 = vld [vmem:[%s1 + $0x1038] sm:$0xff]
    %v551 = vld [vmem:[%s1 + $0x1040] sm:$0xff]
    %v552 = vld [vmem:[%s1 + $0x1048] sm:$0xff]
    %v553 = vld [vmem:[%s1 + $0x1050] sm:$0xff]
    %v554 = vld [vmem:[%s1 + $0x1058] sm:$0xff]
    %v555 = vld [vmem:[%s1 + $0x1060] sm:$0xff]
    %v556 = vld [vmem:[%s1 + $0x1068] sm:$0xff]
    %v557 = vld [vmem:[%s1 + $0x1070] sm:$0xff]
    %v558 = vld [vmem:[%s1 + $0x1078] sm:$0xff]
    %v559 = vld [vmem:[%s1 + $0x1080] sm:$0xff]
    %v560 = vld [vmem:[%s1 + $0x1088] sm:$0xff]
    %v561 = vld [vmem:[%s1 + $0x1090] sm:$0xff]
    %v562 = vld [vmem:[%s1 + $0x1098] sm:$0xff]
    %v563 = vld [vmem:[%s1 + $0x10a0] sm:$0xff]
    %v564 = vld [vmem:[%s1 + $0x10a8] sm:$0xff]
    %v565 = vld [vmem:[%s1 + $0x10b0] sm:$0xff]
    %v566 = vld [vmem:[%s1 + $0x10b8] sm:$0xff]
    %v567 = vld [vmem:[%s1 + $0x10c0] sm:$0xff]
    %v568 = vld [vmem:[%s1 + $0x10c8] sm:$0xff]
    %v569 = vld [vmem:[%s1 + $0x10d0] sm:$0xff]
    %v570 = vld [vmem:[%s1 + $0x10d8] sm:$0xff]
    %v571 = vld [vmem:[%s1 + $0x10e0] sm:$0xff]
    %v572 = vld [vmem:[%s1 + $0x10e8] sm:$0xff]
    %v573 = vld [vmem:[%s1 + $0x10f0] sm:$0xff]
    %v574 = vld [vmem:[%s1 + $0x10f8] sm:$0xff]
    %v575 = vld [vmem:[%s1 + $0x1100] sm:$0xff]
    %v576 = vld [vmem:[%s1 + $0x1108] sm:$0xff]
    %v577 = vld [vmem:[%s1 + $0x1110] sm:$0xff]
    %v578 = vld [vmem:[%s1 + $0x1118] sm:$0xff]
    %v579 = vld [vmem:[%s1 + $0x1120] sm:$0xff]
    %v580 = vld [vmem:[%s1 + $0x1128] sm:$0xff]
    %v581 = vld [vmem:[%s1 + $0x1130] sm:$0xff]
    %v582 = vld [vmem:[%s1 + $0x1138] sm:$0xff]
    %v583 = vld [vmem:[%s1 + $0x1140] sm:$0xff]
    %v584 = vld [vmem:[%s1 + $0x1148] sm:$0xff]
    %v585 = vld [vmem:[%s1 + $0x1150] sm:$0xff]
    %v586 = vld [vmem:[%s1 + $0x1158] sm:$0xff]
    %v587 = vld [vmem:[%s1 + $0x1160] sm:$0xff]
    %v588 = vld [vmem:[%s1 + $0x1168] sm:$0xff]
    %v589 = vld [vmem:[%s1 + $0x1170] sm:$0xff]
    %v590 = vld [vmem:[%s1 + $0x1178] sm:$0xff]
    %v591 = vld [vmem:[%s1 + $0x1180] sm:$0xff]
    %v592 = vld [vmem:[%s1 + $0x1188] sm:$0xff]
    %v593 = vld [vmem:[%s1 + $0x1190] sm:$0xff]
    %v594 = vld [vmem:[%s1 + $0x1198] sm:$0xff]
    %v595 = vld [vmem:[%s1 + $0x11a0] sm:$0xff]
    %v596 = vld [vmem:[%s1 + $0x11a8] sm:$0xff]
    %v597 = vld [vmem:[%s1 + $0x11b0] sm:$0xff]
    %v598 = vld [vmem:[%s1 + $0x11b8] sm:$0xff]
    %v599 = vld [vmem:[%s1 + $0x11c0] sm:$0xff]
    %v600 = vld [vmem:[%s1 + $0x11c8] sm:$0xff]
    %v601 = vld [vmem:[%s1 + $0x11d0] sm:$0xff]
    %v602 = vld [vmem:[%s1 + $0x11d8] sm:$0xff]
    %v603 = vld [vmem:[%s1 + $0x11e0] sm:$0xff]
    %v604 = vld [vmem:[%s1 + $0x11e8] sm:$0xff]
    %v605 = vld [vmem:[%s1 + $0x11f0] sm:$0xff]
    %v606 = vld [vmem:[%s1 + $0x11f8] sm:$0xff]
    %v607 = vld [vmem:[%s1 + $0x1200] sm:$0xff]
    %v608 = vld [vmem:[%s1 + $0x1208] sm:$0xff]
    %v609 = vld [vmem:[%s1 + $0x1210] sm:$0xff]
    %v610 = vld [vmem:[%s1 + $0x1218] sm:$0xff]
    %v611 = vld [vmem:[%s1 + $0x1220] sm:$0xff]
    %v612 = vld [vmem:[%s1 + $0x1228] sm:$0xff]
    %v613 = vld [vmem:[%s1 + $0x1230] sm:$0xff]
    %v614 = vld [vmem:[%s1 + $0x1238] sm:$0xff]
    %v615 = vld [vmem:[%s1 + $0x1240] sm:$0xff]
    %v616 = vld [vmem:[%s1 + $0x1248] sm:$0xff]
    %v617 = vld [vmem:[%s1 + $0x1250] sm:$0xff]
    %v618 = vld [vmem:[%s1 + $0x1258] sm:$0xff]
    %v619 = vld [vmem:[%s1 + $0x1260] sm:$0xff]
    %v620 = vld [vmem:[%s1 + $0x1268] sm:$0xff]
    %v621 = vld [vmem:[%s1 + $0x1270] sm:$0xff]
    %v622 = vld [vmem:[%s1 + $0x1278] sm:$0xff]
    %v623 = vld [vmem:[%s1 + $0x1280] sm:$0xff]
    %v624 = vld [vmem:[%s1 + $0x1288] sm:$0xff]
    %v625 = vld [vmem:[%s1 + $0x1290] sm:$0xff]
    %v626 = vld [vmem:[%s1 + $0x1298] sm:$0xff]
    %v627 = vld [vmem:[%s1 + $0x12a0] sm:$0xff]
    %v628 = vld [vmem:[%s1 + $0x12a8] sm:$0xff]
    %v629 = vld [vmem:[%s1 + $0x12b0] sm:$0xff]
    %v630 = vld [vmem:[%s1 + $0x12b8] sm:$0xff]
    %v631 = vld [vmem:[%s1 + $0x12c0] sm:$0xff]
    %v632 = vld [vmem:[%s1 + $0x12c8] sm:$0xff]
    %v633 = vld [vmem:[%s1 + $0x12d0] sm:$0xff]
    %v634 = vld [vmem:[%s1 + $0x12d8] sm:$0xff]
    %v635 = vld [vmem:[%s1 + $0x12e0] sm:$0xff]
    %v636 = vld [vmem:[%s1 + $0x12e8] sm:$0xff]
    %v637 = vld [vmem:[%s1 + $0x12f0] sm:$0xff]
    %v638 = vld [vmem:[%s1 + $0x12f8] sm:$0xff]
    %v639 = vld [vmem:[%s1 + $0x1300] sm:$0xff]
    %v640 = vld [vmem:[%s1 + $0x1308] sm:$0xff]
    %v641 = vld [vmem:[%s1 + $0x1310] sm:$0xff]
    %v642 = vld [vmem:[%s1 + $0x1318] sm:$0xff]
    %v643 = vld [vmem:[%s1 + $0x1320] sm:$0xff]
    %v644 = vld [vmem:[%s1 + $0x1328] sm:$0xff]
    %v645 = vld [vmem:[%s1 + $0x1330] sm:$0xff]
    %v646 = vld [vmem:[%s1 + $0x1338] sm:$0xff]
    %v647 = vld [vmem:[%s1 + $0x1340] sm:$0xff]
    %v648 = vld [vmem:[%s1 + $0x1348] sm:$0xff]
    %v649 = vld [vmem:[%s1 + $0x1350] sm:$0xff]
    %v650 = vld [vmem:[%s1 + $0x1358] sm:$0xff]
    %v651 = vld [vmem:[%s1 + $0x1360] sm:$0xff]
    %v652 = vld [vmem:[%s1 + $0x1368] sm:$0xff]
    %v653 = vld [vmem:[%s1 + $0x1370] sm:$0xff]
    %v654 = vld [vmem:[%s1 + $0x1378] sm:$0xff]
    %v655 = vld [vmem:[%s1 + $0x1380] sm:$0xff]
    %v656 = vld [vmem:[%s1 + $0x1388] sm:$0xff]
    %v657 = vld [vmem:[%s1 + $0x1390] sm:$0xff]
    %v658 = vld [vmem:[%s1 + $0x1398] sm:$0xff]
    %v659 = vld [vmem:[%s1 + $0x13a0] sm:$0xff]
    %v660 = vld [vmem:[%s1 + $0x13a8] sm:$0xff]
    %v661 = vld [vmem:[%s1 + $0x13b0] sm:$0xff]
    %v662 = vld [vmem:[%s1 + $0x13b8] sm:$0xff]
    %v663 = vld [vmem:[%s1 + $0x13c0] sm:$0xff]
    %v664 = vld [vmem:[%s1 + $0x13c8] sm:$0xff]
    %v665 = vld [vmem:[%s1 + $0x13d0] sm:$0xff]
    %v666 = vld [vmem:[%s1 + $0x13d8] sm:$0xff]
    %v667 = vld [vmem:[%s1 + $0x13e0] sm:$0xff]
    %v668 = vld [vmem:[%s1 + $0x13e8] sm:$0xff]
    %v669 = vld [vmem:[%s1 + $0x13f0] sm:$0xff]
    %v670 = vld [vmem:[%s1 + $0x13f8] sm:$0xff]
    %v671 = vld [vmem:[%s1 + $0x1400] sm:$0xff]
    %v672 = vld [vmem:[%s1 + $0x1408] sm:$0xff]
    %v673 = vld [vmem:[%s1 + $0x1410] sm:$0xff]
    %v674 = vld [vmem:[%s1 + $0x1418] sm:$0xff]
    %v675 = vld [vmem:[%s1 + $0x1420] sm:$0xff]
    %v676 = vld [vmem:[%s1 + $0x1428] sm:$0xff]
    %v677 = vld [vmem:[%s1 + $0x1430] sm:$0xff]
    %v678 = vld [vmem:[%s1 + $0x1438] sm:$0xff]
    %v679 = vld [vmem:[%s1 + $0x1440] sm:$0xff]
    %v680 = vld [vmem:[%s1 + $0x1448] sm:$0xff]
    %v681 = vld [vmem:[%s1 + $0x1450] sm:$0xff]
    %v682 = vld [vmem:[%s1 + $0x1458] sm:$0xff]
    %v683 = vld [vmem:[%s1 + $0x1460] sm:$0xff]
    %v684 = vld [vmem:[%s1 + $0x1468] sm:$0xff]
    %v685 = vld [vmem:[%s1 + $0x1470] sm:$0xff]
    %v686 = vld [vmem:[%s1 + $0x1478] sm:$0xff]
    %v687 = vld [vmem:[%s1 + $0x1480] sm:$0xff]
    %v688 = vld [vmem:[%s1 + $0x1488] sm:$0xff]
    %v689 = vld [vmem:[%s1 + $0x1490] sm:$0xff]
    %v690 = vld [vmem:[%s1 + $0x1498] sm:$0xff]
    %v691 = vld [vmem:[%s1 + $0x14a0] sm:$0xff]
    %v692 = vld [vmem:[%s1 + $0x14a8] sm:$0xff]
    %v693 = vld [vmem:[%s1 + $0x14b0] sm:$0xff]
    %v694 = vld [vmem:[%s1 + $0x14b8] sm:$0xff]
    %v695 = vld [vmem:[%s1 + $0x14c0] sm:$0xff]
    %v696 = vld [vmem:[%s1 + $0x14c8] sm:$0xff]
    %v697 = vld [vmem:[%s1 + $0x14d0] sm:$0xff]
    %v698 = vld [vmem:[%s1 + $0x14d8] sm:$0xff]
    %v699 = vld [vmem:[%s1 + $0x14e0] sm:$0xff]
    %v700 = vld [vmem:[%s1 + $0x14e8] sm:$0xff]
    %v701 = vld [vmem:[%s1 + $0x14f0] sm:$0xff]
    %v702 = vld [vmem:[%s1 + $0x14f8] sm:$0xff]
    %v703 = vld [vmem:[%s1 + $0x1500] sm:$0xff]
    %v704 = vld [vmem:[%s1 + $0x1508] sm:$0xff]
    %v705 = vld [vmem:[%s1 + $0x1510] sm:$0xff]
    %v706 = vld [vmem:[%s1 + $0x1518] sm:$0xff]
    %v707 = vld [vmem:[%s1 + $0x1520] sm:$0xff]
    %v708 = vld [vmem:[%s1 + $0x1528] sm:$0xff]
    %v709 = vld [vmem:[%s1 + $0x1530] sm:$0xff]
    %v710 = vld [vmem:[%s1 + $0x1538] sm:$0xff]
    %v711 = vld [vmem:[%s1 + $0x1540] sm:$0xff]
    %v712 = vld [vmem:[%s1 + $0x1548] sm:$0xff]
    %v713 = vld [vmem:[%s1 + $0x1550] sm:$0xff]
    %v714 = vld [vmem:[%s1 + $0x1558] sm:$0xff]
    %v715 = vld [vmem:[%s1 + $0x1560] sm:$0xff]
    %v716 = vld [vmem:[%s1 + $0x1568] sm:$0xff]
    %v717 = vld [vmem:[%s1 + $0x1570] sm:$0xff]
    %v718 = vld [vmem:[%s1 + $0x1578] sm:$0xff]
    %v719 = vld [vmem:[%s1 + $0x1580] sm:$0xff]
    %v720 = vld [vmem:[%s1 + $0x1588] sm:$0xff]
    %v721 = vld [vmem:[%s1 + $0x1590] sm:$0xff]
    %v722 = vld [vmem:[%s1 + $0x1598] sm:$0xff]
    %v723 = vld [vmem:[%s1 + $0x15a0] sm:$0xff]
    %v724 = vld [vmem:[%s1 + $0x15a8] sm:$0xff]
    %v725 = vld [vmem:[%s1 + $0x15b0] sm:$0xff]
    %v726 = vld [vmem:[%s1 + $0x15b8] sm:$0xff]
    %v727 = vld [vmem:[%s1 + $0x15c0] sm:$0xff]
    %v728 = vld [vmem:[%s1 + $0x15c8] sm:$0xff]
    %v729 = vld [vmem:[%s1 + $0x15d0] sm:$0xff]
    %v730 = vld [vmem:[%s1 + $0x15d8] sm:$0xff]
    %v731 = vld [vmem:[%s1 + $0x15e0] sm:$0xff]
    %v732 = vld [vmem:[%s1 + $0x15e8] sm:$0xff]
    %v733 = vld [vmem:[%s1 + $0x15f0] sm:$0xff]
    %v734 = vld [vmem:[%s1 + $0x15f8] sm:$0xff]
    %v735 = vld [vmem:[%s1 + $0x1600] sm:$0xff]
    %v736 = vld [vmem:[%s1 + $0x1608] sm:$0xff]
    %v737 = vld [vmem:[%s1 + $0x1610] sm:$0xff]
    %v738 = vld [vmem:[%s1 + $0x1618] sm:$0xff]
    %v739 = vld [vmem:[%s1 + $0x1620] sm:$0xff]
    %v740 = vld [vmem:[%s1 + $0x1628] sm:$0xff]
    %v741 = vld [vmem:[%s1 + $0x1630] sm:$0xff]
    %v742 = vld [vmem:[%s1 + $0x1638] sm:$0xff]
    %v743 = vld [vmem:[%s1 + $0x1640] sm:$0xff]
    %v744 = vld [vmem:[%s1 + $0x1648] sm:$0xff]
    %v745 = vld [vmem:[%s1 + $0x1650] sm:$0xff]
    %v746 = vld [vmem:[%s1 + $0x1658] sm:$0xff]
    %v747 = vld [vmem:[%s1 + $0x1660] sm:$0xff]
    %v748 = vld [vmem:[%s1 + $0x1668] sm:$0xff]
    %v749 = vld [vmem:[%s1 + $0x1670] sm:$0xff]
    %v750 = vld [vmem:[%s1 + $0x1678] sm:$0xff]
    %v751 = vld [vmem:[%s1 + $0x1680] sm:$0xff]
    %v752 = vld [vmem:[%s1 + $0x1688] sm:$0xff]
    %v753 = vld [vmem:[%s1 + $0x1690] sm:$0xff]
    %v754 = vld [vmem:[%s1 + $0x1698] sm:$0xff]
    %v755 = vld [vmem:[%s1 + $0x16a0] sm:$0xff]
    %v756 = vld [vmem:[%s1 + $0x16a8] sm:$0xff]
    %v757 = vld [vmem:[%s1 + $0x16b0] sm:$0xff]
    %v758 = vld [vmem:[%s1 + $0x16b8] sm:$0xff]
    %v759 = vld [vmem:[%s1 + $0x16c0] sm:$0xff]
    %v760 = vld [vmem:[%s1 + $0x16c8] sm:$0xff]
    %v761 = vld [vmem:[%s1 + $0x16d0] sm:$0xff]
    %v762 = vld [vmem:[%s1 + $0x16d8] sm:$0xff]
    %v763 = vld [vmem:[%s1 + $0x16e0] sm:$0xff]
    %v764 = vld [vmem:[%s1 + $0x16e8] sm:$0xff]
    %v765 = vld [vmem:[%s1 + $0x16f0] sm:$0xff]
    %v766 = vld [vmem:[%s1 + $0x16f8] sm:$0xff]
    %v767 = vld [vmem:[%s1 + $0x1700] sm:$0xff]
    %v768 = vld [vmem:[%s1 + $0x1708] sm:$0xff]
    %v769 = vld [vmem:[%s1 + $0x1710] sm:$0xff]
    %v770 = vld [vmem:[%s1 + $0x1718] sm:$0xff]
    %v771 = vld [vmem:[%s1 + $0x1720] sm:$0xff]
    %v772 = vld [vmem:[%s1 + $0x1728] sm:$0xff]
    %v773 = vld [vmem:[%s1 + $0x1730] sm:$0xff]
    %v774 = vld [vmem:[%s1 + $0x1738] sm:$0xff]
    %v775 = vld [vmem:[%s1 + $0x1740] sm:$0xff]
    %v776 = vld [vmem:[%s1 + $0x1748] sm:$0xff]
    %v777 = vld [vmem:[%s1 + $0x1750] sm:$0xff]
    %v778 = vld [vmem:[%s1 + $0x1758] sm:$0xff]
    %v779 = vld [vmem:[%s1 + $0x1760] sm:$0xff]
    %v780 = vld [vmem:[%s1 + $0x1768] sm:$0xff]
    %v781 = vld [vmem:[%s1 + $0x1770] sm:$0xff]
    %v782 = vld [vmem:[%s1 + $0x1778] sm:$0xff]
    %v783 = vld [vmem:[%s1 + $0x1780] sm:$0xff]
    %v784 = vld [vmem:[%s1 + $0x1788] sm:$0xff]
    %v785 = vld [vmem:[%s1 + $0x1790] sm:$0xff]
    %v786 = vld [vmem:[%s1 + $0x1798] sm:$0xff]
    %v787 = vld [vmem:[%s1 + $0x17a0] sm:$0xff]
    %v788 = vld [vmem:[%s1 + $0x17a8] sm:$0xff]
    %v789 = vld [vmem:[%s1 + $0x17b0] sm:$0xff]
    %v790 = vld [vmem:[%s1 + $0x17b8] sm:$0xff]
    %v791 = vld [vmem:[%s1 + $0x17c0] sm:$0xff]
    %v792 = vld [vmem:[%s1 + $0x17c8] sm:$0xff]
    %v793 = vld [vmem:[%s1 + $0x17d0] sm:$0xff]
    %v794 = vld [vmem:[%s1 + $0x17d8] sm:$0xff]
    %v795 = vld [vmem:[%s1 + $0x17e0] sm:$0xff]
    %v796 = vld [vmem:[%s1 + $0x17e8] sm:$0xff]
    %v797 = vld [vmem:[%s1 + $0x17f0] sm:$0xff]
    %v798 = vld [vmem:[%s1 + $0x17f8] sm:$0xff]
    %v799 = vld [vmem:[%s1 + $0x1800] sm:$0xff]
    %v800 = vld [vmem:[%s1 + $0x1808] sm:$0xff]
    %v801 = vld [vmem:[%s1 + $0x1810] sm:$0xff]
    %v802 = vld [vmem:[%s1 + $0x1818] sm:$0xff]
    %v803 = vld [vmem:[%s1 + $0x1820] sm:$0xff]
    %v804 = vld [vmem:[%s1 + $0x1828] sm:$0xff]
    %v805 = vld [vmem:[%s1 + $0x1830] sm:$0xff]
    %v806 = vld [vmem:[%s1 + $0x1838] sm:$0xff]
    %v807 = vld [vmem:[%s1 + $0x1840] sm:$0xff]
    %v808 = vld [vmem:[%s1 + $0x1848] sm:$0xff]
    %v809 = vld [vmem:[%s1 + $0x1850] sm:$0xff]
    %v810 = vld [vmem:[%s1 + $0x1858] sm:$0xff]
    %v811 = vld [vmem:[%s1 + $0x1860] sm:$0xff]
    %v812 = vld [vmem:[%s1 + $0x1868] sm:$0xff]
    %v813 = vld [vmem:[%s1 + $0x1870] sm:$0xff]
    %v814 = vld [vmem:[%s1 + $0x1878] sm:$0xff]
    %v815 = vld [vmem:[%s1 + $0x1880] sm:$0xff]
    %v816 = vld [vmem:[%s1 + $0x1888] sm:$0xff]
    %v817 = vld [vmem:[%s1 + $0x1890] sm:$0xff]
    %v818 = vld [vmem:[%s1 + $0x1898] sm:$0xff]
    %v819 = vld [vmem:[%s1 + $0x18a0] sm:$0xff]
    %v820 = vld [vmem:[%s1 + $0x18a8] sm:$0xff]
    %v821 = vld [vmem:[%s1 + $0x18b0] sm:$0xff]
    %v822 = vld [vmem:[%s1 + $0x18b8] sm:$0xff]
    %v823 = vld [vmem:[%s1 + $0x18c0] sm:$0xff]
    %v824 = vld [vmem:[%s1 + $0x18c8] sm:$0xff]
    %v825 = vld [vmem:[%s1 + $0x18d0] sm:$0xff]
    %v826 = vld [vmem:[%s1 + $0x18d8] sm:$0xff]
    %v827 = vld [vmem:[%s1 + $0x18e0] sm:$0xff]
    %v828 = vld [vmem:[%s1 + $0x18e8] sm:$0xff]
    %v829 = vld [vmem:[%s1 + $0x18f0] sm:$0xff]
    %v830 = vld [vmem:[%s1 + $0x18f8] sm:$0xff]
    %v831 = vld [vmem:[%s1 + $0x1900] sm:$0xff]
    %v832 = vld [vmem:[%s1 + $0x1908] sm:$0xff]
    %v833 = vld [vmem:[%s1 + $0x1910] sm:$0xff]
    %v834 = vld [vmem:[%s1 + $0x1918] sm:$0xff]
    %v835 = vld [vmem:[%s1 + $0x1920] sm:$0xff]
    %v836 = vld [vmem:[%s1 + $0x1928] sm:$0xff]
    %v837 = vld [vmem:[%s1 + $0x1930] sm:$0xff]
    %v838 = vld [vmem:[%s1 + $0x1938] sm:$0xff]
    %v839 = vld [vmem:[%s1 + $0x1940] sm:$0xff]
    %v840 = vld [vmem:[%s1 + $0x1948] sm:$0xff]
    %v841 = vld [vmem:[%s1 + $0x1950] sm:$0xff]
    %v842 = vld [vmem:[%s1 + $0x1958] sm:$0xff]
    %v843 = vld [vmem:[%s1 + $0x1960] sm:$0xff]
    %v844 = vld [vmem:[%s1 + $0x1968] sm:$0xff]
    %v845 = vld [vmem:[%s1 + $0x1970] sm:$0xff]
    %v846 = vld [vmem:[%s1 + $0x1978] sm:$0xff]
    %v847 = vld [vmem:[%s1 + $0x1980] sm:$0xff]
    %v848 = vld [vmem:[%s1 + $0x1988] sm:$0xff]
    %v849 = vld [vmem:[%s1 + $0x1990] sm:$0xff]
    %v850 = vld [vmem:[%s1 + $0x1998] sm:$0xff]
    %v851 = vld [vmem:[%s1 + $0x19a0] sm:$0xff]
    %v852 = vld [vmem:[%s1 + $0x19a8] sm:$0xff]
    %v853 = vld [vmem:[%s1 + $0x19b0] sm:$0xff]
    %v854 = vld [vmem:[%s1 + $0x19b8] sm:$0xff]
    %v855 = vld [vmem:[%s1 + $0x19c0] sm:$0xff]
    %v856 = vld [vmem:[%s1 + $0x19c8] sm:$0xff]
    %v857 = vld [vmem:[%s1 + $0x19d0] sm:$0xff]
    %v858 = vld [vmem:[%s1 + $0x19d8] sm:$0xff]
    %v859 = vld [vmem:[%s1 + $0x19e0] sm:$0xff]
    %v860 = vld [vmem:[%s1 + $0x19e8] sm:$0xff]
    %v861 = vld [vmem:[%s1 + $0x19f0] sm:$0xff]
    %v862 = vld [vmem:[%s1 + $0x19f8] sm:$0xff]
    %v863 = vld [vmem:[%s1 + $0x1a00] sm:$0xff]
    %v864 = vld [vmem:[%s1 + $0x1a08] sm:$0xff]
    %v865 = vld [vmem:[%s1 + $0x1a10] sm:$0xff]
    %v866 = vld [vmem:[%s1 + $0x1a18] sm:$0xff]
    %v867 = vld [vmem:[%s1 + $0x1a20] sm:$0xff]
    %v868 = vld [vmem:[%s1 + $0x1a28] sm:$0xff]
    %v869 = vld [vmem:[%s1 + $0x1a30] sm:$0xff]
    %v870 = vld [vmem:[%s1 + $0x1a38] sm:$0xff]
    %v871 = vld [vmem:[%s1 + $0x1a40] sm:$0xff]
    %v872 = vld [vmem:[%s1 + $0x1a48] sm:$0xff]
    %v873 = vld [vmem:[%s1 + $0x1a50] sm:$0xff]
    %v874 = vld [vmem:[%s1 + $0x1a58] sm:$0xff]
    %v875 = vld [vmem:[%s1 + $0x1a60] sm:$0xff]
    %v876 = vld [vmem:[%s1 + $0x1a68] sm:$0xff]
    %v877 = vld [vmem:[%s1 + $0x1a70] sm:$0xff]
    %v878 = vld [vmem:[%s1 + $0x1a78] sm:$0xff]
    %v879 = vld [vmem:[%s1 + $0x1a80] sm:$0xff]
    %v880 = vld [vmem:[%s1 + $0x1a88] sm:$0xff]
    %v881 = vld [vmem:[%s1 + $0x1a90] sm:$0xff]
    %v882 = vld [vmem:[%s1 + $0x1a98] sm:$0xff]
    %v883 = vld [vmem:[%s1 + $0x1aa0] sm:$0xff]
    %v884 = vld [vmem:[%s1 + $0x1aa8] sm:$0xff]
    %v885 = vld [vmem:[%s1 + $0x1ab0] sm:$0xff]
    %v886 = vld [vmem:[%s1 + $0x1ab8] sm:$0xff]
    %v887 = vld [vmem:[%s1 + $0x1ac0] sm:$0xff]
    %v888 = vld [vmem:[%s1 + $0x1ac8] sm:$0xff]
    %v889 = vld [vmem:[%s1 + $0x1ad0] sm:$0xff]
    %v890 = vld [vmem:[%s1 + $0x1ad8] sm:$0xff]
    %v891 = vld [vmem:[%s1 + $0x1ae0] sm:$0xff]
    %v892 = vld [vmem:[%s1 + $0x1ae8] sm:$0xff]
    %v893 = vld [vmem:[%s1 + $0x1af0] sm:$0xff]
    %v894 = vld [vmem:[%s1 + $0x1af8] sm:$0xff]
    %v895 = vld [vmem:[%s1 + $0x1b00] sm:$0xff]
    %v896 = vld [vmem:[%s1 + $0x1b08] sm:$0xff]
    %v897 = vld [vmem:[%s1 + $0x1b10] sm:$0xff]
    %v898 = vld [vmem:[%s1 + $0x1b18] sm:$0xff]
    %v899 = vld [vmem:[%s1 + $0x1b20] sm:$0xff]
    %v900 = vld [vmem:[%s1 + $0x1b28] sm:$0xff]
    %v901 = vld [vmem:[%s1 + $0x1b30] sm:$0xff]
    %v902 = vld [vmem:[%s1 + $0x1b38] sm:$0xff]
    %v903 = vld [vmem:[%s1 + $0x1b40] sm:$0xff]
    %v904 = vld [vmem:[%s1 + $0x1b48] sm:$0xff]
    %v905 = vld [vmem:[%s1 + $0x1b50] sm:$0xff]
    %v906 = vld [vmem:[%s1 + $0x1b58] sm:$0xff]
    %v907 = vld [vmem:[%s1 + $0x1b60] sm:$0xff]
    %v908 = vld [vmem:[%s1 + $0x1b68] sm:$0xff]
    %v909 = vld [vmem:[%s1 + $0x1b70] sm:$0xff]
    %v910 = vld [vmem:[%s1 + $0x1b78] sm:$0xff]
    %v911 = vld [vmem:[%s1 + $0x1b80] sm:$0xff]
    %v912 = vld [vmem:[%s1 + $0x1b88] sm:$0xff]
    %v913 = vld [vmem:[%s1 + $0x1b90] sm:$0xff]
    %v914 = vld [vmem:[%s1 + $0x1b98] sm:$0xff]
    %v915 = vld [vmem:[%s1 + $0x1ba0] sm:$0xff]
    %v916 = vld [vmem:[%s1 + $0x1ba8] sm:$0xff]
    %v917 = vld [vmem:[%s1 + $0x1bb0] sm:$0xff]
    %v918 = vld [vmem:[%s1 + $0x1bb8] sm:$0xff]
    %v919 = vld [vmem:[%s1 + $0x1bc0] sm:$0xff]
    %v920 = vld [vmem:[%s1 + $0x1bc8] sm:$0xff]
    %v921 = vld [vmem:[%s1 + $0x1bd0] sm:$0xff]
    %v922 = vld [vmem:[%s1 + $0x1bd8] sm:$0xff]
    %v923 = vld [vmem:[%s1 + $0x1be0] sm:$0xff]
    %v924 = vld [vmem:[%s1 + $0x1be8] sm:$0xff]
    %v925 = vld [vmem:[%s1 + $0x1bf0] sm:$0xff]
    %v926 = vld [vmem:[%s1 + $0x1bf8] sm:$0xff]
    %v927 = vld [vmem:[%s1 + $0x1c00] sm:$0xff]
    %v928 = vld [vmem:[%s1 + $0x1c08] sm:$0xff]
    %v929 = vld [vmem:[%s1 + $0x1c10] sm:$0xff]
    %v930 = vld [vmem:[%s1 + $0x1c18] sm:$0xff]
    %v931 = vld [vmem:[%s1 + $0x1c20] sm:$0xff]
    %v932 = vld [vmem:[%s1 + $0x1c28] sm:$0xff]
    %v933 = vld [vmem:[%s1 + $0x1c30] sm:$0xff]
    %v934 = vld [vmem:[%s1 + $0x1c38] sm:$0xff]
    %v935 = vld [vmem:[%s1 + $0x1c40] sm:$0xff]
    %v936 = vld [vmem:[%s1 + $0x1c48] sm:$0xff]
    %v937 = vld [vmem:[%s1 + $0x1c50] sm:$0xff]
    %v938 = vld [vmem:[%s1 + $0x1c58] sm:$0xff]
    %v939 = vld [vmem:[%s1 + $0x1c60] sm:$0xff]
    %v940 = vld [vmem:[%s1 + $0x1c68] sm:$0xff]
    %v941 = vld [vmem:[%s1 + $0x1c70] sm:$0xff]
    %v942 = vld [vmem:[%s1 + $0x1c78] sm:$0xff]
    %v943 = vld [vmem:[%s1 + $0x1c80] sm:$0xff]
    %v944 = vld [vmem:[%s1 + $0x1c88] sm:$0xff]
    %v945 = vld [vmem:[%s1 + $0x1c90] sm:$0xff]
    %v946 = vld [vmem:[%s1 + $0x1c98] sm:$0xff]
    %v947 = vld [vmem:[%s1 + $0x1ca0] sm:$0xff]
    %v948 = vld [vmem:[%s1 + $0x1ca8] sm:$0xff]
    %v949 = vld [vmem:[%s1 + $0x1cb0] sm:$0xff]
    %v950 = vld [vmem:[%s1 + $0x1cb8] sm:$0xff]
    %v951 = vld [vmem:[%s1 + $0x1cc0] sm:$0xff]
    %v952 = vld [vmem:[%s1 + $0x1cc8] sm:$0xff]
    %v953 = vld [vmem:[%s1 + $0x1cd0] sm:$0xff]
    %v954 = vld [vmem:[%s1 + $0x1cd8] sm:$0xff]
    %v955 = vld [vmem:[%s1 + $0x1ce0] sm:$0xff]
    %v956 = vld [vmem:[%s1 + $0x1ce8] sm:$0xff]
    %v957 = vld [vmem:[%s1 + $0x1cf0] sm:$0xff]
    %v958 = vld [vmem:[%s1 + $0x1cf8] sm:$0xff]
    %v959 = vld [vmem:[%s1 + $0x1d00] sm:$0xff]
    %v960 = vld [vmem:[%s1 + $0x1d08] sm:$0xff]
    %v961 = vld [vmem:[%s1 + $0x1d10] sm:$0xff]
    %v962 = vld [vmem:[%s1 + $0x1d18] sm:$0xff]
    %v963 = vld [vmem:[%s1 + $0x1d20] sm:$0xff]
    %v964 = vld [vmem:[%s1 + $0x1d28] sm:$0xff]
    %v965 = vld [vmem:[%s1 + $0x1d30] sm:$0xff]
    %v966 = vld [vmem:[%s1 + $0x1d38] sm:$0xff]
    %v967 = vld [vmem:[%s1 + $0x1d40] sm:$0xff]
    %v968 = vld [vmem:[%s1 + $0x1d48] sm:$0xff]
    %v969 = vld [vmem:[%s1 + $0x1d50] sm:$0xff]
    %v970 = vld [vmem:[%s1 + $0x1d58] sm:$0xff]
    %v971 = vld [vmem:[%s1 + $0x1d60] sm:$0xff]
    %v972 = vld [vmem:[%s1 + $0x1d68] sm:$0xff]
    %v973 = vld [vmem:[%s1 + $0x1d70] sm:$0xff]
    %v974 = vld [vmem:[%s1 + $0x1d78] sm:$0xff]
    %v975 = vld [vmem:[%s1 + $0x1d80] sm:$0xff]
    %v976 = vld [vmem:[%s1 + $0x1d88] sm:$0xff]
    %v977 = vld [vmem:[%s1 + $0x1d90] sm:$0xff]
    %v978 = vld [vmem:[%s1 + $0x1d98] sm:$0xff]
    %v979 = vld [vmem:[%s1 + $0x1da0] sm:$0xff]
    %v980 = vld [vmem:[%s1 + $0x1da8] sm:$0xff]
    %v981 = vld [vmem:[%s1 + $0x1db0] sm:$0xff]
    %v982 = vld [vmem:[%s1 + $0x1db8] sm:$0xff]
    %v983 = vld [vmem:[%s1 + $0x1dc0] sm:$0xff]
    %v984 = vld [vmem:[%s1 + $0x1dc8] sm:$0xff]
    %v985 = vld [vmem:[%s1 + $0x1dd0] sm:$0xff]
    %v986 = vld [vmem:[%s1 + $0x1dd8] sm:$0xff]
    %v987 = vld [vmem:[%s1 + $0x1de0] sm:$0xff]
    %v988 = vld [vmem:[%s1 + $0x1de8] sm:$0xff]
    %v989 = vld [vmem:[%s1 + $0x1df0] sm:$0xff]
    %v990 = vld [vmem:[%s1 + $0x1df8] sm:$0xff]
    %v991 = vld [vmem:[%s1 + $0x1e00] sm:$0xff]
    %v992 = vld [vmem:[%s1 + $0x1e08] sm:$0xff]
    %v993 = vld [vmem:[%s1 + $0x1e10] sm:$0xff]
    %v994 = vld [vmem:[%s1 + $0x1e18] sm:$0xff]
    %v995 = vld [vmem:[%s1 + $0x1e20] sm:$0xff]
    %v996 = vld [vmem:[%s1 + $0x1e28] sm:$0xff]
    %v997 = vld [vmem:[%s1 + $0x1e30] sm:$0xff]
    %v998 = vld [vmem:[%s1 + $0x1e38] sm:$0xff]
    %v999 = vld [vmem:[%s1 + $0x1e40] sm:$0xff]
    %v1000 = vld [vmem:[%s1 + $0x1e48] sm:$0xff]
    %v1001 = vld [vmem:[%s1 + $0x1e50] sm:$0xff]
    %v1002 = vld [vmem:[%s1 + $0x1e58] sm:$0xff]
    %v1003 = vld [vmem:[%s1 + $0x1e60] sm:$0xff]
    %v1004 = vld [vmem:[%s1 + $0x1e68] sm:$0xff]
    %v1005 = vld [vmem:[%s1 + $0x1e70] sm:$0xff]
    %v1006 = vld [vmem:[%s1 + $0x1e78] sm:$0xff]
    %v1007 = vld [vmem:[%s1 + $0x1e80] sm:$0xff]
    %v1008 = vld [vmem:[%s1 + $0x1e88] sm:$0xff]
    %v1009 = vld [vmem:[%s1 + $0x1e90] sm:$0xff]
    %v1010 = vld [vmem:[%s1 + $0x1e98] sm:$0xff]
    %v1011 = vld [vmem:[%s1 + $0x1ea0] sm:$0xff]
    %v1012 = vld [vmem:[%s1 + $0x1ea8] sm:$0xff]
    %v1013 = vld [vmem:[%s1 + $0x1eb0] sm:$0xff]
    %v1014 = vld [vmem:[%s1 + $0x1eb8] sm:$0xff]
    %v1015 = vld [vmem:[%s1 + $0x1ec0] sm:$0xff]
    %v1016 = vld [vmem:[%s1 + $0x1ec8] sm:$0xff]
    %v1017 = vld [vmem:[%s1 + $0x1ed0] sm:$0xff]
    %v1018 = vld [vmem:[%s1 + $0x1ed8] sm:$0xff]
    %v1019 = vld [vmem:[%s1 + $0x1ee0] sm:$0xff]
    %v1020 = vld [vmem:[%s1 + $0x1ee8] sm:$0xff]
    %v1021 = vld [vmem:[%s1 + $0x1ef0] sm:$0xff]
    %v1022 = vld [vmem:[%s1 + $0x1ef8] sm:$0xff]
    %v1023 = vld [vmem:[%s1 + $0x1f00] sm:$0xff]
    %v1024 = vld [vmem:[%s1 + $0x1f08] sm:$0xff]
    %v1025 = vld [vmem:[%s1 + $0x1f10] sm:$0xff]
    %v1026 = vld [vmem:[%s1 + $0x1f18] sm:$0xff]
    %v1027 = vld [vmem:[%s1 + $0x1f20] sm:$0xff]
    %v1028 = vld [vmem:[%s1 + $0x1f28] sm:$0xff]
    %v1029 = vld [vmem:[%s1 + $0x1f30] sm:$0xff]
    %v1030 = vld [vmem:[%s1 + $0x1f38] sm:$0xff]
    %v1031 = vld [vmem:[%s1 + $0x1f40] sm:$0xff]
    %v1032 = vld [vmem:[%s1 + $0x1f48] sm:$0xff]
    %v1033 = vld [vmem:[%s1 + $0x1f50] sm:$0xff]
    %v1034 = vld [vmem:[%s1 + $0x1f58] sm:$0xff]
    %v1035 = vld [vmem:[%s1 + $0x1f60] sm:$0xff]
    %v1036 = vld [vmem:[%s1 + $0x1f68] sm:$0xff]
    %v1037 = vld [vmem:[%s1 + $0x1f70] sm:$0xff]
    %v1038 = vld [vmem:[%s1 + $0x1f78] sm:$0xff]
    %v1039 = vld [vmem:[%s1 + $0x1f80] sm:$0xff]
    %v1040 = vld [vmem:[%s1 + $0x1f88] sm:$0xff]
    %v1041 = vld [vmem:[%s1 + $0x1f90] sm:$0xff]
    %v1042 = vld [vmem:[%s1 + $0x1f98] sm:$0xff]
    %v1043 = vld [vmem:[%s1 + $0x1fa0] sm:$0xff]
    %v1044 = vld [vmem:[%s1 + $0x1fa8] sm:$0xff]
    %v1045 = vld [vmem:[%s1 + $0x1fb0] sm:$0xff]
    %v1046 = vld [vmem:[%s1 + $0x1fb8] sm:$0xff]
    %v1047 = vld [vmem:[%s1 + $0x1fc0] sm:$0xff]
    %v1048 = vld [vmem:[%s1 + $0x1fc8] sm:$0xff]
    %v1049 = vld [vmem:[%s1 + $0x1fd0] sm:$0xff]
    %v1050 = vld [vmem:[%s1 + $0x1fd8] sm:$0xff]
    %v1051 = vld [vmem:[%s1 + $0x1fe0] sm:$0xff]
    %v1052 = vld [vmem:[%s1 + $0x1fe8] sm:$0xff]
    %v1053 = vld [vmem:[%s1 + $0x1ff0] sm:$0xff]
    %v1054 = vld [vmem:[%s1 + $0x1ff8] sm:$0xff]
    %v1055 = vld [vmem:[%s1 + $0x2000] sm:$0xff]
    %v1056 = vld [vmem:[%s1 + $0x2008] sm:$0xff]
    %v1057 = vld [vmem:[%s1 + $0x2010] sm:$0xff]
    %v1058 = vld [vmem:[%s1 + $0x2018] sm:$0xff]
    %v1059 = vld [vmem:[%s1 + $0x2020] sm:$0xff]
    %v1060 = vld [vmem:[%s1 + $0x2028] sm:$0xff]
    %v1061 = vld [vmem:[%s1 + $0x2030] sm:$0xff]
    %v1062 = vld [vmem:[%s1 + $0x2038] sm:$0xff]
    %v1063 = vld [vmem:[%s1 + $0x2040] sm:$0xff]
    %v1064 = vld [vmem:[%s1 + $0x2048] sm:$0xff]
    %v1065 = vld [vmem:[%s1 + $0x2050] sm:$0xff]
    %v1066 = vld [vmem:[%s1 + $0x2058] sm:$0xff]
    %v1067 = vld [vmem:[%s1 + $0x2060] sm:$0xff]
    %v1068 = vld [vmem:[%s1 + $0x2068] sm:$0xff]
    %v1069 = vld [vmem:[%s1 + $0x2070] sm:$0xff]
    %v1070 = vld [vmem:[%s1 + $0x2078] sm:$0xff]
    %v1071 = vld [vmem:[%s1 + $0x2080] sm:$0xff]
    %v1072 = vld [vmem:[%s1 + $0x2088] sm:$0xff]
    %v1073 = vld [vmem:[%s1 + $0x2090] sm:$0xff]
    %v1074 = vld [vmem:[%s1 + $0x2098] sm:$0xff]
    %v1075 = vld [vmem:[%s1 + $0x20a0] sm:$0xff]
    %v1076 = vld [vmem:[%s1 + $0x20a8] sm:$0xff]
    %v1077 = vld [vmem:[%s1 + $0x20b0] sm:$0xff]
    %v1078 = vld [vmem:[%s1 + $0x20b8] sm:$0xff]
    %v1079 = vld [vmem:[%s1 + $0x20c0] sm:$0xff]
    %v1080 = vld [vmem:[%s1 + $0x20c8] sm:$0xff]
    %v1081 = vld [vmem:[%s1 + $0x20d0] sm:$0xff]
    %v1082 = vld [vmem:[%s1 + $0x20d8] sm:$0xff]
    %v1083 = vld [vmem:[%s1 + $0x20e0] sm:$0xff]
    %v1084 = vld [vmem:[%s1 + $0x20e8] sm:$0xff]
    %v1085 = vld [vmem:[%s1 + $0x20f0] sm:$0xff]
    %v1086 = vld [vmem:[%s1 + $0x20f8] sm:$0xff]
    %v1087 = vld [vmem:[%s1 + $0x2100] sm:$0xff]
    %v1088 = vld [vmem:[%s1 + $0x2108] sm:$0xff]
    %v1089 = vld [vmem:[%s1 + $0x2110] sm:$0xff]
    %v1090 = vld [vmem:[%s1 + $0x2118] sm:$0xff]
    %v1091 = vld [vmem:[%s1 + $0x2120] sm:$0xff]
    %v1092 = vld [vmem:[%s1 + $0x2128] sm:$0xff]
    %v1093 = vld [vmem:[%s1 + $0x2130] sm:$0xff]
    %v1094 = vld [vmem:[%s1 + $0x2138] sm:$0xff]
    %v1095 = vld [vmem:[%s1 + $0x2140] sm:$0xff]
    %v1096 = vld [vmem:[%s1 + $0x2148] sm:$0xff]
    %v1097 = vld [vmem:[%s1 + $0x2150] sm:$0xff]
    %v1098 = vld [vmem:[%s1 + $0x2158] sm:$0xff]
    %v1099 = vld [vmem:[%s1 + $0x2160] sm:$0xff]
    %v1100 = vld [vmem:[%s1 + $0x2168] sm:$0xff]
    %v1101 = vld [vmem:[%s1 + $0x2170] sm:$0xff]
    %v1102 = vld [vmem:[%s1 + $0x2178] sm:$0xff]
    %v1103 = vld [vmem:[%s1 + $0x2180] sm:$0xff]
    %v1104 = vld [vmem:[%s1 + $0x2188] sm:$0xff]
    %v1105 = vld [vmem:[%s1 + $0x2190] sm:$0xff]
    %v1106 = vld [vmem:[%s1 + $0x2198] sm:$0xff]
    %v1107 = vld [vmem:[%s1 + $0x21a0] sm:$0xff]
    %v1108 = vld [vmem:[%s1 + $0x21a8] sm:$0xff]
    %v1109 = vld [vmem:[%s1 + $0x21b0] sm:$0xff]
    %v1110 = vld [vmem:[%s1 + $0x21b8] sm:$0xff]
    %v1111 = vld [vmem:[%s1 + $0x21c0] sm:$0xff]
    %v1112 = vld [vmem:[%s1 + $0x21c8] sm:$0xff]
    %v1113 = vld [vmem:[%s1 + $0x21d0] sm:$0xff]
    %v1114 = vld [vmem:[%s1 + $0x21d8] sm:$0xff]
    %v1115 = vld [vmem:[%s1 + $0x21e0] sm:$0xff]
    %v1116 = vld [vmem:[%s1 + $0x21e8] sm:$0xff]
    %v1117 = vld [vmem:[%s1 + $0x21f0] sm:$0xff]
    %v1118 = vld [vmem:[%s1 + $0x21f8] sm:$0xff]
    %v1119 = vld [vmem:[%s1 + $0x2200] sm:$0xff]
    %v1120 = vld [vmem:[%s1 + $0x2208] sm:$0xff]
    %v1121 = vld [vmem:[%s1 + $0x2210] sm:$0xff]
    %v1122 = vld [vmem:[%s1 + $0x2218] sm:$0xff]
    %v1123 = vld [vmem:[%s1 + $0x2220] sm:$0xff]
    %v1124 = vld [vmem:[%s1 + $0x2228] sm:$0xff]
    %v1125 = vld [vmem:[%s1 + $0x2230] sm:$0xff]
    %v1126 = vld [vmem:[%s1 + $0x2238] sm:$0xff]
    %v1127 = vld [vmem:[%s1 + $0x2240] sm:$0xff]
    %v1128 = vld [vmem:[%s1 + $0x2248] sm:$0xff]
    %v1129 = vld [vmem:[%s1 + $0x2250] sm:$0xff]
    %v1130 = vld [vmem:[%s1 + $0x2258] sm:$0xff]
    %v1131 = vld [vmem:[%s1 + $0x2260] sm:$0xff]
    %v1132 = vld [vmem:[%s1 + $0x2268] sm:$0xff]
    %v1133 = vld [vmem:[%s1 + $0x2270] sm:$0xff]
    %v1134 = vld [vmem:[%s1 + $0x2278] sm:$0xff]
    %v1135 = vld [vmem:[%s1 + $0x2280] sm:$0xff]
    %v1136 = vld [vmem:[%s1 + $0x2288] sm:$0xff]
    %v1137 = vld [vmem:[%s1 + $0x2290] sm:$0xff]
    %v1138 = vld [vmem:[%s1 + $0x2298] sm:$0xff]
    %v1139 = vld [vmem:[%s1 + $0x22a0] sm:$0xff]
    %v1140 = vld [vmem:[%s1 + $0x22a8] sm:$0xff]
    %v1141 = vld [vmem:[%s1 + $0x22b0] sm:$0xff]
    %v1142 = vld [vmem:[%s1 + $0x22b8] sm:$0xff]
    %v1143 = vld [vmem:[%s1 + $0x22c0] sm:$0xff]
    %v1144 = vld [vmem:[%s1 + $0x22c8] sm:$0xff]
    %v1145 = vld [vmem:[%s1 + $0x22d0] sm:$0xff]
    %v1146 = vld [vmem:[%s1 + $0x22d8] sm:$0xff]
    %v1147 = vld [vmem:[%s1 + $0x22e0] sm:$0xff]
    %v1148 = vld [vmem:[%s1 + $0x22e8] sm:$0xff]
    %v1149 = vld [vmem:[%s1 + $0x22f0] sm:$0xff]
    %v1150 = vld [vmem:[%s1 + $0x22f8] sm:$0xff]
    %v1151 = vld [vmem:[%s1 + $0x2300] sm:$0xff]
    %v1152 = vld [vmem:[%s1 + $0x2308] sm:$0xff]
    %v1153 = vld [vmem:[%s1 + $0x2310] sm:$0xff]
    %v1154 = vld [vmem:[%s1 + $0x2318] sm:$0xff]
    %v1155 = vld [vmem:[%s1 + $0x2320] sm:$0xff]
    %v1156 = vld [vmem:[%s1 + $0x2328] sm:$0xff]
    %v1157 = vld [vmem:[%s1 + $0x2330] sm:$0xff]
    %v1158 = vld [vmem:[%s1 + $0x2338] sm:$0xff]
    %v1159 = vld [vmem:[%s1 + $0x2340] sm:$0xff]
    %v1160 = vld [vmem:[%s1 + $0x2348] sm:$0xff]
    %v1161 = vld [vmem:[%s1 + $0x2350] sm:$0xff]
    %v1162 = vld [vmem:[%s1 + $0x2358] sm:$0xff]
    %v1163 = vld [vmem:[%s1 + $0x2360] sm:$0xff]
    %v1164 = vld [vmem:[%s1 + $0x2368] sm:$0xff]
    %v1165 = vld [vmem:[%s1 + $0x2370] sm:$0xff]
    %v1166 = vld [vmem:[%s1 + $0x2378] sm:$0xff]
    %v1167 = vld [vmem:[%s1 + $0x2380] sm:$0xff]
    %v1168 = vld [vmem:[%s1 + $0x2388] sm:$0xff]
    %v1169 = vld [vmem:[%s1 + $0x2390] sm:$0xff]
    %v1170 = vld [vmem:[%s1 + $0x2398] sm:$0xff]
    %v1171 = vld [vmem:[%s1 + $0x23a0] sm:$0xff]
    %v1172 = vld [vmem:[%s1 + $0x23a8] sm:$0xff]
    %v1173 = vld [vmem:[%s1 + $0x23b0] sm:$0xff]
    %v1174 = vld [vmem:[%s1 + $0x23b8] sm:$0xff]
    %v1175 = vld [vmem:[%s1 + $0x23c0] sm:$0xff]
    %v1176 = vld [vmem:[%s1 + $0x23c8] sm:$0xff]
    %v1177 = vld [vmem:[%s1 + $0x23d0] sm:$0xff]
    %v1178 = vld [vmem:[%s1 + $0x23d8] sm:$0xff]
    %v1179 = vld [vmem:[%s1 + $0x23e0] sm:$0xff]
    %v1180 = vld [vmem:[%s1 + $0x23e8] sm:$0xff]
    %v1181 = vld [vmem:[%s1 + $0x23f0] sm:$0xff]
    %v1182 = vld [vmem:[%s1 + $0x23f8] sm:$0xff]
    %v1183 = vld [vmem:[%s1 + $0x2400] sm:$0xff]
    %v1184 = vld [vmem:[%s1 + $0x2408] sm:$0xff]
    %v1185 = vld [vmem:[%s1 + $0x2410] sm:$0xff]
    %v1186 = vld [vmem:[%s1 + $0x2418] sm:$0xff]
    %v1187 = vld [vmem:[%s1 + $0x2420] sm:$0xff]
    %v1188 = vld [vmem:[%s1 + $0x2428] sm:$0xff]
    %v1189 = vld [vmem:[%s1 + $0x2430] sm:$0xff]
    %v1190 = vld [vmem:[%s1 + $0x2438] sm:$0xff]
    %v1191 = vld [vmem:[%s1 + $0x2440] sm:$0xff]
    %v1192 = vld [vmem:[%s1 + $0x2448] sm:$0xff]
    %v1193 = vld [vmem:[%s1 + $0x2450] sm:$0xff]
    %v1194 = vld [vmem:[%s1 + $0x2458] sm:$0xff]
    %v1195 = vld [vmem:[%s1 + $0x2460] sm:$0xff]
    %v1196 = vld [vmem:[%s1 + $0x2468] sm:$0xff]
    %v1197 = vld [vmem:[%s1 + $0x2470] sm:$0xff]
    %v1198 = vld [vmem:[%s1 + $0x2478] sm:$0xff]
    %v1199 = vld [vmem:[%s1 + $0x2480] sm:$0xff]
    %v1200 = vld [vmem:[%s1 + $0x2488] sm:$0xff]
    %v1201 = vld [vmem:[%s1 + $0x2490] sm:$0xff]
    %v1202 = vld [vmem:[%s1 + $0x2498] sm:$0xff]
    %v1203 = vld [vmem:[%s1 + $0x24a0] sm:$0xff]
    %v1204 = vld [vmem:[%s1 + $0x24a8] sm:$0xff]
    %v1205 = vld [vmem:[%s1 + $0x24b0] sm:$0xff]
    %v1206 = vld [vmem:[%s1 + $0x24b8] sm:$0xff]
    %v1207 = vld [vmem:[%s1 + $0x24c0] sm:$0xff]
    %v1208 = vld [vmem:[%s1 + $0x24c8] sm:$0xff]
    %v1209 = vld [vmem:[%s1 + $0x24d0] sm:$0xff]
    %v1210 = vld [vmem:[%s1 + $0x24d8] sm:$0xff]
    %v1211 = vld [vmem:[%s1 + $0x24e0] sm:$0xff]
    %v1212 = vld [vmem:[%s1 + $0x24e8] sm:$0xff]
    %v1213 = vld [vmem:[%s1 + $0x24f0] sm:$0xff]
    %v1214 = vld [vmem:[%s1 + $0x24f8] sm:$0xff]
    %v1215 = vld [vmem:[%s1 + $0x2500] sm:$0xff]
    %v1216 = vld [vmem:[%s1 + $0x2508] sm:$0xff]
    %v1217 = vld [vmem:[%s1 + $0x2510] sm:$0xff]
    %v1218 = vld [vmem:[%s1 + $0x2518] sm:$0xff]
    %v1219 = vld [vmem:[%s1 + $0x2520] sm:$0xff]
    %v1220 = vld [vmem:[%s1 + $0x2528] sm:$0xff]
    %v1221 = vld [vmem:[%s1 + $0x2530] sm:$0xff]
    %v1222 = vld [vmem:[%s1 + $0x2538] sm:$0xff]
    %v1223 = vld [vmem:[%s1 + $0x2540] sm:$0xff]
    %v1224 = vld [vmem:[%s1 + $0x2548] sm:$0xff]
    %v1225 = vld [vmem:[%s1 + $0x2550] sm:$0xff]
    %v1226 = vld [vmem:[%s1 + $0x2558] sm:$0xff]
    %v1227 = vld [vmem:[%s1 + $0x2560] sm:$0xff]
    %v1228 = vld [vmem:[%s1 + $0x2568] sm:$0xff]
    %v1229 = vld [vmem:[%s1 + $0x2570] sm:$0xff]
    %v1230 = vld [vmem:[%s1 + $0x2578] sm:$0xff]
    %v1231 = vld [vmem:[%s1 + $0x2580] sm:$0xff]
    %v1232 = vld [vmem:[%s1 + $0x2588] sm:$0xff]
    %v1233 = vld [vmem:[%s1 + $0x2590] sm:$0xff]
    %v1234 = vld [vmem:[%s1 + $0x2598] sm:$0xff]
    %v1235 = vld [vmem:[%s1 + $0x25a0] sm:$0xff]
    %v1236 = vld [vmem:[%s1 + $0x25a8] sm:$0xff]
    %v1237 = vld [vmem:[%s1 + $0x25b0] sm:$0xff]
    %v1238 = vld [vmem:[%s1 + $0x25b8] sm:$0xff]
    %v1239 = vld [vmem:[%s1 + $0x25c0] sm:$0xff]
    %v1240 = vld [vmem:[%s1 + $0x25c8] sm:$0xff]
    %v1241 = vld [vmem:[%s1 + $0x25d0] sm:$0xff]
    %v1242 = vld [vmem:[%s1 + $0x25d8] sm:$0xff]
    %v1243 = vld [vmem:[%s1 + $0x25e0] sm:$0xff]
    %v1244 = vld [vmem:[%s1 + $0x25e8] sm:$0xff]
    %v1245 = vld [vmem:[%s1 + $0x25f0] sm:$0xff]
    %v1246 = vld [vmem:[%s1 + $0x25f8] sm:$0xff]
    %v1247 = vld [vmem:[%s1 + $0x2600] sm:$0xff]
    %v1248 = vld [vmem:[%s1 + $0x2608] sm:$0xff]
    %v1249 = vld [vmem:[%s1 + $0x2610] sm:$0xff]
    %v1250 = vld [vmem:[%s1 + $0x2618] sm:$0xff]
    %v1251 = vld [vmem:[%s1 + $0x2620] sm:$0xff]
    %v1252 = vld [vmem:[%s1 + $0x2628] sm:$0xff]
    %v1253 = vld [vmem:[%s1 + $0x2630] sm:$0xff]
    %v1254 = vld [vmem:[%s1 + $0x2638] sm:$0xff]
    %v1255 = vld [vmem:[%s1 + $0x2640] sm:$0xff]
    %v1256 = vld [vmem:[%s1 + $0x2648] sm:$0xff]
    %v1257 = vld [vmem:[%s1 + $0x2650] sm:$0xff]
    %v1258 = vld [vmem:[%s1 + $0x2658] sm:$0xff]
    %v1259 = vld [vmem:[%s1 + $0x2660] sm:$0xff]
    %v1260 = vld [vmem:[%s1 + $0x2668] sm:$0xff]
    %v1261 = vld [vmem:[%s1 + $0x2670] sm:$0xff]
    %v1262 = vld [vmem:[%s1 + $0x2678] sm:$0xff]
    %v1263 = vld [vmem:[%s1 + $0x2680] sm:$0xff]
    %v1264 = vld [vmem:[%s1 + $0x2688] sm:$0xff]
    %v1265 = vld [vmem:[%s1 + $0x2690] sm:$0xff]
    %v1266 = vld [vmem:[%s1 + $0x2698] sm:$0xff]
    %v1267 = vld [vmem:[%s1 + $0x26a0] sm:$0xff]
    %v1268 = vld [vmem:[%s1 + $0x26a8] sm:$0xff]
    %v1269 = vld [vmem:[%s1 + $0x26b0] sm:$0xff]
    %v1270 = vld [vmem:[%s1 + $0x26b8] sm:$0xff]
    %v1271 = vld [vmem:[%s1 + $0x26c0] sm:$0xff]
    %v1272 = vld [vmem:[%s1 + $0x26c8] sm:$0xff]
    %v1273 = vld [vmem:[%s1 + $0x26d0] sm:$0xff]
    %v1274 = vld [vmem:[%s1 + $0x26d8] sm:$0xff]
    %v1275 = vld [vmem:[%s1 + $0x26e0] sm:$0xff]
    %v1276 = vld [vmem:[%s1 + $0x26e8] sm:$0xff]
    %v1277 = vld [vmem:[%s1 + $0x26f0] sm:$0xff]
    %v1278 = vld [vmem:[%s1 + $0x26f8] sm:$0xff]
    %v1279 = vld [vmem:[%s1 + $0x2700] sm:$0xff]
    %v1280 = vld [vmem:[%s1 + $0x2708] sm:$0xff]
    %v1281 = vld [vmem:[%s1 + $0x2710] sm:$0xff]
    %v1282 = vld [vmem:[%s1 + $0x2718] sm:$0xff]
    %v1283 = vld [vmem:[%s1 + $0x2720] sm:$0xff]
    %v1284 = vld [vmem:[%s1 + $0x2728] sm:$0xff]
    %v1285 = vld [vmem:[%s1 + $0x2730] sm:$0xff]
    %v1286 = vld [vmem:[%s1 + $0x2738] sm:$0xff]
    %v1287 = vld [vmem:[%s1 + $0x2740] sm:$0xff]
    %v1288 = vld [vmem:[%s1 + $0x2748] sm:$0xff]
    %v1289 = vld [vmem:[%s1 + $0x2750] sm:$0xff]
    %v1290 = vld [vmem:[%s1 + $0x2758] sm:$0xff]
    %v1291 = vld [vmem:[%s1 + $0x2760] sm:$0xff]
    %v1292 = vld [vmem:[%s1 + $0x2768] sm:$0xff]
    %v1293 = vld [vmem:[%s1 + $0x2770] sm:$0xff]
    %v1294 = vld [vmem:[%s1 + $0x2778] sm:$0xff]
    %v1295 = vld [vmem:[%s1 + $0x2780] sm:$0xff]
    %v1296 = vld [vmem:[%s1 + $0x2788] sm:$0xff]
    %v1297 = vld [vmem:[%s1 + $0x2790] sm:$0xff]
    %v1298 = vld [vmem:[%s1 + $0x2798] sm:$0xff]
    %v1299 = vld [vmem:[%s1 + $0x27a0] sm:$0xff]
    %v1300 = vld [vmem:[%s1 + $0x27a8] sm:$0xff]
    %v1301 = vld [vmem:[%s1 + $0x27b0] sm:$0xff]
    %v1302 = vld [vmem:[%s1 + $0x27b8] sm:$0xff]
    %v1303 = vld [vmem:[%s1 + $0x27c0] sm:$0xff]
    %v1304 = vld [vmem:[%s1 + $0x27c8] sm:$0xff]
    %v1305 = vld [vmem:[%s1 + $0x27d0] sm:$0xff]
    %v1306 = vld [vmem:[%s1 + $0x27d8] sm:$0xff]
    %v1307 = vld [vmem:[%s1 + $0x27e0] sm:$0xff]
    %v1308 = vld [vmem:[%s1 + $0x27e8] sm:$0xff]
    %v1309 = vld [vmem:[%s1 + $0x27f0] sm:$0xff]
    %v1310 = vld [vmem:[%s1 + $0x27f8] sm:$0xff]
    %v1311 = vld [vmem:[%s1 + $0x2800] sm:$0xff]
    %v1312 = vld [vmem:[%s1 + $0x2808] sm:$0xff]
    %v1313 = vld [vmem:[%s1 + $0x2810] sm:$0xff]
    %v1314 = vld [vmem:[%s1 + $0x2818] sm:$0xff]
    %v1315 = vld [vmem:[%s1 + $0x2820] sm:$0xff]
    %v1316 = vld [vmem:[%s1 + $0x2828] sm:$0xff]
    %v1317 = vld [vmem:[%s1 + $0x2830] sm:$0xff]
    %v1318 = vld [vmem:[%s1 + $0x2838] sm:$0xff]
    %v1319 = vld [vmem:[%s1 + $0x2840] sm:$0xff]
    %v1320 = vld [vmem:[%s1 + $0x2848] sm:$0xff]
    %v1321 = vld [vmem:[%s1 + $0x2850] sm:$0xff]
    %v1322 = vld [vmem:[%s1 + $0x2858] sm:$0xff]
    %v1323 = vld [vmem:[%s1 + $0x2860] sm:$0xff]
    %v1324 = vld [vmem:[%s1 + $0x2868] sm:$0xff]
    %v1325 = vld [vmem:[%s1 + $0x2870] sm:$0xff]
    %v1326 = vld [vmem:[%s1 + $0x2878] sm:$0xff]
    %v1327 = vld [vmem:[%s1 + $0x2880] sm:$0xff]
    %v1328 = vld [vmem:[%s1 + $0x2888] sm:$0xff]
    %v1329 = vld [vmem:[%s1 + $0x2890] sm:$0xff]
    %v1330 = vld [vmem:[%s1 + $0x2898] sm:$0xff]
    %v1331 = vld [vmem:[%s1 + $0x28a0] sm:$0xff]
    %v1332 = vld [vmem:[%s1 + $0x28a8] sm:$0xff]
    %v1333 = vld [vmem:[%s1 + $0x28b0] sm:$0xff]
    %v1334 = vld [vmem:[%s1 + $0x28b8] sm:$0xff]
    %v1335 = vld [vmem:[%s1 + $0x28c0] sm:$0xff]
    %v1336 = vld [vmem:[%s1 + $0x28c8] sm:$0xff]
    %v1337 = vld [vmem:[%s1 + $0x28d0] sm:$0xff]
    %v1338 = vld [vmem:[%s1 + $0x28d8] sm:$0xff]
    %v1339 = vld [vmem:[%s1 + $0x28e0] sm:$0xff]
    %v1340 = vld [vmem:[%s1 + $0x28e8] sm:$0xff]
    %v1341 = vld [vmem:[%s1 + $0x28f0] sm:$0xff]
    %v1342 = vld [vmem:[%s1 + $0x28f8] sm:$0xff]
    %v1343 = vld [vmem:[%s1 + $0x2900] sm:$0xff]
    %v1344 = vld [vmem:[%s1 + $0x2908] sm:$0xff]
    %v1345 = vld [vmem:[%s1 + $0x2910] sm:$0xff]
    %v1346 = vld [vmem:[%s1 + $0x2918] sm:$0xff]
    %v1347 = vld [vmem:[%s1 + $0x2920] sm:$0xff]
    %v1348 = vld [vmem:[%s1 + $0x2928] sm:$0xff]
    %v1349 = vld [vmem:[%s1 + $0x2930] sm:$0xff]
    %v1350 = vld [vmem:[%s1 + $0x2938] sm:$0xff]
    %v1351 = vld [vmem:[%s1 + $0x2940] sm:$0xff]
    %v1352 = vld [vmem:[%s1 + $0x2948] sm:$0xff]
    %v1353 = vld [vmem:[%s1 + $0x2950] sm:$0xff]
    %v1354 = vld [vmem:[%s1 + $0x2958] sm:$0xff]
    %v1355 = vld [vmem:[%s1 + $0x2960] sm:$0xff]
    %v1356 = vld [vmem:[%s1 + $0x2968] sm:$0xff]
    %v1357 = vld [vmem:[%s1 + $0x2970] sm:$0xff]
    %v1358 = vld [vmem:[%s1 + $0x2978] sm:$0xff]
    %v1359 = vld [vmem:[%s1 + $0x2980] sm:$0xff]
    %v1360 = vld [vmem:[%s1 + $0x2988] sm:$0xff]
    %v1361 = vld [vmem:[%s1 + $0x2990] sm:$0xff]
    %v1362 = vld [vmem:[%s1 + $0x2998] sm:$0xff]
    %v1363 = vld [vmem:[%s1 + $0x29a0] sm:$0xff]
    %v1364 = vld [vmem:[%s1 + $0x29a8] sm:$0xff]
    %v1365 = vld [vmem:[%s1 + $0x29b0] sm:$0xff]
    %v1366 = vld [vmem:[%s1 + $0x29b8] sm:$0xff]
    %v1367 = vld [vmem:[%s1 + $0x29c0] sm:$0xff]
    %v1368 = vld [vmem:[%s1 + $0x29c8] sm:$0xff]
    %v1369 = vld [vmem:[%s1 + $0x29d0] sm:$0xff]
    %v1370 = vld [vmem:[%s1 + $0x29d8] sm:$0xff]
    %v1371 = vld [vmem:[%s1 + $0x29e0] sm:$0xff]
    %v1372 = vld [vmem:[%s1 + $0x29e8] sm:$0xff]
    %v1373 = vld [vmem:[%s1 + $0x29f0] sm:$0xff]
    %v1374 = vld [vmem:[%s1 + $0x29f8] sm:$0xff]
    %v1375 = vld [vmem:[%s1 + $0x2a00] sm:$0xff]
    %v1376 = vld [vmem:[%s1 + $0x2a08] sm:$0xff]
    %v1377 = vld [vmem:[%s1 + $0x2a10] sm:$0xff]
    %v1378 = vld [vmem:[%s1 + $0x2a18] sm:$0xff]
    %v1379 = vld [vmem:[%s1 + $0x2a20] sm:$0xff]
    %v1380 = vld [vmem:[%s1 + $0x2a28] sm:$0xff]
    %v1381 = vld [vmem:[%s1 + $0x2a30] sm:$0xff]
    %v1382 = vld [vmem:[%s1 + $0x2a38] sm:$0xff]
    %v1383 = vld [vmem:[%s1 + $0x2a40] sm:$0xff]
    %v1384 = vld [vmem:[%s1 + $0x2a48] sm:$0xff]
    %v1385 = vld [vmem:[%s1 + $0x2a50] sm:$0xff]
    %v1386 = vld [vmem:[%s1 + $0x2a58] sm:$0xff]
    %v1387 = vld [vmem:[%s1 + $0x2a60] sm:$0xff]
    %v1388 = vld [vmem:[%s1 + $0x2a68] sm:$0xff]
    %v1389 = vld [vmem:[%s1 + $0x2a70] sm:$0xff]
    %v1390 = vld [vmem:[%s1 + $0x2a78] sm:$0xff]
    %v1391 = vld [vmem:[%s1 + $0x2a80] sm:$0xff]
    %v1392 = vld [vmem:[%s1 + $0x2a88] sm:$0xff]
    %v1393 = vld [vmem:[%s1 + $0x2a90] sm:$0xff]
    %v1394 = vld [vmem:[%s1 + $0x2a98] sm:$0xff]
    %v1395 = vld [vmem:[%s1 + $0x2aa0] sm:$0xff]
    %v1396 = vld [vmem:[%s1 + $0x2aa8] sm:$0xff]
    %v1397 = vld [vmem:[%s1 + $0x2ab0] sm:$0xff]
    %v1398 = vld [vmem:[%s1 + $0x2ab8] sm:$0xff]
    %v1399 = vld [vmem:[%s1 + $0x2ac0] sm:$0xff]
    %v1400 = vld [vmem:[%s1 + $0x2ac8] sm:$0xff]
    %v1401 = vld [vmem:[%s1 + $0x2ad0] sm:$0xff]
    %v1402 = vld [vmem:[%s1 + $0x2ad8] sm:$0xff]
    %v1403 = vld [vmem:[%s1 + $0x2ae0] sm:$0xff]
    %v1404 = vld [vmem:[%s1 + $0x2ae8] sm:$0xff]
    %v1405 = vld [vmem:[%s1 + $0x2af0] sm:$0xff]
    %v1406 = vld [vmem:[%s1 + $0x2af8] sm:$0xff]
    %v1407 = vld [vmem:[%s1 + $0x2b00] sm:$0xff]
    %v1408 = vld [vmem:[%s1 + $0x2b08] sm:$0xff]
    %v1409 = vld [vmem:[%s1 + $0x2b10] sm:$0xff]
    %v1410 = vld [vmem:[%s1 + $0x2b18] sm:$0xff]
    %v1411 = vld [vmem:[%s1 + $0x2b20] sm:$0xff]
    %v1412 = vld [vmem:[%s1 + $0x2b28] sm:$0xff]
    %v1413 = vld [vmem:[%s1 + $0x2b30] sm:$0xff]
    %v1414 = vld [vmem:[%s1 + $0x2b38] sm:$0xff]
    %v1415 = vld [vmem:[%s1 + $0x2b40] sm:$0xff]
    %v1416 = vld [vmem:[%s1 + $0x2b48] sm:$0xff]
    %v1417 = vld [vmem:[%s1 + $0x2b50] sm:$0xff]
    %v1418 = vld [vmem:[%s1 + $0x2b58] sm:$0xff]
    %v1419 = vld [vmem:[%s1 + $0x2b60] sm:$0xff]
    %v1420 = vld [vmem:[%s1 + $0x2b68] sm:$0xff]
    %v1421 = vld [vmem:[%s1 + $0x2b70] sm:$0xff]
    %v1422 = vld [vmem:[%s1 + $0x2b78] sm:$0xff]
    %v1423 = vld [vmem:[%s1 + $0x2b80] sm:$0xff]
    %v1424 = vld [vmem:[%s1 + $0x2b88] sm:$0xff]
    %v1425 = vld [vmem:[%s1 + $0x2b90] sm:$0xff]
    %v1426 = vld [vmem:[%s1 + $0x2b98] sm:$0xff]
    %v1427 = vld [vmem:[%s1 + $0x2ba0] sm:$0xff]
    %v1428 = vld [vmem:[%s1 + $0x2ba8] sm:$0xff]
    %v1429 = vld [vmem:[%s1 + $0x2bb0] sm:$0xff]
    %v1430 = vld [vmem:[%s1 + $0x2bb8] sm:$0xff]
    %v1431 = vld [vmem:[%s1 + $0x2bc0] sm:$0xff]
    %v1432 = vld [vmem:[%s1 + $0x2bc8] sm:$0xff]
    %v1433 = vld [vmem:[%s1 + $0x2bd0] sm:$0xff]
    %v1434 = vld [vmem:[%s1 + $0x2bd8] sm:$0xff]
    %v1435 = vld [vmem:[%s1 + $0x2be0] sm:$0xff]
    %v1436 = vld [vmem:[%s1 + $0x2be8] sm:$0xff]
    %v1437 = vld [vmem:[%s1 + $0x2bf0] sm:$0xff]
    %v1438 = vld [vmem:[%s1 + $0x2bf8] sm:$0xff]
    %v1439 = vld [vmem:[%s1 + $0x2c00] sm:$0xff]
    %v1440 = vld [vmem:[%s1 + $0x2c08] sm:$0xff]
    %v1441 = vld [vmem:[%s1 + $0x2c10] sm:$0xff]
    %v1442 = vld [vmem:[%s1 + $0x2c18] sm:$0xff]
    %v1443 = vld [vmem:[%s1 + $0x2c20] sm:$0xff]
    %v1444 = vld [vmem:[%s1 + $0x2c28] sm:$0xff]
    %v1445 = vld [vmem:[%s1 + $0x2c30] sm:$0xff]
    %v1446 = vld [vmem:[%s1 + $0x2c38] sm:$0xff]
    %v1447 = vld [vmem:[%s1 + $0x2c40] sm:$0xff]
    %v1448 = vld [vmem:[%s1 + $0x2c48] sm:$0xff]
    %v1449 = vld [vmem:[%s1 + $0x2c50] sm:$0xff]
    %v1450 = vld [vmem:[%s1 + $0x2c58] sm:$0xff]
    %v1451 = vld [vmem:[%s1 + $0x2c60] sm:$0xff]
    %v1452 = vld [vmem:[%s1 + $0x2c68] sm:$0xff]
    %v1453 = vld [vmem:[%s1 + $0x2c70] sm:$0xff]
    %v1454 = vld [vmem:[%s1 + $0x2c78] sm:$0xff]
    %v1455 = vld [vmem:[%s1 + $0x2c80] sm:$0xff]
    %v1456 = vld [vmem:[%s1 + $0x2c88] sm:$0xff]
    %v1457 = vld [vmem:[%s1 + $0x2c90] sm:$0xff]
    %v1458 = vld [vmem:[%s1 + $0x2c98] sm:$0xff]
    %v1459 = vld [vmem:[%s1 + $0x2ca0] sm:$0xff]
    %v1460 = vld [vmem:[%s1 + $0x2ca8] sm:$0xff]
    %v1461 = vld [vmem:[%s1 + $0x2cb0] sm:$0xff]
    %v1462 = vld [vmem:[%s1 + $0x2cb8] sm:$0xff]
    %v1463 = vld [vmem:[%s1 + $0x2cc0] sm:$0xff]
    %v1464 = vld [vmem:[%s1 + $0x2cc8] sm:$0xff]
    %v1465 = vld [vmem:[%s1 + $0x2cd0] sm:$0xff]
    %v1466 = vld [vmem:[%s1 + $0x2cd8] sm:$0xff]
    %v1467 = vld [vmem:[%s1 + $0x2ce0] sm:$0xff]
    %v1468 = vld [vmem:[%s1 + $0x2ce8] sm:$0xff]
    %v1469 = vld [vmem:[%s1 + $0x2cf0] sm:$0xff]
    %v1470 = vld [vmem:[%s1 + $0x2cf8] sm:$0xff]
    %v1471 = vld [vmem:[%s1 + $0x2d00] sm:$0xff]
    %v1472 = vld [vmem:[%s1 + $0x2d08] sm:$0xff]
    %v1473 = vld [vmem:[%s1 + $0x2d10] sm:$0xff]
    %v1474 = vld [vmem:[%s1 + $0x2d18] sm:$0xff]
    %v1475 = vld [vmem:[%s1 + $0x2d20] sm:$0xff]
    %v1476 = vld [vmem:[%s1 + $0x2d28] sm:$0xff]
    %v1477 = vld [vmem:[%s1 + $0x2d30] sm:$0xff]
    %v1478 = vld [vmem:[%s1 + $0x2d38] sm:$0xff]
    %v1479 = vld [vmem:[%s1 + $0x2d40] sm:$0xff]
    %v1480 = vld [vmem:[%s1 + $0x2d48] sm:$0xff]
    %v1481 = vld [vmem:[%s1 + $0x2d50] sm:$0xff]
    %v1482 = vld [vmem:[%s1 + $0x2d58] sm:$0xff]
    %v1483 = vld [vmem:[%s1 + $0x2d60] sm:$0xff]
    %v1484 = vld [vmem:[%s1 + $0x2d68] sm:$0xff]
    %v1485 = vld [vmem:[%s1 + $0x2d70] sm:$0xff]
    %v1486 = vld [vmem:[%s1 + $0x2d78] sm:$0xff]
    %v1487 = vld [vmem:[%s1 + $0x2d80] sm:$0xff]
    %v1488 = vld [vmem:[%s1 + $0x2d88] sm:$0xff]
    %v1489 = vld [vmem:[%s1 + $0x2d90] sm:$0xff]
    %v1490 = vld [vmem:[%s1 + $0x2d98] sm:$0xff]
    %v1491 = vld [vmem:[%s1 + $0x2da0] sm:$0xff]
    %v1492 = vld [vmem:[%s1 + $0x2da8] sm:$0xff]
    %v1493 = vld [vmem:[%s1 + $0x2db0] sm:$0xff]
    %v1494 = vld [vmem:[%s1 + $0x2db8] sm:$0xff]
    %v1495 = vld [vmem:[%s1 + $0x2dc0] sm:$0xff]
    %v1496 = vld [vmem:[%s1 + $0x2dc8] sm:$0xff]
    %v1497 = vld [vmem:[%s1 + $0x2dd0] sm:$0xff]
    %v1498 = vld [vmem:[%s1 + $0x2dd8] sm:$0xff]
    %v1499 = vld [vmem:[%s1 + $0x2de0] sm:$0xff]
    %v1500 = vld [vmem:[%s1 + $0x2de8] sm:$0xff]
    %v1501 = vld [vmem:[%s1 + $0x2df0] sm:$0xff]
    %v1502 = vld [vmem:[%s1 + $0x2df8] sm:$0xff]
    %v1503 = vld [vmem:[%s1 + $0x2e00] sm:$0xff]
    %v1504 = vld [vmem:[%s1 + $0x2e08] sm:$0xff]
    %v1505 = vld [vmem:[%s1 + $0x2e10] sm:$0xff]
    %v1506 = vld [vmem:[%s1 + $0x2e18] sm:$0xff]
    %v1507 = vld [vmem:[%s1 + $0x2e20] sm:$0xff]
    %v1508 = vld [vmem:[%s1 + $0x2e28] sm:$0xff]
    %v1509 = vld [vmem:[%s1 + $0x2e30] sm:$0xff]
    %v1510 = vld [vmem:[%s1 + $0x2e38] sm:$0xff]
    %v1511 = vld [vmem:[%s1 + $0x2e40] sm:$0xff]
    %v1512 = vld [vmem:[%s1 + $0x2e48] sm:$0xff]
    %v1513 = vld [vmem:[%s1 + $0x2e50] sm:$0xff]
    %v1514 = vld [vmem:[%s1 + $0x2e58] sm:$0xff]
    %v1515 = vld [vmem:[%s1 + $0x2e60] sm:$0xff]
    %v1516 = vld [vmem:[%s1 + $0x2e68] sm:$0xff]
    %v1517 = vld [vmem:[%s1 + $0x2e70] sm:$0xff]
    %v1518 = vld [vmem:[%s1 + $0x2e78] sm:$0xff]
    %v1519 = vld [vmem:[%s1 + $0x2e80] sm:$0xff]
    %v1520 = vld [vmem:[%s1 + $0x2e88] sm:$0xff]
    %v1521 = vld [vmem:[%s1 + $0x2e90] sm:$0xff]
    %v1522 = vld [vmem:[%s1 + $0x2e98] sm:$0xff]
    %v1523 = vld [vmem:[%s1 + $0x2ea0] sm:$0xff]
    %v1524 = vld [vmem:[%s1 + $0x2ea8] sm:$0xff]
    %v1525 = vld [vmem:[%s1 + $0x2eb0] sm:$0xff]
    %v1526 = vld [vmem:[%s1 + $0x2eb8] sm:$0xff]
    %v1527 = vld [vmem:[%s1 + $0x2ec0] sm:$0xff]
    %v1528 = vld [vmem:[%s1 + $0x2ec8] sm:$0xff]
    %v1529 = vld [vmem:[%s1 + $0x2ed0] sm:$0xff]
    %v1530 = vld [vmem:[%s1 + $0x2ed8] sm:$0xff]
    %v1531 = vld [vmem:[%s1 + $0x2ee0] sm:$0xff]
    %v1532 = vld [vmem:[%s1 + $0x2ee8] sm:$0xff]
    %v1533 = vld [vmem:[%s1 + $0x2ef0] sm:$0xff]
    %v1534 = vld [vmem:[%s1 + $0x2ef8] sm:$0xff]
    %v1535 = vld [vmem:[%s1 + $0x2f00] sm:$0xff]
    %v1536 = vld [vmem:[%s1 + $0x2f08] sm:$0xff]
    %v1537 = vld [vmem:[%s1 + $0x2f10] sm:$0xff]
    %v1538 = vld [vmem:[%s1 + $0x2f18] sm:$0xff]
    %v1539 = vld [vmem:[%s1 + $0x2f20] sm:$0xff]
    %v1540 = vld [vmem:[%s1 + $0x2f28] sm:$0xff]
    %v1541 = vld [vmem:[%s1 + $0x2f30] sm:$0xff]
    %v1542 = vld [vmem:[%s1 + $0x2f38] sm:$0xff]
    %v1543 = vld [vmem:[%s1 + $0x2f40] sm:$0xff]
    %v1544 = vld [vmem:[%s1 + $0x2f48] sm:$0xff]
    %v1545 = vld [vmem:[%s1 + $0x2f50] sm:$0xff]
    %v1546 = vld [vmem:[%s1 + $0x2f58] sm:$0xff]
    %v1547 = vld [vmem:[%s1 + $0x2f60] sm:$0xff]
    %v1548 = vld [vmem:[%s1 + $0x2f68] sm:$0xff]
    %v1549 = vld [vmem:[%s1 + $0x2f70] sm:$0xff]
    %v1550 = vld [vmem:[%s1 + $0x2f78] sm:$0xff]
    %v1551 = vld [vmem:[%s1 + $0x2f80] sm:$0xff]
    %v1552 = vld [vmem:[%s1 + $0x2f88] sm:$0xff]
    %v1553 = vld [vmem:[%s1 + $0x2f90] sm:$0xff]
    %v1554 = vld [vmem:[%s1 + $0x2f98] sm:$0xff]
    %v1555 = vld [vmem:[%s1 + $0x2fa0] sm:$0xff]
    %v1556 = vld [vmem:[%s1 + $0x2fa8] sm:$0xff]
    %v1557 = vld [vmem:[%s1 + $0x2fb0] sm:$0xff]
    %v1558 = vld [vmem:[%s1 + $0x2fb8] sm:$0xff]
    %v1559 = vld [vmem:[%s1 + $0x2fc0] sm:$0xff]
    %v1560 = vld [vmem:[%s1 + $0x2fc8] sm:$0xff]
    %v1561 = vld [vmem:[%s1 + $0x2fd0] sm:$0xff]
    %v1562 = vld [vmem:[%s1 + $0x2fd8] sm:$0xff]
    %v1563 = vld [vmem:[%s1 + $0x2fe0] sm:$0xff]
    %v1564 = vld [vmem:[%s1 + $0x2fe8] sm:$0xff]
    %v1565 = vld [vmem:[%s1 + $0x2ff0] sm:$0xff]
    %v1566 = vld [vmem:[%s1 + $0x2ff8] sm:$0xff]
    %v1567 = vld [vmem:[%s1 + $0x3000] sm:$0xff]
    %v1568 = vld [vmem:[%s1 + $0x3008] sm:$0xff]
    %v1569 = vld [vmem:[%s1 + $0x3010] sm:$0xff]
    %v1570 = vld [vmem:[%s1 + $0x3018] sm:$0xff]
    %v1571 = vld [vmem:[%s1 + $0x3020] sm:$0xff]
    %v1572 = vld [vmem:[%s1 + $0x3028] sm:$0xff]
    %v1573 = vld [vmem:[%s1 + $0x3030] sm:$0xff]
    %v1574 = vld [vmem:[%s1 + $0x3038] sm:$0xff]
    %v1575 = vld [vmem:[%s1 + $0x3040] sm:$0xff]
    %v1576 = vld [vmem:[%s1 + $0x3048] sm:$0xff]
    %v1577 = vld [vmem:[%s1 + $0x3050] sm:$0xff]
    %v1578 = vld [vmem:[%s1 + $0x3058] sm:$0xff]
    %v1579 = vld [vmem:[%s1 + $0x3060] sm:$0xff]
    %v1580 = vld [vmem:[%s1 + $0x3068] sm:$0xff]
    %v1581 = vld [vmem:[%s1 + $0x3070] sm:$0xff]
    %v1582 = vld [vmem:[%s1 + $0x3078] sm:$0xff]
    %v1583 = vld [vmem:[%s1 + $0x3080] sm:$0xff]
    %v1584 = vld [vmem:[%s1 + $0x3088] sm:$0xff]
    %v1585 = vld [vmem:[%s1 + $0x3090] sm:$0xff]
    %v1586 = vld [vmem:[%s1 + $0x3098] sm:$0xff]
    %v1587 = vld [vmem:[%s1 + $0x30a0] sm:$0xff]
    %v1588 = vld [vmem:[%s1 + $0x30a8] sm:$0xff]
    %v1589 = vld [vmem:[%s1 + $0x30b0] sm:$0xff]
    %v1590 = vld [vmem:[%s1 + $0x30b8] sm:$0xff]
    %v1591 = vld [vmem:[%s1 + $0x30c0] sm:$0xff]
    %v1592 = vld [vmem:[%s1 + $0x30c8] sm:$0xff]
    %v1593 = vld [vmem:[%s1 + $0x30d0] sm:$0xff]
    %v1594 = vld [vmem:[%s1 + $0x30d8] sm:$0xff]
    %v1595 = vld [vmem:[%s1 + $0x30e0] sm:$0xff]
    %v1596 = vld [vmem:[%s1 + $0x30e8] sm:$0xff]
    %v1597 = vld [vmem:[%s1 + $0x30f0] sm:$0xff]
    %v1598 = vld [vmem:[%s1 + $0x30f8] sm:$0xff]
    %v1599 = vld [vmem:[%s2] sm:$0xf]
    %v1601 = vlaneseq
    %v1602 = vshrl.u32 %v1601, 7
    %v1603 = vsub.s32 0, %v1602
    %v1604 = vrot.slane %v1599, %v1603
    %v1605 = vlaneseq
    %v1606 = vshrl.u32 %v1605, 7
    %v1607 = vsub.s32 1, %v1606
    %v1608 = vrot.slane %v1599, %v1607
    %v1609 = vlaneseq
    %v1610 = vshrl.u32 %v1609, 7
    %v1611 = vsub.s32 2, %v1610
    %v1612 = vrot.slane %v1599, %v1611
    %v1613 = vlaneseq
    %v1614 = vshrl.u32 %v1613, 7
    %v1615 = vsub.s32 3, %v1614
    %v1616 = vrot.slane %v1599, %v1615
    %v1628 = vcombine.high %v24, %v24
    %v1630 = vunpack.c.l.s4 1983009808
    %v1631 = vunpack.c.0.s8 %v1630
    %v1632 = vlaneseq
    %v1633 = vshrl.u32 %v1632, 7
    %v1634 = vsub.s32 %v1631, %v1633
    %v1635 = vrot.slane %v24, %v1634
    %v1637 = vunpack.c.l.s4 1983009808
    %v1638 = vunpack.c.0.s8 %v1637
    %v1639 = vlaneseq
    %v1640 = vshrl.u32 %v1639, 7
    %v1641 = vsub.s32 %v1638, %v1640
    %v1642 = vrot.slane %v1628, %v1641
    %v1643 = vcombine.high %v1635, %v1635
    %v1644 = vcombine.high %v1642, %v1642
    %v1645 = vcombine.high %v25, %v25
    %v1647 = vunpack.c.l.s4 1983009808
    %v1648 = vunpack.c.0.s8 %v1647
    %v1649 = vlaneseq
    %v1650 = vshrl.u32 %v1649, 7
    %v1651 = vsub.s32 %v1648, %v1650
    %v1652 = vrot.slane %v25, %v1651
    %v1654 = vunpack.c.l.s4 1983009808
    %v1655 = vunpack.c.0.s8 %v1654
    %v1656 = vlaneseq
    %v1657 = vshrl.u32 %v1656, 7
    %v1658 = vsub.s32 %v1655, %v1657
    %v1659 = vrot.slane %v1645, %v1658
    %v1660 = vcombine.high %v1652, %v1652
    %v1661 = vcombine.high %v1659, %v1659
    %v1662 = vcombine.high %v26, %v26
    %v1664 = vunpack.c.l.s4 1983009808
    %v1665 = vunpack.c.0.s8 %v1664
    %v1666 = vlaneseq
    %v1667 = vshrl.u32 %v1666, 7
    %v1668 = vsub.s32 %v1665, %v1667
    %v1669 = vrot.slane %v26, %v1668
    %v1671 = vunpack.c.l.s4 1983009808
    %v1672 = vunpack.c.0.s8 %v1671
    %v1673 = vlaneseq
    %v1674 = vshrl.u32 %v1673, 7
    %v1675 = vsub.s32 %v1672, %v1674
    %v1676 = vrot.slane %v1662, %v1675
    %v1677 = vcombine.high %v1669, %v1669
    %v1678 = vcombine.high %v1676, %v1676
    %v1679 = vcombine.high %v27, %v27
    %v1681 = vunpack.c.l.s4 1983009808
    %v1682 = vunpack.c.0.s8 %v1681
    %v1683 = vlaneseq
    %v1684 = vshrl.u32 %v1683, 7
    %v1685 = vsub.s32 %v1682, %v1684
    %v1686 = vrot.slane %v27, %v1685
    %v1688 = vunpack.c.l.s4 1983009808
    %v1689 = vunpack.c.0.s8 %v1688
    %v1690 = vlaneseq
    %v1691 = vshrl.u32 %v1690, 7
    %v1692 = vsub.s32 %v1689, %v1691
    %v1693 = vrot.slane %v1679, %v1692
    %v1694 = vcombine.high %v1686, %v1686
    %v1695 = vcombine.high %v1693, %v1693
    %v1696 = vcombine.high %v28, %v28
    %v1698 = vunpack.c.l.s4 1983009808
    %v1699 = vunpack.c.0.s8 %v1698
    %v1700 = vlaneseq
    %v1701 = vshrl.u32 %v1700, 7
    %v1702 = vsub.s32 %v1699, %v1701
    %v1703 = vrot.slane %v28, %v1702
    %v1705 = vunpack.c.l.s4 1983009808
    %v1706 = vunpack.c.0.s8 %v1705
    %v1707 = vlaneseq
    %v1708 = vshrl.u32 %v1707, 7
    %v1709 = vsub.s32 %v1706, %v1708
    %v1710 = vrot.slane %v1696, %v1709
    %v1711 = vcombine.high %v1703, %v1703
    %v1712 = vcombine.high %v1710, %v1710
    %v1713 = vcombine.high %v29, %v29
    %v1715 = vunpack.c.l.s4 1983009808
    %v1716 = vunpack.c.0.s8 %v1715
    %v1717 = vlaneseq
    %v1718 = vshrl.u32 %v1717, 7
    %v1719 = vsub.s32 %v1716, %v1718
    %v1720 = vrot.slane %v29, %v1719
    %v1722 = vunpack.c.l.s4 1983009808
    %v1723 = vunpack.c.0.s8 %v1722
    %v1724 = vlaneseq
    %v1725 = vshrl.u32 %v1724, 7
    %v1726 = vsub.s32 %v1723, %v1725
    %v1727 = vrot.slane %v1713, %v1726
    %v1728 = vcombine.high %v1720, %v1720
    %v1729 = vcombine.high %v1727, %v1727
    %v1731 = vunpack.c.l.s4 1983009808
    %v1732 = vunpack.c.0.s8 %v1731
    %v1733 = vlaneseq
    %v1734 = vshrl.u32 %v1733, 7
    %v1735 = vsub.s32 %v1732, %v1734
    %v1736 = vrot.slane %v30, %v1735
    %vm1761 = vcmask 523264
    %v1762 = vsel %vm1761, %v1736, 0
    %1764 = vmatprep.subr.mxu0 %v32
    %1765 = vmatpush1.msra.mxu0 %v31
    %1766 = vmatprep.subr.mxu0 %v36
    %1767 = vmatpush1.msra.mxu0 %v35
    %1768 = vmatprep.subr.mxu0 %v40
    %1769 = vmatpush1.msra.mxu0 %v39
    %1770 = vmatprep.subr.mxu0 %v44
    %1771 = vmatpush1.msra.mxu0 %v43
    %1772 = vmatprep.subr.mxu0 %v48
    %1773 = vmatpush1.msra.mxu0 %v47
    %1774 = vmatprep.subr.mxu0 %v52
    %1775 = vmatpush1.msra.mxu0 %v51
    %1776 = vmatprep.subr.mxu0 %v56
    %1777 = vmatpush1.msra.mxu0 %v55
    %1778 = vmatprep.subr.mxu0 %v60
    %1779 = vmatpush1.msra.mxu0 %v59
    %1780 = vmatprep.subr.mxu0 %v64
    %1781 = vmatpush1.msra.mxu0 %v63
    %1782 = vmatprep.subr.mxu0 %v68
    %1783 = vmatpush1.msra.mxu0 %v67
    %1784 = vmatprep.subr.mxu0 %v72
    %1785 = vmatpush1.msra.mxu0 %v71
    %1786 = vmatprep.subr.mxu0 %v76
    %1787 = vmatpush1.msra.mxu0 %v75
    %1788 = vmatprep.subr.mxu0 %v80
    %1789 = vmatpush1.msra.mxu0 %v79
    %1790 = vmatprep.subr.mxu0 %v84
    %1791 = vmatpush1.msra.mxu0 %v83
    %1792 = vmatprep.subr.mxu0 %v88
    %1793 = vmatpush1.msra.mxu0 %v87
    %1794 = vmatprep.subr.mxu0 %v92
    %1795 = vmatpush1.msra.mxu0 %v91
    %1796 = vmatprep.subr.mxu0 %v96
    %1797 = vmatpush1.msra.mxu0 %v95
    %1798 = vmatprep.subr.mxu0 %v100
    %1799 = vmatpush1.msra.mxu0 %v99
    %1800 = vmatprep.subr.mxu0 %v104
    %1801 = vmatpush1.msra.mxu0 %v103
    %1802 = vmatprep.subr.mxu0 %v108
    %1803 = vmatpush1.msra.mxu0 %v107
    %1804 = vmatprep.subr.mxu0 %v112
    %1805 = vmatpush1.msra.mxu0 %v111
    %1806 = vmatprep.subr.mxu0 %v116
    %1807 = vmatpush1.msra.mxu0 %v115
    %1808 = vmatprep.subr.mxu0 %v120
    %1809 = vmatpush1.msra.mxu0 %v119
    %1810 = vmatprep.subr.mxu0 %v124
    %1811 = vmatpush1.msra.mxu0 %v123
    %1812 = vmatprep.subr.mxu0 %v128
    %1813 = vmatpush1.msra.mxu0 %v127
    %1814 = vmatprep.subr.mxu0 %v132
    %1815 = vmatpush1.msra.mxu0 %v131
    %1816 = vmatprep.subr.mxu0 %v136
    %1817 = vmatpush1.msra.mxu0 %v135
    %1818 = vmatprep.subr.mxu0 %v140
    %1819 = vmatpush1.msra.mxu0 %v139
    %1820 = vmatprep.subr.mxu0 %v144
    %1821 = vmatpush1.msra.mxu0 %v143
    %1822 = vmatprep.subr.mxu0 %v148
    %1823 = vmatpush1.msra.mxu0 %v147
    %1824 = vmatprep.subr.mxu0 %v152
    %1825 = vmatpush1.msra.mxu0 %v151
    %1826 = vmatprep.subr.mxu0 %v156
    %1827 = vmatpush1.msra.mxu0 %v155
    %1828 = vmatprep.mubr.f32.mxu0 %v1643
    %1829 = vmatmul.mubr.f32.gmra.mrb[0].mxu0 %v1635
    %v1830 = vpop.f32.mrb[0].mxu0
    %v1831 = vadd.f32 %v1604, %v1830
    %v1832 = vpop.f32.mrb[0].mxu0
    %v1833 = vadd.f32 %v1608, %v1832
    %1834 = vdwg.mxu0
    %1835 = vmatprep.subr.mxu0 %v160
    %1836 = vmatpush1.msra.mxu0 %v159
    %1837 = vmatprep.subr.mxu0 %v164
    %1838 = vmatpush1.msra.mxu0 %v163
    %1839 = vmatprep.subr.mxu0 %v168
    %1840 = vmatpush1.msra.mxu0 %v167
    %1841 = vmatprep.subr.mxu0 %v172
    %1842 = vmatpush1.msra.mxu0 %v171
    %1843 = vmatprep.subr.mxu0 %v176
    %1844 = vmatpush1.msra.mxu0 %v175
    %1845 = vmatprep.subr.mxu0 %v180
    %1846 = vmatpush1.msra.mxu0 %v179
    %1847 = vmatprep.subr.mxu0 %v184
    %1848 = vmatpush1.msra.mxu0 %v183
    %1849 = vmatprep.subr.mxu0 %v188
    %1850 = vmatpush1.msra.mxu0 %v187
    %1851 = vmatprep.subr.mxu0 %v192
    %1852 = vmatpush1.msra.mxu0 %v191
    %1853 = vmatprep.subr.mxu0 %v196
    %1854 = vmatpush1.msra.mxu0 %v195
    %1855 = vmatprep.subr.mxu0 %v200
    %1856 = vmatpush1.msra.mxu0 %v199
    %1857 = vmatprep.subr.mxu0 %v204
    %1858 = vmatpush1.msra.mxu0 %v203
    %1859 = vmatprep.subr.mxu0 %v208
    %1860 = vmatpush1.msra.mxu0 %v207
    %1861 = vmatprep.subr.mxu0 %v212
    %1862 = vmatpush1.msra.mxu0 %v211
    %1863 = vmatprep.subr.mxu0 %v216
    %1864 = vmatpush1.msra.mxu0 %v215
    %1865 = vmatprep.subr.mxu0 %v220
    %1866 = vmatpush1.msra.mxu0 %v219
    %1867 = vmatprep.subr.mxu0 %v224
    %1868 = vmatpush1.msra.mxu0 %v223
    %1869 = vmatprep.subr.mxu0 %v228
    %1870 = vmatpush1.msra.mxu0 %v227
    %1871 = vmatprep.subr.mxu0 %v232
    %1872 = vmatpush1.msra.mxu0 %v231
    %1873 = vmatprep.subr.mxu0 %v236
    %1874 = vmatpush1.msra.mxu0 %v235
    %1875 = vmatprep.subr.mxu0 %v240
    %1876 = vmatpush1.msra.mxu0 %v239
    %1877 = vmatprep.subr.mxu0 %v244
    %1878 = vmatpush1.msra.mxu0 %v243
    %1879 = vmatprep.subr.mxu0 %v248
    %1880 = vmatpush1.msra.mxu0 %v247
    %1881 = vmatprep.subr.mxu0 %v252
    %1882 = vmatpush1.msra.mxu0 %v251
    %1883 = vmatprep.subr.mxu0 %v256
    %1884 = vmatpush1.msra.mxu0 %v255
    %1885 = vmatprep.subr.mxu0 %v260
    %1886 = vmatpush1.msra.mxu0 %v259
    %1887 = vmatprep.subr.mxu0 %v264
    %1888 = vmatpush1.msra.mxu0 %v263
    %1889 = vmatprep.subr.mxu0 %v268
    %1890 = vmatpush1.msra.mxu0 %v267
    %1891 = vmatprep.subr.mxu0 %v272
    %1892 = vmatpush1.msra.mxu0 %v271
    %1893 = vmatprep.subr.mxu0 %v276
    %1894 = vmatpush1.msra.mxu0 %v275
    %1895 = vmatprep.subr.mxu0 %v280
    %1896 = vmatpush1.msra.mxu0 %v279
    %1897 = vmatprep.subr.mxu0 %v284
    %1898 = vmatpush1.msra.mxu0 %v283
    %1899 = vmatprep.mubr.f32.mxu0 %v1644
    %1900 = vmatmul.mubr.f32.gmra.mrb[0].mxu0 %v1642
    %v1901 = vpop.f32.mrb[0].mxu0
    %v1902 = vadd.f32 %v1831, %v1901
    %v1903 = vpop.f32.mrb[0].mxu0
    %v1904 = vadd.f32 %v1833, %v1903
    %1905 = vdwg.mxu0
    %1906 = vmatprep.subr.mxu0 %v288
    %1907 = vmatpush1.msra.mxu0 %v287
    %1908 = vmatprep.subr.mxu0 %v292
    %1909 = vmatpush1.msra.mxu0 %v291
    %1910 = vmatprep.subr.mxu0 %v296
    %1911 = vmatpush1.msra.mxu0 %v295
    %1912 = vmatprep.subr.mxu0 %v300
    %1913 = vmatpush1.msra.mxu0 %v299
    %1914 = vmatprep.subr.mxu0 %v304
    %1915 = vmatpush1.msra.mxu0 %v303
    %1916 = vmatprep.subr.mxu0 %v308
    %1917 = vmatpush1.msra.mxu0 %v307
    %1918 = vmatprep.subr.mxu0 %v312
    %1919 = vmatpush1.msra.mxu0 %v311
    %1920 = vmatprep.subr.mxu0 %v316
    %1921 = vmatpush1.msra.mxu0 %v315
    %1922 = vmatprep.subr.mxu0 %v320
    %1923 = vmatpush1.msra.mxu0 %v319
    %1924 = vmatprep.subr.mxu0 %v324
    %1925 = vmatpush1.msra.mxu0 %v323
    %1926 = vmatprep.subr.mxu0 %v328
    %1927 = vmatpush1.msra.mxu0 %v327
    %1928 = vmatprep.subr.mxu0 %v332
    %1929 = vmatpush1.msra.mxu0 %v331
    %1930 = vmatprep.subr.mxu0 %v336
    %1931 = vmatpush1.msra.mxu0 %v335
    %1932 = vmatprep.subr.mxu0 %v340
    %1933 = vmatpush1.msra.mxu0 %v339
    %1934 = vmatprep.subr.mxu0 %v344
    %1935 = vmatpush1.msra.mxu0 %v343
    %1936 = vmatprep.subr.mxu0 %v348
    %1937 = vmatpush1.msra.mxu0 %v347
    %1938 = vmatprep.subr.mxu0 %v352
    %1939 = vmatpush1.msra.mxu0 %v351
    %1940 = vmatprep.subr.mxu0 %v356
    %1941 = vmatpush1.msra.mxu0 %v355
    %1942 = vmatprep.subr.mxu0 %v360
    %1943 = vmatpush1.msra.mxu0 %v359
    %1944 = vmatprep.subr.mxu0 %v364
    %1945 = vmatpush1.msra.mxu0 %v363
    %1946 = vmatprep.subr.mxu0 %v368
    %1947 = vmatpush1.msra.mxu0 %v367
    %1948 = vmatprep.subr.mxu0 %v372
    %1949 = vmatpush1.msra.mxu0 %v371
    %1950 = vmatprep.subr.mxu0 %v376
    %1951 = vmatpush1.msra.mxu0 %v375
    %1952 = vmatprep.subr.mxu0 %v380
    %1953 = vmatpush1.msra.mxu0 %v379
    %1954 = vmatprep.subr.mxu0 %v384
    %1955 = vmatpush1.msra.mxu0 %v383
    %1956 = vmatprep.subr.mxu0 %v388
    %1957 = vmatpush1.msra.mxu0 %v387
    %1958 = vmatprep.subr.mxu0 %v392
    %1959 = vmatpush1.msra.mxu0 %v391
    %1960 = vmatprep.subr.mxu0 %v396
    %1961 = vmatpush1.msra.mxu0 %v395
    %1962 = vmatprep.subr.mxu0 %v400
    %1963 = vmatpush1.msra.mxu0 %v399
    %1964 = vmatprep.subr.mxu0 %v404
    %1965 = vmatpush1.msra.mxu0 %v403
    %1966 = vmatprep.subr.mxu0 %v408
    %1967 = vmatpush1.msra.mxu0 %v407
    %1968 = vmatprep.subr.mxu0 %v412
    %1969 = vmatpush1.msra.mxu0 %v411
    %1970 = vmatprep.mubr.f32.mxu0 %v1660
    %1971 = vmatmul.mubr.f32.gmra.mrb[0].mxu0 %v1652
    %v1972 = vpop.f32.mrb[0].mxu0
    %v1973 = vadd.f32 %v1902, %v1972
    %v1974 = vpop.f32.mrb[0].mxu0
    %v1975 = vadd.f32 %v1904, %v1974
    %1976 = vdwg.mxu0
    %1977 = vmatprep.subr.mxu0 %v416
    %1978 = vmatpush1.msra.mxu0 %v415
    %1979 = vmatprep.subr.mxu0 %v420
    %1980 = vmatpush1.msra.mxu0 %v419
    %1981 = vmatprep.subr.mxu0 %v424
    %1982 = vmatpush1.msra.mxu0 %v423
    %1983 = vmatprep.subr.mxu0 %v428
    %1984 = vmatpush1.msra.mxu0 %v427
    %1985 = vmatprep.subr.mxu0 %v432
    %1986 = vmatpush1.msra.mxu0 %v431
    %1987 = vmatprep.subr.mxu0 %v436
    %1988 = vmatpush1.msra.mxu0 %v435
    %1989 = vmatprep.subr.mxu0 %v440
    %1990 = vmatpush1.msra.mxu0 %v439
    %1991 = vmatprep.subr.mxu0 %v444
    %1992 = vmatpush1.msra.mxu0 %v443
    %1993 = vmatprep.subr.mxu0 %v448
    %1994 = vmatpush1.msra.mxu0 %v447
    %1995 = vmatprep.subr.mxu0 %v452
    %1996 = vmatpush1.msra.mxu0 %v451
    %1997 = vmatprep.subr.mxu0 %v456
    %1998 = vmatpush1.msra.mxu0 %v455
    %1999 = vmatprep.subr.mxu0 %v460
    %2000 = vmatpush1.msra.mxu0 %v459
    %2001 = vmatprep.subr.mxu0 %v464
    %2002 = vmatpush1.msra.mxu0 %v463
    %2003 = vmatprep.subr.mxu0 %v468
    %2004 = vmatpush1.msra.mxu0 %v467
    %2005 = vmatprep.subr.mxu0 %v472
    %2006 = vmatpush1.msra.mxu0 %v471
    %2007 = vmatprep.subr.mxu0 %v476
    %2008 = vmatpush1.msra.mxu0 %v475
    %2009 = vmatprep.subr.mxu0 %v480
    %2010 = vmatpush1.msra.mxu0 %v479
    %2011 = vmatprep.subr.mxu0 %v484
    %2012 = vmatpush1.msra.mxu0 %v483
    %2013 = vmatprep.subr.mxu0 %v488
    %2014 = vmatpush1.msra.mxu0 %v487
    %2015 = vmatprep.subr.mxu0 %v492
    %2016 = vmatpush1.msra.mxu0 %v491
    %2017 = vmatprep.subr.mxu0 %v496
    %2018 = vmatpush1.msra.mxu0 %v495
    %2019 = vmatprep.subr.mxu0 %v500
    %2020 = vmatpush1.msra.mxu0 %v499
    %2021 = vmatprep.subr.mxu0 %v504
    %2022 = vmatpush1.msra.mxu0 %v503
    %2023 = vmatprep.subr.mxu0 %v508
    %2024 = vmatpush1.msra.mxu0 %v507
    %2025 = vmatprep.subr.mxu0 %v512
    %2026 = vmatpush1.msra.mxu0 %v511
    %2027 = vmatprep.subr.mxu0 %v516
    %2028 = vmatpush1.msra.mxu0 %v515
    %2029 = vmatprep.subr.mxu0 %v520
    %2030 = vmatpush1.msra.mxu0 %v519
    %2031 = vmatprep.subr.mxu0 %v524
    %2032 = vmatpush1.msra.mxu0 %v523
    %2033 = vmatprep.subr.mxu0 %v528
    %2034 = vmatpush1.msra.mxu0 %v527
    %2035 = vmatprep.subr.mxu0 %v532
    %2036 = vmatpush1.msra.mxu0 %v531
    %2037 = vmatprep.subr.mxu0 %v536
    %2038 = vmatpush1.msra.mxu0 %v535
    %2039 = vmatprep.subr.mxu0 %v540
    %2040 = vmatpush1.msra.mxu0 %v539
    %2041 = vmatprep.mubr.f32.mxu0 %v1661
    %2042 = vmatmul.mubr.f32.gmra.mrb[0].mxu0 %v1659
    %v2043 = vpop.f32.mrb[0].mxu0
    %v2044 = vadd.f32 %v1973, %v2043
    %v2045 = vpop.f32.mrb[0].mxu0
    %v2046 = vadd.f32 %v1975, %v2045
    %2047 = vdwg.mxu0
    %2048 = vmatprep.subr.mxu0 %v544
    %2049 = vmatpush1.msra.mxu0 %v543
    %2050 = vmatprep.subr.mxu0 %v548
    %2051 = vmatpush1.msra.mxu0 %v547
    %2052 = vmatprep.subr.mxu0 %v552
    %2053 = vmatpush1.msra.mxu0 %v551
    %2054 = vmatprep.subr.mxu0 %v556
    %2055 = vmatpush1.msra.mxu0 %v555
    %2056 = vmatprep.subr.mxu0 %v560
    %2057 = vmatpush1.msra.mxu0 %v559
    %2058 = vmatprep.subr.mxu0 %v564
    %2059 = vmatpush1.msra.mxu0 %v563
    %2060 = vmatprep.subr.mxu0 %v568
    %2061 = vmatpush1.msra.mxu0 %v567
    %2062 = vmatprep.subr.mxu0 %v572
    %2063 = vmatpush1.msra.mxu0 %v571
    %2064 = vmatprep.subr.mxu0 %v576
    %2065 = vmatpush1.msra.mxu0 %v575
    %2066 = vmatprep.subr.mxu0 %v580
    %2067 = vmatpush1.msra.mxu0 %v579
    %2068 = vmatprep.subr.mxu0 %v584
    %2069 = vmatpush1.msra.mxu0 %v583
    %2070 = vmatprep.subr.mxu0 %v588
    %2071 = vmatpush1.msra.mxu0 %v587
    %2072 = vmatprep.subr.mxu0 %v592
    %2073 = vmatpush1.msra.mxu0 %v591
    %2074 = vmatprep.subr.mxu0 %v596
    %2075 = vmatpush1.msra.mxu0 %v595
    %2076 = vmatprep.subr.mxu0 %v600
    %2077 = vmatpush1.msra.mxu0 %v599
    %2078 = vmatprep.subr.mxu0 %v604
    %2079 = vmatpush1.msra.mxu0 %v603
    %2080 = vmatprep.subr.mxu0 %v608
    %2081 = vmatpush1.msra.mxu0 %v607
    %2082 = vmatprep.subr.mxu0 %v612
    %2083 = vmatpush1.msra.mxu0 %v611
    %2084 = vmatprep.subr.mxu0 %v616
    %2085 = vmatpush1.msra.mxu0 %v615
    %2086 = vmatprep.subr.mxu0 %v620
    %2087 = vmatpush1.msra.mxu0 %v619
    %2088 = vmatprep.subr.mxu0 %v624
    %2089 = vmatpush1.msra.mxu0 %v623
    %2090 = vmatprep.subr.mxu0 %v628
    %2091 = vmatpush1.msra.mxu0 %v627
    %2092 = vmatprep.subr.mxu0 %v632
    %2093 = vmatpush1.msra.mxu0 %v631
    %2094 = vmatprep.subr.mxu0 %v636
    %2095 = vmatpush1.msra.mxu0 %v635
    %2096 = vmatprep.subr.mxu0 %v640
    %2097 = vmatpush1.msra.mxu0 %v639
    %2098 = vmatprep.subr.mxu0 %v644
    %2099 = vmatpush1.msra.mxu0 %v643
    %2100 = vmatprep.subr.mxu0 %v648
    %2101 = vmatpush1.msra.mxu0 %v647
    %2102 = vmatprep.subr.mxu0 %v652
    %2103 = vmatpush1.msra.mxu0 %v651
    %2104 = vmatprep.subr.mxu0 %v656
    %2105 = vmatpush1.msra.mxu0 %v655
    %2106 = vmatprep.subr.mxu0 %v660
    %2107 = vmatpush1.msra.mxu0 %v659
    %2108 = vmatprep.subr.mxu0 %v664
    %2109 = vmatpush1.msra.mxu0 %v663
    %2110 = vmatprep.subr.mxu0 %v668
    %2111 = vmatpush1.msra.mxu0 %v667
    %2112 = vmatprep.mubr.f32.mxu0 %v1677
    %2113 = vmatmul.mubr.f32.gmra.mrb[0].mxu0 %v1669
    %v2114 = vpop.f32.mrb[0].mxu0
    %v2115 = vadd.f32 %v2044, %v2114
    %v2116 = vpop.f32.mrb[0].mxu0
    %v2117 = vadd.f32 %v2046, %v2116
    %2118 = vdwg.mxu0
    %2119 = vmatprep.subr.mxu0 %v672
    %2120 = vmatpush1.msra.mxu0 %v671
    %2121 = vmatprep.subr.mxu0 %v676
    %2122 = vmatpush1.msra.mxu0 %v675
    %2123 = vmatprep.subr.mxu0 %v680
    %2124 = vmatpush1.msra.mxu0 %v679
    %2125 = vmatprep.subr.mxu0 %v684
    %2126 = vmatpush1.msra.mxu0 %v683
    %2127 = vmatprep.subr.mxu0 %v688
    %2128 = vmatpush1.msra.mxu0 %v687
    %2129 = vmatprep.subr.mxu0 %v692
    %2130 = vmatpush1.msra.mxu0 %v691
    %2131 = vmatprep.subr.mxu0 %v696
    %2132 = vmatpush1.msra.mxu0 %v695
    %2133 = vmatprep.subr.mxu0 %v700
    %2134 = vmatpush1.msra.mxu0 %v699
    %2135 = vmatprep.subr.mxu0 %v704
    %2136 = vmatpush1.msra.mxu0 %v703
    %2137 = vmatprep.subr.mxu0 %v708
    %2138 = vmatpush1.msra.mxu0 %v707
    %2139 = vmatprep.subr.mxu0 %v712
    %2140 = vmatpush1.msra.mxu0 %v711
    %2141 = vmatprep.subr.mxu0 %v716
    %2142 = vmatpush1.msra.mxu0 %v715
    %2143 = vmatprep.subr.mxu0 %v720
    %2144 = vmatpush1.msra.mxu0 %v719
    %2145 = vmatprep.subr.mxu0 %v724
    %2146 = vmatpush1.msra.mxu0 %v723
    %2147 = vmatprep.subr.mxu0 %v728
    %2148 = vmatpush1.msra.mxu0 %v727
    %2149 = vmatprep.subr.mxu0 %v732
    %2150 = vmatpush1.msra.mxu0 %v731
    %2151 = vmatprep.subr.mxu0 %v736
    %2152 = vmatpush1.msra.mxu0 %v735
    %2153 = vmatprep.subr.mxu0 %v740
    %2154 = vmatpush1.msra.mxu0 %v739
    %2155 = vmatprep.subr.mxu0 %v744
    %2156 = vmatpush1.msra.mxu0 %v743
    %2157 = vmatprep.subr.mxu0 %v748
    %2158 = vmatpush1.msra.mxu0 %v747
    %2159 = vmatprep.subr.mxu0 %v752
    %2160 = vmatpush1.msra.mxu0 %v751
    %2161 = vmatprep.subr.mxu0 %v756
    %2162 = vmatpush1.msra.mxu0 %v755
    %2163 = vmatprep.subr.mxu0 %v760
    %2164 = vmatpush1.msra.mxu0 %v759
    %2165 = vmatprep.subr.mxu0 %v764
    %2166 = vmatpush1.msra.mxu0 %v763
    %2167 = vmatprep.subr.mxu0 %v768
    %2168 = vmatpush1.msra.mxu0 %v767
    %2169 = vmatprep.subr.mxu0 %v772
    %2170 = vmatpush1.msra.mxu0 %v771
    %2171 = vmatprep.subr.mxu0 %v776
    %2172 = vmatpush1.msra.mxu0 %v775
    %2173 = vmatprep.subr.mxu0 %v780
    %2174 = vmatpush1.msra.mxu0 %v779
    %2175 = vmatprep.subr.mxu0 %v784
    %2176 = vmatpush1.msra.mxu0 %v783
    %2177 = vmatprep.subr.mxu0 %v788
    %2178 = vmatpush1.msra.mxu0 %v787
    %2179 = vmatprep.subr.mxu0 %v792
    %2180 = vmatpush1.msra.mxu0 %v791
    %2181 = vmatprep.subr.mxu0 %v796
    %2182 = vmatpush1.msra.mxu0 %v795
    %2183 = vmatprep.mubr.f32.mxu0 %v1678
    %2184 = vmatmul.mubr.f32.gmra.mrb[0].mxu0 %v1676
    %v2185 = vpop.f32.mrb[0].mxu0
    %v2186 = vadd.f32 %v2115, %v2185
    %v2187 = vpop.f32.mrb[0].mxu0
    %v2188 = vadd.f32 %v2117, %v2187
    %2189 = vdwg.mxu0
    %2190 = vmatprep.subr.mxu0 %v800
    %2191 = vmatpush1.msra.mxu0 %v799
    %2192 = vmatprep.subr.mxu0 %v804
    %2193 = vmatpush1.msra.mxu0 %v803
    %2194 = vmatprep.subr.mxu0 %v808
    %2195 = vmatpush1.msra.mxu0 %v807
    %2196 = vmatprep.subr.mxu0 %v812
    %2197 = vmatpush1.msra.mxu0 %v811
    %2198 = vmatprep.subr.mxu0 %v816
    %2199 = vmatpush1.msra.mxu0 %v815
    %2200 = vmatprep.subr.mxu0 %v820
    %2201 = vmatpush1.msra.mxu0 %v819
    %2202 = vmatprep.subr.mxu0 %v824
    %2203 = vmatpush1.msra.mxu0 %v823
    %2204 = vmatprep.subr.mxu0 %v828
    %2205 = vmatpush1.msra.mxu0 %v827
    %2206 = vmatprep.subr.mxu0 %v832
    %2207 = vmatpush1.msra.mxu0 %v831
    %2208 = vmatprep.subr.mxu0 %v836
    %2209 = vmatpush1.msra.mxu0 %v835
    %2210 = vmatprep.subr.mxu0 %v840
    %2211 = vmatpush1.msra.mxu0 %v839
    %2212 = vmatprep.subr.mxu0 %v844
    %2213 = vmatpush1.msra.mxu0 %v843
    %2214 = vmatprep.subr.mxu0 %v848
    %2215 = vmatpush1.msra.mxu0 %v847
    %2216 = vmatprep.subr.mxu0 %v852
    %2217 = vmatpush1.msra.mxu0 %v851
    %2218 = vmatprep.subr.mxu0 %v856
    %2219 = vmatpush1.msra.mxu0 %v855
    %2220 = vmatprep.subr.mxu0 %v860
    %2221 = vmatpush1.msra.mxu0 %v859
    %2222 = vmatprep.subr.mxu0 %v864
    %2223 = vmatpush1.msra.mxu0 %v863
    %2224 = vmatprep.subr.mxu0 %v868
    %2225 = vmatpush1.msra.mxu0 %v867
    %2226 = vmatprep.subr.mxu0 %v872
    %2227 = vmatpush1.msra.mxu0 %v871
    %2228 = vmatprep.subr.mxu0 %v876
    %2229 = vmatpush1.msra.mxu0 %v875
    %2230 = vmatprep.subr.mxu0 %v880
    %2231 = vmatpush1.msra.mxu0 %v879
    %2232 = vmatprep.subr.mxu0 %v884
    %2233 = vmatpush1.msra.mxu0 %v883
    %2234 = vmatprep.subr.mxu0 %v888
    %2235 = vmatpush1.msra.mxu0 %v887
    %2236 = vmatprep.subr.mxu0 %v892
    %2237 = vmatpush1.msra.mxu0 %v891
    %2238 = vmatprep.subr.mxu0 %v896
    %2239 = vmatpush1.msra.mxu0 %v895
    %2240 = vmatprep.subr.mxu0 %v900
    %2241 = vmatpush1.msra.mxu0 %v899
    %2242 = vmatprep.subr.mxu0 %v904
    %2243 = vmatpush1.msra.mxu0 %v903
    %2244 = vmatprep.subr.mxu0 %v908
    %2245 = vmatpush1.msra.mxu0 %v907
    %2246 = vmatprep.subr.mxu0 %v912
    %2247 = vmatpush1.msra.mxu0 %v911
    %2248 = vmatprep.subr.mxu0 %v916
    %2249 = vmatpush1.msra.mxu0 %v915
    %2250 = vmatprep.subr.mxu0 %v920
    %2251 = vmatpush1.msra.mxu0 %v919
    %2252 = vmatprep.subr.mxu0 %v924
    %2253 = vmatpush1.msra.mxu0 %v923
    %2254 = vmatprep.mubr.f32.mxu0 %v1694
    %2255 = vmatmul.mubr.f32.gmra.mrb[0].mxu0 %v1686
    %v2256 = vpop.f32.mrb[0].mxu0
    %v2257 = vadd.f32 %v2186, %v2256
    %v2258 = vpop.f32.mrb[0].mxu0
    %v2259 = vadd.f32 %v2188, %v2258
    %2260 = vdwg.mxu0
    %2261 = vmatprep.subr.mxu0 %v928
    %2262 = vmatpush1.msra.mxu0 %v927
    %2263 = vmatprep.subr.mxu0 %v932
    %2264 = vmatpush1.msra.mxu0 %v931
    %2265 = vmatprep.subr.mxu0 %v936
    %2266 = vmatpush1.msra.mxu0 %v935
    %2267 = vmatprep.subr.mxu0 %v940
    %2268 = vmatpush1.msra.mxu0 %v939
    %2269 = vmatprep.subr.mxu0 %v944
    %2270 = vmatpush1.msra.mxu0 %v943
    %2271 = vmatprep.subr.mxu0 %v948
    %2272 = vmatpush1.msra.mxu0 %v947
    %2273 = vmatprep.subr.mxu0 %v952
    %2274 = vmatpush1.msra.mxu0 %v951
    %2275 = vmatprep.subr.mxu0 %v956
    %2276 = vmatpush1.msra.mxu0 %v955
    %2277 = vmatprep.subr.mxu0 %v960
    %2278 = vmatpush1.msra.mxu0 %v959
    %2279 = vmatprep.subr.mxu0 %v964
    %2280 = vmatpush1.msra.mxu0 %v963
    %2281 = vmatprep.subr.mxu0 %v968
    %2282 = vmatpush1.msra.mxu0 %v967
    %2283 = vmatprep.subr.mxu0 %v972
    %2284 = vmatpush1.msra.mxu0 %v971
    %2285 = vmatprep.subr.mxu0 %v976
    %2286 = vmatpush1.msra.mxu0 %v975
    %2287 = vmatprep.subr.mxu0 %v980
    %2288 = vmatpush1.msra.mxu0 %v979
    %2289 = vmatprep.subr.mxu0 %v984
    %2290 = vmatpush1.msra.mxu0 %v983
    %2291 = vmatprep.subr.mxu0 %v988
    %2292 = vmatpush1.msra.mxu0 %v987
    %2293 = vmatprep.subr.mxu0 %v992
    %2294 = vmatpush1.msra.mxu0 %v991
    %2295 = vmatprep.subr.mxu0 %v996
    %2296 = vmatpush1.msra.mxu0 %v995
    %2297 = vmatprep.subr.mxu0 %v1000
    %2298 = vmatpush1.msra.mxu0 %v999
    %2299 = vmatprep.subr.mxu0 %v1004
    %2300 = vmatpush1.msra.mxu0 %v1003
    %2301 = vmatprep.subr.mxu0 %v1008
    %2302 = vmatpush1.msra.mxu0 %v1007
    %2303 = vmatprep.subr.mxu0 %v1012
    %2304 = vmatpush1.msra.mxu0 %v1011
    %2305 = vmatprep.subr.mxu0 %v1016
    %2306 = vmatpush1.msra.mxu0 %v1015
    %2307 = vmatprep.subr.mxu0 %v1020
    %2308 = vmatpush1.msra.mxu0 %v1019
    %2309 = vmatprep.subr.mxu0 %v1024
    %2310 = vmatpush1.msra.mxu0 %v1023
    %2311 = vmatprep.subr.mxu0 %v1028
    %2312 = vmatpush1.msra.mxu0 %v1027
    %2313 = vmatprep.subr.mxu0 %v1032
    %2314 = vmatpush1.msra.mxu0 %v1031
    %2315 = vmatprep.subr.mxu0 %v1036
    %2316 = vmatpush1.msra.mxu0 %v1035
    %2317 = vmatprep.subr.mxu0 %v1040
    %2318 = vmatpush1.msra.mxu0 %v1039
    %2319 = vmatprep.subr.mxu0 %v1044
    %2320 = vmatpush1.msra.mxu0 %v1043
    %2321 = vmatprep.subr.mxu0 %v1048
    %2322 = vmatpush1.msra.mxu0 %v1047
    %2323 = vmatprep.subr.mxu0 %v1052
    %2324 = vmatpush1.msra.mxu0 %v1051
    %2325 = vmatprep.mubr.f32.mxu0 %v1695
    %2326 = vmatmul.mubr.f32.gmra.mrb[0].mxu0 %v1693
    %v2327 = vpop.f32.mrb[0].mxu0
    %v2328 = vadd.f32 %v2257, %v2327
    %v2329 = vpop.f32.mrb[0].mxu0
    %v2330 = vadd.f32 %v2259, %v2329
    %2331 = vdwg.mxu0
    %2332 = vmatprep.subr.mxu0 %v1056
    %2333 = vmatpush1.msra.mxu0 %v1055
    %2334 = vmatprep.subr.mxu0 %v1060
    %2335 = vmatpush1.msra.mxu0 %v1059
    %2336 = vmatprep.subr.mxu0 %v1064
    %2337 = vmatpush1.msra.mxu0 %v1063
    %2338 = vmatprep.subr.mxu0 %v1068
    %2339 = vmatpush1.msra.mxu0 %v1067
    %2340 = vmatprep.subr.mxu0 %v1072
    %2341 = vmatpush1.msra.mxu0 %v1071
    %2342 = vmatprep.subr.mxu0 %v1076
    %2343 = vmatpush1.msra.mxu0 %v1075
    %2344 = vmatprep.subr.mxu0 %v1080
    %2345 = vmatpush1.msra.mxu0 %v1079
    %2346 = vmatprep.subr.mxu0 %v1084
    %2347 = vmatpush1.msra.mxu0 %v1083
    %2348 = vmatprep.subr.mxu0 %v1088
    %2349 = vmatpush1.msra.mxu0 %v1087
    %2350 = vmatprep.subr.mxu0 %v1092
    %2351 = vmatpush1.msra.mxu0 %v1091
    %2352 = vmatprep.subr.mxu0 %v1096
    %2353 = vmatpush1.msra.mxu0 %v1095
    %2354 = vmatprep.subr.mxu0 %v1100
    %2355 = vmatpush1.msra.mxu0 %v1099
    %2356 = vmatprep.subr.mxu0 %v1104
    %2357 = vmatpush1.msra.mxu0 %v1103
    %2358 = vmatprep.subr.mxu0 %v1108
    %2359 = vmatpush1.msra.mxu0 %v1107
    %2360 = vmatprep.subr.mxu0 %v1112
    %2361 = vmatpush1.msra.mxu0 %v1111
    %2362 = vmatprep.subr.mxu0 %v1116
    %2363 = vmatpush1.msra.mxu0 %v1115
    %2364 = vmatprep.subr.mxu0 %v1120
    %2365 = vmatpush1.msra.mxu0 %v1119
    %2366 = vmatprep.subr.mxu0 %v1124
    %2367 = vmatpush1.msra.mxu0 %v1123
    %2368 = vmatprep.subr.mxu0 %v1128
    %2369 = vmatpush1.msra.mxu0 %v1127
    %2370 = vmatprep.subr.mxu0 %v1132
    %2371 = vmatpush1.msra.mxu0 %v1131
    %2372 = vmatprep.subr.mxu0 %v1136
    %2373 = vmatpush1.msra.mxu0 %v1135
    %2374 = vmatprep.subr.mxu0 %v1140
    %2375 = vmatpush1.msra.mxu0 %v1139
    %2376 = vmatprep.subr.mxu0 %v1144
    %2377 = vmatpush1.msra.mxu0 %v1143
    %2378 = vmatprep.subr.mxu0 %v1148
    %2379 = vmatpush1.msra.mxu0 %v1147
    %2380 = vmatprep.subr.mxu0 %v1152
    %2381 = vmatpush1.msra.mxu0 %v1151
    %2382 = vmatprep.subr.mxu0 %v1156
    %2383 = vmatpush1.msra.mxu0 %v1155
    %2384 = vmatprep.subr.mxu0 %v1160
    %2385 = vmatpush1.msra.mxu0 %v1159
    %2386 = vmatprep.subr.mxu0 %v1164
    %2387 = vmatpush1.msra.mxu0 %v1163
    %2388 = vmatprep.subr.mxu0 %v1168
    %2389 = vmatpush1.msra.mxu0 %v1167
    %2390 = vmatprep.subr.mxu0 %v1172
    %2391 = vmatpush1.msra.mxu0 %v1171
    %2392 = vmatprep.subr.mxu0 %v1176
    %2393 = vmatpush1.msra.mxu0 %v1175
    %2394 = vmatprep.subr.mxu0 %v1180
    %2395 = vmatpush1.msra.mxu0 %v1179
    %2396 = vmatprep.mubr.f32.mxu0 %v1711
    %2397 = vmatmul.mubr.f32.gmra.mrb[0].mxu0 %v1703
    %v2398 = vpop.f32.mrb[0].mxu0
    %v2399 = vadd.f32 %v2328, %v2398
    %v2400 = vpop.f32.mrb[0].mxu0
    %v2401 = vadd.f32 %v2330, %v2400
    %2402 = vdwg.mxu0
    %2403 = vmatprep.subr.mxu0 %v1184
    %2404 = vmatpush1.msra.mxu0 %v1183
    %2405 = vmatprep.subr.mxu0 %v1188
    %2406 = vmatpush1.msra.mxu0 %v1187
    %2407 = vmatprep.subr.mxu0 %v1192
    %2408 = vmatpush1.msra.mxu0 %v1191
    %2409 = vmatprep.subr.mxu0 %v1196
    %2410 = vmatpush1.msra.mxu0 %v1195
    %2411 = vmatprep.subr.mxu0 %v1200
    %2412 = vmatpush1.msra.mxu0 %v1199
    %2413 = vmatprep.subr.mxu0 %v1204
    %2414 = vmatpush1.msra.mxu0 %v1203
    %2415 = vmatprep.subr.mxu0 %v1208
    %2416 = vmatpush1.msra.mxu0 %v1207
    %2417 = vmatprep.subr.mxu0 %v1212
    %2418 = vmatpush1.msra.mxu0 %v1211
    %2419 = vmatprep.subr.mxu0 %v1216
    %2420 = vmatpush1.msra.mxu0 %v1215
    %2421 = vmatprep.subr.mxu0 %v1220
    %2422 = vmatpush1.msra.mxu0 %v1219
    %2423 = vmatprep.subr.mxu0 %v1224
    %2424 = vmatpush1.msra.mxu0 %v1223
    %2425 = vmatprep.subr.mxu0 %v1228
    %2426 = vmatpush1.msra.mxu0 %v1227
    %2427 = vmatprep.subr.mxu0 %v1232
    %2428 = vmatpush1.msra.mxu0 %v1231
    %2429 = vmatprep.subr.mxu0 %v1236
    %2430 = vmatpush1.msra.mxu0 %v1235
    %2431 = vmatprep.subr.mxu0 %v1240
    %2432 = vmatpush1.msra.mxu0 %v1239
    %2433 = vmatprep.subr.mxu0 %v1244
    %2434 = vmatpush1.msra.mxu0 %v1243
    %2435 = vmatprep.subr.mxu0 %v1248
    %2436 = vmatpush1.msra.mxu0 %v1247
    %2437 = vmatprep.subr.mxu0 %v1252
    %2438 = vmatpush1.msra.mxu0 %v1251
    %2439 = vmatprep.subr.mxu0 %v1256
    %2440 = vmatpush1.msra.mxu0 %v1255
    %2441 = vmatprep.subr.mxu0 %v1260
    %2442 = vmatpush1.msra.mxu0 %v1259
    %2443 = vmatprep.subr.mxu0 %v1264
    %2444 = vmatpush1.msra.mxu0 %v1263
    %2445 = vmatprep.subr.mxu0 %v1268
    %2446 = vmatpush1.msra.mxu0 %v1267
    %2447 = vmatprep.subr.mxu0 %v1272
    %2448 = vmatpush1.msra.mxu0 %v1271
    %2449 = vmatprep.subr.mxu0 %v1276
    %2450 = vmatpush1.msra.mxu0 %v1275
    %2451 = vmatprep.subr.mxu0 %v1280
    %2452 = vmatpush1.msra.mxu0 %v1279
    %2453 = vmatprep.subr.mxu0 %v1284
    %2454 = vmatpush1.msra.mxu0 %v1283
    %2455 = vmatprep.subr.mxu0 %v1288
    %2456 = vmatpush1.msra.mxu0 %v1287
    %2457 = vmatprep.subr.mxu0 %v1292
    %2458 = vmatpush1.msra.mxu0 %v1291
    %2459 = vmatprep.subr.mxu0 %v1296
    %2460 = vmatpush1.msra.mxu0 %v1295
    %2461 = vmatprep.subr.mxu0 %v1300
    %2462 = vmatpush1.msra.mxu0 %v1299
    %2463 = vmatprep.subr.mxu0 %v1304
    %2464 = vmatpush1.msra.mxu0 %v1303
    %2465 = vmatprep.subr.mxu0 %v1308
    %2466 = vmatpush1.msra.mxu0 %v1307
    %2467 = vmatprep.mubr.f32.mxu0 %v1712
    %2468 = vmatmul.mubr.f32.gmra.mrb[0].mxu0 %v1710
    %v2469 = vpop.f32.mrb[0].mxu0
    %v2470 = vadd.f32 %v2399, %v2469
    %v2471 = vpop.f32.mrb[0].mxu0
    %v2472 = vadd.f32 %v2401, %v2471
    %2473 = vdwg.mxu0
    %2474 = vmatprep.subr.mxu0 %v1312
    %2475 = vmatpush1.msra.mxu0 %v1311
    %2476 = vmatprep.subr.mxu0 %v1316
    %2477 = vmatpush1.msra.mxu0 %v1315
    %2478 = vmatprep.subr.mxu0 %v1320
    %2479 = vmatpush1.msra.mxu0 %v1319
    %2480 = vmatprep.subr.mxu0 %v1324
    %2481 = vmatpush1.msra.mxu0 %v1323
    %2482 = vmatprep.subr.mxu0 %v1328
    %2483 = vmatpush1.msra.mxu0 %v1327
    %2484 = vmatprep.subr.mxu0 %v1332
    %2485 = vmatpush1.msra.mxu0 %v1331
    %2486 = vmatprep.subr.mxu0 %v1336
    %2487 = vmatpush1.msra.mxu0 %v1335
    %2488 = vmatprep.subr.mxu0 %v1340
    %2489 = vmatpush1.msra.mxu0 %v1339
    %2490 = vmatprep.subr.mxu0 %v1344
    %2491 = vmatpush1.msra.mxu0 %v1343
    %2492 = vmatprep.subr.mxu0 %v1348
    %2493 = vmatpush1.msra.mxu0 %v1347
    %2494 = vmatprep.subr.mxu0 %v1352
    %2495 = vmatpush1.msra.mxu0 %v1351
    %2496 = vmatprep.subr.mxu0 %v1356
    %2497 = vmatpush1.msra.mxu0 %v1355
    %2498 = vmatprep.subr.mxu0 %v1360
    %2499 = vmatpush1.msra.mxu0 %v1359
    %2500 = vmatprep.subr.mxu0 %v1364
    %2501 = vmatpush1.msra.mxu0 %v1363
    %2502 = vmatprep.subr.mxu0 %v1368
    %2503 = vmatpush1.msra.mxu0 %v1367
    %2504 = vmatprep.subr.mxu0 %v1372
    %2505 = vmatpush1.msra.mxu0 %v1371
    %2506 = vmatprep.subr.mxu0 %v1376
    %2507 = vmatpush1.msra.mxu0 %v1375
    %2508 = vmatprep.subr.mxu0 %v1380
    %2509 = vmatpush1.msra.mxu0 %v1379
    %2510 = vmatprep.subr.mxu0 %v1384
    %2511 = vmatpush1.msra.mxu0 %v1383
    %2512 = vmatprep.subr.mxu0 %v1388
    %2513 = vmatpush1.msra.mxu0 %v1387
    %2514 = vmatprep.subr.mxu0 %v1392
    %2515 = vmatpush1.msra.mxu0 %v1391
    %2516 = vmatprep.subr.mxu0 %v1396
    %2517 = vmatpush1.msra.mxu0 %v1395
    %2518 = vmatprep.subr.mxu0 %v1400
    %2519 = vmatpush1.msra.mxu0 %v1399
    %2520 = vmatprep.subr.mxu0 %v1404
    %2521 = vmatpush1.msra.mxu0 %v1403
    %2522 = vmatprep.subr.mxu0 %v1408
    %2523 = vmatpush1.msra.mxu0 %v1407
    %2524 = vmatprep.subr.mxu0 %v1412
    %2525 = vmatpush1.msra.mxu0 %v1411
    %2526 = vmatprep.subr.mxu0 %v1416
    %2527 = vmatpush1.msra.mxu0 %v1415
    %2528 = vmatprep.subr.mxu0 %v1420
    %2529 = vmatpush1.msra.mxu0 %v1419
    %2530 = vmatprep.subr.mxu0 %v1424
    %2531 = vmatpush1.msra.mxu0 %v1423
    %2532 = vmatprep.subr.mxu0 %v1428
    %2533 = vmatpush1.msra.mxu0 %v1427
    %2534 = vmatprep.subr.mxu0 %v1432
    %2535 = vmatpush1.msra.mxu0 %v1431
    %2536 = vmatprep.subr.mxu0 %v1436
    %2537 = vmatpush1.msra.mxu0 %v1435
    %2538 = vmatprep.mubr.f32.mxu0 %v1728
    %2539 = vmatmul.mubr.f32.gmra.mrb[0].mxu0 %v1720
    %v2540 = vpop.f32.mrb[0].mxu0
    %v2541 = vadd.f32 %v2470, %v2540
    %v2542 = vpop.f32.mrb[0].mxu0
    %v2543 = vadd.f32 %v2472, %v2542
    %2544 = vdwg.mxu0
    %2545 = vmatprep.subr.mxu0 %v1440
    %2546 = vmatpush1.msra.mxu0 %v1439
    %2547 = vmatprep.subr.mxu0 %v1444
    %2548 = vmatpush1.msra.mxu0 %v1443
    %2549 = vmatprep.subr.mxu0 %v1448
    %2550 = vmatpush1.msra.mxu0 %v1447
    %2551 = vmatprep.subr.mxu0 %v1452
    %2552 = vmatpush1.msra.mxu0 %v1451
    %2553 = vmatprep.subr.mxu0 %v1456
    %2554 = vmatpush1.msra.mxu0 %v1455
    %2555 = vmatprep.subr.mxu0 %v1460
    %2556 = vmatpush1.msra.mxu0 %v1459
    %2557 = vmatprep.subr.mxu0 %v1464
    %2558 = vmatpush1.msra.mxu0 %v1463
    %2559 = vmatprep.subr.mxu0 %v1468
    %2560 = vmatpush1.msra.mxu0 %v1467
    %2561 = vmatprep.subr.mxu0 %v1472
    %2562 = vmatpush1.msra.mxu0 %v1471
    %2563 = vmatprep.subr.mxu0 %v1476
    %2564 = vmatpush1.msra.mxu0 %v1475
    %2565 = vmatprep.subr.mxu0 %v1480
    %2566 = vmatpush1.msra.mxu0 %v1479
    %2567 = vmatprep.subr.mxu0 %v1484
    %2568 = vmatpush1.msra.mxu0 %v1483
    %2569 = vmatprep.subr.mxu0 %v1488
    %2570 = vmatpush1.msra.mxu0 %v1487
    %2571 = vmatprep.subr.mxu0 %v1492
    %2572 = vmatpush1.msra.mxu0 %v1491
    %2573 = vmatprep.subr.mxu0 %v1496
    %2574 = vmatpush1.msra.mxu0 %v1495
    %2575 = vmatprep.subr.mxu0 %v1500
    %2576 = vmatpush1.msra.mxu0 %v1499
    %2577 = vmatprep.subr.mxu0 %v1504
    %2578 = vmatpush1.msra.mxu0 %v1503
    %2579 = vmatprep.subr.mxu0 %v1508
    %2580 = vmatpush1.msra.mxu0 %v1507
    %2581 = vmatprep.subr.mxu0 %v1512
    %2582 = vmatpush1.msra.mxu0 %v1511
    %2583 = vmatprep.subr.mxu0 %v1516
    %2584 = vmatpush1.msra.mxu0 %v1515
    %2585 = vmatprep.subr.mxu0 %v1520
    %2586 = vmatpush1.msra.mxu0 %v1519
    %2587 = vmatprep.subr.mxu0 %v1524
    %2588 = vmatpush1.msra.mxu0 %v1523
    %2589 = vmatprep.subr.mxu0 %v1528
    %2590 = vmatpush1.msra.mxu0 %v1527
    %2591 = vmatprep.subr.mxu0 %v1532
    %2592 = vmatpush1.msra.mxu0 %v1531
    %2593 = vmatprep.subr.mxu0 %v1536
    %2594 = vmatpush1.msra.mxu0 %v1535
    %2595 = vmatprep.subr.mxu0 %v1540
    %2596 = vmatpush1.msra.mxu0 %v1539
    %2597 = vmatprep.subr.mxu0 %v1544
    %2598 = vmatpush1.msra.mxu0 %v1543
    %2599 = vmatprep.subr.mxu0 %v1548
    %2600 = vmatpush1.msra.mxu0 %v1547
    %2601 = vmatprep.subr.mxu0 %v1552
    %2602 = vmatpush1.msra.mxu0 %v1551
    %2603 = vmatprep.subr.mxu0 %v1556
    %2604 = vmatpush1.msra.mxu0 %v1555
    %2605 = vmatprep.subr.mxu0 %v1560
    %2606 = vmatpush1.msra.mxu0 %v1559
    %2607 = vmatprep.subr.mxu0 %v1564
    %2608 = vmatpush1.msra.mxu0 %v1563
    %2609 = vmatprep.mubr.f32.mxu0 %v1729
    %2610 = vmatmul.mubr.f32.gmra.mrb[0].mxu0 %v1727
    %v2611 = vpop.f32.mrb[0].mxu0
    %v2612 = vadd.f32 %v2541, %v2611
    %v2613 = vpop.f32.mrb[0].mxu0
    %v2614 = vadd.f32 %v2543, %v2613
    %2615 = vdwg.mxu0
    %2616 = vmatprep.subr.mxu0 %v1568
    %2617 = vmatpush1.msra.mxu0 %v1567
    %2618 = vmatprep.subr.mxu0 %v1572
    %2619 = vmatpush1.msra.mxu0 %v1571
    %2620 = vmatprep.subr.mxu0 %v1576
    %2621 = vmatpush1.msra.mxu0 %v1575
    %2622 = vmatprep.subr.mxu0 %v1580
    %2623 = vmatpush1.msra.mxu0 %v1579
    %2624 = vmatprep.subr.mxu0 %v1584
    %2625 = vmatpush1.msra.mxu0 %v1583
    %2626 = vmatprep.subr.mxu0 %v1588
    %2627 = vmatpush1.msra.mxu0 %v1587
    %2628 = vmatprep.subr.mxu0 %v1592
    %2629 = vmatpush1.msra.mxu0 %v1591
    %2630 = vmatprep.subr.mxu0 %v1596
    %2631 = vmatpush1.msra.mxu0 %v1595
    %2632 = vmatprep.subr.mxu0 0.0
    %2633 = vmatpush1.msra.mxu0 0.0
    %2634 = vmatprep.subr.mxu0 0.0
    %2635 = vmatpush1.msra.mxu0 0.0
    %2636 = vmatprep.subr.mxu0 0.0
    %2637 = vmatpush1.msra.mxu0 0.0
    %2638 = vmatprep.subr.mxu0 0.0
    %2639 = vmatpush1.msra.mxu0 0.0
    %2640 = vmatprep.subr.mxu0 0.0
    %2641 = vmatpush1.msra.mxu0 0.0
    %2642 = vmatprep.subr.mxu0 0.0
    %2643 = vmatpush1.msra.mxu0 0.0
    %2644 = vmatprep.subr.mxu0 0.0
    %2645 = vmatpush1.msra.mxu0 0.0
    %2646 = vmatprep.subr.mxu0 0.0
    %2647 = vmatpush1.msra.mxu0 0.0
    %2648 = vmatprep.subr.mxu0 0.0
    %2649 = vmatpush1.msra.mxu0 0.0
    %2650 = vmatprep.subr.mxu0 0.0
    %2651 = vmatpush1.msra.mxu0 0.0
    %2652 = vmatprep.subr.mxu0 0.0
    %2653 = vmatpush1.msra.mxu0 0.0
    %2654 = vmatprep.subr.mxu0 0.0
    %2655 = vmatpush1.msra.mxu0 0.0
    %2656 = vmatprep.subr.mxu0 0.0
    %2657 = vmatpush1.msra.mxu0 0.0
    %2658 = vmatprep.subr.mxu0 0.0
    %2659 = vmatpush1.msra.mxu0 0.0
    %2660 = vmatprep.subr.mxu0 0.0
    %2661 = vmatpush1.msra.mxu0 0.0
    %2662 = vmatprep.subr.mxu0 0.0
    %2663 = vmatpush1.msra.mxu0 0.0
    %2664 = vmatprep.subr.mxu0 0.0
    %2665 = vmatpush1.msra.mxu0 0.0
    %2666 = vmatprep.subr.mxu0 0.0
    %2667 = vmatpush1.msra.mxu0 0.0
    %2668 = vmatprep.subr.mxu0 0.0
    %2669 = vmatpush1.msra.mxu0 0.0
    %2670 = vmatprep.subr.mxu0 0.0
    %2671 = vmatpush1.msra.mxu0 0.0
    %2672 = vmatprep.subr.mxu0 0.0
    %2673 = vmatpush1.msra.mxu0 0.0
    %2674 = vmatprep.subr.mxu0 0.0
    %2675 = vmatpush1.msra.mxu0 0.0
    %2676 = vmatprep.subr.mxu0 0.0
    %2677 = vmatpush1.msra.mxu0 0.0
    %2678 = vmatprep.subr.mxu0 0.0
    %2679 = vmatpush1.msra.mxu0 0.0
    %2680 = vmatprep.mubr.f32.mxu0 0.0
    %2681 = vmatmul.mubr.f32.gmra.mrb[0].mxu0 %v1762
    %v2682 = vpop.f32.mrb[0].mxu0
    %v2683 = vadd.f32 %v2612, %v2682
    %v2684 = vpop.f32.mrb[0].mxu0
    %v2685 = vadd.f32 %v2614, %v2684
    %2686 = vdwg.mxu0
    %2687 = vmatprep.subr.mxu0 %v34
    %2688 = vmatpush1.msra.mxu0 %v33
    %2689 = vmatprep.subr.mxu0 %v38
    %2690 = vmatpush1.msra.mxu0 %v37
    %2691 = vmatprep.subr.mxu0 %v42
    %2692 = vmatpush1.msra.mxu0 %v41
    %2693 = vmatprep.subr.mxu0 %v46
    %2694 = vmatpush1.msra.mxu0 %v45
    %2695 = vmatprep.subr.mxu0 %v50
    %2696 = vmatpush1.msra.mxu0 %v49
    %2697 = vmatprep.subr.mxu0 %v54
    %2698 = vmatpush1.msra.mxu0 %v53
    %2699 = vmatprep.subr.mxu0 %v58
    %2700 = vmatpush1.msra.mxu0 %v57
    %2701 = vmatprep.subr.mxu0 %v62
    %2702 = vmatpush1.msra.mxu0 %v61
    %2703 = vmatprep.subr.mxu0 %v66
    %2704 = vmatpush1.msra.mxu0 %v65
    %2705 = vmatprep.subr.mxu0 %v70
    %2706 = vmatpush1.msra.mxu0 %v69
    %2707 = vmatprep.subr.mxu0 %v74
    %2708 = vmatpush1.msra.mxu0 %v73
    %2709 = vmatprep.subr.mxu0 %v78
    %2710 = vmatpush1.msra.mxu0 %v77
    %2711 = vmatprep.subr.mxu0 %v82
    %2712 = vmatpush1.msra.mxu0 %v81
    %2713 = vmatprep.subr.mxu0 %v86
    %2714 = vmatpush1.msra.mxu0 %v85
    %2715 = vmatprep.subr.mxu0 %v90
    %2716 = vmatpush1.msra.mxu0 %v89
    %2717 = vmatprep.subr.mxu0 %v94
    %2718 = vmatpush1.msra.mxu0 %v93
    %2719 = vmatprep.subr.mxu0 %v98
    %2720 = vmatpush1.msra.mxu0 %v97
    %2721 = vmatprep.subr.mxu0 %v102
    %2722 = vmatpush1.msra.mxu0 %v101
    %2723 = vmatprep.subr.mxu0 %v106
    %2724 = vmatpush1.msra.mxu0 %v105
    %2725 = vmatprep.subr.mxu0 %v110
    %2726 = vmatpush1.msra.mxu0 %v109
    %2727 = vmatprep.subr.mxu0 %v114
    %2728 = vmatpush1.msra.mxu0 %v113
    %2729 = vmatprep.subr.mxu0 %v118
    %2730 = vmatpush1.msra.mxu0 %v117
    %2731 = vmatprep.subr.mxu0 %v122
    %2732 = vmatpush1.msra.mxu0 %v121
    %2733 = vmatprep.subr.mxu0 %v126
    %2734 = vmatpush1.msra.mxu0 %v125
    %2735 = vmatprep.subr.mxu0 %v130
    %2736 = vmatpush1.msra.mxu0 %v129
    %2737 = vmatprep.subr.mxu0 %v134
    %2738 = vmatpush1.msra.mxu0 %v133
    %2739 = vmatprep.subr.mxu0 %v138
    %2740 = vmatpush1.msra.mxu0 %v137
    %2741 = vmatprep.subr.mxu0 %v142
    %2742 = vmatpush1.msra.mxu0 %v141
    %2743 = vmatprep.subr.mxu0 %v146
    %2744 = vmatpush1.msra.mxu0 %v145
    %2745 = vmatprep.subr.mxu0 %v150
    %2746 = vmatpush1.msra.mxu0 %v149
    %2747 = vmatprep.subr.mxu0 %v154
    %2748 = vmatpush1.msra.mxu0 %v153
    %2749 = vmatprep.subr.mxu0 %v158
    %2750 = vmatpush1.msra.mxu0 %v157
    %2751 = vmatprep.mubr.f32.mxu0 %v1643
    %2752 = vmatmul.mubr.f32.gmra.mrb[0].mxu0 %v1635
    %v2753 = vpop.f32.mrb[0].mxu0
    %v2754 = vadd.f32 %v1612, %v2753
    %v2755 = vpop.f32.mrb[0].mxu0
    %v2756 = vadd.f32 %v1616, %v2755
    %2757 = vdwg.mxu0
    %2758 = vmatprep.subr.mxu0 %v162
    %2759 = vmatpush1.msra.mxu0 %v161
    %2760 = vmatprep.subr.mxu0 %v166
    %2761 = vmatpush1.msra.mxu0 %v165
    %2762 = vmatprep.subr.mxu0 %v170
    %2763 = vmatpush1.msra.mxu0 %v169
    %2764 = vmatprep.subr.mxu0 %v174
    %2765 = vmatpush1.msra.mxu0 %v173
    %2766 = vmatprep.subr.mxu0 %v178
    %2767 = vmatpush1.msra.mxu0 %v177
    %2768 = vmatprep.subr.mxu0 %v182
    %2769 = vmatpush1.msra.mxu0 %v181
    %2770 = vmatprep.subr.mxu0 %v186
    %2771 = vmatpush1.msra.mxu0 %v185
    %2772 = vmatprep.subr.mxu0 %v190
    %2773 = vmatpush1.msra.mxu0 %v189
    %2774 = vmatprep.subr.mxu0 %v194
    %2775 = vmatpush1.msra.mxu0 %v193
    %2776 = vmatprep.subr.mxu0 %v198
    %2777 = vmatpush1.msra.mxu0 %v197
    %2778 = vmatprep.subr.mxu0 %v202
    %2779 = vmatpush1.msra.mxu0 %v201
    %2780 = vmatprep.subr.mxu0 %v206
    %2781 = vmatpush1.msra.mxu0 %v205
    %2782 = vmatprep.subr.mxu0 %v210
    %2783 = vmatpush1.msra.mxu0 %v209
    %2784 = vmatprep.subr.mxu0 %v214
    %2785 = vmatpush1.msra.mxu0 %v213
    %2786 = vmatprep.subr.mxu0 %v218
    %2787 = vmatpush1.msra.mxu0 %v217
    %2788 = vmatprep.subr.mxu0 %v222
    %2789 = vmatpush1.msra.mxu0 %v221
    %2790 = vmatprep.subr.mxu0 %v226
    %2791 = vmatpush1.msra.mxu0 %v225
    %2792 = vmatprep.subr.mxu0 %v230
    %2793 = vmatpush1.msra.mxu0 %v229
    %2794 = vmatprep.subr.mxu0 %v234
    %2795 = vmatpush1.msra.mxu0 %v233
    %2796 = vmatprep.subr.mxu0 %v238
    %2797 = vmatpush1.msra.mxu0 %v237
    %2798 = vmatprep.subr.mxu0 %v242
    %2799 = vmatpush1.msra.mxu0 %v241
    %2800 = vmatprep.subr.mxu0 %v246
    %2801 = vmatpush1.msra.mxu0 %v245
    %2802 = vmatprep.subr.mxu0 %v250
    %2803 = vmatpush1.msra.mxu0 %v249
    %2804 = vmatprep.subr.mxu0 %v254
    %2805 = vmatpush1.msra.mxu0 %v253
    %2806 = vmatprep.subr.mxu0 %v258
    %2807 = vmatpush1.msra.mxu0 %v257
    %2808 = vmatprep.subr.mxu0 %v262
    %2809 = vmatpush1.msra.mxu0 %v261
    %2810 = vmatprep.subr.mxu0 %v266
    %2811 = vmatpush1.msra.mxu0 %v265
    %2812 = vmatprep.subr.mxu0 %v270
    %2813 = vmatpush1.msra.mxu0 %v269
    %2814 = vmatprep.subr.mxu0 %v274
    %2815 = vmatpush1.msra.mxu0 %v273
    %2816 = vmatprep.subr.mxu0 %v278
    %2817 = vmatpush1.msra.mxu0 %v277
    %2818 = vmatprep.subr.mxu0 %v282
    %2819 = vmatpush1.msra.mxu0 %v281
    %2820 = vmatprep.subr.mxu0 %v286
    %2821 = vmatpush1.msra.mxu0 %v285
    %2822 = vmatprep.mubr.f32.mxu0 %v1644
    %2823 = vmatmul.mubr.f32.gmra.mrb[0].mxu0 %v1642
    %v2824 = vpop.f32.mrb[0].mxu0
    %v2825 = vadd.f32 %v2754, %v2824
    %v2826 = vpop.f32.mrb[0].mxu0
    %v2827 = vadd.f32 %v2756, %v2826
    %2828 = vdwg.mxu0
    %2829 = vmatprep.subr.mxu0 %v290
    %2830 = vmatpush1.msra.mxu0 %v289
    %2831 = vmatprep.subr.mxu0 %v294
    %2832 = vmatpush1.msra.mxu0 %v293
    %2833 = vmatprep.subr.mxu0 %v298
    %2834 = vmatpush1.msra.mxu0 %v297
    %2835 = vmatprep.subr.mxu0 %v302
    %2836 = vmatpush1.msra.mxu0 %v301
    %2837 = vmatprep.subr.mxu0 %v306
    %2838 = vmatpush1.msra.mxu0 %v305
    %2839 = vmatprep.subr.mxu0 %v310
    %2840 = vmatpush1.msra.mxu0 %v309
    %2841 = vmatprep.subr.mxu0 %v314
    %2842 = vmatpush1.msra.mxu0 %v313
    %2843 = vmatprep.subr.mxu0 %v318
    %2844 = vmatpush1.msra.mxu0 %v317
    %2845 = vmatprep.subr.mxu0 %v322
    %2846 = vmatpush1.msra.mxu0 %v321
    %2847 = vmatprep.subr.mxu0 %v326
    %2848 = vmatpush1.msra.mxu0 %v325
    %2849 = vmatprep.subr.mxu0 %v330
    %2850 = vmatpush1.msra.mxu0 %v329
    %2851 = vmatprep.subr.mxu0 %v334
    %2852 = vmatpush1.msra.mxu0 %v333
    %2853 = vmatprep.subr.mxu0 %v338
    %2854 = vmatpush1.msra.mxu0 %v337
    %2855 = vmatprep.subr.mxu0 %v342
    %2856 = vmatpush1.msra.mxu0 %v341
    %2857 = vmatprep.subr.mxu0 %v346
    %2858 = vmatpush1.msra.mxu0 %v345
    %2859 = vmatprep.subr.mxu0 %v350
    %2860 = vmatpush1.msra.mxu0 %v349
    %2861 = vmatprep.subr.mxu0 %v354
    %2862 = vmatpush1.msra.mxu0 %v353
    %2863 = vmatprep.subr.mxu0 %v358
    %2864 = vmatpush1.msra.mxu0 %v357
    %2865 = vmatprep.subr.mxu0 %v362
    %2866 = vmatpush1.msra.mxu0 %v361
    %2867 = vmatprep.subr.mxu0 %v366
    %2868 = vmatpush1.msra.mxu0 %v365
    %2869 = vmatprep.subr.mxu0 %v370
    %2870 = vmatpush1.msra.mxu0 %v369
    %2871 = vmatprep.subr.mxu0 %v374
    %2872 = vmatpush1.msra.mxu0 %v373
    %2873 = vmatprep.subr.mxu0 %v378
    %2874 = vmatpush1.msra.mxu0 %v377
    %2875 = vmatprep.subr.mxu0 %v382
    %2876 = vmatpush1.msra.mxu0 %v381
    %2877 = vmatprep.subr.mxu0 %v386
    %2878 = vmatpush1.msra.mxu0 %v385
    %2879 = vmatprep.subr.mxu0 %v390
    %2880 = vmatpush1.msra.mxu0 %v389
    %2881 = vmatprep.subr.mxu0 %v394
    %2882 = vmatpush1.msra.mxu0 %v393
    %2883 = vmatprep.subr.mxu0 %v398
    %2884 = vmatpush1.msra.mxu0 %v397
    %2885 = vmatprep.subr.mxu0 %v402
    %2886 = vmatpush1.msra.mxu0 %v401
    %2887 = vmatprep.subr.mxu0 %v406
    %2888 = vmatpush1.msra.mxu0 %v405
    %2889 = vmatprep.subr.mxu0 %v410
    %2890 = vmatpush1.msra.mxu0 %v409
    %2891 = vmatprep.subr.mxu0 %v414
    %2892 = vmatpush1.msra.mxu0 %v413
    %2893 = vmatprep.mubr.f32.mxu0 %v1660
    %2894 = vmatmul.mubr.f32.gmra.mrb[0].mxu0 %v1652
    %v2895 = vpop.f32.mrb[0].mxu0
    %v2896 = vadd.f32 %v2825, %v2895
    %v2897 = vpop.f32.mrb[0].mxu0
    %v2898 = vadd.f32 %v2827, %v2897
    %2899 = vdwg.mxu0
    %2900 = vmatprep.subr.mxu0 %v418
    %2901 = vmatpush1.msra.mxu0 %v417
    %2902 = vmatprep.subr.mxu0 %v422
    %2903 = vmatpush1.msra.mxu0 %v421
    %2904 = vmatprep.subr.mxu0 %v426
    %2905 = vmatpush1.msra.mxu0 %v425
    %2906 = vmatprep.subr.mxu0 %v430
    %2907 = vmatpush1.msra.mxu0 %v429
    %2908 = vmatprep.subr.mxu0 %v434
    %2909 = vmatpush1.msra.mxu0 %v433
    %2910 = vmatprep.subr.mxu0 %v438
    %2911 = vmatpush1.msra.mxu0 %v437
    %2912 = vmatprep.subr.mxu0 %v442
    %2913 = vmatpush1.msra.mxu0 %v441
    %2914 = vmatprep.subr.mxu0 %v446
    %2915 = vmatpush1.msra.mxu0 %v445
    %2916 = vmatprep.subr.mxu0 %v450
    %2917 = vmatpush1.msra.mxu0 %v449
    %2918 = vmatprep.subr.mxu0 %v454
    %2919 = vmatpush1.msra.mxu0 %v453
    %2920 = vmatprep.subr.mxu0 %v458
    %2921 = vmatpush1.msra.mxu0 %v457
    %2922 = vmatprep.subr.mxu0 %v462
    %2923 = vmatpush1.msra.mxu0 %v461
    %2924 = vmatprep.subr.mxu0 %v466
    %2925 = vmatpush1.msra.mxu0 %v465
    %2926 = vmatprep.subr.mxu0 %v470
    %2927 = vmatpush1.msra.mxu0 %v469
    %2928 = vmatprep.subr.mxu0 %v474
    %2929 = vmatpush1.msra.mxu0 %v473
    %2930 = vmatprep.subr.mxu0 %v478
    %2931 = vmatpush1.msra.mxu0 %v477
    %2932 = vmatprep.subr.mxu0 %v482
    %2933 = vmatpush1.msra.mxu0 %v481
    %2934 = vmatprep.subr.mxu0 %v486
    %2935 = vmatpush1.msra.mxu0 %v485
    %2936 = vmatprep.subr.mxu0 %v490
    %2937 = vmatpush1.msra.mxu0 %v489
    %2938 = vmatprep.subr.mxu0 %v494
    %2939 = vmatpush1.msra.mxu0 %v493
    %2940 = vmatprep.subr.mxu0 %v498
    %2941 = vmatpush1.msra.mxu0 %v497
    %2942 = vmatprep.subr.mxu0 %v502
    %2943 = vmatpush1.msra.mxu0 %v501
    %2944 = vmatprep.subr.mxu0 %v506
    %2945 = vmatpush1.msra.mxu0 %v505
    %2946 = vmatprep.subr.mxu0 %v510
    %2947 = vmatpush1.msra.mxu0 %v509
    %2948 = vmatprep.subr.mxu0 %v514
    %2949 = vmatpush1.msra.mxu0 %v513
    %2950 = vmatprep.subr.mxu0 %v518
    %2951 = vmatpush1.msra.mxu0 %v517
    %2952 = vmatprep.subr.mxu0 %v522
    %2953 = vmatpush1.msra.mxu0 %v521
    %2954 = vmatprep.subr.mxu0 %v526
    %2955 = vmatpush1.msra.mxu0 %v525
    %2956 = vmatprep.subr.mxu0 %v530
    %2957 = vmatpush1.msra.mxu0 %v529
    %2958 = vmatprep.subr.mxu0 %v534
    %2959 = vmatpush1.msra.mxu0 %v533
    %2960 = vmatprep.subr.mxu0 %v538
    %2961 = vmatpush1.msra.mxu0 %v537
    %2962 = vmatprep.subr.mxu0 %v542
    %2963 = vmatpush1.msra.mxu0 %v541
    %2964 = vmatprep.mubr.f32.mxu0 %v1661
    %2965 = vmatmul.mubr.f32.gmra.mrb[0].mxu0 %v1659
    %v2966 = vpop.f32.mrb[0].mxu0
    %v2967 = vadd.f32 %v2896, %v2966
    %v2968 = vpop.f32.mrb[0].mxu0
    %v2969 = vadd.f32 %v2898, %v2968
    %2970 = vdwg.mxu0
    %2971 = vmatprep.subr.mxu0 %v546
    %2972 = vmatpush1.msra.mxu0 %v545
    %2973 = vmatprep.subr.mxu0 %v550
    %2974 = vmatpush1.msra.mxu0 %v549
    %2975 = vmatprep.subr.mxu0 %v554
    %2976 = vmatpush1.msra.mxu0 %v553
    %2977 = vmatprep.subr.mxu0 %v558
    %2978 = vmatpush1.msra.mxu0 %v557
    %2979 = vmatprep.subr.mxu0 %v562
    %2980 = vmatpush1.msra.mxu0 %v561
    %2981 = vmatprep.subr.mxu0 %v566
    %2982 = vmatpush1.msra.mxu0 %v565
    %2983 = vmatprep.subr.mxu0 %v570
    %2984 = vmatpush1.msra.mxu0 %v569
    %2985 = vmatprep.subr.mxu0 %v574
    %2986 = vmatpush1.msra.mxu0 %v573
    %2987 = vmatprep.subr.mxu0 %v578
    %2988 = vmatpush1.msra.mxu0 %v577
    %2989 = vmatprep.subr.mxu0 %v582
    %2990 = vmatpush1.msra.mxu0 %v581
    %2991 = vmatprep.subr.mxu0 %v586
    %2992 = vmatpush1.msra.mxu0 %v585
    %2993 = vmatprep.subr.mxu0 %v590
    %2994 = vmatpush1.msra.mxu0 %v589
    %2995 = vmatprep.subr.mxu0 %v594
    %2996 = vmatpush1.msra.mxu0 %v593
    %2997 = vmatprep.subr.mxu0 %v598
    %2998 = vmatpush1.msra.mxu0 %v597
    %2999 = vmatprep.subr.mxu0 %v602
    %3000 = vmatpush1.msra.mxu0 %v601
    %3001 = vmatprep.subr.mxu0 %v606
    %3002 = vmatpush1.msra.mxu0 %v605
    %3003 = vmatprep.subr.mxu0 %v610
    %3004 = vmatpush1.msra.mxu0 %v609
    %3005 = vmatprep.subr.mxu0 %v614
    %3006 = vmatpush1.msra.mxu0 %v613
    %3007 = vmatprep.subr.mxu0 %v618
    %3008 = vmatpush1.msra.mxu0 %v617
    %3009 = vmatprep.subr.mxu0 %v622
    %3010 = vmatpush1.msra.mxu0 %v621
    %3011 = vmatprep.subr.mxu0 %v626
    %3012 = vmatpush1.msra.mxu0 %v625
    %3013 = vmatprep.subr.mxu0 %v630
    %3014 = vmatpush1.msra.mxu0 %v629
    %3015 = vmatprep.subr.mxu0 %v634
    %3016 = vmatpush1.msra.mxu0 %v633
    %3017 = vmatprep.subr.mxu0 %v638
    %3018 = vmatpush1.msra.mxu0 %v637
    %3019 = vmatprep.subr.mxu0 %v642
    %3020 = vmatpush1.msra.mxu0 %v641
    %3021 = vmatprep.subr.mxu0 %v646
    %3022 = vmatpush1.msra.mxu0 %v645
    %3023 = vmatprep.subr.mxu0 %v650
    %3024 = vmatpush1.msra.mxu0 %v649
    %3025 = vmatprep.subr.mxu0 %v654
    %3026 = vmatpush1.msra.mxu0 %v653
    %3027 = vmatprep.subr.mxu0 %v658
    %3028 = vmatpush1.msra.mxu0 %v657
    %3029 = vmatprep.subr.mxu0 %v662
    %3030 = vmatpush1.msra.mxu0 %v661
    %3031 = vmatprep.subr.mxu0 %v666
    %3032 = vmatpush1.msra.mxu0 %v665
    %3033 = vmatprep.subr.mxu0 %v670
    %3034 = vmatpush1.msra.mxu0 %v669
    %3035 = vmatprep.mubr.f32.mxu0 %v1677
    %3036 = vmatmul.mubr.f32.gmra.mrb[0].mxu0 %v1669
    %v3037 = vpop.f32.mrb[0].mxu0
    %v3038 = vadd.f32 %v2967, %v3037
    %v3039 = vpop.f32.mrb[0].mxu0
    %v3040 = vadd.f32 %v2969, %v3039
    %3041 = vdwg.mxu0
    %3042 = vmatprep.subr.mxu0 %v674
    %3043 = vmatpush1.msra.mxu0 %v673
    %3044 = vmatprep.subr.mxu0 %v678
    %3045 = vmatpush1.msra.mxu0 %v677
    %3046 = vmatprep.subr.mxu0 %v682
    %3047 = vmatpush1.msra.mxu0 %v681
    %3048 = vmatprep.subr.mxu0 %v686
    %3049 = vmatpush1.msra.mxu0 %v685
    %3050 = vmatprep.subr.mxu0 %v690
    %3051 = vmatpush1.msra.mxu0 %v689
    %3052 = vmatprep.subr.mxu0 %v694
    %3053 = vmatpush1.msra.mxu0 %v693
    %3054 = vmatprep.subr.mxu0 %v698
    %3055 = vmatpush1.msra.mxu0 %v697
    %3056 = vmatprep.subr.mxu0 %v702
    %3057 = vmatpush1.msra.mxu0 %v701
    %3058 = vmatprep.subr.mxu0 %v706
    %3059 = vmatpush1.msra.mxu0 %v705
    %3060 = vmatprep.subr.mxu0 %v710
    %3061 = vmatpush1.msra.mxu0 %v709
    %3062 = vmatprep.subr.mxu0 %v714
    %3063 = vmatpush1.msra.mxu0 %v713
    %3064 = vmatprep.subr.mxu0 %v718
    %3065 = vmatpush1.msra.mxu0 %v717
    %3066 = vmatprep.subr.mxu0 %v722
    %3067 = vmatpush1.msra.mxu0 %v721
    %3068 = vmatprep.subr.mxu0 %v726
    %3069 = vmatpush1.msra.mxu0 %v725
    %3070 = vmatprep.subr.mxu0 %v730
    %3071 = vmatpush1.msra.mxu0 %v729
    %3072 = vmatprep.subr.mxu0 %v734
    %3073 = vmatpush1.msra.mxu0 %v733
    %3074 = vmatprep.subr.mxu0 %v738
    %3075 = vmatpush1.msra.mxu0 %v737
    %3076 = vmatprep.subr.mxu0 %v742
    %3077 = vmatpush1.msra.mxu0 %v741
    %3078 = vmatprep.subr.mxu0 %v746
    %3079 = vmatpush1.msra.mxu0 %v745
    %3080 = vmatprep.subr.mxu0 %v750
    %3081 = vmatpush1.msra.mxu0 %v749
    %3082 = vmatprep.subr.mxu0 %v754
    %3083 = vmatpush1.msra.mxu0 %v753
    %3084 = vmatprep.subr.mxu0 %v758
    %3085 = vmatpush1.msra.mxu0 %v757
    %3086 = vmatprep.subr.mxu0 %v762
    %3087 = vmatpush1.msra.mxu0 %v761
    %3088 = vmatprep.subr.mxu0 %v766
    %3089 = vmatpush1.msra.mxu0 %v765
    %3090 = vmatprep.subr.mxu0 %v770
    %3091 = vmatpush1.msra.mxu0 %v769
    %3092 = vmatprep.subr.mxu0 %v774
    %3093 = vmatpush1.msra.mxu0 %v773
    %3094 = vmatprep.subr.mxu0 %v778
    %3095 = vmatpush1.msra.mxu0 %v777
    %3096 = vmatprep.subr.mxu0 %v782
    %3097 = vmatpush1.msra.mxu0 %v781
    %3098 = vmatprep.subr.mxu0 %v786
    %3099 = vmatpush1.msra.mxu0 %v785
    %3100 = vmatprep.subr.mxu0 %v790
    %3101 = vmatpush1.msra.mxu0 %v789
    %3102 = vmatprep.subr.mxu0 %v794
    %3103 = vmatpush1.msra.mxu0 %v793
    %3104 = vmatprep.subr.mxu0 %v798
    %3105 = vmatpush1.msra.mxu0 %v797
    %3106 = vmatprep.mubr.f32.mxu0 %v1678
    %3107 = vmatmul.mubr.f32.gmra.mrb[0].mxu0 %v1676
    %v3108 = vpop.f32.mrb[0].mxu0
    %v3109 = vadd.f32 %v3038, %v3108
    %v3110 = vpop.f32.mrb[0].mxu0
    %v3111 = vadd.f32 %v3040, %v3110
    %3112 = vdwg.mxu0
    %3113 = vmatprep.subr.mxu0 %v802
    %3114 = vmatpush1.msra.mxu0 %v801
    %3115 = vmatprep.subr.mxu0 %v806
    %3116 = vmatpush1.msra.mxu0 %v805
    %3117 = vmatprep.subr.mxu0 %v810
    %3118 = vmatpush1.msra.mxu0 %v809
    %3119 = vmatprep.subr.mxu0 %v814
    %3120 = vmatpush1.msra.mxu0 %v813
    %3121 = vmatprep.subr.mxu0 %v818
    %3122 = vmatpush1.msra.mxu0 %v817
    %3123 = vmatprep.subr.mxu0 %v822
    %3124 = vmatpush1.msra.mxu0 %v821
    %3125 = vmatprep.subr.mxu0 %v826
    %3126 = vmatpush1.msra.mxu0 %v825
    %3127 = vmatprep.subr.mxu0 %v830
    %3128 = vmatpush1.msra.mxu0 %v829
    %3129 = vmatprep.subr.mxu0 %v834
    %3130 = vmatpush1.msra.mxu0 %v833
    %3131 = vmatprep.subr.mxu0 %v838
    %3132 = vmatpush1.msra.mxu0 %v837
    %3133 = vmatprep.subr.mxu0 %v842
    %3134 = vmatpush1.msra.mxu0 %v841
    %3135 = vmatprep.subr.mxu0 %v846
    %3136 = vmatpush1.msra.mxu0 %v845
    %3137 = vmatprep.subr.mxu0 %v850
    %3138 = vmatpush1.msra.mxu0 %v849
    %3139 = vmatprep.subr.mxu0 %v854
    %3140 = vmatpush1.msra.mxu0 %v853
    %3141 = vmatprep.subr.mxu0 %v858
    %3142 = vmatpush1.msra.mxu0 %v857
    %3143 = vmatprep.subr.mxu0 %v862
    %3144 = vmatpush1.msra.mxu0 %v861
    %3145 = vmatprep.subr.mxu0 %v866
    %3146 = vmatpush1.msra.mxu0 %v865
    %3147 = vmatprep.subr.mxu0 %v870
    %3148 = vmatpush1.msra.mxu0 %v869
    %3149 = vmatprep.subr.mxu0 %v874
    %3150 = vmatpush1.msra.mxu0 %v873
    %3151 = vmatprep.subr.mxu0 %v878
    %3152 = vmatpush1.msra.mxu0 %v877
    %3153 = vmatprep.subr.mxu0 %v882
    %3154 = vmatpush1.msra.mxu0 %v881
    %3155 = vmatprep.subr.mxu0 %v886
    %3156 = vmatpush1.msra.mxu0 %v885
    %3157 = vmatprep.subr.mxu0 %v890
    %3158 = vmatpush1.msra.mxu0 %v889
    %3159 = vmatprep.subr.mxu0 %v894
    %3160 = vmatpush1.msra.mxu0 %v893
    %3161 = vmatprep.subr.mxu0 %v898
    %3162 = vmatpush1.msra.mxu0 %v897
    %3163 = vmatprep.subr.mxu0 %v902
    %3164 = vmatpush1.msra.mxu0 %v901
    %3165 = vmatprep.subr.mxu0 %v906
    %3166 = vmatpush1.msra.mxu0 %v905
    %3167 = vmatprep.subr.mxu0 %v910
    %3168 = vmatpush1.msra.mxu0 %v909
    %3169 = vmatprep.subr.mxu0 %v914
    %3170 = vmatpush1.msra.mxu0 %v913
    %3171 = vmatprep.subr.mxu0 %v918
    %3172 = vmatpush1.msra.mxu0 %v917
    %3173 = vmatprep.subr.mxu0 %v922
    %3174 = vmatpush1.msra.mxu0 %v921
    %3175 = vmatprep.subr.mxu0 %v926
    %3176 = vmatpush1.msra.mxu0 %v925
    %3177 = vmatprep.mubr.f32.mxu0 %v1694
    %3178 = vmatmul.mubr.f32.gmra.mrb[0].mxu0 %v1686
    %v3179 = vpop.f32.mrb[0].mxu0
    %v3180 = vadd.f32 %v3109, %v3179
    %v3181 = vpop.f32.mrb[0].mxu0
    %v3182 = vadd.f32 %v3111, %v3181
    %3183 = vdwg.mxu0
    %3184 = vmatprep.subr.mxu0 %v930
    %3185 = vmatpush1.msra.mxu0 %v929
    %3186 = vmatprep.subr.mxu0 %v934
    %3187 = vmatpush1.msra.mxu0 %v933
    %3188 = vmatprep.subr.mxu0 %v938
    %3189 = vmatpush1.msra.mxu0 %v937
    %3190 = vmatprep.subr.mxu0 %v942
    %3191 = vmatpush1.msra.mxu0 %v941
    %3192 = vmatprep.subr.mxu0 %v946
    %3193 = vmatpush1.msra.mxu0 %v945
    %3194 = vmatprep.subr.mxu0 %v950
    %3195 = vmatpush1.msra.mxu0 %v949
    %3196 = vmatprep.subr.mxu0 %v954
    %3197 = vmatpush1.msra.mxu0 %v953
    %3198 = vmatprep.subr.mxu0 %v958
    %3199 = vmatpush1.msra.mxu0 %v957
    %3200 = vmatprep.subr.mxu0 %v962
    %3201 = vmatpush1.msra.mxu0 %v961
    %3202 = vmatprep.subr.mxu0 %v966
    %3203 = vmatpush1.msra.mxu0 %v965
    %3204 = vmatprep.subr.mxu0 %v970
    %3205 = vmatpush1.msra.mxu0 %v969
    %3206 = vmatprep.subr.mxu0 %v974
    %3207 = vmatpush1.msra.mxu0 %v973
    %3208 = vmatprep.subr.mxu0 %v978
    %3209 = vmatpush1.msra.mxu0 %v977
    %3210 = vmatprep.subr.mxu0 %v982
    %3211 = vmatpush1.msra.mxu0 %v981
    %3212 = vmatprep.subr.mxu0 %v986
    %3213 = vmatpush1.msra.mxu0 %v985
    %3214 = vmatprep.subr.mxu0 %v990
    %3215 = vmatpush1.msra.mxu0 %v989
    %3216 = vmatprep.subr.mxu0 %v994
    %3217 = vmatpush1.msra.mxu0 %v993
    %3218 = vmatprep.subr.mxu0 %v998
    %3219 = vmatpush1.msra.mxu0 %v997
    %3220 = vmatprep.subr.mxu0 %v1002
    %3221 = vmatpush1.msra.mxu0 %v1001
    %3222 = vmatprep.subr.mxu0 %v1006
    %3223 = vmatpush1.msra.mxu0 %v1005
    %3224 = vmatprep.subr.mxu0 %v1010
    %3225 = vmatpush1.msra.mxu0 %v1009
    %3226 = vmatprep.subr.mxu0 %v1014
    %3227 = vmatpush1.msra.mxu0 %v1013
    %3228 = vmatprep.subr.mxu0 %v1018
    %3229 = vmatpush1.msra.mxu0 %v1017
    %3230 = vmatprep.subr.mxu0 %v1022
    %3231 = vmatpush1.msra.mxu0 %v1021
    %3232 = vmatprep.subr.mxu0 %v1026
    %3233 = vmatpush1.msra.mxu0 %v1025
    %3234 = vmatprep.subr.mxu0 %v1030
    %3235 = vmatpush1.msra.mxu0 %v1029
    %3236 = vmatprep.subr.mxu0 %v1034
    %3237 = vmatpush1.msra.mxu0 %v1033
    %3238 = vmatprep.subr.mxu0 %v1038
    %3239 = vmatpush1.msra.mxu0 %v1037
    %3240 = vmatprep.subr.mxu0 %v1042
    %3241 = vmatpush1.msra.mxu0 %v1041
    %3242 = vmatprep.subr.mxu0 %v1046
    %3243 = vmatpush1.msra.mxu0 %v1045
    %3244 = vmatprep.subr.mxu0 %v1050
    %3245 = vmatpush1.msra.mxu0 %v1049
    %3246 = vmatprep.subr.mxu0 %v1054
    %3247 = vmatpush1.msra.mxu0 %v1053
    %3248 = vmatprep.mubr.f32.mxu0 %v1695
    %3249 = vmatmul.mubr.f32.gmra.mrb[0].mxu0 %v1693
    %v3250 = vpop.f32.mrb[0].mxu0
    %v3251 = vadd.f32 %v3180, %v3250
    %v3252 = vpop.f32.mrb[0].mxu0
    %v3253 = vadd.f32 %v3182, %v3252
    %3254 = vdwg.mxu0
    %3255 = vmatprep.subr.mxu0 %v1058
    %3256 = vmatpush1.msra.mxu0 %v1057
    %3257 = vmatprep.subr.mxu0 %v1062
    %3258 = vmatpush1.msra.mxu0 %v1061
    %3259 = vmatprep.subr.mxu0 %v1066
    %3260 = vmatpush1.msra.mxu0 %v1065
    %3261 = vmatprep.subr.mxu0 %v1070
    %3262 = vmatpush1.msra.mxu0 %v1069
    %3263 = vmatprep.subr.mxu0 %v1074
    %3264 = vmatpush1.msra.mxu0 %v1073
    %3265 = vmatprep.subr.mxu0 %v1078
    %3266 = vmatpush1.msra.mxu0 %v1077
    %3267 = vmatprep.subr.mxu0 %v1082
    %3268 = vmatpush1.msra.mxu0 %v1081
    %3269 = vmatprep.subr.mxu0 %v1086
    %3270 = vmatpush1.msra.mxu0 %v1085
    %3271 = vmatprep.subr.mxu0 %v1090
    %3272 = vmatpush1.msra.mxu0 %v1089
    %3273 = vmatprep.subr.mxu0 %v1094
    %3274 = vmatpush1.msra.mxu0 %v1093
    %3275 = vmatprep.subr.mxu0 %v1098
    %3276 = vmatpush1.msra.mxu0 %v1097
    %3277 = vmatprep.subr.mxu0 %v1102
    %3278 = vmatpush1.msra.mxu0 %v1101
    %3279 = vmatprep.subr.mxu0 %v1106
    %3280 = vmatpush1.msra.mxu0 %v1105
    %3281 = vmatprep.subr.mxu0 %v1110
    %3282 = vmatpush1.msra.mxu0 %v1109
    %3283 = vmatprep.subr.mxu0 %v1114
    %3284 = vmatpush1.msra.mxu0 %v1113
    %3285 = vmatprep.subr.mxu0 %v1118
    %3286 = vmatpush1.msra.mxu0 %v1117
    %3287 = vmatprep.subr.mxu0 %v1122
    %3288 = vmatpush1.msra.mxu0 %v1121
    %3289 = vmatprep.subr.mxu0 %v1126
    %3290 = vmatpush1.msra.mxu0 %v1125
    %3291 = vmatprep.subr.mxu0 %v1130
    %3292 = vmatpush1.msra.mxu0 %v1129
    %3293 = vmatprep.subr.mxu0 %v1134
    %3294 = vmatpush1.msra.mxu0 %v1133
    %3295 = vmatprep.subr.mxu0 %v1138
    %3296 = vmatpush1.msra.mxu0 %v1137
    %3297 = vmatprep.subr.mxu0 %v1142
    %3298 = vmatpush1.msra.mxu0 %v1141
    %3299 = vmatprep.subr.mxu0 %v1146
    %3300 = vmatpush1.msra.mxu0 %v1145
    %3301 = vmatprep.subr.mxu0 %v1150
    %3302 = vmatpush1.msra.mxu0 %v1149
    %3303 = vmatprep.subr.mxu0 %v1154
    %3304 = vmatpush1.msra.mxu0 %v1153
    %3305 = vmatprep.subr.mxu0 %v1158
    %3306 = vmatpush1.msra.mxu0 %v1157
    %3307 = vmatprep.subr.mxu0 %v1162
    %3308 = vmatpush1.msra.mxu0 %v1161
    %3309 = vmatprep.subr.mxu0 %v1166
    %3310 = vmatpush1.msra.mxu0 %v1165
    %3311 = vmatprep.subr.mxu0 %v1170
    %3312 = vmatpush1.msra.mxu0 %v1169
    %3313 = vmatprep.subr.mxu0 %v1174
    %3314 = vmatpush1.msra.mxu0 %v1173
    %3315 = vmatprep.subr.mxu0 %v1178
    %3316 = vmatpush1.msra.mxu0 %v1177
    %3317 = vmatprep.subr.mxu0 %v1182
    %3318 = vmatpush1.msra.mxu0 %v1181
    %3319 = vmatprep.mubr.f32.mxu0 %v1711
    %3320 = vmatmul.mubr.f32.gmra.mrb[0].mxu0 %v1703
    %v3321 = vpop.f32.mrb[0].mxu0
    %v3322 = vadd.f32 %v3251, %v3321
    %v3323 = vpop.f32.mrb[0].mxu0
    %v3324 = vadd.f32 %v3253, %v3323
    %3325 = vdwg.mxu0
    %3326 = vmatprep.subr.mxu0 %v1186
    %3327 = vmatpush1.msra.mxu0 %v1185
    %3328 = vmatprep.subr.mxu0 %v1190
    %3329 = vmatpush1.msra.mxu0 %v1189
    %3330 = vmatprep.subr.mxu0 %v1194
    %3331 = vmatpush1.msra.mxu0 %v1193
    %3332 = vmatprep.subr.mxu0 %v1198
    %3333 = vmatpush1.msra.mxu0 %v1197
    %3334 = vmatprep.subr.mxu0 %v1202
    %3335 = vmatpush1.msra.mxu0 %v1201
    %3336 = vmatprep.subr.mxu0 %v1206
    %3337 = vmatpush1.msra.mxu0 %v1205
    %3338 = vmatprep.subr.mxu0 %v1210
    %3339 = vmatpush1.msra.mxu0 %v1209
    %3340 = vmatprep.subr.mxu0 %v1214
    %3341 = vmatpush1.msra.mxu0 %v1213
    %3342 = vmatprep.subr.mxu0 %v1218
    %3343 = vmatpush1.msra.mxu0 %v1217
    %3344 = vmatprep.subr.mxu0 %v1222
    %3345 = vmatpush1.msra.mxu0 %v1221
    %3346 = vmatprep.subr.mxu0 %v1226
    %3347 = vmatpush1.msra.mxu0 %v1225
    %3348 = vmatprep.subr.mxu0 %v1230
    %3349 = vmatpush1.msra.mxu0 %v1229
    %3350 = vmatprep.subr.mxu0 %v1234
    %3351 = vmatpush1.msra.mxu0 %v1233
    %3352 = vmatprep.subr.mxu0 %v1238
    %3353 = vmatpush1.msra.mxu0 %v1237
    %3354 = vmatprep.subr.mxu0 %v1242
    %3355 = vmatpush1.msra.mxu0 %v1241
    %3356 = vmatprep.subr.mxu0 %v1246
    %3357 = vmatpush1.msra.mxu0 %v1245
    %3358 = vmatprep.subr.mxu0 %v1250
    %3359 = vmatpush1.msra.mxu0 %v1249
    %3360 = vmatprep.subr.mxu0 %v1254
    %3361 = vmatpush1.msra.mxu0 %v1253
    %3362 = vmatprep.subr.mxu0 %v1258
    %3363 = vmatpush1.msra.mxu0 %v1257
    %3364 = vmatprep.subr.mxu0 %v1262
    %3365 = vmatpush1.msra.mxu0 %v1261
    %3366 = vmatprep.subr.mxu0 %v1266
    %3367 = vmatpush1.msra.mxu0 %v1265
    %3368 = vmatprep.subr.mxu0 %v1270
    %3369 = vmatpush1.msra.mxu0 %v1269
    %3370 = vmatprep.subr.mxu0 %v1274
    %3371 = vmatpush1.msra.mxu0 %v1273
    %3372 = vmatprep.subr.mxu0 %v1278
    %3373 = vmatpush1.msra.mxu0 %v1277
    %3374 = vmatprep.subr.mxu0 %v1282
    %3375 = vmatpush1.msra.mxu0 %v1281
    %3376 = vmatprep.subr.mxu0 %v1286
    %3377 = vmatpush1.msra.mxu0 %v1285
    %3378 = vmatprep.subr.mxu0 %v1290
    %3379 = vmatpush1.msra.mxu0 %v1289
    %3380 = vmatprep.subr.mxu0 %v1294
    %3381 = vmatpush1.msra.mxu0 %v1293
    %3382 = vmatprep.subr.mxu0 %v1298
    %3383 = vmatpush1.msra.mxu0 %v1297
    %3384 = vmatprep.subr.mxu0 %v1302
    %3385 = vmatpush1.msra.mxu0 %v1301
    %3386 = vmatprep.subr.mxu0 %v1306
    %3387 = vmatpush1.msra.mxu0 %v1305
    %3388 = vmatprep.subr.mxu0 %v1310
    %3389 = vmatpush1.msra.mxu0 %v1309
    %3390 = vmatprep.mubr.f32.mxu0 %v1712
    %3391 = vmatmul.mubr.f32.gmra.mrb[0].mxu0 %v1710
    %v3392 = vpop.f32.mrb[0].mxu0
    %v3393 = vadd.f32 %v3322, %v3392
    %v3394 = vpop.f32.mrb[0].mxu0
    %v3395 = vadd.f32 %v3324, %v3394
    %3396 = vdwg.mxu0
    %3397 = vmatprep.subr.mxu0 %v1314
    %3398 = vmatpush1.msra.mxu0 %v1313
    %3399 = vmatprep.subr.mxu0 %v1318
    %3400 = vmatpush1.msra.mxu0 %v1317
    %3401 = vmatprep.subr.mxu0 %v1322
    %3402 = vmatpush1.msra.mxu0 %v1321
    %3403 = vmatprep.subr.mxu0 %v1326
    %3404 = vmatpush1.msra.mxu0 %v1325
    %3405 = vmatprep.subr.mxu0 %v1330
    %3406 = vmatpush1.msra.mxu0 %v1329
    %3407 = vmatprep.subr.mxu0 %v1334
    %3408 = vmatpush1.msra.mxu0 %v1333
    %3409 = vmatprep.subr.mxu0 %v1338
    %3410 = vmatpush1.msra.mxu0 %v1337
    %3411 = vmatprep.subr.mxu0 %v1342
    %3412 = vmatpush1.msra.mxu0 %v1341
    %3413 = vmatprep.subr.mxu0 %v1346
    %3414 = vmatpush1.msra.mxu0 %v1345
    %3415 = vmatprep.subr.mxu0 %v1350
    %3416 = vmatpush1.msra.mxu0 %v1349
    %3417 = vmatprep.subr.mxu0 %v1354
    %3418 = vmatpush1.msra.mxu0 %v1353
    %3419 = vmatprep.subr.mxu0 %v1358
    %3420 = vmatpush1.msra.mxu0 %v1357
    %3421 = vmatprep.subr.mxu0 %v1362
    %3422 = vmatpush1.msra.mxu0 %v1361
    %3423 = vmatprep.subr.mxu0 %v1366
    %3424 = vmatpush1.msra.mxu0 %v1365
    %3425 = vmatprep.subr.mxu0 %v1370
    %3426 = vmatpush1.msra.mxu0 %v1369
    %3427 = vmatprep.subr.mxu0 %v1374
    %3428 = vmatpush1.msra.mxu0 %v1373
    %3429 = vmatprep.subr.mxu0 %v1378
    %3430 = vmatpush1.msra.mxu0 %v1377
    %3431 = vmatprep.subr.mxu0 %v1382
    %3432 = vmatpush1.msra.mxu0 %v1381
    %3433 = vmatprep.subr.mxu0 %v1386
    %3434 = vmatpush1.msra.mxu0 %v1385
    %3435 = vmatprep.subr.mxu0 %v1390
    %3436 = vmatpush1.msra.mxu0 %v1389
    %3437 = vmatprep.subr.mxu0 %v1394
    %3438 = vmatpush1.msra.mxu0 %v1393
    %3439 = vmatprep.subr.mxu0 %v1398
    %3440 = vmatpush1.msra.mxu0 %v1397
    %3441 = vmatprep.subr.mxu0 %v1402
    %3442 = vmatpush1.msra.mxu0 %v1401
    %3443 = vmatprep.subr.mxu0 %v1406
    %3444 = vmatpush1.msra.mxu0 %v1405
    %3445 = vmatprep.subr.mxu0 %v1410
    %3446 = vmatpush1.msra.mxu0 %v1409
    %3447 = vmatprep.subr.mxu0 %v1414
    %3448 = vmatpush1.msra.mxu0 %v1413
    %3449 = vmatprep.subr.mxu0 %v1418
    %3450 = vmatpush1.msra.mxu0 %v1417
    %3451 = vmatprep.subr.mxu0 %v1422
    %3452 = vmatpush1.msra.mxu0 %v1421
    %3453 = vmatprep.subr.mxu0 %v1426
    %3454 = vmatpush1.msra.mxu0 %v1425
    %3455 = vmatprep.subr.mxu0 %v1430
    %3456 = vmatpush1.msra.mxu0 %v1429
    %3457 = vmatprep.subr.mxu0 %v1434
    %3458 = vmatpush1.msra.mxu0 %v1433
    %3459 = vmatprep.subr.mxu0 %v1438
    %3460 = vmatpush1.msra.mxu0 %v1437
    %3461 = vmatprep.mubr.f32.mxu0 %v1728
    %3462 = vmatmul.mubr.f32.gmra.mrb[0].mxu0 %v1720
    %v3463 = vpop.f32.mrb[0].mxu0
    %v3464 = vadd.f32 %v3393, %v3463
    %v3465 = vpop.f32.mrb[0].mxu0
    %v3466 = vadd.f32 %v3395, %v3465
    %3467 = vdwg.mxu0
    %3468 = vmatprep.subr.mxu0 %v1442
    %3469 = vmatpush1.msra.mxu0 %v1441
    %3470 = vmatprep.subr.mxu0 %v1446
    %3471 = vmatpush1.msra.mxu0 %v1445
    %3472 = vmatprep.subr.mxu0 %v1450
    %3473 = vmatpush1.msra.mxu0 %v1449
    %3474 = vmatprep.subr.mxu0 %v1454
    %3475 = vmatpush1.msra.mxu0 %v1453
    %3476 = vmatprep.subr.mxu0 %v1458
    %3477 = vmatpush1.msra.mxu0 %v1457
    %3478 = vmatprep.subr.mxu0 %v1462
    %3479 = vmatpush1.msra.mxu0 %v1461
    %3480 = vmatprep.subr.mxu0 %v1466
    %3481 = vmatpush1.msra.mxu0 %v1465
    %3482 = vmatprep.subr.mxu0 %v1470
    %3483 = vmatpush1.msra.mxu0 %v1469
    %3484 = vmatprep.subr.mxu0 %v1474
    %3485 = vmatpush1.msra.mxu0 %v1473
    %3486 = vmatprep.subr.mxu0 %v1478
    %3487 = vmatpush1.msra.mxu0 %v1477
    %3488 = vmatprep.subr.mxu0 %v1482
    %3489 = vmatpush1.msra.mxu0 %v1481
    %3490 = vmatprep.subr.mxu0 %v1486
    %3491 = vmatpush1.msra.mxu0 %v1485
    %3492 = vmatprep.subr.mxu0 %v1490
    %3493 = vmatpush1.msra.mxu0 %v1489
    %3494 = vmatprep.subr.mxu0 %v1494
    %3495 = vmatpush1.msra.mxu0 %v1493
    %3496 = vmatprep.subr.mxu0 %v1498
    %3497 = vmatpush1.msra.mxu0 %v1497
    %3498 = vmatprep.subr.mxu0 %v1502
    %3499 = vmatpush1.msra.mxu0 %v1501
    %3500 = vmatprep.subr.mxu0 %v1506
    %3501 = vmatpush1.msra.mxu0 %v1505
    %3502 = vmatprep.subr.mxu0 %v1510
    %3503 = vmatpush1.msra.mxu0 %v1509
    %3504 = vmatprep.subr.mxu0 %v1514
    %3505 = vmatpush1.msra.mxu0 %v1513
    %3506 = vmatprep.subr.mxu0 %v1518
    %3507 = vmatpush1.msra.mxu0 %v1517
    %3508 = vmatprep.subr.mxu0 %v1522
    %3509 = vmatpush1.msra.mxu0 %v1521
    %3510 = vmatprep.subr.mxu0 %v1526
    %3511 = vmatpush1.msra.mxu0 %v1525
    %3512 = vmatprep.subr.mxu0 %v1530
    %3513 = vmatpush1.msra.mxu0 %v1529
    %3514 = vmatprep.subr.mxu0 %v1534
    %3515 = vmatpush1.msra.mxu0 %v1533
    %3516 = vmatprep.subr.mxu0 %v1538
    %3517 = vmatpush1.msra.mxu0 %v1537
    %3518 = vmatprep.subr.mxu0 %v1542
    %3519 = vmatpush1.msra.mxu0 %v1541
    %3520 = vmatprep.subr.mxu0 %v1546
    %3521 = vmatpush1.msra.mxu0 %v1545
    %3522 = vmatprep.subr.mxu0 %v1550
    %3523 = vmatpush1.msra.mxu0 %v1549
    %3524 = vmatprep.subr.mxu0 %v1554
    %3525 = vmatpush1.msra.mxu0 %v1553
    %3526 = vmatprep.subr.mxu0 %v1558
    %3527 = vmatpush1.msra.mxu0 %v1557
    %3528 = vmatprep.subr.mxu0 %v1562
    %3529 = vmatpush1.msra.mxu0 %v1561
    %3530 = vmatprep.subr.mxu0 %v1566
    %3531 = vmatpush1.msra.mxu0 %v1565
    %3532 = vmatprep.mubr.f32.mxu0 %v1729
    %3533 = vmatmul.mubr.f32.gmra.mrb[0].mxu0 %v1727
    %v3534 = vpop.f32.mrb[0].mxu0
    %v3535 = vadd.f32 %v3464, %v3534
    %v3536 = vpop.f32.mrb[0].mxu0
    %v3537 = vadd.f32 %v3466, %v3536
    %3538 = vdwg.mxu0
    %3539 = vmatprep.subr.mxu0 %v1570
    %3540 = vmatpush1.msra.mxu0 %v1569
    %3541 = vmatprep.subr.mxu0 %v1574
    %3542 = vmatpush1.msra.mxu0 %v1573
    %3543 = vmatprep.subr.mxu0 %v1578
    %3544 = vmatpush1.msra.mxu0 %v1577
    %3545 = vmatprep.subr.mxu0 %v1582
    %3546 = vmatpush1.msra.mxu0 %v1581
    %3547 = vmatprep.subr.mxu0 %v1586
    %3548 = vmatpush1.msra.mxu0 %v1585
    %3549 = vmatprep.subr.mxu0 %v1590
    %3550 = vmatpush1.msra.mxu0 %v1589
    %3551 = vmatprep.subr.mxu0 %v1594
    %3552 = vmatpush1.msra.mxu0 %v1593
    %3553 = vmatprep.subr.mxu0 %v1598
    %3554 = vmatpush1.msra.mxu0 %v1597
    %3555 = vmatprep.subr.mxu0 0.0
    %3556 = vmatpush1.msra.mxu0 0.0
    %3557 = vmatprep.subr.mxu0 0.0
    %3558 = vmatpush1.msra.mxu0 0.0
    %3559 = vmatprep.subr.mxu0 0.0
    %3560 = vmatpush1.msra.mxu0 0.0
    %3561 = vmatprep.subr.mxu0 0.0
    %3562 = vmatpush1.msra.mxu0 0.0
    %3563 = vmatprep.subr.mxu0 0.0
    %3564 = vmatpush1.msra.mxu0 0.0
    %3565 = vmatprep.subr.mxu0 0.0
    %3566 = vmatpush1.msra.mxu0 0.0
    %3567 = vmatprep.subr.mxu0 0.0
    %3568 = vmatpush1.msra.mxu0 0.0
    %3569 = vmatprep.subr.mxu0 0.0
    %3570 = vmatpush1.msra.mxu0 0.0
    %3571 = vmatprep.subr.mxu0 0.0
    %3572 = vmatpush1.msra.mxu0 0.0
    %3573 = vmatprep.subr.mxu0 0.0
    %3574 = vmatpush1.msra.mxu0 0.0
    %3575 = vmatprep.subr.mxu0 0.0
    %3576 = vmatpush1.msra.mxu0 0.0
    %3577 = vmatprep.subr.mxu0 0.0
    %3578 = vmatpush1.msra.mxu0 0.0
    %3579 = vmatprep.subr.mxu0 0.0
    %3580 = vmatpush1.msra.mxu0 0.0
    %3581 = vmatprep.subr.mxu0 0.0
    %3582 = vmatpush1.msra.mxu0 0.0
    %3583 = vmatprep.subr.mxu0 0.0
    %3584 = vmatpush1.msra.mxu0 0.0
    %3585 = vmatprep.subr.mxu0 0.0
    %3586 = vmatpush1.msra.mxu0 0.0
    %3587 = vmatprep.subr.mxu0 0.0
    %3588 = vmatpush1.msra.mxu0 0.0
    %3589 = vmatprep.subr.mxu0 0.0
    %3590 = vmatpush1.msra.mxu0 0.0
    %3591 = vmatprep.subr.mxu0 0.0
    %3592 = vmatpush1.msra.mxu0 0.0
    %3593 = vmatprep.subr.mxu0 0.0
    %3594 = vmatpush1.msra.mxu0 0.0
    %3595 = vmatprep.subr.mxu0 0.0
    %3596 = vmatpush1.msra.mxu0 0.0
    %3597 = vmatprep.subr.mxu0 0.0
    %3598 = vmatpush1.msra.mxu0 0.0
    %3599 = vmatprep.subr.mxu0 0.0
    %3600 = vmatpush1.msra.mxu0 0.0
    %3601 = vmatprep.subr.mxu0 0.0
    %3602 = vmatpush1.msra.mxu0 0.0
    %3603 = vmatprep.mubr.f32.mxu0 0.0
    %3604 = vmatmul.mubr.f32.gmra.mrb[0].mxu0 %v1762
    %v3605 = vpop.f32.mrb[0].mxu0
    %v3606 = vadd.f32 %v3535, %v3605
    %v3607 = vpop.f32.mrb[0].mxu0
    %v3608 = vadd.f32 %v3537, %v3607
    %3609 = vdwg.mxu0
    %v3610 = vmax.f32 %v2683, 0.0
    %v3611 = vmax.f32 %v2685, 0.0
    %v3612 = vmax.f32 %v3606, 0.0
    %v3613 = vmax.f32 %v3608, 0.0
    %v3614 = vld [vmem:[%s3] sm:$0xff]
    %v3615 = vld [vmem:[%s3 + $0x8] sm:$0xff]
    %v3616 = vld [vmem:[%s3 + $0x10] sm:$0xff]
    %v3617 = vld [vmem:[%s3 + $0x18] sm:$0xff]
    %v3618 = vld [vmem:[%s3 + $0x20] sm:$0xff]
    %v3619 = vld [vmem:[%s3 + $0x28] sm:$0xff]
    %v3620 = vld [vmem:[%s3 + $0x30] sm:$0xff]
    %v3621 = vld [vmem:[%s3 + $0x38] sm:$0xff]
    %v3622 = vld [vmem:[%s3 + $0x40] sm:$0xff]
    %v3623 = vld [vmem:[%s3 + $0x48] sm:$0xff]
    %v3624 = vld [vmem:[%s3 + $0x50] sm:$0xff]
    %v3625 = vld [vmem:[%s3 + $0x58] sm:$0xff]
    %v3626 = vld [vmem:[%s3 + $0x60] sm:$0xff]
    %v3627 = vld [vmem:[%s3 + $0x68] sm:$0xff]
    %v3628 = vld [vmem:[%s3 + $0x70] sm:$0xff]
    %v3629 = vld [vmem:[%s3 + $0x78] sm:$0xff]
    %v3630 = vld [vmem:[%s3 + $0x80] sm:$0xff]
    %v3631 = vld [vmem:[%s3 + $0x88] sm:$0xff]
    %v3632 = vld [vmem:[%s3 + $0x90] sm:$0xff]
    %v3633 = vld [vmem:[%s3 + $0x98] sm:$0xff]
    %v3634 = vld [vmem:[%s3 + $0xa0] sm:$0xff]
    %v3635 = vld [vmem:[%s3 + $0xa8] sm:$0xff]
    %v3636 = vld [vmem:[%s3 + $0xb0] sm:$0xff]
    %v3637 = vld [vmem:[%s3 + $0xb8] sm:$0xff]
    %v3638 = vld [vmem:[%s3 + $0xc0] sm:$0xff]
    %v3639 = vld [vmem:[%s3 + $0xc8] sm:$0xff]
    %v3640 = vld [vmem:[%s3 + $0xd0] sm:$0xff]
    %v3641 = vld [vmem:[%s3 + $0xd8] sm:$0xff]
    %v3642 = vld [vmem:[%s3 + $0xe0] sm:$0xff]
    %v3643 = vld [vmem:[%s3 + $0xe8] sm:$0xff]
    %v3644 = vld [vmem:[%s3 + $0xf0] sm:$0xff]
    %v3645 = vld [vmem:[%s3 + $0xf8] sm:$0xff]
    %v3646 = vld [vmem:[%s3 + $0x100] sm:$0xff]
    %v3647 = vld [vmem:[%s3 + $0x108] sm:$0xff]
    %v3648 = vld [vmem:[%s3 + $0x110] sm:$0xff]
    %v3649 = vld [vmem:[%s3 + $0x118] sm:$0xff]
    %v3650 = vld [vmem:[%s3 + $0x120] sm:$0xff]
    %v3651 = vld [vmem:[%s3 + $0x128] sm:$0xff]
    %v3652 = vld [vmem:[%s3 + $0x130] sm:$0xff]
    %v3653 = vld [vmem:[%s3 + $0x138] sm:$0xff]
    %v3654 = vld [vmem:[%s3 + $0x140] sm:$0xff]
    %v3655 = vld [vmem:[%s3 + $0x148] sm:$0xff]
    %v3656 = vld [vmem:[%s3 + $0x150] sm:$0xff]
    %v3657 = vld [vmem:[%s3 + $0x158] sm:$0xff]
    %v3658 = vld [vmem:[%s3 + $0x160] sm:$0xff]
    %v3659 = vld [vmem:[%s3 + $0x168] sm:$0xff]
    %v3660 = vld [vmem:[%s3 + $0x170] sm:$0xff]
    %v3661 = vld [vmem:[%s3 + $0x178] sm:$0xff]
    %v3662 = vld [vmem:[%s3 + $0x180] sm:$0xff]
    %v3663 = vld [vmem:[%s3 + $0x188] sm:$0xff]
    %v3664 = vld [vmem:[%s3 + $0x190] sm:$0xff]
    %v3665 = vld [vmem:[%s3 + $0x198] sm:$0xff]
    %v3666 = vld [vmem:[%s3 + $0x1a0] sm:$0xff]
    %v3667 = vld [vmem:[%s3 + $0x1a8] sm:$0xff]
    %v3668 = vld [vmem:[%s3 + $0x1b0] sm:$0xff]
    %v3669 = vld [vmem:[%s3 + $0x1b8] sm:$0xff]
    %v3670 = vld [vmem:[%s3 + $0x1c0] sm:$0xff]
    %v3671 = vld [vmem:[%s3 + $0x1c8] sm:$0xff]
    %v3672 = vld [vmem:[%s3 + $0x1d0] sm:$0xff]
    %v3673 = vld [vmem:[%s3 + $0x1d8] sm:$0xff]
    %v3674 = vld [vmem:[%s3 + $0x1e0] sm:$0xff]
    %v3675 = vld [vmem:[%s3 + $0x1e8] sm:$0xff]
    %v3676 = vld [vmem:[%s3 + $0x1f0] sm:$0xff]
    %v3677 = vld [vmem:[%s3 + $0x1f8] sm:$0xff]
    %v3678 = vld [vmem:[%s4] sm:$0x1]
    %v3680 = vlaneseq
    %v3681 = vshrl.u32 %v3680, 7
    %v3682 = vsub.s32 0, %v3681
    %v3683 = vrot.slane %v3678, %v3682
    %3685 = vmatprep.subr.mxu0 0.0
    %3686 = vmatpush1.msra.mxu0 %v3614
    %3687 = vmatprep.subr.mxu0 0.0
    %3688 = vmatpush1.msra.mxu0 %v3615
    %3689 = vmatprep.subr.mxu0 0.0
    %3690 = vmatpush1.msra.mxu0 %v3616
    %3691 = vmatprep.subr.mxu0 0.0
    %3692 = vmatpush1.msra.mxu0 %v3617
    %3693 = vmatprep.subr.mxu0 0.0
    %3694 = vmatpush1.msra.mxu0 %v3618
    %3695 = vmatprep.subr.mxu0 0.0
    %3696 = vmatpush1.msra.mxu0 %v3619
    %3697 = vmatprep.subr.mxu0 0.0
    %3698 = vmatpush1.msra.mxu0 %v3620
    %3699 = vmatprep.subr.mxu0 0.0
    %3700 = vmatpush1.msra.mxu0 %v3621
    %3701 = vmatprep.subr.mxu0 0.0
    %3702 = vmatpush1.msra.mxu0 %v3622
    %3703 = vmatprep.subr.mxu0 0.0
    %3704 = vmatpush1.msra.mxu0 %v3623
    %3705 = vmatprep.subr.mxu0 0.0
    %3706 = vmatpush1.msra.mxu0 %v3624
    %3707 = vmatprep.subr.mxu0 0.0
    %3708 = vmatpush1.msra.mxu0 %v3625
    %3709 = vmatprep.subr.mxu0 0.0
    %3710 = vmatpush1.msra.mxu0 %v3626
    %3711 = vmatprep.subr.mxu0 0.0
    %3712 = vmatpush1.msra.mxu0 %v3627
    %3713 = vmatprep.subr.mxu0 0.0
    %3714 = vmatpush1.msra.mxu0 %v3628
    %3715 = vmatprep.subr.mxu0 0.0
    %3716 = vmatpush1.msra.mxu0 %v3629
    %3717 = vmatprep.subr.mxu0 0.0
    %3718 = vmatpush1.msra.mxu0 %v3630
    %3719 = vmatprep.subr.mxu0 0.0
    %3720 = vmatpush1.msra.mxu0 %v3631
    %3721 = vmatprep.subr.mxu0 0.0
    %3722 = vmatpush1.msra.mxu0 %v3632
    %3723 = vmatprep.subr.mxu0 0.0
    %3724 = vmatpush1.msra.mxu0 %v3633
    %3725 = vmatprep.subr.mxu0 0.0
    %3726 = vmatpush1.msra.mxu0 %v3634
    %3727 = vmatprep.subr.mxu0 0.0
    %3728 = vmatpush1.msra.mxu0 %v3635
    %3729 = vmatprep.subr.mxu0 0.0
    %3730 = vmatpush1.msra.mxu0 %v3636
    %3731 = vmatprep.subr.mxu0 0.0
    %3732 = vmatpush1.msra.mxu0 %v3637
    %3733 = vmatprep.subr.mxu0 0.0
    %3734 = vmatpush1.msra.mxu0 %v3638
    %3735 = vmatprep.subr.mxu0 0.0
    %3736 = vmatpush1.msra.mxu0 %v3639
    %3737 = vmatprep.subr.mxu0 0.0
    %3738 = vmatpush1.msra.mxu0 %v3640
    %3739 = vmatprep.subr.mxu0 0.0
    %3740 = vmatpush1.msra.mxu0 %v3641
    %3741 = vmatprep.subr.mxu0 0.0
    %3742 = vmatpush1.msra.mxu0 %v3642
    %3743 = vmatprep.subr.mxu0 0.0
    %3744 = vmatpush1.msra.mxu0 %v3643
    %3745 = vmatprep.subr.mxu0 0.0
    %3746 = vmatpush1.msra.mxu0 %v3644
    %3747 = vmatprep.subr.mxu0 0.0
    %3748 = vmatpush1.msra.mxu0 %v3645
    %3749 = vmatprep.mubr.f32.mxu0 %v3611
    %3750 = vmatmul.mubr.f32.gmra.mrb[0].mxu0 %v3610
    %v3751 = vpop.f32.mrb[0].mxu0
    %v3752 = vadd.f32 %v3683, %v3751
    %v3753 = vpop.f32.mrb[0].mxu0
    %3754 = vdwg.mxu0
    %3755 = vmatprep.subr.mxu0 0.0
    %3756 = vmatpush1.msra.mxu0 %v3646
    %3757 = vmatprep.subr.mxu0 0.0
    %3758 = vmatpush1.msra.mxu0 %v3647
    %3759 = vmatprep.subr.mxu0 0.0
    %3760 = vmatpush1.msra.mxu0 %v3648
    %3761 = vmatprep.subr.mxu0 0.0
    %3762 = vmatpush1.msra.mxu0 %v3649
    %3763 = vmatprep.subr.mxu0 0.0
    %3764 = vmatpush1.msra.mxu0 %v3650
    %3765 = vmatprep.subr.mxu0 0.0
    %3766 = vmatpush1.msra.mxu0 %v3651
    %3767 = vmatprep.subr.mxu0 0.0
    %3768 = vmatpush1.msra.mxu0 %v3652
    %3769 = vmatprep.subr.mxu0 0.0
    %3770 = vmatpush1.msra.mxu0 %v3653
    %3771 = vmatprep.subr.mxu0 0.0
    %3772 = vmatpush1.msra.mxu0 %v3654
    %3773 = vmatprep.subr.mxu0 0.0
    %3774 = vmatpush1.msra.mxu0 %v3655
    %3775 = vmatprep.subr.mxu0 0.0
    %3776 = vmatpush1.msra.mxu0 %v3656
    %3777 = vmatprep.subr.mxu0 0.0
    %3778 = vmatpush1.msra.mxu0 %v3657
    %3779 = vmatprep.subr.mxu0 0.0
    %3780 = vmatpush1.msra.mxu0 %v3658
    %3781 = vmatprep.subr.mxu0 0.0
    %3782 = vmatpush1.msra.mxu0 %v3659
    %3783 = vmatprep.subr.mxu0 0.0
    %3784 = vmatpush1.msra.mxu0 %v3660
    %3785 = vmatprep.subr.mxu0 0.0
    %3786 = vmatpush1.msra.mxu0 %v3661
    %3787 = vmatprep.subr.mxu0 0.0
    %3788 = vmatpush1.msra.mxu0 %v3662
    %3789 = vmatprep.subr.mxu0 0.0
    %3790 = vmatpush1.msra.mxu0 %v3663
    %3791 = vmatprep.subr.mxu0 0.0
    %3792 = vmatpush1.msra.mxu0 %v3664
    %3793 = vmatprep.subr.mxu0 0.0
    %3794 = vmatpush1.msra.mxu0 %v3665
    %3795 = vmatprep.subr.mxu0 0.0
    %3796 = vmatpush1.msra.mxu0 %v3666
    %3797 = vmatprep.subr.mxu0 0.0
    %3798 = vmatpush1.msra.mxu0 %v3667
    %3799 = vmatprep.subr.mxu0 0.0
    %3800 = vmatpush1.msra.mxu0 %v3668
    %3801 = vmatprep.subr.mxu0 0.0
    %3802 = vmatpush1.msra.mxu0 %v3669
    %3803 = vmatprep.subr.mxu0 0.0
    %3804 = vmatpush1.msra.mxu0 %v3670
    %3805 = vmatprep.subr.mxu0 0.0
    %3806 = vmatpush1.msra.mxu0 %v3671
    %3807 = vmatprep.subr.mxu0 0.0
    %3808 = vmatpush1.msra.mxu0 %v3672
    %3809 = vmatprep.subr.mxu0 0.0
    %3810 = vmatpush1.msra.mxu0 %v3673
    %3811 = vmatprep.subr.mxu0 0.0
    %3812 = vmatpush1.msra.mxu0 %v3674
    %3813 = vmatprep.subr.mxu0 0.0
    %3814 = vmatpush1.msra.mxu0 %v3675
    %3815 = vmatprep.subr.mxu0 0.0
    %3816 = vmatpush1.msra.mxu0 %v3676
    %3817 = vmatprep.subr.mxu0 0.0
    %3818 = vmatpush1.msra.mxu0 %v3677
    %3819 = vmatprep.mubr.f32.mxu0 %v3613
    %3820 = vmatmul.mubr.f32.gmra.mrb[0].mxu0 %v3612
    %v3821 = vpop.f32.mrb[0].mxu0
    %v3822 = vadd.f32 %v3752, %v3821
    %v3823 = vpop.f32.mrb[0].mxu0
    %3824 = vdwg.mxu0
    %v3825 = vld [vmem:[%s5] sm:$0x3]
    %3827 = vset.pattern.permute.xlu0 0
    %3828 = vperm.xlu0 %3827, %v3825
    %v3829 = vpop.permute.xlu0 %3828
    %v3831 = vmul.f32 %v3829, %v3822
    %v3832 = vadd.f32 %v3831, 0.0
    %3833 = vset.pattern.permute.xlu0 1
    %3834 = vperm.xlu0 %3833, %v3825
    %v3835 = vpop.permute.xlu0 %3834
    %v3837 = vmul.f32 %v3835, %v3822
    %3839 = vrot.lane.b32.xlu0 %v3837, 122
    %v3840 = vpop.permute.xlu0 %3839
    %v3842 = vadd.f32 %v3832, %v3840
    %3843 = vset.pattern.permute.xlu0 2
    %3844 = vperm.xlu0 %3843, %v3825
    %v3845 = vpop.permute.xlu0 %3844
    %v3847 = vmul.f32 %v3845, %v3822
    %3849 = vrot.lane.b32.xlu0 %v3847, 116
    %v3850 = vpop.permute.xlu0 %3849
    %v3852 = vadd.f32 %v3842, %v3850
    %3853 = vset.pattern.permute.xlu0 3
    %3854 = vperm.xlu0 %3853, %v3825
    %v3855 = vpop.permute.xlu0 %3854
    %v3857 = vmul.f32 %v3855, %v3822
    %3859 = vrot.lane.b32.xlu0 %v3857, 110
    %v3860 = vpop.permute.xlu0 %3859
    %v3862 = vadd.f32 %v3852, %v3860
    %3863 = vset.pattern.permute.xlu0 4
    %3864 = vperm.xlu0 %3863, %v3825
    %v3865 = vpop.permute.xlu0 %3864
    %v3867 = vmul.f32 %v3865, %v3822
    %3869 = vrot.lane.b32.xlu0 %v3867, 104
    %v3870 = vpop.permute.xlu0 %3869
    %v3872 = vadd.f32 %v3862, %v3870
    %vm3873 = vcmask 41984
    %3874 = vst.msk [vmem:[#allocation2] sm:$0x3] %vm3873, %v3872
    // Predicated region
    $region26: #{conv_q_forward.7} parent=1 // pred_check
      _
    $region27: #{conv_q_forward.7} parent=1 // pred_check_branch
      %3876 = sbr.rel (0) target = $region29
    $region28: #{conv_q_forward.7} parent=1 // pred_region
      %s3878 = ssub.s32 32, 32
      %3879 = vsyncadd [#allocation3], %s3878
      %s3881 = sshll.u32 [#allocation2], 4
      %s3882 = int_to_ptr.vmem [resolvable:$true] %s3881
      %3884 = dma.vmem_to_hbm [thread:$0]  %s3882, 32, %s6, [#allocation3]
    $region29: #{conv_q_forward.7} parent=1 // pred_fallthru
      _
    // Predicated region
    $region30: #{conv_q_forward.7} parent=1 // pred_check
      _
    $region31: #{conv_q_forward.7} parent=1 // pred_check_branch
      %3886 = sbr.rel (0) target = $region33
    $region32: #{conv_q_forward.7} parent=1 // pred_region
      %3887 = dma.done [#allocation3], 32
    $region33: #{conv_q_forward.7} parent=1 // pred_fallthru
      _
    %3888 = vsyncpa [#allocation3], 1

</llo_original>
